<compile_context>
chip_gen: v5e
topology: v5e:2x2
jax: 0.10.0
libtpu: 0.0.40
codegen_flags: <defaults>
</compile_context>

<pallas_src>
import functools

import numpy as np
import jax
import jax.numpy as jnp
from jax.experimental import pallas as pl
from jax.experimental.pallas import tpu as pltpu

OUT_PAD = 128  # lane pad of the 1-wide prediction head (keeps the last matmul lane-dense)


# ------------------------------ fused kernel -------------------------------


def _dlrm_fused_kernel(*refs, n_dense_layers, n_pred_tail):
    f32 = jnp.float32
    it = iter(refs)
    dense_ref = next(it)
    gidx_ref = next(it)
    dense_layers = [(next(it), next(it)) for _ in range(n_dense_layers)]
    emb_ref = next(it)
    sel_d_ref = next(it)
    sel_s_ref = next(it)
    wfold_ref = next(it)
    wdense0_ref = next(it)
    pb0_ref = next(it)
    pred_tail = [(next(it), next(it)) for _ in range(n_pred_tail)]
    o_ref = next(it)

    def matmul(x, w_ref):
        # bf16 (or f32) MXU operands, f32 accumulation.
        return jnp.dot(x.astype(w_ref.dtype), w_ref[...],
                       preferred_element_type=f32)

    # --------------- DenseArch MLP (normalization is identity) -------------
    x = dense_ref[...]
    for li, (w_ref, b_ref) in enumerate(dense_layers):
        x = matmul(x, w_ref) + b_ref[...]
        if li < n_dense_layers - 1:
            x = jnp.maximum(x, 0.0)
    dense_out = x                                            # (TB, Dout) f32

    # ------------ SparseArch: fused multi-hot embedding lookup -------------
    # gidx holds modulus-hashed indices offset into the block-diagonal table;
    # feature row ranges are disjoint, so OR of one-hot masks == their sum.
    tb = dense_out.shape[0]
    n_sparse = gidx_ref.shape[1]
    card_pad = emb_ref.shape[0]
    lane = jax.lax.broadcasted_iota(jnp.int32, (tb, card_pad), 1)
    hot = lane == gidx_ref[:, 0:1]
    for i in range(1, n_sparse):
        hot = jnp.logical_or(hot, lane == gidx_ref[:, i:i + 1])
    # TODO(synk): for production cardinalities (1e5-1e7 rows) replace the
    # one-hot matmul with a scalar-prefetched, double-buffered DMA row gather
    # from HBM tables (memory_space=pl.ANY) so VMEM stays flat on v7x.
    emb = matmul(hot, emb_ref)                               # (TB, sum(E)) f32

    # ------- 'dot' interaction with triu folded into pred layer 0 ----------
    # One fused wide selector per input builds both halves in 2 MXU calls:
    #   ab[:, :FFp][b, i*F+j] = c_i      ab[:, FFp:][b, i*F+j] = c_j
    # FFp is padded to a multiple of 128 so a/b/flat are lane-dense.
    ffp = wfold_ref.shape[0]
    ab = matmul(dense_out, sel_d_ref) + matmul(emb, sel_s_ref)   # (TB, 2*FFp)
    # TODO(synk): the c_j (tile) half can instead be built with an XLU
    # lane-periodic copy of concat to halve the selector matmul FLOPs.
    flat = ab[:, :ffp] * ab[:, ffp:]                         # (TB, FFp) f32

    # first prediction layer == [triu(dot), dense_out] @ W0 + b0
    h = (matmul(flat, wfold_ref)
         + matmul(dense_out, wdense0_ref) + pb0_ref[...])
    h = jnp.maximum(h, 0.0)

    # -------------------- remaining prediction MLP layers ------------------
    for li, (w_ref, b_ref) in enumerate(pred_tail):
        h = matmul(h, w_ref) + b_ref[...]
        if li < n_pred_tail - 1:
            h = jnp.maximum(h, 0.0)

    # h: (TB, OUT_PAD), column 0 is the logit.  Transpose (XLU, off the VALU/
    # MXU slots) so the only HBM store is a small lane-dense (1, TB) row.
    logit_row = jnp.transpose(h)[0:1, :]                     # (1, TB)
    o_ref[...] = logit_row.reshape(o_ref.shape).astype(o_ref.dtype)


# ------------------------------ host wrapper --------------------------------


def _pick_tile_b(B):
    # Largest tile up to 256 that keeps >= 2 grid steps (v7x megacore) and
    # divides B; fall back to a single step for tiny batches.
    for t in (256, 128, 64, 32, 16, 8):
        if B % t == 0 and B // t >= 2:
            return t
    return B


def _pick_vmem_limit_bytes():
    # ~96 MiB on v5e/v6e (128 MiB physical), ~48 MiB on v7x (64 MiB physical).
    try:
        cap = int(pltpu.get_tpu_info().vmem_capacity_bytes)
    except Exception:
        return 48 * 1024 * 1024
    return int(min(cap * 3 // 4, 96 * 1024 * 1024))


def dlrm_forward(params, dense_features, sparse_features, *,
                 tile_b=None, single_buffer_weights=True):
    """Fused DLRM forward; returns (B,) logits (no sigmoid, as in the module)."""
    B, d_in = dense_features.shape
    if tile_b is None:
        tile_b = _pick_tile_b(B)
    tile_b = min(tile_b, B)
    assert B % tile_b == 0 and tile_b % 8 == 0, (B, tile_b)
    num_tiles = B // tile_b

    # Modulus hash + offset into the fused block-diagonal embedding table
    # (single vectorized integer op; feeds the kernel directly).
    # NOTE: assumes non-negative int32 ids that don't overflow on +1, matching
    # the reference semantics for the ids used here.
    gidx = ((sparse_features.astype(jnp.int32) + 1) % params["cards_arr"]
            + params["row_offsets_arr"]).astype(jnp.int32)

    weight_args = []
    for w, b in zip(params["k_dense_w"], params["k_dense_b"]):
        weight_args += [w, b]
    weight_args += [
        params["k_emb_block"], params["k_sel_d"], params["k_sel_s"],
        params["k_w_fold"], params["k_w_dense0"], params["k_pred_b0"],
    ]
    for w, b in zip(params["k_tail_w"], params["k_tail_b"]):
        weight_args += [w, b]

    def batch_spec(feat):
        return pl.BlockSpec((tile_b, feat), lambda bi: (bi, 0))

    def resident_spec(arr):
        # Constant index_map: weight is DMA'd once and stays VMEM-resident.
        if single_buffer_weights:
            return pl.BlockSpec(arr.shape, lambda bi: (0,) * arr.ndim,
                                pipeline_mode=pl.Buffered(1))
        return pl.BlockSpec(arr.shape, lambda bi: (0,) * arr.ndim)

    kernel = functools.partial(
        _dlrm_fused_kernel,
        n_dense_layers=len(params["k_dense_w"]),
        n_pred_tail=len(params["k_tail_w"]),
    )

    out = pl.pallas_call(
        kernel,
        out_shape=jax.ShapeDtypeStruct((num_tiles, 1, tile_b), jnp.float32),
        grid_spec=pltpu.PrefetchScalarGridSpec(
            num_scalar_prefetch=0,
            grid=(num_tiles,),
            in_specs=[batch_spec(d_in), batch_spec(gidx.shape[1])]
                     + [resident_spec(w) for w in weight_args],
            out_specs=pl.BlockSpec((1, 1, tile_b), lambda bi: (bi, 0, 0)),
        ),
        compiler_params=pltpu.CompilerParams(
            dimension_semantics=("parallel",),        # shard batch tiles (v7x 2 TCs)
            vmem_limit_bytes=_pick_vmem_limit_bytes(),
        ),
    )(dense_features, gidx, *weight_args)

    return out.reshape(B)


# ------------------------------- parameters ---------------------------------


def _init_mlp(key, input_size, hidden_sizes, output_size):
    sizes = [input_size] + list(hidden_sizes) + [output_size]
    ws, bs = [], []
    for i in range(len(sizes) - 1):
        key, kw, kb = jax.random.split(key, 3)
        ws.append(0.1 * jax.random.normal(kw, (sizes[i], sizes[i + 1]), jnp.float32))
        bs.append(0.1 * jax.random.normal(kb, (1, sizes[i + 1]), jnp.float32))
    return ws, bs, key


def init_dlrm_params(key, dense_feature_count, dense_hidden_sizes, dense_out_size,
                     cardinalities, embedding_sizes, prediction_hidden_sizes,
                     compute_dtype=jnp.bfloat16):
    assert len(prediction_hidden_sizes) >= 1
    dense_w, dense_b, key = _init_mlp(
        key, dense_feature_count, dense_hidden_sizes, dense_out_size)

    emb_tables = []
    for card, e in zip(cardinalities, embedding_sizes):
        key, k = jax.random.split(key)
        emb_tables.append(0.1 * jax.random.normal(k, (card, e), jnp.float32))

    f_dim = dense_out_size + sum(embedding_sizes)
    n_triu = f_dim * (f_dim + 1) // 2                 # triu incl. diagonal (offset=0)
    pred_in = n_triu + dense_out_size                 # concat order: [triu, dense_out]
    pred_w, pred_b, key = _init_mlp(key, pred_in, prediction_hidden_sizes, 1)

    # (a) block-diagonal stacked embedding table; rows padded to mult. of 128
    sum_card = sum(cardinalities)
    card_pad = ((sum_card + 127) // 128) * 128
    tot_e = sum(embedding_sizes)
    emb_block = np.zeros((card_pad, tot_e), np.float32)
    row_offsets, r0, c0 = [], 0, 0
    for tbl, card, e in zip(emb_tables, cardinalities, embedding_sizes):
        emb_block[r0:r0 + card, c0:c0 + e] = np.asarray(tbl)
        row_offsets.append(r0)
        r0 += card
        c0 += e

    # (b) 0/1 selectors; F*F padded to a multiple of 128 lanes and expand|tile
    #     fused horizontally into ONE wide selector per input:
    #       (concat @ expand)[b, i*F+j] = concat[b, i]
    #       (concat @ tile  )[b, i*F+j] = concat[b, j]
    ff = f_dim * f_dim
    ff_pad = ((ff + 127) // 128) * 128
    expand_mat = np.zeros((f_dim, ff_pad), np.float32)
    tile_mat = np.zeros((f_dim, ff_pad), np.float32)
    for i in range(f_dim):
        expand_mat[i, i * f_dim:(i + 1) * f_dim] = 1.0
        tile_mat[i, i:ff:f_dim] = 1.0
    sel = np.concatenate([expand_mat, tile_mat], axis=1)     # (F, 2*ff_pad)
    sel_d, sel_s = sel[:dense_out_size], sel[dense_out_size:]

    # (c) triu gather folded into the first prediction-layer weight
    r_idx, c_idx = np.triu_indices(f_dim)             # row-major, matches torch
    w0 = np.asarray(pred_w[0])                        # (pred_in, H0)
    w_fold = np.zeros((ff_pad, w0.shape[1]), np.float32)
    w_fold[r_idx * f_dim + c_idx, :] = w0[:n_triu, :]
    w_dense0 = w0[n_triu:, :]                         # (dense_out_size, H0)

    # (d) lane-dense padded prediction head (col 0 real; kernel extracts it)
    w_last, b_last = np.asarray(pred_w[-1]), np.asarray(pred_b[-1])
    w_last_pad = np.zeros((w_last.shape[0], OUT_PAD), np.float32)
    w_last_pad[:, :1] = w_last
    b_last_pad = np.zeros((1, OUT_PAD), np.float32)
    b_last_pad[:, :1] = b_last
    tail_w = [np.asarray(w) for w in pred_w[1:-1]] + [w_last_pad]
    tail_b = [np.asarray(b) for b in pred_b[1:-1]] + [b_last_pad]

    cd = compute_dtype
    return {
        # fused-kernel parameters (MXU operands in compute dtype, biases f32)
        "k_dense_w": [jnp.asarray(w, cd) for w in dense_w],
        "k_dense_b": [jnp.asarray(b, jnp.float32) for b in dense_b],
        "k_emb_block": jnp.asarray(emb_block, cd),
        "k_sel_d": jnp.asarray(sel_d, cd),            # 0/1 -> exact in bf16
        "k_sel_s": jnp.asarray(sel_s, cd),
        "k_w_fold": jnp.asarray(w_fold, cd),
        "k_w_dense0": jnp.asarray(w_dense0, cd),
        "k_pred_b0": jnp.asarray(pred_b[0], jnp.float32),
        "k_tail_w": [jnp.asarray(w, cd) for w in tail_w],
        "k_tail_b": [jnp.asarray(b, jnp.float32) for b in tail_b],
        "cards_arr": jnp.asarray(cardinalities, jnp.int32),
        "row_offsets_arr": jnp.asarray(row_offsets, jnp.int32),
        # f32 originals kept for the pure-JAX reference check
        "dense_w": dense_w, "dense_b": dense_b,
        "emb_tables": emb_tables, "cardinalities": list(cardinalities),
        "pred_w": pred_w, "pred_b": pred_b,
    }


# --------------------------- pure-JAX reference ------------------------------


def dlrm_reference(params, dense_features, sparse_features):
    prec = jax.lax.Precision.HIGHEST

    x = dense_features
    nd = len(params["dense_w"])
    for i, (w, b) in enumerate(zip(params["dense_w"], params["dense_b"])):
        x = jnp.dot(x, w, precision=prec) + b
        if i < nd - 1:
            x = jnp.maximum(x, 0.0)
    dense_out = x

    sparse_outs = []
    for i, (tbl, card) in enumerate(zip(params["emb_tables"],
                                        params["cardinalities"])):
        idx = (sparse_features[:, i] + 1) % card
        sparse_outs.append(tbl[idx])

    concat = jnp.concatenate([dense_out] + sparse_outs, axis=-1)
    f_dim = concat.shape[1]
    dot = concat[:, :, None] * concat[:, None, :]
    r_idx, c_idx = np.triu_indices(f_dim)
    triu = dot[:, r_idx, c_idx]
    inter = jnp.concatenate([triu, dense_out], axis=1)

    x = inter
    npred = len(params["pred_w"])
    for i, (w, b) in enumerate(zip(params["pred_w"], params["pred_b"])):
        x = jnp.dot(x, w, precision=prec) + b
        if i < npred - 1:
            x = jnp.maximum(x, 0.0)
    return jnp.squeeze(x, axis=1)


# ----------------------------------- main ------------------------------------


if __name__ == "__main__":
    key = jax.random.PRNGKey(0)

    B = 64
    dense_feature_count = 16
    dense_hidden_sizes = [32, 32]
    dense_out_size = 16
    cardinalities = [100, 50, 30]
    embedding_sizes = [8, 8, 8]
    prediction_hidden_sizes = [64, 32]

    key, kp = jax.random.split(key)
    params = init_dlrm_params(kp, dense_feature_count, dense_hidden_sizes,
                              dense_out_size, cardinalities, embedding_sizes,
                              prediction_hidden_sizes)

    key, kd, ks = jax.random.split(key, 3)
    dense_features = jax.random.normal(kd, (B, dense_feature_count), jnp.float32)
    sparse_features = jax.random.randint(ks, (B, len(cardinalities)), 0, 1000,
                                         dtype=jnp.int32)

    fwd = jax.jit(functools.partial(dlrm_forward, single_buffer_weights=True))
    try:
        out = jax.block_until_ready(fwd(params, dense_features, sparse_features))
    except Exception:
        # Fallback if single-buffered (pl.Buffered(1)) resident weights are not
        # supported by the installed Pallas version; default double buffering.
        fwd = jax.jit(functools.partial(dlrm_forward, single_buffer_weights=False))
        out = jax.block_until_ready(fwd(params, dense_features, sparse_features))
    assert out.shape == (B,)

    ref = dlrm_reference(params, dense_features, sparse_features)
    # Kernel uses bf16 MXU operands with f32 accumulation; the reference is
    # f32 HIGHEST precision, so use a bf16-appropriate tolerance.
    max_err = float(jnp.max(jnp.abs(out - ref)))
    assert jnp.allclose(out, ref, rtol=3e-2, atol=3e-2), max_err
    print("KERNEL_OK")
</pallas_src>

<mosaic_0001>
module attributes {stable_mosaic.version = 11 : i64} {
  func.func @_dlrm_fused_kernel(%arg0: i32, %arg1: memref<32x16xf32, #tpu.memory_space<vmem>>, %arg2: memref<32x3xi32, #tpu.memory_space<vmem>>, %arg3: memref<16x32xbf16, #tpu.memory_space<vmem>>, %arg4: memref<1x32xf32, #tpu.memory_space<vmem>>, %arg5: memref<32x32xbf16, #tpu.memory_space<vmem>>, %arg6: memref<1x32xf32, #tpu.memory_space<vmem>>, %arg7: memref<32x16xbf16, #tpu.memory_space<vmem>>, %arg8: memref<1x16xf32, #tpu.memory_space<vmem>>, %arg9: memref<256x24xbf16, #tpu.memory_space<vmem>>, %arg10: memref<16x3328xbf16, #tpu.memory_space<vmem>>, %arg11: memref<24x3328xbf16, #tpu.memory_space<vmem>>, %arg12: memref<1664x64xbf16, #tpu.memory_space<vmem>>, %arg13: memref<16x64xbf16, #tpu.memory_space<vmem>>, %arg14: memref<1x64xf32, #tpu.memory_space<vmem>>, %arg15: memref<64x32xbf16, #tpu.memory_space<vmem>>, %arg16: memref<1x32xf32, #tpu.memory_space<vmem>>, %arg17: memref<32x128xbf16, #tpu.memory_space<vmem>>, %arg18: memref<1x128xf32, #tpu.memory_space<vmem>>, %arg19: memref<1x1x32xf32, #tpu.memory_space<vmem>>) attributes {dimension_semantics = [#tpu.dimension_semantics<parallel>], iteration_bounds = array<i64: 2>, scalar_prefetch = 0 : i64, scratch_operands = 0 : i64, tpu.core_type = #tpu.core_type<tc>, window_params = [{transform_indices = @transform_0, window_bounds = array<i64: 32, 16>}, {transform_indices = @transform_1, window_bounds = array<i64: 32, 3>}, {pipeline_mode = #tpu.pipeline_mode<synchronous>, transform_indices = @transform_2, window_bounds = array<i64: 16, 32>}, {pipeline_mode = #tpu.pipeline_mode<synchronous>, transform_indices = @transform_3, window_bounds = array<i64: 1, 32>}, {pipeline_mode = #tpu.pipeline_mode<synchronous>, transform_indices = @transform_4, window_bounds = array<i64: 32, 32>}, {pipeline_mode = #tpu.pipeline_mode<synchronous>, transform_indices = @transform_5, window_bounds = array<i64: 1, 32>}, {pipeline_mode = #tpu.pipeline_mode<synchronous>, transform_indices = @transform_6, window_bounds = array<i64: 32, 16>}, {pipeline_mode = #tpu.pipeline_mode<synchronous>, transform_indices = @transform_7, window_bounds = array<i64: 1, 16>}, {pipeline_mode = #tpu.pipeline_mode<synchronous>, transform_indices = @transform_8, window_bounds = array<i64: 256, 24>}, {pipeline_mode = #tpu.pipeline_mode<synchronous>, transform_indices = @transform_9, window_bounds = array<i64: 16, 3328>}, {pipeline_mode = #tpu.pipeline_mode<synchronous>, transform_indices = @transform_10, window_bounds = array<i64: 24, 3328>}, {pipeline_mode = #tpu.pipeline_mode<synchronous>, transform_indices = @transform_11, window_bounds = array<i64: 1664, 64>}, {pipeline_mode = #tpu.pipeline_mode<synchronous>, transform_indices = @transform_12, window_bounds = array<i64: 16, 64>}, {pipeline_mode = #tpu.pipeline_mode<synchronous>, transform_indices = @transform_13, window_bounds = array<i64: 1, 64>}, {pipeline_mode = #tpu.pipeline_mode<synchronous>, transform_indices = @transform_14, window_bounds = array<i64: 64, 32>}, {pipeline_mode = #tpu.pipeline_mode<synchronous>, transform_indices = @transform_15, window_bounds = array<i64: 1, 32>}, {pipeline_mode = #tpu.pipeline_mode<synchronous>, transform_indices = @transform_16, window_bounds = array<i64: 32, 128>}, {pipeline_mode = #tpu.pipeline_mode<synchronous>, transform_indices = @transform_17, window_bounds = array<i64: 1, 128>}, {transform_indices = @transform_18, window_bounds = array<i64: 1, 1, 32>}]} {
    %c0 = arith.constant 0 : index
    %c0_0 = arith.constant 0 : index
    %0 = vector.load %arg1[%c0, %c0_0] : memref<32x16xf32, #tpu.memory_space<vmem>>, vector<32x16xf32>
    %1 = arith.truncf %0 : vector<32x16xf32> to vector<32x16xbf16>
    %c0_1 = arith.constant 0 : index
    %c0_2 = arith.constant 0 : index
    %2 = vector.load %arg3[%c0_1, %c0_2] : memref<16x32xbf16, #tpu.memory_space<vmem>>, vector<16x32xbf16>
    %cst = arith.constant dense<0.000000e+00> : vector<32x32xf32>
    %3 = tpu.matmul %1, %2, %cst {dimension_numbers = #tpu.dot_dimension_numbers<[1], [0], [0], [1], [0, 0, 1, 1], [], []>} : vector<32x16xbf16>, vector<16x32xbf16>, vector<32x32xf32> -> vector<32x32xf32>
    %c0_3 = arith.constant 0 : index
    %c0_4 = arith.constant 0 : index
    %4 = vector.load %arg4[%c0_3, %c0_4] : memref<1x32xf32, #tpu.memory_space<vmem>>, vector<1x32xf32>
    %5 = vector.broadcast %4 : vector<1x32xf32> to vector<32x32xf32>
    %6 = arith.addf %3, %5 : vector<32x32xf32>
    %cst_5 = arith.constant 0.000000e+00 : f32
    %7 = vector.broadcast %cst_5 : f32 to vector<32x32xf32>
    %8 = arith.maximumf %6, %7 : vector<32x32xf32>
    %9 = arith.truncf %8 : vector<32x32xf32> to vector<32x32xbf16>
    %c0_6 = arith.constant 0 : index
    %c0_7 = arith.constant 0 : index
    %10 = vector.load %arg5[%c0_6, %c0_7] : memref<32x32xbf16, #tpu.memory_space<vmem>>, vector<32x32xbf16>
    %cst_8 = arith.constant dense<0.000000e+00> : vector<32x32xf32>
    %11 = tpu.matmul %9, %10, %cst_8 {dimension_numbers = #tpu.dot_dimension_numbers<[1], [0], [0], [1], [0, 0, 1, 1], [], []>} : vector<32x32xbf16>, vector<32x32xbf16>, vector<32x32xf32> -> vector<32x32xf32>
    %c0_9 = arith.constant 0 : index
    %c0_10 = arith.constant 0 : index
    %12 = vector.load %arg6[%c0_9, %c0_10] : memref<1x32xf32, #tpu.memory_space<vmem>>, vector<1x32xf32>
    %13 = vector.broadcast %12 : vector<1x32xf32> to vector<32x32xf32>
    %14 = arith.addf %11, %13 : vector<32x32xf32>
    %cst_11 = arith.constant 0.000000e+00 : f32
    %15 = vector.broadcast %cst_11 : f32 to vector<32x32xf32>
    %16 = arith.maximumf %14, %15 : vector<32x32xf32>
    %17 = arith.truncf %16 : vector<32x32xf32> to vector<32x32xbf16>
    %c0_12 = arith.constant 0 : index
    %c0_13 = arith.constant 0 : index
    %18 = vector.load %arg7[%c0_12, %c0_13] : memref<32x16xbf16, #tpu.memory_space<vmem>>, vector<32x16xbf16>
    %cst_14 = arith.constant dense<0.000000e+00> : vector<32x16xf32>
    %19 = tpu.matmul %17, %18, %cst_14 {dimension_numbers = #tpu.dot_dimension_numbers<[1], [0], [0], [1], [0, 0, 1, 1], [], []>} : vector<32x32xbf16>, vector<32x16xbf16>, vector<32x16xf32> -> vector<32x16xf32>
    %c0_15 = arith.constant 0 : index
    %c0_16 = arith.constant 0 : index
    %20 = vector.load %arg8[%c0_15, %c0_16] : memref<1x16xf32, #tpu.memory_space<vmem>>, vector<1x16xf32>
    %21 = vector.broadcast %20 : vector<1x16xf32> to vector<32x16xf32>
    %22 = arith.addf %19, %21 : vector<32x16xf32>
    %23 = tpu.iota {dimensions = array<i32: 1>} : vector<32x256xi32>
    %c0_17 = arith.constant 0 : index
    %c0_18 = arith.constant 0 : index
    %24 = vector.load %arg2[%c0_17, %c0_18] : memref<32x3xi32, #tpu.memory_space<vmem>>, vector<32x1xi32>
    %25 = vector.broadcast %24 : vector<32x1xi32> to vector<32x256xi32>
    %26 = arith.cmpi eq, %23, %25 : vector<32x256xi32>
    %c0_19 = arith.constant 0 : index
    %c1 = arith.constant 1 : index
    %27 = vector.load %arg2[%c0_19, %c1] : memref<32x3xi32, #tpu.memory_space<vmem>>, vector<32x1xi32>
    %28 = vector.broadcast %27 : vector<32x1xi32> to vector<32x256xi32>
    %29 = arith.cmpi eq, %23, %28 : vector<32x256xi32>
    %30 = arith.ori %26, %29 : vector<32x256xi1>
    %c0_20 = arith.constant 0 : index
    %c2 = arith.constant 2 : index
    %31 = vector.load %arg2[%c0_20, %c2] : memref<32x3xi32, #tpu.memory_space<vmem>>, vector<32x1xi32>
    %32 = vector.broadcast %31 : vector<32x1xi32> to vector<32x256xi32>
    %33 = arith.cmpi eq, %23, %32 : vector<32x256xi32>
    %34 = arith.ori %30, %33 : vector<32x256xi1>
    %35 = arith.extui %34 : vector<32x256xi1> to vector<32x256xi32>
    %36 = arith.sitofp %35 : vector<32x256xi32> to vector<32x256xf32>
    %37 = arith.truncf %36 : vector<32x256xf32> to vector<32x256xbf16>
    %c0_21 = arith.constant 0 : index
    %c0_22 = arith.constant 0 : index
    %38 = vector.load %arg9[%c0_21, %c0_22] : memref<256x24xbf16, #tpu.memory_space<vmem>>, vector<256x24xbf16>
    %cst_23 = arith.constant dense<0.000000e+00> : vector<32x24xf32>
    %39 = tpu.matmul %37, %38, %cst_23 {dimension_numbers = #tpu.dot_dimension_numbers<[1], [0], [0], [1], [0, 0, 1, 1], [], []>} : vector<32x256xbf16>, vector<256x24xbf16>, vector<32x24xf32> -> vector<32x24xf32>
    %40 = arith.truncf %22 : vector<32x16xf32> to vector<32x16xbf16>
    %c0_24 = arith.constant 0 : index
    %c0_25 = arith.constant 0 : index
    %41 = vector.load %arg10[%c0_24, %c0_25] : memref<16x3328xbf16, #tpu.memory_space<vmem>>, vector<16x3328xbf16>
    %cst_26 = arith.constant dense<0.000000e+00> : vector<32x3328xf32>
    %42 = tpu.matmul %40, %41, %cst_26 {dimension_numbers = #tpu.dot_dimension_numbers<[1], [0], [0], [1], [0, 0, 1, 1], [], []>} : vector<32x16xbf16>, vector<16x3328xbf16>, vector<32x3328xf32> -> vector<32x3328xf32>
    %43 = arith.truncf %39 : vector<32x24xf32> to vector<32x24xbf16>
    %c0_27 = arith.constant 0 : index
    %c0_28 = arith.constant 0 : index
    %44 = vector.load %arg11[%c0_27, %c0_28] : memref<24x3328xbf16, #tpu.memory_space<vmem>>, vector<24x3328xbf16>
    %cst_29 = arith.constant dense<0.000000e+00> : vector<32x3328xf32>
    %45 = tpu.matmul %43, %44, %cst_29 {dimension_numbers = #tpu.dot_dimension_numbers<[1], [0], [0], [1], [0, 0, 1, 1], [], []>} : vector<32x24xbf16>, vector<24x3328xbf16>, vector<32x3328xf32> -> vector<32x3328xf32>
    %46 = arith.addf %42, %45 : vector<32x3328xf32>
    %47 = vector.extract_strided_slice %46 {offsets = [0, 0], sizes = [32, 1664], strides = [1, 1]} : vector<32x3328xf32> to vector<32x1664xf32>
    %48 = vector.extract_strided_slice %46 {offsets = [0, 1664], sizes = [32, 1664], strides = [1, 1]} : vector<32x3328xf32> to vector<32x1664xf32>
    %49 = arith.mulf %47, %48 : vector<32x1664xf32>
    %50 = arith.truncf %49 : vector<32x1664xf32> to vector<32x1664xbf16>
    %c0_30 = arith.constant 0 : index
    %c0_31 = arith.constant 0 : index
    %51 = vector.load %arg12[%c0_30, %c0_31] : memref<1664x64xbf16, #tpu.memory_space<vmem>>, vector<1664x64xbf16>
    %cst_32 = arith.constant dense<0.000000e+00> : vector<32x64xf32>
    %52 = tpu.matmul %50, %51, %cst_32 {dimension_numbers = #tpu.dot_dimension_numbers<[1], [0], [0], [1], [0, 0, 1, 1], [], []>} : vector<32x1664xbf16>, vector<1664x64xbf16>, vector<32x64xf32> -> vector<32x64xf32>
    %53 = arith.truncf %22 : vector<32x16xf32> to vector<32x16xbf16>
    %c0_33 = arith.constant 0 : index
    %c0_34 = arith.constant 0 : index
    %54 = vector.load %arg13[%c0_33, %c0_34] : memref<16x64xbf16, #tpu.memory_space<vmem>>, vector<16x64xbf16>
    %cst_35 = arith.constant dense<0.000000e+00> : vector<32x64xf32>
    %55 = tpu.matmul %53, %54, %cst_35 {dimension_numbers = #tpu.dot_dimension_numbers<[1], [0], [0], [1], [0, 0, 1, 1], [], []>} : vector<32x16xbf16>, vector<16x64xbf16>, vector<32x64xf32> -> vector<32x64xf32>
    %56 = arith.addf %52, %55 : vector<32x64xf32>
    %c0_36 = arith.constant 0 : index
    %c0_37 = arith.constant 0 : index
    %57 = vector.load %arg14[%c0_36, %c0_37] : memref<1x64xf32, #tpu.memory_space<vmem>>, vector<1x64xf32>
    %58 = vector.broadcast %57 : vector<1x64xf32> to vector<32x64xf32>
    %59 = arith.addf %56, %58 : vector<32x64xf32>
    %cst_38 = arith.constant 0.000000e+00 : f32
    %60 = vector.broadcast %cst_38 : f32 to vector<32x64xf32>
    %61 = arith.maximumf %59, %60 : vector<32x64xf32>
    %62 = arith.truncf %61 : vector<32x64xf32> to vector<32x64xbf16>
    %c0_39 = arith.constant 0 : index
    %c0_40 = arith.constant 0 : index
    %63 = vector.load %arg15[%c0_39, %c0_40] : memref<64x32xbf16, #tpu.memory_space<vmem>>, vector<64x32xbf16>
    %cst_41 = arith.constant dense<0.000000e+00> : vector<32x32xf32>
    %64 = tpu.matmul %62, %63, %cst_41 {dimension_numbers = #tpu.dot_dimension_numbers<[1], [0], [0], [1], [0, 0, 1, 1], [], []>} : vector<32x64xbf16>, vector<64x32xbf16>, vector<32x32xf32> -> vector<32x32xf32>
    %c0_42 = arith.constant 0 : index
    %c0_43 = arith.constant 0 : index
    %65 = vector.load %arg16[%c0_42, %c0_43] : memref<1x32xf32, #tpu.memory_space<vmem>>, vector<1x32xf32>
    %66 = vector.broadcast %65 : vector<1x32xf32> to vector<32x32xf32>
    %67 = arith.addf %64, %66 : vector<32x32xf32>
    %cst_44 = arith.constant 0.000000e+00 : f32
    %68 = vector.broadcast %cst_44 : f32 to vector<32x32xf32>
    %69 = arith.maximumf %67, %68 : vector<32x32xf32>
    %70 = arith.truncf %69 : vector<32x32xf32> to vector<32x32xbf16>
    %c0_45 = arith.constant 0 : index
    %c0_46 = arith.constant 0 : index
    %71 = vector.load %arg17[%c0_45, %c0_46] : memref<32x128xbf16, #tpu.memory_space<vmem>>, vector<32x128xbf16>
    %cst_47 = arith.constant dense<0.000000e+00> : vector<32x128xf32>
    %72 = tpu.matmul %70, %71, %cst_47 {dimension_numbers = #tpu.dot_dimension_numbers<[1], [0], [0], [1], [0, 0, 1, 1], [], []>} : vector<32x32xbf16>, vector<32x128xbf16>, vector<32x128xf32> -> vector<32x128xf32>
    %c0_48 = arith.constant 0 : index
    %c0_49 = arith.constant 0 : index
    %73 = vector.load %arg18[%c0_48, %c0_49] : memref<1x128xf32, #tpu.memory_space<vmem>>, vector<1x128xf32>
    %74 = vector.broadcast %73 : vector<1x128xf32> to vector<32x128xf32>
    %75 = arith.addf %72, %74 : vector<32x128xf32>
    %76 = tpu.transpose %75, [1, 0] : vector<32x128xf32> -> vector<128x32xf32>
    %77 = vector.extract_strided_slice %76 {offsets = [0, 0], sizes = [1, 32], strides = [1, 1]} : vector<128x32xf32> to vector<1x32xf32>
    %78 = vector.shape_cast %77 : vector<1x32xf32> to vector<1x1x32xf32>
    %c0_50 = arith.constant 0 : index
    %c0_51 = arith.constant 0 : index
    %c0_52 = arith.constant 0 : index
    %79 = vector.load %arg19[%c0_50, %c0_51, %c0_52] : memref<1x1x32xf32, #tpu.memory_space<vmem>>, vector<1x1x32xf32>
    tpu.vector_store %arg19[%c0_50, %c0_51, %c0_52], %78 {strides = array<i32>} : memref<1x1x32xf32, #tpu.memory_space<vmem>>, vector<1x1x32xf32>,
    return
  }
  func.func @transform_0(%arg0: i32) -> (i32, i32) {
    %c0_i32 = arith.constant 0 : i32
    %c0_i32_0 = arith.constant 0 : i32
    return %arg0, %c0_i32 : i32, i32
  }
  func.func @transform_1(%arg0: i32) -> (i32, i32) {
    %c0_i32 = arith.constant 0 : i32
    %c0_i32_0 = arith.constant 0 : i32
    return %arg0, %c0_i32 : i32, i32
  }
  func.func @transform_2(%arg0: i32) -> (i32, i32) {
    %c0_i32 = arith.constant 0 : i32
    %c0_i32_0 = arith.constant 0 : i32
    %c0_i32_1 = arith.constant 0 : i32
    return %c0_i32, %c0_i32_0 : i32, i32
  }
  func.func @transform_3(%arg0: i32) -> (i32, i32) {
    %c0_i32 = arith.constant 0 : i32
    %c0_i32_0 = arith.constant 0 : i32
    %c0_i32_1 = arith.constant 0 : i32
    return %c0_i32, %c0_i32_0 : i32, i32
  }
  func.func @transform_4(%arg0: i32) -> (i32, i32) {
    %c0_i32 = arith.constant 0 : i32
    %c0_i32_0 = arith.constant 0 : i32
    %c0_i32_1 = arith.constant 0 : i32
    return %c0_i32, %c0_i32_0 : i32, i32
  }
  func.func @transform_5(%arg0: i32) -> (i32, i32) {
    %c0_i32 = arith.constant 0 : i32
    %c0_i32_0 = arith.constant 0 : i32
    %c0_i32_1 = arith.constant 0 : i32
    return %c0_i32, %c0_i32_0 : i32, i32
  }
  func.func @transform_6(%arg0: i32) -> (i32, i32) {
    %c0_i32 = arith.constant 0 : i32
    %c0_i32_0 = arith.constant 0 : i32
    %c0_i32_1 = arith.constant 0 : i32
    return %c0_i32, %c0_i32_0 : i32, i32
  }
  func.func @transform_7(%arg0: i32) -> (i32, i32) {
    %c0_i32 = arith.constant 0 : i32
    %c0_i32_0 = arith.constant 0 : i32
    %c0_i32_1 = arith.constant 0 : i32
    return %c0_i32, %c0_i32_0 : i32, i32
  }
  func.func @transform_8(%arg0: i32) -> (i32, i32) {
    %c0_i32 = arith.constant 0 : i32
    %c0_i32_0 = arith.constant 0 : i32
    %c0_i32_1 = arith.constant 0 : i32
    return %c0_i32, %c0_i32_0 : i32, i32
  }
  func.func @transform_9(%arg0: i32) -> (i32, i32) {
    %c0_i32 = arith.constant 0 : i32
    %c0_i32_0 = arith.constant 0 : i32
    %c0_i32_1 = arith.constant 0 : i32
    return %c0_i32, %c0_i32_0 : i32, i32
  }
  func.func @transform_10(%arg0: i32) -> (i32, i32) {
    %c0_i32 = arith.constant 0 : i32
    %c0_i32_0 = arith.constant 0 : i32
    %c0_i32_1 = arith.constant 0 : i32
    return %c0_i32, %c0_i32_0 : i32, i32
  }
  func.func @transform_11(%arg0: i32) -> (i32, i32) {
    %c0_i32 = arith.constant 0 : i32
    %c0_i32_0 = arith.constant 0 : i32
    %c0_i32_1 = arith.constant 0 : i32
    return %c0_i32, %c0_i32_0 : i32, i32
  }
  func.func @transform_12(%arg0: i32) -> (i32, i32) {
    %c0_i32 = arith.constant 0 : i32
    %c0_i32_0 = arith.constant 0 : i32
    %c0_i32_1 = arith.constant 0 : i32
    return %c0_i32, %c0_i32_0 : i32, i32
  }
  func.func @transform_13(%arg0: i32) -> (i32, i32) {
    %c0_i32 = arith.constant 0 : i32
    %c0_i32_0 = arith.constant 0 : i32
    %c0_i32_1 = arith.constant 0 : i32
    return %c0_i32, %c0_i32_0 : i32, i32
  }
  func.func @transform_14(%arg0: i32) -> (i32, i32) {
    %c0_i32 = arith.constant 0 : i32
    %c0_i32_0 = arith.constant 0 : i32
    %c0_i32_1 = arith.constant 0 : i32
    return %c0_i32, %c0_i32_0 : i32, i32
  }
  func.func @transform_15(%arg0: i32) -> (i32, i32) {
    %c0_i32 = arith.constant 0 : i32
    %c0_i32_0 = arith.constant 0 : i32
    %c0_i32_1 = arith.constant 0 : i32
    return %c0_i32, %c0_i32_0 : i32, i32
  }
  func.func @transform_16(%arg0: i32) -> (i32, i32) {
    %c0_i32 = arith.constant 0 : i32
    %c0_i32_0 = arith.constant 0 : i32
    %c0_i32_1 = arith.constant 0 : i32
    return %c0_i32, %c0_i32_0 : i32, i32
  }
  func.func @transform_17(%arg0: i32) -> (i32, i32) {
    %c0_i32 = arith.constant 0 : i32
    %c0_i32_0 = arith.constant 0 : i32
    %c0_i32_1 = arith.constant 0 : i32
    return %c0_i32, %c0_i32_0 : i32, i32
  }
  func.func @transform_18(%arg0: i32) -> (i32, i32, i32) {
    %c0_i32 = arith.constant 0 : i32
    %c0_i32_0 = arith.constant 0 : i32
    %c0_i32_1 = arith.constant 0 : i32
    return %arg0, %c0_i32, %c0_i32_0 : i32, i32, i32
  }
}

module attributes {stable_mosaic.version = 11 : i64} {
  func.func @_dlrm_fused_kernel(%arg0: i32, %arg1: memref<32x16xf32, #tpu.memory_space<vmem>>, %arg2: memref<32x3xi32, #tpu.memory_space<vmem>>, %arg3: memref<16x32xbf16, #tpu.memory_space<vmem>>, %arg4: memref<1x32xf32, #tpu.memory_space<vmem>>, %arg5: memref<32x32xbf16, #tpu.memory_space<vmem>>, %arg6: memref<1x32xf32, #tpu.memory_space<vmem>>, %arg7: memref<32x16xbf16, #tpu.memory_space<vmem>>, %arg8: memref<1x16xf32, #tpu.memory_space<vmem>>, %arg9: memref<256x24xbf16, #tpu.memory_space<vmem>>, %arg10: memref<16x3328xbf16, #tpu.memory_space<vmem>>, %arg11: memref<24x3328xbf16, #tpu.memory_space<vmem>>, %arg12: memref<1664x64xbf16, #tpu.memory_space<vmem>>, %arg13: memref<16x64xbf16, #tpu.memory_space<vmem>>, %arg14: memref<1x64xf32, #tpu.memory_space<vmem>>, %arg15: memref<64x32xbf16, #tpu.memory_space<vmem>>, %arg16: memref<1x32xf32, #tpu.memory_space<vmem>>, %arg17: memref<32x128xbf16, #tpu.memory_space<vmem>>, %arg18: memref<1x128xf32, #tpu.memory_space<vmem>>, %arg19: memref<1x1x32xf32, #tpu.memory_space<vmem>>) attributes {dimension_semantics = [#tpu.dimension_semantics<parallel>], iteration_bounds = array<i64: 2>, scalar_prefetch = 0 : i64, scratch_operands = 0 : i64, tpu.core_type = #tpu.core_type<tc>, window_params = [{transform_indices = @transform_0, window_bounds = array<i64: 32, 16>}, {transform_indices = @transform_1, window_bounds = array<i64: 32, 3>}, {pipeline_mode = #tpu.pipeline_mode<synchronous>, transform_indices = @transform_2, window_bounds = array<i64: 16, 32>}, {pipeline_mode = #tpu.pipeline_mode<synchronous>, transform_indices = @transform_3, window_bounds = array<i64: 1, 32>}, {pipeline_mode = #tpu.pipeline_mode<synchronous>, transform_indices = @transform_4, window_bounds = array<i64: 32, 32>}, {pipeline_mode = #tpu.pipeline_mode<synchronous>, transform_indices = @transform_5, window_bounds = array<i64: 1, 32>}, {pipeline_mode = #tpu.pipeline_mode<synchronous>, transform_indices = @transform_6, window_bounds = array<i64: 32, 16>}, {pipeline_mode = #tpu.pipeline_mode<synchronous>, transform_indices = @transform_7, window_bounds = array<i64: 1, 16>}, {pipeline_mode = #tpu.pipeline_mode<synchronous>, transform_indices = @transform_8, window_bounds = array<i64: 256, 24>}, {pipeline_mode = #tpu.pipeline_mode<synchronous>, transform_indices = @transform_9, window_bounds = array<i64: 16, 3328>}, {pipeline_mode = #tpu.pipeline_mode<synchronous>, transform_indices = @transform_10, window_bounds = array<i64: 24, 3328>}, {pipeline_mode = #tpu.pipeline_mode<synchronous>, transform_indices = @transform_11, window_bounds = array<i64: 1664, 64>}, {pipeline_mode = #tpu.pipeline_mode<synchronous>, transform_indices = @transform_12, window_bounds = array<i64: 16, 64>}, {pipeline_mode = #tpu.pipeline_mode<synchronous>, transform_indices = @transform_13, window_bounds = array<i64: 1, 64>}, {pipeline_mode = #tpu.pipeline_mode<synchronous>, transform_indices = @transform_14, window_bounds = array<i64: 64, 32>}, {pipeline_mode = #tpu.pipeline_mode<synchronous>, transform_indices = @transform_15, window_bounds = array<i64: 1, 32>}, {pipeline_mode = #tpu.pipeline_mode<synchronous>, transform_indices = @transform_16, window_bounds = array<i64: 32, 128>}, {pipeline_mode = #tpu.pipeline_mode<synchronous>, transform_indices = @transform_17, window_bounds = array<i64: 1, 128>}, {transform_indices = @transform_18, window_bounds = array<i64: 1, 1, 32>}]} {
    %c0 = arith.constant 0 : index
    %c0_0 = arith.constant 0 : index
    %0 = vector.load %arg1[%c0, %c0_0] : memref<32x16xf32, #tpu.memory_space<vmem>>, vector<32x16xf32>
    %1 = arith.truncf %0 : vector<32x16xf32> to vector<32x16xbf16>
    %c0_1 = arith.constant 0 : index
    %c0_2 = arith.constant 0 : index
    %2 = vector.load %arg3[%c0_1, %c0_2] : memref<16x32xbf16, #tpu.memory_space<vmem>>, vector<16x32xbf16>
    %cst = arith.constant dense<0.000000e+00> : vector<32x32xf32>
    %3 = tpu.matmul %1, %2, %cst {dimension_numbers = #tpu.dot_dimension_numbers<[1], [0], [0], [1], [0, 0, 1, 1], [], []>} : vector<32x16xbf16>, vector<16x32xbf16>, vector<32x32xf32> -> vector<32x32xf32>
    %c0_3 = arith.constant 0 : index
    %c0_4 = arith.constant 0 : index
    %4 = vector.load %arg4[%c0_3, %c0_4] : memref<1x32xf32, #tpu.memory_space<vmem>>, vector<1x32xf32>
    %5 = vector.broadcast %4 : vector<1x32xf32> to vector<32x32xf32>
    %6 = arith.addf %3, %5 : vector<32x32xf32>
    %cst_5 = arith.constant 0.000000e+00 : f32
    %7 = vector.broadcast %cst_5 : f32 to vector<32x32xf32>
    %8 = arith.maximumf %6, %7 : vector<32x32xf32>
    %9 = arith.truncf %8 : vector<32x32xf32> to vector<32x32xbf16>
    %c0_6 = arith.constant 0 : index
    %c0_7 = arith.constant 0 : index
    %10 = vector.load %arg5[%c0_6, %c0_7] : memref<32x32xbf16, #tpu.memory_space<vmem>>, vector<32x32xbf16>
    %cst_8 = arith.constant dense<0.000000e+00> : vector<32x32xf32>
    %11 = tpu.matmul %9, %10, %cst_8 {dimension_numbers = #tpu.dot_dimension_numbers<[1], [0], [0], [1], [0, 0, 1, 1], [], []>} : vector<32x32xbf16>, vector<32x32xbf16>, vector<32x32xf32> -> vector<32x32xf32>
    %c0_9 = arith.constant 0 : index
    %c0_10 = arith.constant 0 : index
    %12 = vector.load %arg6[%c0_9, %c0_10] : memref<1x32xf32, #tpu.memory_space<vmem>>, vector<1x32xf32>
    %13 = vector.broadcast %12 : vector<1x32xf32> to vector<32x32xf32>
    %14 = arith.addf %11, %13 : vector<32x32xf32>
    %cst_11 = arith.constant 0.000000e+00 : f32
    %15 = vector.broadcast %cst_11 : f32 to vector<32x32xf32>
    %16 = arith.maximumf %14, %15 : vector<32x32xf32>
    %17 = arith.truncf %16 : vector<32x32xf32> to vector<32x32xbf16>
    %c0_12 = arith.constant 0 : index
    %c0_13 = arith.constant 0 : index
    %18 = vector.load %arg7[%c0_12, %c0_13] : memref<32x16xbf16, #tpu.memory_space<vmem>>, vector<32x16xbf16>
    %cst_14 = arith.constant dense<0.000000e+00> : vector<32x16xf32>
    %19 = tpu.matmul %17, %18, %cst_14 {dimension_numbers = #tpu.dot_dimension_numbers<[1], [0], [0], [1], [0, 0, 1, 1], [], []>} : vector<32x32xbf16>, vector<32x16xbf16>, vector<32x16xf32> -> vector<32x16xf32>
    %c0_15 = arith.constant 0 : index
    %c0_16 = arith.constant 0 : index
    %20 = vector.load %arg8[%c0_15, %c0_16] : memref<1x16xf32, #tpu.memory_space<vmem>>, vector<1x16xf32>
    %21 = vector.broadcast %20 : vector<1x16xf32> to vector<32x16xf32>
    %22 = arith.addf %19, %21 : vector<32x16xf32>
    %23 = tpu.iota {dimensions = array<i32: 1>} : vector<32x256xi32>
    %c0_17 = arith.constant 0 : index
    %c0_18 = arith.constant 0 : index
    %24 = vector.load %arg2[%c0_17, %c0_18] : memref<32x3xi32, #tpu.memory_space<vmem>>, vector<32x1xi32>
    %25 = vector.broadcast %24 : vector<32x1xi32> to vector<32x256xi32>
    %26 = arith.cmpi eq, %23, %25 : vector<32x256xi32>
    %c0_19 = arith.constant 0 : index
    %c1 = arith.constant 1 : index
    %27 = vector.load %arg2[%c0_19, %c1] : memref<32x3xi32, #tpu.memory_space<vmem>>, vector<32x1xi32>
    %28 = vector.broadcast %27 : vector<32x1xi32> to vector<32x256xi32>
    %29 = arith.cmpi eq, %23, %28 : vector<32x256xi32>
    %30 = arith.ori %26, %29 : vector<32x256xi1>
    %c0_20 = arith.constant 0 : index
    %c2 = arith.constant 2 : index
    %31 = vector.load %arg2[%c0_20, %c2] : memref<32x3xi32, #tpu.memory_space<vmem>>, vector<32x1xi32>
    %32 = vector.broadcast %31 : vector<32x1xi32> to vector<32x256xi32>
    %33 = arith.cmpi eq, %23, %32 : vector<32x256xi32>
    %34 = arith.ori %30, %33 : vector<32x256xi1>
    %35 = arith.extui %34 : vector<32x256xi1> to vector<32x256xi32>
    %36 = arith.sitofp %35 : vector<32x256xi32> to vector<32x256xf32>
    %37 = arith.truncf %36 : vector<32x256xf32> to vector<32x256xbf16>
    %c0_21 = arith.constant 0 : index
    %c0_22 = arith.constant 0 : index
    %38 = vector.load %arg9[%c0_21, %c0_22] : memref<256x24xbf16, #tpu.memory_space<vmem>>, vector<256x24xbf16>
    %cst_23 = arith.constant dense<0.000000e+00> : vector<32x24xf32>
    %39 = tpu.matmul %37, %38, %cst_23 {dimension_numbers = #tpu.dot_dimension_numbers<[1], [0], [0], [1], [0, 0, 1, 1], [], []>} : vector<32x256xbf16>, vector<256x24xbf16>, vector<32x24xf32> -> vector<32x24xf32>
    %40 = arith.truncf %22 : vector<32x16xf32> to vector<32x16xbf16>
    %c0_24 = arith.constant 0 : index
    %c0_25 = arith.constant 0 : index
    %41 = vector.load %arg10[%c0_24, %c0_25] : memref<16x3328xbf16, #tpu.memory_space<vmem>>, vector<16x3328xbf16>
    %cst_26 = arith.constant dense<0.000000e+00> : vector<32x3328xf32>
    %42 = tpu.matmul %40, %41, %cst_26 {dimension_numbers = #tpu.dot_dimension_numbers<[1], [0], [0], [1], [0, 0, 1, 1], [], []>} : vector<32x16xbf16>, vector<16x3328xbf16>, vector<32x3328xf32> -> vector<32x3328xf32>
    %43 = arith.truncf %39 : vector<32x24xf32> to vector<32x24xbf16>
    %c0_27 = arith.constant 0 : index
    %c0_28 = arith.constant 0 : index
    %44 = vector.load %arg11[%c0_27, %c0_28] : memref<24x3328xbf16, #tpu.memory_space<vmem>>, vector<24x3328xbf16>
    %cst_29 = arith.constant dense<0.000000e+00> : vector<32x3328xf32>
    %45 = tpu.matmul %43, %44, %cst_29 {dimension_numbers = #tpu.dot_dimension_numbers<[1], [0], [0], [1], [0, 0, 1, 1], [], []>} : vector<32x24xbf16>, vector<24x3328xbf16>, vector<32x3328xf32> -> vector<32x3328xf32>
    %46 = arith.addf %42, %45 : vector<32x3328xf32>
    %47 = vector.extract_strided_slice %46 {offsets = [0, 0], sizes = [32, 1664], strides = [1, 1]} : vector<32x3328xf32> to vector<32x1664xf32>
    %48 = vector.extract_strided_slice %46 {offsets = [0, 1664], sizes = [32, 1664], strides = [1, 1]} : vector<32x3328xf32> to vector<32x1664xf32>
    %49 = arith.mulf %47, %48 : vector<32x1664xf32>
    %50 = arith.truncf %49 : vector<32x1664xf32> to vector<32x1664xbf16>
    %c0_30 = arith.constant 0 : index
    %c0_31 = arith.constant 0 : index
    %51 = vector.load %arg12[%c0_30, %c0_31] : memref<1664x64xbf16, #tpu.memory_space<vmem>>, vector<1664x64xbf16>
    %cst_32 = arith.constant dense<0.000000e+00> : vector<32x64xf32>
    %52 = tpu.matmul %50, %51, %cst_32 {dimension_numbers = #tpu.dot_dimension_numbers<[1], [0], [0], [1], [0, 0, 1, 1], [], []>} : vector<32x1664xbf16>, vector<1664x64xbf16>, vector<32x64xf32> -> vector<32x64xf32>
    %53 = arith.truncf %22 : vector<32x16xf32> to vector<32x16xbf16>
    %c0_33 = arith.constant 0 : index
    %c0_34 = arith.constant 0 : index
    %54 = vector.load %arg13[%c0_33, %c0_34] : memref<16x64xbf16, #tpu.memory_space<vmem>>, vector<16x64xbf16>
    %cst_35 = arith.constant dense<0.000000e+00> : vector<32x64xf32>
    %55 = tpu.matmul %53, %54, %cst_35 {dimension_numbers = #tpu.dot_dimension_numbers<[1], [0], [0], [1], [0, 0, 1, 1], [], []>} : vector<32x16xbf16>, vector<16x64xbf16>, vector<32x64xf32> -> vector<32x64xf32>
    %56 = arith.addf %52, %55 : vector<32x64xf32>
    %c0_36 = arith.constant 0 : index
    %c0_37 = arith.constant 0 : index
    %57 = vector.load %arg14[%c0_36, %c0_37] : memref<1x64xf32, #tpu.memory_space<vmem>>, vector<1x64xf32>
    %58 = vector.broadcast %57 : vector<1x64xf32> to vector<32x64xf32>
    %59 = arith.addf %56, %58 : vector<32x64xf32>
    %cst_38 = arith.constant 0.000000e+00 : f32
    %60 = vector.broadcast %cst_38 : f32 to vector<32x64xf32>
    %61 = arith.maximumf %59, %60 : vector<32x64xf32>
    %62 = arith.truncf %61 : vector<32x64xf32> to vector<32x64xbf16>
    %c0_39 = arith.constant 0 : index
    %c0_40 = arith.constant 0 : index
    %63 = vector.load %arg15[%c0_39, %c0_40] : memref<64x32xbf16, #tpu.memory_space<vmem>>, vector<64x32xbf16>
    %cst_41 = arith.constant dense<0.000000e+00> : vector<32x32xf32>
    %64 = tpu.matmul %62, %63, %cst_41 {dimension_numbers = #tpu.dot_dimension_numbers<[1], [0], [0], [1], [0, 0, 1, 1], [], []>} : vector<32x64xbf16>, vector<64x32xbf16>, vector<32x32xf32> -> vector<32x32xf32>
    %c0_42 = arith.constant 0 : index
    %c0_43 = arith.constant 0 : index
    %65 = vector.load %arg16[%c0_42, %c0_43] : memref<1x32xf32, #tpu.memory_space<vmem>>, vector<1x32xf32>
    %66 = vector.broadcast %65 : vector<1x32xf32> to vector<32x32xf32>
    %67 = arith.addf %64, %66 : vector<32x32xf32>
    %cst_44 = arith.constant 0.000000e+00 : f32
    %68 = vector.broadcast %cst_44 : f32 to vector<32x32xf32>
    %69 = arith.maximumf %67, %68 : vector<32x32xf32>
    %70 = arith.truncf %69 : vector<32x32xf32> to vector<32x32xbf16>
    %c0_45 = arith.constant 0 : index
    %c0_46 = arith.constant 0 : index
    %71 = vector.load %arg17[%c0_45, %c0_46] : memref<32x128xbf16, #tpu.memory_space<vmem>>, vector<32x128xbf16>
    %cst_47 = arith.constant dense<0.000000e+00> : vector<32x128xf32>
    %72 = tpu.matmul %70, %71, %cst_47 {dimension_numbers = #tpu.dot_dimension_numbers<[1], [0], [0], [1], [0, 0, 1, 1], [], []>} : vector<32x32xbf16>, vector<32x128xbf16>, vector<32x128xf32> -> vector<32x128xf32>
    %c0_48 = arith.constant 0 : index
    %c0_49 = arith.constant 0 : index
    %73 = vector.load %arg18[%c0_48, %c0_49] : memref<1x128xf32, #tpu.memory_space<vmem>>, vector<1x128xf32>
    %74 = vector.broadcast %73 : vector<1x128xf32> to vector<32x128xf32>
    %75 = arith.addf %72, %74 : vector<32x128xf32>
    %76 = tpu.transpose %75, [1, 0] : vector<32x128xf32> -> vector<128x32xf32>
    %77 = vector.extract_strided_slice %76 {offsets = [0, 0], sizes = [1, 32], strides = [1, 1]} : vector<128x32xf32> to vector<1x32xf32>
    %78 = vector.shape_cast %77 : vector<1x32xf32> to vector<1x1x32xf32>
    %c0_50 = arith.constant 0 : index
    %c0_51 = arith.constant 0 : index
    %c0_52 = arith.constant 0 : index
    %79 = vector.load %arg19[%c0_50, %c0_51, %c0_52] : memref<1x1x32xf32, #tpu.memory_space<vmem>>, vector<1x1x32xf32>
    tpu.vector_store %arg19[%c0_50, %c0_51, %c0_52], %78 {strides = array<i32>} : memref<1x1x32xf32, #tpu.memory_space<vmem>>, vector<1x1x32xf32>,
    return
  }
  func.func @transform_0(%arg0: i32) -> (i32, i32) {
    %c0_i32 = arith.constant 0 : i32
    %c0_i32_0 = arith.constant 0 : i32
    return %arg0, %c0_i32 : i32, i32
  }
  func.func @transform_1(%arg0: i32) -> (i32, i32) {
    %c0_i32 = arith.constant 0 : i32
    %c0_i32_0 = arith.constant 0 : i32
    return %arg0, %c0_i32 : i32, i32
  }
  func.func @transform_2(%arg0: i32) -> (i32, i32) {
    %c0_i32 = arith.constant 0 : i32
    %c0_i32_0 = arith.constant 0 : i32
    %c0_i32_1 = arith.constant 0 : i32
    return %c0_i32, %c0_i32_0 : i32, i32
  }
  func.func @transform_3(%arg0: i32) -> (i32, i32) {
    %c0_i32 = arith.constant 0 : i32
    %c0_i32_0 = arith.constant 0 : i32
    %c0_i32_1 = arith.constant 0 : i32
    return %c0_i32, %c0_i32_0 : i32, i32
  }
  func.func @transform_4(%arg0: i32) -> (i32, i32) {
    %c0_i32 = arith.constant 0 : i32
    %c0_i32_0 = arith.constant 0 : i32
    %c0_i32_1 = arith.constant 0 : i32
    return %c0_i32, %c0_i32_0 : i32, i32
  }
  func.func @transform_5(%arg0: i32) -> (i32, i32) {
    %c0_i32 = arith.constant 0 : i32
    %c0_i32_0 = arith.constant 0 : i32
    %c0_i32_1 = arith.constant 0 : i32
    return %c0_i32, %c0_i32_0 : i32, i32
  }
  func.func @transform_6(%arg0: i32) -> (i32, i32) {
    %c0_i32 = arith.constant 0 : i32
    %c0_i32_0 = arith.constant 0 : i32
    %c0_i32_1 = arith.constant 0 : i32
    return %c0_i32, %c0_i32_0 : i32, i32
  }
  func.func @transform_7(%arg0: i32) -> (i32, i32) {
    %c0_i32 = arith.constant 0 : i32
    %c0_i32_0 = arith.constant 0 : i32
    %c0_i32_1 = arith.constant 0 : i32
    return %c0_i32, %c0_i32_0 : i32, i32
  }
  func.func @transform_8(%arg0: i32) -> (i32, i32) {
    %c0_i32 = arith.constant 0 : i32
    %c0_i32_0 = arith.constant 0 : i32
    %c0_i32_1 = arith.constant 0 : i32
    return %c0_i32, %c0_i32_0 : i32, i32
  }
  func.func @transform_9(%arg0: i32) -> (i32, i32) {
    %c0_i32 = arith.constant 0 : i32
    %c0_i32_0 = arith.constant 0 : i32
    %c0_i32_1 = arith.constant 0 : i32
    return %c0_i32, %c0_i32_0 : i32, i32
  }
  func.func @transform_10(%arg0: i32) -> (i32, i32) {
    %c0_i32 = arith.constant 0 : i32
    %c0_i32_0 = arith.constant 0 : i32
    %c0_i32_1 = arith.constant 0 : i32
    return %c0_i32, %c0_i32_0 : i32, i32
  }
  func.func @transform_11(%arg0: i32) -> (i32, i32) {
    %c0_i32 = arith.constant 0 : i32
    %c0_i32_0 = arith.constant 0 : i32
    %c0_i32_1 = arith.constant 0 : i32
    return %c0_i32, %c0_i32_0 : i32, i32
  }
  func.func @transform_12(%arg0: i32) -> (i32, i32) {
    %c0_i32 = arith.constant 0 : i32
    %c0_i32_0 = arith.constant 0 : i32
    %c0_i32_1 = arith.constant 0 : i32
    return %c0_i32, %c0_i32_0 : i32, i32
  }
  func.func @transform_13(%arg0: i32) -> (i32, i32) {
    %c0_i32 = arith.constant 0 : i32
    %c0_i32_0 = arith.constant 0 : i32
    %c0_i32_1 = arith.constant 0 : i32
    return %c0_i32, %c0_i32_0 : i32, i32
  }
  func.func @transform_14(%arg0: i32) -> (i32, i32) {
    %c0_i32 = arith.constant 0 : i32
    %c0_i32_0 = arith.constant 0 : i32
    %c0_i32_1 = arith.constant 0 : i32
    return %c0_i32, %c0_i32_0 : i32, i32
  }
  func.func @transform_15(%arg0: i32) -> (i32, i32) {
    %c0_i32 = arith.constant 0 : i32
    %c0_i32_0 = arith.constant 0 : i32
    %c0_i32_1 = arith.constant 0 : i32
    return %c0_i32, %c0_i32_0 : i32, i32
  }
  func.func @transform_16(%arg0: i32) -> (i32, i32) {
    %c0_i32 = arith.constant 0 : i32
    %c0_i32_0 = arith.constant 0 : i32
    %c0_i32_1 = arith.constant 0 : i32
    return %c0_i32, %c0_i32_0 : i32, i32
  }
  func.func @transform_17(%arg0: i32) -> (i32, i32) {
    %c0_i32 = arith.constant 0 : i32
    %c0_i32_0 = arith.constant 0 : i32
    %c0_i32_1 = arith.constant 0 : i32
    return %c0_i32, %c0_i32_0 : i32, i32
  }
  func.func @transform_18(%arg0: i32) -> (i32, i32, i32) {
    %c0_i32 = arith.constant 0 : i32
    %c0_i32_0 = arith.constant 0 : i32
    %c0_i32_1 = arith.constant 0 : i32
    return %arg0, %c0_i32, %c0_i32_0 : i32, i32, i32
  }
}

</mosaic_0001>

<llo_original>
// kernel: dlrm_forward.1
$region0: #{dlrm_forward.1}
  #allocation0 [shape = 'u32[]', space=smem, size = 0x4, offset = 0x4, fixed_abs, tag = 'smem constant byte address 0x4 - core index']
  #allocation1 [shape = 'u32[72,128]{1,0:T(1,128)}', space=vmem, size = 0x9000, scoped, tag = 'internal scratch']
  %s0 = inlined_call_operand.vmem [shape: f32[64,16], index: 0, kind: input, shape index: {}]
  %s1 = inlined_call_operand.vmem [shape: s32[64,3], index: 1, kind: input, shape index: {}]
  %s2 = inlined_call_operand.vmem [shape: bf16[16,32], index: 2, kind: input, shape index: {}]
  %s3 = inlined_call_operand.vmem [shape: f32[1,32], index: 3, kind: input, shape index: {}]
  %s4 = inlined_call_operand.vmem [shape: bf16[32,32], index: 4, kind: input, shape index: {}]
  %s5 = inlined_call_operand.vmem [shape: f32[1,32], index: 5, kind: input, shape index: {}]
  %s6 = inlined_call_operand.vmem [shape: bf16[32,16], index: 6, kind: input, shape index: {}]
  %s7 = inlined_call_operand.vmem [shape: f32[1,16], index: 7, kind: input, shape index: {}]
  %s8 = inlined_call_operand.vmem [shape: bf16[256,24], index: 8, kind: input, shape index: {}]
  %s9 = inlined_call_operand.vmem [shape: bf16[16,3328], index: 9, kind: input, shape index: {}]
  %s10 = inlined_call_operand.vmem [shape: bf16[24,3328], index: 10, kind: input, shape index: {}]
  %s11 = inlined_call_operand.vmem [shape: bf16[1664,64], index: 11, kind: input, shape index: {}]
  %s12 = inlined_call_operand.vmem [shape: bf16[16,64], index: 12, kind: input, shape index: {}]
  %s13 = inlined_call_operand.vmem [shape: f32[1,64], index: 13, kind: input, shape index: {}]
  %s14 = inlined_call_operand.vmem [shape: bf16[64,32], index: 14, kind: input, shape index: {}]
  %s15 = inlined_call_operand.vmem [shape: f32[1,32], index: 15, kind: input, shape index: {}]
  %s16 = inlined_call_operand.vmem [shape: bf16[32,128], index: 16, kind: input, shape index: {}]
  %s17 = inlined_call_operand.vmem [shape: f32[1,128], index: 17, kind: input, shape index: {}]
  %s18 = inlined_call_operand.vmem [shape: f32[2,1,32], index: 18, kind: output, shape index: {}]
  %s19 = sld [smem:[#allocation0]]
  $region105: #{dlrm_forward.1} parent=0
    _
  %s21 = ssub.s32 1, %s19
  %s22 = scalar_select 0, %s21, %s19
  loop: start=0, step=1, limit=4
  $region2: #{dlrm_forward.1} parent=0 // loop_pre_header
    _
  $region3: #{dlrm_forward.1} parent=0 // loop_header
    %s24 = sphi 0, %s28
    %p25 = scmp.ge.s32.totalorder %s24, 4
    %s34 = sphi 0, %s36
    %s37 = sphi 0, %s34
    %s38 = sphi 0, %s37
    %s54 = sphi 0, %s38
    %s60 = sphi 0, %s62
    %s63 = sphi 0, %s60
    %s64 = sphi 0, %s63
    %s80 = sphi 0, %s64
    %s84 = sphi 0, %s84
    %s86 = sphi 0, %s84
    %s87 = sphi 0, %s86
    %s101 = sphi 0, %s87
    %s105 = sphi 0, %s105
    %s107 = sphi 0, %s105
    %s108 = sphi 0, %s107
    %s122 = sphi 0, %s108
    %s126 = sphi 0, %s126
    %s128 = sphi 0, %s126
    %s129 = sphi 0, %s128
    %s143 = sphi 0, %s129
    %s147 = sphi 0, %s147
    %s149 = sphi 0, %s147
    %s150 = sphi 0, %s149
    %s164 = sphi 0, %s150
    %s168 = sphi 0, %s168
    %s170 = sphi 0, %s168
    %s171 = sphi 0, %s170
    %s185 = sphi 0, %s171
    %s189 = sphi 0, %s189
    %s191 = sphi 0, %s189
    %s192 = sphi 0, %s191
    %s206 = sphi 0, %s192
    %s210 = sphi 0, %s210
    %s212 = sphi 0, %s210
    %s213 = sphi 0, %s212
    %s227 = sphi 0, %s213
    %s231 = sphi 0, %s231
    %s233 = sphi 0, %s231
    %s234 = sphi 0, %s233
    %s248 = sphi 0, %s234
    %s252 = sphi 0, %s252
    %s254 = sphi 0, %s252
    %s255 = sphi 0, %s254
    %s269 = sphi 0, %s255
    %s273 = sphi 0, %s273
    %s275 = sphi 0, %s273
    %s276 = sphi 0, %s275
    %s290 = sphi 0, %s276
    %s294 = sphi 0, %s294
    %s296 = sphi 0, %s294
    %s297 = sphi 0, %s296
    %s311 = sphi 0, %s297
    %s315 = sphi 0, %s315
    %s317 = sphi 0, %s315
    %s318 = sphi 0, %s317
    %s332 = sphi 0, %s318
    %s336 = sphi 0, %s336
    %s338 = sphi 0, %s336
    %s339 = sphi 0, %s338
    %s353 = sphi 0, %s339
    %s357 = sphi 0, %s357
    %s359 = sphi 0, %s357
    %s360 = sphi 0, %s359
    %s374 = sphi 0, %s360
    %s378 = sphi 0, %s378
    %s380 = sphi 0, %s378
    %s381 = sphi 0, %s380
    %s395 = sphi 0, %s381
    %s399 = sphi 0, %s399
    %s401 = sphi 0, %s399
    %s402 = sphi 0, %s401
    %s416 = sphi 0, %s402
    %s422 = sphi 0, %s424
    %s425 = sphi 0, %s422
    %s426 = sphi 0, %s425
    %s442 = sphi 0, %s426
  $region4: #{dlrm_forward.1} parent=0 // loop_header_branch
    %27 = sbr.rel (%p25) target = $region8
  $region5: #{dlrm_forward.1} parent=0 // loop_body
    %s29 = ssub.s32 %s24, 1
    %s30 = ssub.s32 %s24, 2
    %s31 = sadd.s32 %s24, 1
    %s32 = ssub.s32 %s24, %s31
    %p33 = scmp.eq.s32.totalorder %s32, 0
    %s35 = sadd.s32 %s34, 1
    %s36 = scalar_select %p33, %s34, %s35
    %p39 = pneg %p33
    %p40 = scmp.eq.s32.totalorder %s24, 1
    %p41 = por %p39, %p40
    %p42 = scmp.ne.s32.totalorder %s34, %s37
    %p43 = scmp.eq.s32.totalorder %s24, 0
    %p44 = por %p42, %p43
    %p45 = scmp.ne.s32.totalorder %s34, %s37
    %p46 = scmp.eq.s32.totalorder %s29, 1
    %p47 = por %p45, %p46
    %p48 = scmp.ne.s32.totalorder %s37, %s38
    %p49 = scmp.eq.s32.totalorder %s29, 0
    %p50 = por %p48, %p49
    %p51 = scmp.ne.s32.totalorder %s37, %s38
    %p52 = scmp.eq.s32.totalorder %s30, 1
    %p53 = por %p51, %p52
    %p55 = scmp.ne.s32.totalorder %s38, %s54
    %p56 = scmp.eq.s32.totalorder %s30, 0
    %p57 = por %p55, %p56
    %s58 = ssub.s32 %s24, %s31
    %p59 = scmp.eq.s32.totalorder %s58, 0
    %s61 = sadd.s32 %s60, 1
    %s62 = scalar_select %p59, %s60, %s61
    %p65 = pneg %p59
    %p66 = scmp.eq.s32.totalorder %s24, 1
    %p67 = por %p65, %p66
    %p68 = scmp.ne.s32.totalorder %s60, %s63
    %p69 = scmp.eq.s32.totalorder %s24, 0
    %p70 = por %p68, %p69
    %p71 = scmp.ne.s32.totalorder %s60, %s63
    %p72 = scmp.eq.s32.totalorder %s29, 1
    %p73 = por %p71, %p72
    %p74 = scmp.ne.s32.totalorder %s63, %s64
    %p75 = scmp.eq.s32.totalorder %s29, 0
    %p76 = por %p74, %p75
    %p77 = scmp.ne.s32.totalorder %s63, %s64
    %p78 = scmp.eq.s32.totalorder %s30, 1
    %p79 = por %p77, %p78
    %p81 = scmp.ne.s32.totalorder %s64, %s80
    %p82 = scmp.eq.s32.totalorder %s30, 0
    %p83 = por %p81, %p82
    %s85 = sadd.s32 %s84, 1
    %p88 = scmp.eq.s32.totalorder %s24, 1
    %p89 = scmp.ne.s32.totalorder %s84, %s86
    %p90 = scmp.eq.s32.totalorder %s24, 0
    %p91 = por %p89, %p90
    %p92 = scmp.ne.s32.totalorder %s84, %s86
    %p93 = scmp.eq.s32.totalorder %s29, 1
    %p94 = por %p92, %p93
    %p95 = scmp.ne.s32.totalorder %s86, %s87
    %p96 = scmp.eq.s32.totalorder %s29, 0
    %p97 = por %p95, %p96
    %p98 = scmp.ne.s32.totalorder %s86, %s87
    %p99 = scmp.eq.s32.totalorder %s30, 1
    %p100 = por %p98, %p99
    %p102 = scmp.ne.s32.totalorder %s87, %s101
    %p103 = scmp.eq.s32.totalorder %s30, 0
    %p104 = por %p102, %p103
    %s106 = sadd.s32 %s105, 1
    %p109 = scmp.eq.s32.totalorder %s24, 1
    %p110 = scmp.ne.s32.totalorder %s105, %s107
    %p111 = scmp.eq.s32.totalorder %s24, 0
    %p112 = por %p110, %p111
    %p113 = scmp.ne.s32.totalorder %s105, %s107
    %p114 = scmp.eq.s32.totalorder %s29, 1
    %p115 = por %p113, %p114
    %p116 = scmp.ne.s32.totalorder %s107, %s108
    %p117 = scmp.eq.s32.totalorder %s29, 0
    %p118 = por %p116, %p117
    %p119 = scmp.ne.s32.totalorder %s107, %s108
    %p120 = scmp.eq.s32.totalorder %s30, 1
    %p121 = por %p119, %p120
    %p123 = scmp.ne.s32.totalorder %s108, %s122
    %p124 = scmp.eq.s32.totalorder %s30, 0
    %p125 = por %p123, %p124
    %s127 = sadd.s32 %s126, 1
    %p130 = scmp.eq.s32.totalorder %s24, 1
    %p131 = scmp.ne.s32.totalorder %s126, %s128
    %p132 = scmp.eq.s32.totalorder %s24, 0
    %p133 = por %p131, %p132
    %p134 = scmp.ne.s32.totalorder %s126, %s128
    %p135 = scmp.eq.s32.totalorder %s29, 1
    %p136 = por %p134, %p135
    %p137 = scmp.ne.s32.totalorder %s128, %s129
    %p138 = scmp.eq.s32.totalorder %s29, 0
    %p139 = por %p137, %p138
    %p140 = scmp.ne.s32.totalorder %s128, %s129
    %p141 = scmp.eq.s32.totalorder %s30, 1
    %p142 = por %p140, %p141
    %p144 = scmp.ne.s32.totalorder %s129, %s143
    %p145 = scmp.eq.s32.totalorder %s30, 0
    %p146 = por %p144, %p145
    %s148 = sadd.s32 %s147, 1
    %p151 = scmp.eq.s32.totalorder %s24, 1
    %p152 = scmp.ne.s32.totalorder %s147, %s149
    %p153 = scmp.eq.s32.totalorder %s24, 0
    %p154 = por %p152, %p153
    %p155 = scmp.ne.s32.totalorder %s147, %s149
    %p156 = scmp.eq.s32.totalorder %s29, 1
    %p157 = por %p155, %p156
    %p158 = scmp.ne.s32.totalorder %s149, %s150
    %p159 = scmp.eq.s32.totalorder %s29, 0
    %p160 = por %p158, %p159
    %p161 = scmp.ne.s32.totalorder %s149, %s150
    %p162 = scmp.eq.s32.totalorder %s30, 1
    %p163 = por %p161, %p162
    %p165 = scmp.ne.s32.totalorder %s150, %s164
    %p166 = scmp.eq.s32.totalorder %s30, 0
    %p167 = por %p165, %p166
    %s169 = sadd.s32 %s168, 1
    %p172 = scmp.eq.s32.totalorder %s24, 1
    %p173 = scmp.ne.s32.totalorder %s168, %s170
    %p174 = scmp.eq.s32.totalorder %s24, 0
    %p175 = por %p173, %p174
    %p176 = scmp.ne.s32.totalorder %s168, %s170
    %p177 = scmp.eq.s32.totalorder %s29, 1
    %p178 = por %p176, %p177
    %p179 = scmp.ne.s32.totalorder %s170, %s171
    %p180 = scmp.eq.s32.totalorder %s29, 0
    %p181 = por %p179, %p180
    %p182 = scmp.ne.s32.totalorder %s170, %s171
    %p183 = scmp.eq.s32.totalorder %s30, 1
    %p184 = por %p182, %p183
    %p186 = scmp.ne.s32.totalorder %s171, %s185
    %p187 = scmp.eq.s32.totalorder %s30, 0
    %p188 = por %p186, %p187
    %s190 = sadd.s32 %s189, 1
    %p193 = scmp.eq.s32.totalorder %s24, 1
    %p194 = scmp.ne.s32.totalorder %s189, %s191
    %p195 = scmp.eq.s32.totalorder %s24, 0
    %p196 = por %p194, %p195
    %p197 = scmp.ne.s32.totalorder %s189, %s191
    %p198 = scmp.eq.s32.totalorder %s29, 1
    %p199 = por %p197, %p198
    %p200 = scmp.ne.s32.totalorder %s191, %s192
    %p201 = scmp.eq.s32.totalorder %s29, 0
    %p202 = por %p200, %p201
    %p203 = scmp.ne.s32.totalorder %s191, %s192
    %p204 = scmp.eq.s32.totalorder %s30, 1
    %p205 = por %p203, %p204
    %p207 = scmp.ne.s32.totalorder %s192, %s206
    %p208 = scmp.eq.s32.totalorder %s30, 0
    %p209 = por %p207, %p208
    %s211 = sadd.s32 %s210, 1
    %p214 = scmp.eq.s32.totalorder %s24, 1
    %p215 = scmp.ne.s32.totalorder %s210, %s212
    %p216 = scmp.eq.s32.totalorder %s24, 0
    %p217 = por %p215, %p216
    %p218 = scmp.ne.s32.totalorder %s210, %s212
    %p219 = scmp.eq.s32.totalorder %s29, 1
    %p220 = por %p218, %p219
    %p221 = scmp.ne.s32.totalorder %s212, %s213
    %p222 = scmp.eq.s32.totalorder %s29, 0
    %p223 = por %p221, %p222
    %p224 = scmp.ne.s32.totalorder %s212, %s213
    %p225 = scmp.eq.s32.totalorder %s30, 1
    %p226 = por %p224, %p225
    %p228 = scmp.ne.s32.totalorder %s213, %s227
    %p229 = scmp.eq.s32.totalorder %s30, 0
    %p230 = por %p228, %p229
    %s232 = sadd.s32 %s231, 1
    %p235 = scmp.eq.s32.totalorder %s24, 1
    %p236 = scmp.ne.s32.totalorder %s231, %s233
    %p237 = scmp.eq.s32.totalorder %s24, 0
    %p238 = por %p236, %p237
    %p239 = scmp.ne.s32.totalorder %s231, %s233
    %p240 = scmp.eq.s32.totalorder %s29, 1
    %p241 = por %p239, %p240
    %p242 = scmp.ne.s32.totalorder %s233, %s234
    %p243 = scmp.eq.s32.totalorder %s29, 0
    %p244 = por %p242, %p243
    %p245 = scmp.ne.s32.totalorder %s233, %s234
    %p246 = scmp.eq.s32.totalorder %s30, 1
    %p247 = por %p245, %p246
    %p249 = scmp.ne.s32.totalorder %s234, %s248
    %p250 = scmp.eq.s32.totalorder %s30, 0
    %p251 = por %p249, %p250
    %s253 = sadd.s32 %s252, 1
    %p256 = scmp.eq.s32.totalorder %s24, 1
    %p257 = scmp.ne.s32.totalorder %s252, %s254
    %p258 = scmp.eq.s32.totalorder %s24, 0
    %p259 = por %p257, %p258
    %p260 = scmp.ne.s32.totalorder %s252, %s254
    %p261 = scmp.eq.s32.totalorder %s29, 1
    %p262 = por %p260, %p261
    %p263 = scmp.ne.s32.totalorder %s254, %s255
    %p264 = scmp.eq.s32.totalorder %s29, 0
    %p265 = por %p263, %p264
    %p266 = scmp.ne.s32.totalorder %s254, %s255
    %p267 = scmp.eq.s32.totalorder %s30, 1
    %p268 = por %p266, %p267
    %p270 = scmp.ne.s32.totalorder %s255, %s269
    %p271 = scmp.eq.s32.totalorder %s30, 0
    %p272 = por %p270, %p271
    %s274 = sadd.s32 %s273, 1
    %p277 = scmp.eq.s32.totalorder %s24, 1
    %p278 = scmp.ne.s32.totalorder %s273, %s275
    %p279 = scmp.eq.s32.totalorder %s24, 0
    %p280 = por %p278, %p279
    %p281 = scmp.ne.s32.totalorder %s273, %s275
    %p282 = scmp.eq.s32.totalorder %s29, 1
    %p283 = por %p281, %p282
    %p284 = scmp.ne.s32.totalorder %s275, %s276
    %p285 = scmp.eq.s32.totalorder %s29, 0
    %p286 = por %p284, %p285
    %p287 = scmp.ne.s32.totalorder %s275, %s276
    %p288 = scmp.eq.s32.totalorder %s30, 1
    %p289 = por %p287, %p288
    %p291 = scmp.ne.s32.totalorder %s276, %s290
    %p292 = scmp.eq.s32.totalorder %s30, 0
    %p293 = por %p291, %p292
    %s295 = sadd.s32 %s294, 1
    %p298 = scmp.eq.s32.totalorder %s24, 1
    %p299 = scmp.ne.s32.totalorder %s294, %s296
    %p300 = scmp.eq.s32.totalorder %s24, 0
    %p301 = por %p299, %p300
    %p302 = scmp.ne.s32.totalorder %s294, %s296
    %p303 = scmp.eq.s32.totalorder %s29, 1
    %p304 = por %p302, %p303
    %p305 = scmp.ne.s32.totalorder %s296, %s297
    %p306 = scmp.eq.s32.totalorder %s29, 0
    %p307 = por %p305, %p306
    %p308 = scmp.ne.s32.totalorder %s296, %s297
    %p309 = scmp.eq.s32.totalorder %s30, 1
    %p310 = por %p308, %p309
    %p312 = scmp.ne.s32.totalorder %s297, %s311
    %p313 = scmp.eq.s32.totalorder %s30, 0
    %p314 = por %p312, %p313
    %s316 = sadd.s32 %s315, 1
    %p319 = scmp.eq.s32.totalorder %s24, 1
    %p320 = scmp.ne.s32.totalorder %s315, %s317
    %p321 = scmp.eq.s32.totalorder %s24, 0
    %p322 = por %p320, %p321
    %p323 = scmp.ne.s32.totalorder %s315, %s317
    %p324 = scmp.eq.s32.totalorder %s29, 1
    %p325 = por %p323, %p324
    %p326 = scmp.ne.s32.totalorder %s317, %s318
    %p327 = scmp.eq.s32.totalorder %s29, 0
    %p328 = por %p326, %p327
    %p329 = scmp.ne.s32.totalorder %s317, %s318
    %p330 = scmp.eq.s32.totalorder %s30, 1
    %p331 = por %p329, %p330
    %p333 = scmp.ne.s32.totalorder %s318, %s332
    %p334 = scmp.eq.s32.totalorder %s30, 0
    %p335 = por %p333, %p334
    %s337 = sadd.s32 %s336, 1
    %p340 = scmp.eq.s32.totalorder %s24, 1
    %p341 = scmp.ne.s32.totalorder %s336, %s338
    %p342 = scmp.eq.s32.totalorder %s24, 0
    %p343 = por %p341, %p342
    %p344 = scmp.ne.s32.totalorder %s336, %s338
    %p345 = scmp.eq.s32.totalorder %s29, 1
    %p346 = por %p344, %p345
    %p347 = scmp.ne.s32.totalorder %s338, %s339
    %p348 = scmp.eq.s32.totalorder %s29, 0
    %p349 = por %p347, %p348
    %p350 = scmp.ne.s32.totalorder %s338, %s339
    %p351 = scmp.eq.s32.totalorder %s30, 1
    %p352 = por %p350, %p351
    %p354 = scmp.ne.s32.totalorder %s339, %s353
    %p355 = scmp.eq.s32.totalorder %s30, 0
    %p356 = por %p354, %p355
    %s358 = sadd.s32 %s357, 1
    %p361 = scmp.eq.s32.totalorder %s24, 1
    %p362 = scmp.ne.s32.totalorder %s357, %s359
    %p363 = scmp.eq.s32.totalorder %s24, 0
    %p364 = por %p362, %p363
    %p365 = scmp.ne.s32.totalorder %s357, %s359
    %p366 = scmp.eq.s32.totalorder %s29, 1
    %p367 = por %p365, %p366
    %p368 = scmp.ne.s32.totalorder %s359, %s360
    %p369 = scmp.eq.s32.totalorder %s29, 0
    %p370 = por %p368, %p369
    %p371 = scmp.ne.s32.totalorder %s359, %s360
    %p372 = scmp.eq.s32.totalorder %s30, 1
    %p373 = por %p371, %p372
    %p375 = scmp.ne.s32.totalorder %s360, %s374
    %p376 = scmp.eq.s32.totalorder %s30, 0
    %p377 = por %p375, %p376
    %s379 = sadd.s32 %s378, 1
    %p382 = scmp.eq.s32.totalorder %s24, 1
    %p383 = scmp.ne.s32.totalorder %s378, %s380
    %p384 = scmp.eq.s32.totalorder %s24, 0
    %p385 = por %p383, %p384
    %p386 = scmp.ne.s32.totalorder %s378, %s380
    %p387 = scmp.eq.s32.totalorder %s29, 1
    %p388 = por %p386, %p387
    %p389 = scmp.ne.s32.totalorder %s380, %s381
    %p390 = scmp.eq.s32.totalorder %s29, 0
    %p391 = por %p389, %p390
    %p392 = scmp.ne.s32.totalorder %s380, %s381
    %p393 = scmp.eq.s32.totalorder %s30, 1
    %p394 = por %p392, %p393
    %p396 = scmp.ne.s32.totalorder %s381, %s395
    %p397 = scmp.eq.s32.totalorder %s30, 0
    %p398 = por %p396, %p397
    %s400 = sadd.s32 %s399, 1
    %p403 = scmp.eq.s32.totalorder %s24, 1
    %p404 = scmp.ne.s32.totalorder %s399, %s401
    %p405 = scmp.eq.s32.totalorder %s24, 0
    %p406 = por %p404, %p405
    %p407 = scmp.ne.s32.totalorder %s399, %s401
    %p408 = scmp.eq.s32.totalorder %s29, 1
    %p409 = por %p407, %p408
    %p410 = scmp.ne.s32.totalorder %s401, %s402
    %p411 = scmp.eq.s32.totalorder %s29, 0
    %p412 = por %p410, %p411
    %p413 = scmp.ne.s32.totalorder %s401, %s402
    %p414 = scmp.eq.s32.totalorder %s30, 1
    %p415 = por %p413, %p414
    %p417 = scmp.ne.s32.totalorder %s402, %s416
    %p418 = scmp.eq.s32.totalorder %s30, 0
    %p419 = por %p417, %p418
    %s420 = ssub.s32 %s24, %s31
    %p421 = scmp.eq.s32.totalorder %s420, 0
    %s423 = sadd.s32 %s422, 1
    %s424 = scalar_select %p421, %s422, %s423
    %p427 = pneg %p421
    %p428 = scmp.eq.s32.totalorder %s24, 1
    %p429 = por %p427, %p428
    %p430 = scmp.ne.s32.totalorder %s422, %s425
    %p431 = scmp.eq.s32.totalorder %s24, 0
    %p432 = por %p430, %p431
    %p433 = scmp.ne.s32.totalorder %s422, %s425
    %p434 = scmp.eq.s32.totalorder %s29, 1
    %p435 = por %p433, %p434
    %p436 = scmp.ne.s32.totalorder %s425, %s426
    %p437 = scmp.eq.s32.totalorder %s29, 0
    %p438 = por %p436, %p437
    %p439 = scmp.ne.s32.totalorder %s425, %s426
    %p440 = scmp.eq.s32.totalorder %s30, 1
    %p441 = por %p439, %p440
    %p443 = scmp.ne.s32.totalorder %s426, %s442
    %p444 = scmp.eq.s32.totalorder %s30, 0
    %p445 = por %p443, %p444
    %p446 = scmp.le.s32.totalorder 1, %s24
    %p447 = scmp.lt.s32.totalorder %s24, 3
    %p448 = pnand %p446, %p447
    %p449 = pneg %p448
    // Predicated region
    $region9: #{dlrm_forward.1} parent=5 // pred_check
      _
    $region10: #{dlrm_forward.1} parent=5 // pred_check_branch
      %451 = sbr.rel (%p448) target = $region12
    $region11: #{dlrm_forward.1} parent=5 // pred_region
      %s452 = ssub.s32 %s24, 1
      // Predicated region
      $region13: #{dlrm_forward.1} parent=11 // pred_check
        %p453 = pneg %p97
      $region14: #{dlrm_forward.1} parent=11 // pred_check_branch
        %455 = sbr.rel (%p453) target = $region16
      $region15: #{dlrm_forward.1} parent=11 // pred_region
        _
      $region16: #{dlrm_forward.1} parent=11 // pred_fallthru
        _
      // Predicated region
      $region17: #{dlrm_forward.1} parent=11 // pred_check
        %p456 = pneg %p118
      $region18: #{dlrm_forward.1} parent=11 // pred_check_branch
        %458 = sbr.rel (%p456) target = $region20
      $region19: #{dlrm_forward.1} parent=11 // pred_region
        _
      $region20: #{dlrm_forward.1} parent=11 // pred_fallthru
        _
      // Predicated region
      $region21: #{dlrm_forward.1} parent=11 // pred_check
        %p459 = pneg %p139
      $region22: #{dlrm_forward.1} parent=11 // pred_check_branch
        %461 = sbr.rel (%p459) target = $region24
      $region23: #{dlrm_forward.1} parent=11 // pred_region
        _
      $region24: #{dlrm_forward.1} parent=11 // pred_fallthru
        _
      // Predicated region
      $region25: #{dlrm_forward.1} parent=11 // pred_check
        %p462 = pneg %p160
      $region26: #{dlrm_forward.1} parent=11 // pred_check_branch
        %464 = sbr.rel (%p462) target = $region28
      $region27: #{dlrm_forward.1} parent=11 // pred_region
        _
      $region28: #{dlrm_forward.1} parent=11 // pred_fallthru
        _
      // Predicated region
      $region29: #{dlrm_forward.1} parent=11 // pred_check
        %p465 = pneg %p181
      $region30: #{dlrm_forward.1} parent=11 // pred_check_branch
        %467 = sbr.rel (%p465) target = $region32
      $region31: #{dlrm_forward.1} parent=11 // pred_region
        _
      $region32: #{dlrm_forward.1} parent=11 // pred_fallthru
        _
      // Predicated region
      $region33: #{dlrm_forward.1} parent=11 // pred_check
        %p468 = pneg %p202
      $region34: #{dlrm_forward.1} parent=11 // pred_check_branch
        %470 = sbr.rel (%p468) target = $region36
      $region35: #{dlrm_forward.1} parent=11 // pred_region
        _
      $region36: #{dlrm_forward.1} parent=11 // pred_fallthru
        _
      // Predicated region
      $region37: #{dlrm_forward.1} parent=11 // pred_check
        %p471 = pneg %p223
      $region38: #{dlrm_forward.1} parent=11 // pred_check_branch
        %473 = sbr.rel (%p471) target = $region40
      $region39: #{dlrm_forward.1} parent=11 // pred_region
        _
      $region40: #{dlrm_forward.1} parent=11 // pred_fallthru
        _
      // Predicated region
      $region41: #{dlrm_forward.1} parent=11 // pred_check
        %p474 = pneg %p244
      $region42: #{dlrm_forward.1} parent=11 // pred_check_branch
        %476 = sbr.rel (%p474) target = $region44
      $region43: #{dlrm_forward.1} parent=11 // pred_region
        _
      $region44: #{dlrm_forward.1} parent=11 // pred_fallthru
        _
      // Predicated region
      $region45: #{dlrm_forward.1} parent=11 // pred_check
        %p477 = pneg %p265
      $region46: #{dlrm_forward.1} parent=11 // pred_check_branch
        %479 = sbr.rel (%p477) target = $region48
      $region47: #{dlrm_forward.1} parent=11 // pred_region
        _
      $region48: #{dlrm_forward.1} parent=11 // pred_fallthru
        _
      // Predicated region
      $region49: #{dlrm_forward.1} parent=11 // pred_check
        %p480 = pneg %p286
      $region50: #{dlrm_forward.1} parent=11 // pred_check_branch
        %482 = sbr.rel (%p480) target = $region52
      $region51: #{dlrm_forward.1} parent=11 // pred_region
        _
      $region52: #{dlrm_forward.1} parent=11 // pred_fallthru
        _
      // Predicated region
      $region53: #{dlrm_forward.1} parent=11 // pred_check
        %p483 = pneg %p307
      $region54: #{dlrm_forward.1} parent=11 // pred_check_branch
        %485 = sbr.rel (%p483) target = $region56
      $region55: #{dlrm_forward.1} parent=11 // pred_region
        _
      $region56: #{dlrm_forward.1} parent=11 // pred_fallthru
        _
      // Predicated region
      $region57: #{dlrm_forward.1} parent=11 // pred_check
        %p486 = pneg %p328
      $region58: #{dlrm_forward.1} parent=11 // pred_check_branch
        %488 = sbr.rel (%p486) target = $region60
      $region59: #{dlrm_forward.1} parent=11 // pred_region
        _
      $region60: #{dlrm_forward.1} parent=11 // pred_fallthru
        _
      // Predicated region
      $region61: #{dlrm_forward.1} parent=11 // pred_check
        %p489 = pneg %p349
      $region62: #{dlrm_forward.1} parent=11 // pred_check_branch
        %491 = sbr.rel (%p489) target = $region64
      $region63: #{dlrm_forward.1} parent=11 // pred_region
        _
      $region64: #{dlrm_forward.1} parent=11 // pred_fallthru
        _
      // Predicated region
      $region65: #{dlrm_forward.1} parent=11 // pred_check
        %p492 = pneg %p370
      $region66: #{dlrm_forward.1} parent=11 // pred_check_branch
        %494 = sbr.rel (%p492) target = $region68
      $region67: #{dlrm_forward.1} parent=11 // pred_region
        _
      $region68: #{dlrm_forward.1} parent=11 // pred_fallthru
        _
      // Predicated region
      $region69: #{dlrm_forward.1} parent=11 // pred_check
        %p495 = pneg %p391
      $region70: #{dlrm_forward.1} parent=11 // pred_check_branch
        %497 = sbr.rel (%p495) target = $region72
      $region71: #{dlrm_forward.1} parent=11 // pred_region
        _
      $region72: #{dlrm_forward.1} parent=11 // pred_fallthru
        _
      // Predicated region
      $region73: #{dlrm_forward.1} parent=11 // pred_check
        %p498 = pneg %p412
      $region74: #{dlrm_forward.1} parent=11 // pred_check_branch
        %500 = sbr.rel (%p498) target = $region76
      $region75: #{dlrm_forward.1} parent=11 // pred_region
        _
      $region76: #{dlrm_forward.1} parent=11 // pred_fallthru
        _
    $region12: #{dlrm_forward.1} parent=5 // pred_fallthru
      _
    %p501 = scmp.lt.s32.totalorder %s24, 2
    // Predicated region
    $region77: #{dlrm_forward.1} parent=5 // pred_check
      %p502 = pneg %p501
    $region78: #{dlrm_forward.1} parent=5 // pred_check_branch
      %504 = sbr.rel (%p502) target = $region80
    $region79: #{dlrm_forward.1} parent=5 // pred_region
      // Predicated region
      $region81: #{dlrm_forward.1} parent=79 // pred_check
        %p505 = pneg %p44
      $region82: #{dlrm_forward.1} parent=79 // pred_check_branch
        %507 = sbr.rel (%p505) target = $region84
      $region83: #{dlrm_forward.1} parent=79 // pred_region
        %s508 = smul.u32 4, %s24
        %p509 = scmp.lt.s32.totalorder %s508, 7
        %s510 = scalar_select %p509, %s508, 7
        %s511 = smul.addr %s510, 8
        %s512 = scalar_lea.vmem %s0, %s511
        %s513 = smul.u32 4, %s24
      $region84: #{dlrm_forward.1} parent=79 // pred_fallthru
        _
      // Predicated region
      $region85: #{dlrm_forward.1} parent=79 // pred_check
        %p514 = pneg %p70
      $region86: #{dlrm_forward.1} parent=79 // pred_check_branch
        %516 = sbr.rel (%p514) target = $region88
      $region87: #{dlrm_forward.1} parent=79 // pred_region
        %s517 = smul.u32 4, %s24
        %p518 = scmp.lt.s32.totalorder %s517, 7
        %s519 = scalar_select %p518, %s517, 7
        %s520 = smul.addr %s519, 8
        %s521 = scalar_lea.vmem %s1, %s520
        %s522 = smul.u32 4, %s24
      $region88: #{dlrm_forward.1} parent=79 // pred_fallthru
        _
    $region80: #{dlrm_forward.1} parent=5 // pred_fallthru
      _
    %p523 = scmp.le.s32.totalorder 1, %s24
    %p524 = scmp.lt.s32.totalorder %s24, 3
    %p525 = pnand %p523, %p524
    %p526 = pneg %p525
    // Predicated region
    $region89: #{dlrm_forward.1} parent=5 // pred_check
      _
    $region90: #{dlrm_forward.1} parent=5 // pred_check_branch
      %528 = sbr.rel (%p525) target = $region92
    $region91: #{dlrm_forward.1} parent=5 // pred_region
      %s529 = ssub.s32 %s24, 1
      %s530 = smul.u32 4, %s29
      %p531 = scmp.lt.s32.totalorder %s530, 7
      %s532 = scalar_select %p531, %s530, 7
      %s533 = smul.addr %s532, 8
      %s534 = scalar_lea.vmem %s0, %s533
      %p535 = pneg %p50
      %p536 = pneg %p47
      %s537 = smul.u32 4, %s29
      %p538 = scmp.lt.s32.totalorder %s537, 7
      %s539 = scalar_select %p538, %s537, 7
      %s540 = smul.addr %s539, 8
      %s541 = scalar_lea.vmem %s1, %s540
      %p542 = pneg %p76
      %p543 = pneg %p73
      %p544 = pneg %p97
      %p545 = pneg %p94
      %p546 = pneg %p118
      %p547 = pneg %p115
      %p548 = pneg %p139
      %p549 = pneg %p136
      %p550 = pneg %p160
      %p551 = pneg %p157
      %p552 = pneg %p181
      %p553 = pneg %p178
      %p554 = pneg %p202
      %p555 = pneg %p199
      %p556 = pneg %p223
      %p557 = pneg %p220
      %p558 = pneg %p244
      %p559 = pneg %p241
      %p560 = pneg %p265
      %p561 = pneg %p262
      %p562 = pneg %p286
      %p563 = pneg %p283
      %p564 = pneg %p307
      %p565 = pneg %p304
      %p566 = pneg %p328
      %p567 = pneg %p325
      %p568 = pneg %p349
      %p569 = pneg %p346
      %p570 = pneg %p370
      %p571 = pneg %p367
      %p572 = pneg %p391
      %p573 = pneg %p388
      %p574 = pneg %p412
      %p575 = pneg %p409
      %p576 = pneg %p438
      %p577 = pneg %p435
      %p578 = scmp.lt.s32.totalorder %s29, 1
      %s579 = scalar_select %p578, %s29, 1
      %s580 = scalar_lea.vmem %s18, %s579
      %s581 = smul.u32 4, %s29
      %p582 = scmp.lt.s32.totalorder %s581, 7
      %s583 = scalar_select %p582, %s581, 7
      %s584 = smul.addr %s583, 8
      %s585 = scalar_lea.vmem %s0, %s584
      %s586 = smul.u32 4, %s29
      %s587 = smul.u32 4, %s29
      %p588 = scmp.lt.s32.totalorder %s587, 7
      %s589 = scalar_select %p588, %s587, 7
      %s590 = smul.addr %s589, 8
      %s591 = scalar_lea.vmem %s1, %s590
      %s592 = smul.u32 4, %s29
      %p593 = scmp.lt.s32.totalorder %s29, 1
      %s594 = scalar_select %p593, %s29, 1
      %s595 = scalar_lea.vmem %s18, %s594
      %v597 = vld [vmem:[%s585] sm:$0xff]
      %v598 = vld [vmem:[%s585 + $0x8] sm:$0xff]
      %v599 = vld [vmem:[%s585 + $0x10] sm:$0xff]
      %v600 = vld [vmem:[%s585 + $0x18] sm:$0xff]
      %v601 = vpack.c.bf16 %v598, %v597
      %v602 = vpack.c.bf16 %v600, %v599
      %v603 = vld [vmem:[%s2] sm:$0xf]
      %v604 = vld [vmem:[%s2 + $0x4] sm:$0xf]
      %v605 = vld [vmem:[%s3] sm:$0x1]
      %v607 = vperm.slane %v605, 0
      %v611 = vunpack.c.l.b16 %v603
      %v612 = vunpack.c.l.b16 %v604
      %v613 = vpack.c.b16 %v612, %v611
      %vm615 = vcmask 130048
      %v617 = vsel %vm615, %v601, 0
      %v620 = vsel %vm615, %v602, 0
      %622 = vmatpush.bf16.msra.mxu0 0
      %623 = vmatpush.bf16.msra.mxu0 0
      %624 = vmatpush.bf16.msra.mxu0 0
      %625 = vmatpush.bf16.msra.mxu0 0
      %626 = vmatpush.bf16.msra.mxu0 0
      %627 = vmatpush.bf16.msra.mxu0 0
      %628 = vmatpush.bf16.msra.mxu0 0
      %629 = vmatpush.bf16.msra.mxu0 %v613
      %630 = vmatmul.bf16.gmra.mxu0 %v617
      %v631 = vpop.f32.mrf.mxu0
      %v632 = vadd.f32 %v607, %v631
      %v633 = vpop.f32.mrf.mxu0
      %v634 = vadd.f32 %v607, %v633
      %635 = vmatmul.bf16.gmra.mxu0 %v620
      %v636 = vpop.f32.mrf.mxu0
      %v637 = vadd.f32 %v607, %v636
      %v638 = vpop.f32.mrf.mxu0
      %v639 = vadd.f32 %v607, %v638
      %640 = vdwg.mxu0
      %v641 = vmax.f32 %v632, 0.0
      %v642 = vmax.f32 %v634, 0.0
      %v643 = vmax.f32 %v637, 0.0
      %v644 = vmax.f32 %v639, 0.0
      %v645 = vpack.c.bf16 %v642, %v641
      %v646 = vpack.c.bf16 %v644, %v643
      %v647 = vld [vmem:[%s4] sm:$0xf]
      %v648 = vld [vmem:[%s4 + $0x4] sm:$0xf]
      %v649 = vld [vmem:[%s4 + $0x8] sm:$0xf]
      %v650 = vld [vmem:[%s4 + $0xc] sm:$0xf]
      %v651 = vld [vmem:[%s5] sm:$0x1]
      %v653 = vperm.slane %v651, 0
      %v659 = vunpack.c.l.b16 %v647
      %v660 = vunpack.c.l.b16 %v648
      %v661 = vunpack.c.l.b16 %v649
      %v662 = vunpack.c.l.b16 %v650
      %v663 = vpack.c.b16 %v660, %v659
      %v664 = vpack.c.b16 %v662, %v661
      %vm667 = vcmask 261120
      %v669 = vsel %vm667, %v645, 0
      %v672 = vsel %vm667, %v646, 0
      %674 = vmatpush.bf16.msra.mxu0 0
      %675 = vmatpush.bf16.msra.mxu0 0
      %676 = vmatpush.bf16.msra.mxu0 0
      %677 = vmatpush.bf16.msra.mxu0 0
      %678 = vmatpush.bf16.msra.mxu0 0
      %679 = vmatpush.bf16.msra.mxu0 0
      %680 = vmatpush.bf16.msra.mxu0 %v664
      %681 = vmatpush.bf16.msra.mxu0 %v663
      %682 = vmatmul.bf16.gmra.mxu0 %v669
      %v683 = vpop.f32.mrf.mxu0
      %v684 = vadd.f32 %v653, %v683
      %v685 = vpop.f32.mrf.mxu0
      %v686 = vadd.f32 %v653, %v685
      %687 = vmatmul.bf16.gmra.mxu0 %v672
      %v688 = vpop.f32.mrf.mxu0
      %v689 = vadd.f32 %v653, %v688
      %v690 = vpop.f32.mrf.mxu0
      %v691 = vadd.f32 %v653, %v690
      %692 = vdwg.mxu0
      %v693 = vmax.f32 %v684, 0.0
      %v694 = vmax.f32 %v686, 0.0
      %v695 = vmax.f32 %v689, 0.0
      %v696 = vmax.f32 %v691, 0.0
      %v697 = vpack.c.bf16 %v694, %v693
      %v698 = vpack.c.bf16 %v696, %v695
      %v699 = vld [vmem:[%s6] sm:$0xf]
      %v700 = vld [vmem:[%s6 + $0x4] sm:$0xf]
      %v701 = vld [vmem:[%s6 + $0x8] sm:$0xf]
      %v702 = vld [vmem:[%s6 + $0xc] sm:$0xf]
      %v703 = vld [vmem:[%s7] sm:$0x1]
      %v705 = vperm.slane %v703, 0
      %v711 = vunpack.c.l.b16 %v699
      %v712 = vunpack.c.l.b16 %v700
      %v713 = vunpack.c.l.b16 %v701
      %v714 = vunpack.c.l.b16 %v702
      %v715 = vpack.c.b16 %v712, %v711
      %v716 = vpack.c.b16 %v714, %v713
      %v720 = vsel %vm667, %v697, 0
      %v723 = vsel %vm667, %v698, 0
      %725 = vmatpush.bf16.msra.mxu0 0
      %726 = vmatpush.bf16.msra.mxu0 0
      %727 = vmatpush.bf16.msra.mxu0 0
      %728 = vmatpush.bf16.msra.mxu0 0
      %729 = vmatpush.bf16.msra.mxu0 0
      %730 = vmatpush.bf16.msra.mxu0 0
      %731 = vmatpush.bf16.msra.mxu0 %v716
      %732 = vmatpush.bf16.msra.mxu0 %v715
      %733 = vmatmul.bf16.gmra.mxu0 %v720
      %v734 = vpop.f32.mrf.mxu0
      %v735 = vadd.f32 %v705, %v734
      %v736 = vpop.f32.mrf.mxu0
      %v737 = vadd.f32 %v705, %v736
      %738 = vmatmul.bf16.gmra.mxu0 %v723
      %v739 = vpop.f32.mrf.mxu0
      %v740 = vadd.f32 %v705, %v739
      %v741 = vpop.f32.mrf.mxu0
      %v742 = vadd.f32 %v705, %v741
      %743 = vdwg.mxu0
      %v744 = vlaneseq
      %v745 = vand.u32 %v744, 127
      %v746 = vadd.s32 %v745, 128
      %v747 = vld [vmem:[%s591] sm:$0xff]
      %v748 = vld [vmem:[%s591 + $0x8] sm:$0xff]
      %v749 = vld [vmem:[%s591 + $0x10] sm:$0xff]
      %v750 = vld [vmem:[%s591 + $0x18] sm:$0xff]
      %751 = vset.pattern.permute.xlu0 0
      %752 = vperm.xlu0 %751, %v747
      %v753 = vpop.permute.xlu0 %752
      %754 = vset.pattern.permute.xlu0 0
      %755 = vperm.xlu0 %754, %v748
      %v756 = vpop.permute.xlu0 %755
      %757 = vset.pattern.permute.xlu0 0
      %758 = vperm.xlu0 %757, %v749
      %v759 = vpop.permute.xlu0 %758
      %760 = vset.pattern.permute.xlu0 0
      %761 = vperm.xlu0 %760, %v750
      %v762 = vpop.permute.xlu0 %761
      %vm763 = vcmp.eq.s32.totalorder %v745, %v753
      %vm764 = vcmp.eq.s32.totalorder %v746, %v753
      %vm765 = vcmp.eq.s32.totalorder %v745, %v756
      %vm766 = vcmp.eq.s32.totalorder %v746, %v756
      %vm767 = vcmp.eq.s32.totalorder %v745, %v759
      %vm768 = vcmp.eq.s32.totalorder %v746, %v759
      %vm769 = vcmp.eq.s32.totalorder %v745, %v762
      %vm770 = vcmp.eq.s32.totalorder %v746, %v762
      %771 = vset.pattern.permute.xlu0 1
      %772 = vperm.xlu0 %771, %v747
      %v773 = vpop.permute.xlu0 %772
      %774 = vset.pattern.permute.xlu0 1
      %775 = vperm.xlu0 %774, %v748
      %v776 = vpop.permute.xlu0 %775
      %777 = vset.pattern.permute.xlu0 1
      %778 = vperm.xlu0 %777, %v749
      %v779 = vpop.permute.xlu0 %778
      %780 = vset.pattern.permute.xlu0 1
      %781 = vperm.xlu0 %780, %v750
      %v782 = vpop.permute.xlu0 %781
      %vm783 = vcmp.eq.s32.totalorder %v745, %v773
      %vm784 = vcmp.eq.s32.totalorder %v746, %v773
      %vm785 = vcmp.eq.s32.totalorder %v745, %v776
      %vm786 = vcmp.eq.s32.totalorder %v746, %v776
      %vm787 = vcmp.eq.s32.totalorder %v745, %v779
      %vm788 = vcmp.eq.s32.totalorder %v746, %v779
      %vm789 = vcmp.eq.s32.totalorder %v745, %v782
      %vm790 = vcmp.eq.s32.totalorder %v746, %v782
      %vm791 = vmor %vm763, %vm783
      %vm792 = vmor %vm764, %vm784
      %vm793 = vmor %vm765, %vm785
      %vm794 = vmor %vm766, %vm786
      %vm795 = vmor %vm767, %vm787
      %vm796 = vmor %vm768, %vm788
      %vm797 = vmor %vm769, %vm789
      %vm798 = vmor %vm770, %vm790
      %799 = vset.pattern.permute.xlu0 2
      %800 = vperm.xlu0 %799, %v747
      %v801 = vpop.permute.xlu0 %800
      %802 = vset.pattern.permute.xlu0 2
      %803 = vperm.xlu0 %802, %v748
      %v804 = vpop.permute.xlu0 %803
      %805 = vset.pattern.permute.xlu0 2
      %806 = vperm.xlu0 %805, %v749
      %v807 = vpop.permute.xlu0 %806
      %808 = vset.pattern.permute.xlu0 2
      %809 = vperm.xlu0 %808, %v750
      %v810 = vpop.permute.xlu0 %809
      %vm811 = vcmp.eq.s32.totalorder %v745, %v801
      %vm812 = vcmp.eq.s32.totalorder %v746, %v801
      %vm813 = vcmp.eq.s32.totalorder %v745, %v804
      %vm814 = vcmp.eq.s32.totalorder %v746, %v804
      %vm815 = vcmp.eq.s32.totalorder %v745, %v807
      %vm816 = vcmp.eq.s32.totalorder %v746, %v807
      %vm817 = vcmp.eq.s32.totalorder %v745, %v810
      %vm818 = vcmp.eq.s32.totalorder %v746, %v810
      %vm819 = vmor %vm791, %vm811
      %vm820 = vmor %vm792, %vm812
      %vm821 = vmor %vm793, %vm813
      %vm822 = vmor %vm794, %vm814
      %vm823 = vmor %vm795, %vm815
      %vm824 = vmor %vm796, %vm816
      %vm825 = vmor %vm797, %vm817
      %vm826 = vmor %vm798, %vm818
      %v827 = vsel %vm819, 1, 0
      %v828 = vsel %vm820, 1, 0
      %v829 = vsel %vm821, 1, 0
      %v830 = vsel %vm822, 1, 0
      %v831 = vsel %vm823, 1, 0
      %v832 = vsel %vm824, 1, 0
      %v833 = vsel %vm825, 1, 0
      %v834 = vsel %vm826, 1, 0
      %v835 = vcvt.s32.f32 %v827
      %v836 = vcvt.s32.f32 %v828
      %v837 = vcvt.s32.f32 %v829
      %v838 = vcvt.s32.f32 %v830
      %v839 = vcvt.s32.f32 %v831
      %v840 = vcvt.s32.f32 %v832
      %v841 = vcvt.s32.f32 %v833
      %v842 = vcvt.s32.f32 %v834
      %v843 = vpack.c.bf16 %v837, %v835
      %v844 = vpack.c.bf16 %v838, %v836
      %v845 = vpack.c.bf16 %v841, %v839
      %v846 = vpack.c.bf16 %v842, %v840
      %v847 = vld [vmem:[%s8] sm:$0xf]
      %v848 = vld [vmem:[%s8 + $0x4] sm:$0xf]
      %v849 = vld [vmem:[%s8 + $0x8] sm:$0xf]
      %v850 = vld [vmem:[%s8 + $0xc] sm:$0xf]
      %v851 = vld [vmem:[%s8 + $0x10] sm:$0xf]
      %v852 = vld [vmem:[%s8 + $0x14] sm:$0xf]
      %v853 = vld [vmem:[%s8 + $0x18] sm:$0xf]
      %v854 = vld [vmem:[%s8 + $0x1c] sm:$0xf]
      %v855 = vld [vmem:[%s8 + $0x20] sm:$0xf]
      %v856 = vld [vmem:[%s8 + $0x24] sm:$0xf]
      %v857 = vld [vmem:[%s8 + $0x28] sm:$0xf]
      %v858 = vld [vmem:[%s8 + $0x2c] sm:$0xf]
      %v859 = vld [vmem:[%s8 + $0x30] sm:$0xf]
      %v860 = vld [vmem:[%s8 + $0x34] sm:$0xf]
      %v861 = vld [vmem:[%s8 + $0x38] sm:$0xf]
      %v862 = vld [vmem:[%s8 + $0x3c] sm:$0xf]
      %v863 = vld [vmem:[%s8 + $0x40] sm:$0xf]
      %v864 = vld [vmem:[%s8 + $0x44] sm:$0xf]
      %v865 = vld [vmem:[%s8 + $0x48] sm:$0xf]
      %v866 = vld [vmem:[%s8 + $0x4c] sm:$0xf]
      %v867 = vld [vmem:[%s8 + $0x50] sm:$0xf]
      %v868 = vld [vmem:[%s8 + $0x54] sm:$0xf]
      %v869 = vld [vmem:[%s8 + $0x58] sm:$0xf]
      %v870 = vld [vmem:[%s8 + $0x5c] sm:$0xf]
      %v871 = vld [vmem:[%s8 + $0x60] sm:$0xf]
      %v872 = vld [vmem:[%s8 + $0x64] sm:$0xf]
      %v873 = vld [vmem:[%s8 + $0x68] sm:$0xf]
      %v874 = vld [vmem:[%s8 + $0x6c] sm:$0xf]
      %v875 = vld [vmem:[%s8 + $0x70] sm:$0xf]
      %v876 = vld [vmem:[%s8 + $0x74] sm:$0xf]
      %v877 = vld [vmem:[%s8 + $0x78] sm:$0xf]
      %v878 = vld [vmem:[%s8 + $0x7c] sm:$0xf]
      %v911 = vunpack.c.l.b16 %v847
      %v912 = vunpack.c.l.b16 %v848
      %v913 = vunpack.c.l.b16 %v849
      %v914 = vunpack.c.l.b16 %v850
      %v915 = vunpack.c.l.b16 %v851
      %v916 = vunpack.c.l.b16 %v852
      %v917 = vunpack.c.l.b16 %v853
      %v918 = vunpack.c.l.b16 %v854
      %v919 = vunpack.c.l.b16 %v855
      %v920 = vunpack.c.l.b16 %v856
      %v921 = vunpack.c.l.b16 %v857
      %v922 = vunpack.c.l.b16 %v858
      %v923 = vunpack.c.l.b16 %v859
      %v924 = vunpack.c.l.b16 %v860
      %v925 = vunpack.c.l.b16 %v861
      %v926 = vunpack.c.l.b16 %v862
      %v927 = vunpack.c.l.b16 %v863
      %v928 = vunpack.c.l.b16 %v864
      %v929 = vunpack.c.l.b16 %v865
      %v930 = vunpack.c.l.b16 %v866
      %v931 = vunpack.c.l.b16 %v867
      %v932 = vunpack.c.l.b16 %v868
      %v933 = vunpack.c.l.b16 %v869
      %v934 = vunpack.c.l.b16 %v870
      %v935 = vunpack.c.l.b16 %v871
      %v936 = vunpack.c.l.b16 %v872
      %v937 = vunpack.c.l.b16 %v873
      %v938 = vunpack.c.l.b16 %v874
      %v939 = vunpack.c.l.b16 %v875
      %v940 = vunpack.c.l.b16 %v876
      %v941 = vunpack.c.l.b16 %v877
      %v942 = vunpack.c.l.b16 %v878
      %v943 = vpack.c.b16 %v912, %v911
      %v944 = vpack.c.b16 %v914, %v913
      %v945 = vpack.c.b16 %v916, %v915
      %v946 = vpack.c.b16 %v918, %v917
      %v947 = vpack.c.b16 %v920, %v919
      %v948 = vpack.c.b16 %v922, %v921
      %v949 = vpack.c.b16 %v924, %v923
      %v950 = vpack.c.b16 %v926, %v925
      %v951 = vpack.c.b16 %v928, %v927
      %v952 = vpack.c.b16 %v930, %v929
      %v953 = vpack.c.b16 %v932, %v931
      %v954 = vpack.c.b16 %v934, %v933
      %v955 = vpack.c.b16 %v936, %v935
      %v956 = vpack.c.b16 %v938, %v937
      %v957 = vpack.c.b16 %v940, %v939
      %v958 = vpack.c.b16 %v942, %v941
      %975 = vmatpush.bf16.msra.mxu0 %v950
      %976 = vmatpush.bf16.msra.mxu0 %v949
      %977 = vmatpush.bf16.msra.mxu0 %v948
      %978 = vmatpush.bf16.msra.mxu0 %v947
      %979 = vmatpush.bf16.msra.mxu0 %v946
      %980 = vmatpush.bf16.msra.mxu0 %v945
      %981 = vmatpush.bf16.msra.mxu0 %v944
      %982 = vmatpush.bf16.msra.mxu0 %v943
      %983 = vmatmul.bf16.gmra.mxu0 %v843
      %v984 = vpop.f32.mrf.mxu0
      %v985 = vadd.f32 0.0, %v984
      %v986 = vpop.f32.mrf.mxu0
      %v987 = vadd.f32 0.0, %v986
      %988 = vmatmul.bf16.gmra.mxu0 %v845
      %v989 = vpop.f32.mrf.mxu0
      %v990 = vadd.f32 0.0, %v989
      %v991 = vpop.f32.mrf.mxu0
      %v992 = vadd.f32 0.0, %v991
      %993 = vdwg.mxu0
      %994 = vmatpush.bf16.msra.mxu0 %v958
      %995 = vmatpush.bf16.msra.mxu0 %v957
      %996 = vmatpush.bf16.msra.mxu0 %v956
      %997 = vmatpush.bf16.msra.mxu0 %v955
      %998 = vmatpush.bf16.msra.mxu0 %v954
      %999 = vmatpush.bf16.msra.mxu0 %v953
      %1000 = vmatpush.bf16.msra.mxu0 %v952
      %1001 = vmatpush.bf16.msra.mxu0 %v951
      %1002 = vmatmul.bf16.gmra.mxu0 %v844
      %v1003 = vpop.f32.mrf.mxu0
      %v1004 = vadd.f32 %v985, %v1003
      %v1005 = vpop.f32.mrf.mxu0
      %v1006 = vadd.f32 %v987, %v1005
      %1007 = vmatmul.bf16.gmra.mxu0 %v846
      %v1008 = vpop.f32.mrf.mxu0
      %v1009 = vadd.f32 %v990, %v1008
      %v1010 = vpop.f32.mrf.mxu0
      %v1011 = vadd.f32 %v992, %v1010
      %1012 = vdwg.mxu0
      %v1013 = vpack.c.bf16 %v737, %v735
      %v1014 = vpack.c.bf16 %v742, %v740
      %v1015 = vld [vmem:[%s9] sm:$0xff]
      %v1016 = vld [vmem:[%s9 + $0x8] sm:$0xff]
      %v1017 = vld [vmem:[%s9 + $0x10] sm:$0xff]
      %v1018 = vld [vmem:[%s9 + $0x18] sm:$0xff]
      %v1019 = vld [vmem:[%s9 + $0x20] sm:$0xff]
      %v1020 = vld [vmem:[%s9 + $0x28] sm:$0xff]
      %v1021 = vld [vmem:[%s9 + $0x30] sm:$0xff]
      %v1022 = vld [vmem:[%s9 + $0x38] sm:$0xff]
      %v1023 = vld [vmem:[%s9 + $0x40] sm:$0xff]
      %v1024 = vld [vmem:[%s9 + $0x48] sm:$0xff]
      %v1025 = vld [vmem:[%s9 + $0x50] sm:$0xff]
      %v1026 = vld [vmem:[%s9 + $0x58] sm:$0xff]
      %v1027 = vld [vmem:[%s9 + $0x60] sm:$0xff]
      %v1028 = vld [vmem:[%s9 + $0x68] sm:$0xff]
      %v1029 = vld [vmem:[%s9 + $0x70] sm:$0xff]
      %v1030 = vld [vmem:[%s9 + $0x78] sm:$0xff]
      %v1031 = vld [vmem:[%s9 + $0x80] sm:$0xff]
      %v1032 = vld [vmem:[%s9 + $0x88] sm:$0xff]
      %v1033 = vld [vmem:[%s9 + $0x90] sm:$0xff]
      %v1034 = vld [vmem:[%s9 + $0x98] sm:$0xff]
      %v1035 = vld [vmem:[%s9 + $0xa0] sm:$0xff]
      %v1036 = vld [vmem:[%s9 + $0xa8] sm:$0xff]
      %v1037 = vld [vmem:[%s9 + $0xb0] sm:$0xff]
      %v1038 = vld [vmem:[%s9 + $0xb8] sm:$0xff]
      %v1039 = vld [vmem:[%s9 + $0xc0] sm:$0xff]
      %v1040 = vld [vmem:[%s9 + $0xc8] sm:$0xff]
      %v1041 = vpack.c.bf16 %v1006, %v1004
      %v1042 = vpack.c.bf16 %v1011, %v1009
      %v1043 = vld [vmem:[%s10] sm:$0xff]
      %v1044 = vld [vmem:[%s10 + $0x8] sm:$0xff]
      %v1045 = vld [vmem:[%s10 + $0x10] sm:$0xff]
      %v1046 = vld [vmem:[%s10 + $0x18] sm:$0xff]
      %v1047 = vld [vmem:[%s10 + $0x20] sm:$0xff]
      %v1048 = vld [vmem:[%s10 + $0x28] sm:$0xff]
      %v1049 = vld [vmem:[%s10 + $0x30] sm:$0xff]
      %v1050 = vld [vmem:[%s10 + $0x38] sm:$0xff]
      %v1051 = vld [vmem:[%s10 + $0x40] sm:$0xff]
      %v1052 = vld [vmem:[%s10 + $0x48] sm:$0xff]
      %v1053 = vld [vmem:[%s10 + $0x50] sm:$0xff]
      %v1054 = vld [vmem:[%s10 + $0x58] sm:$0xff]
      %v1055 = vld [vmem:[%s10 + $0x60] sm:$0xff]
      %v1056 = vld [vmem:[%s10 + $0x68] sm:$0xff]
      %v1057 = vld [vmem:[%s10 + $0x70] sm:$0xff]
      %v1058 = vld [vmem:[%s10 + $0x78] sm:$0xff]
      %v1059 = vld [vmem:[%s10 + $0x80] sm:$0xff]
      %v1060 = vld [vmem:[%s10 + $0x88] sm:$0xff]
      %v1061 = vld [vmem:[%s10 + $0x90] sm:$0xff]
      %v1062 = vld [vmem:[%s10 + $0x98] sm:$0xff]
      %v1063 = vld [vmem:[%s10 + $0xa0] sm:$0xff]
      %v1064 = vld [vmem:[%s10 + $0xa8] sm:$0xff]
      %v1065 = vld [vmem:[%s10 + $0xb0] sm:$0xff]
      %v1066 = vld [vmem:[%s10 + $0xb8] sm:$0xff]
      %v1067 = vld [vmem:[%s10 + $0xc0] sm:$0xff]
      %v1068 = vld [vmem:[%s10 + $0xc8] sm:$0xff]
      %v1069 = vld [vmem:[%s10 + $0xd0] sm:$0xff]
      %v1070 = vld [vmem:[%s10 + $0xd8] sm:$0xff]
      %v1071 = vld [vmem:[%s10 + $0xe0] sm:$0xff]
      %v1072 = vld [vmem:[%s10 + $0xe8] sm:$0xff]
      %v1073 = vld [vmem:[%s10 + $0xf0] sm:$0xff]
      %v1074 = vld [vmem:[%s10 + $0xf8] sm:$0xff]
      %v1075 = vld [vmem:[%s10 + $0x100] sm:$0xff]
      %v1076 = vld [vmem:[%s10 + $0x108] sm:$0xff]
      %v1077 = vld [vmem:[%s10 + $0x110] sm:$0xff]
      %v1078 = vld [vmem:[%s10 + $0x118] sm:$0xff]
      %v1079 = vld [vmem:[%s10 + $0x120] sm:$0xff]
      %v1080 = vld [vmem:[%s10 + $0x128] sm:$0xff]
      %v1081 = vld [vmem:[%s10 + $0x130] sm:$0xff]
      %v1121 = vunpack.c.l.b16 %v1043
      %v1122 = vunpack.c.h.b16 %v1043
      %v1123 = vunpack.c.l.b16 %v1044
      %v1124 = vunpack.c.h.b16 %v1044
      %v1125 = vunpack.c.l.b16 %v1045
      %v1126 = vunpack.c.h.b16 %v1045
      %v1127 = vunpack.c.l.b16 %v1046
      %v1128 = vunpack.c.h.b16 %v1046
      %v1129 = vunpack.c.l.b16 %v1047
      %v1130 = vunpack.c.h.b16 %v1047
      %v1131 = vunpack.c.l.b16 %v1048
      %v1132 = vunpack.c.h.b16 %v1048
      %v1133 = vunpack.c.l.b16 %v1049
      %v1134 = vunpack.c.h.b16 %v1049
      %v1135 = vunpack.c.l.b16 %v1050
      %v1136 = vunpack.c.h.b16 %v1050
      %v1137 = vunpack.c.l.b16 %v1051
      %v1138 = vunpack.c.h.b16 %v1051
      %v1139 = vunpack.c.l.b16 %v1052
      %v1140 = vunpack.c.h.b16 %v1052
      %v1141 = vunpack.c.l.b16 %v1053
      %v1142 = vunpack.c.h.b16 %v1053
      %v1143 = vunpack.c.l.b16 %v1054
      %v1144 = vunpack.c.h.b16 %v1054
      %v1145 = vunpack.c.l.b16 %v1055
      %v1146 = vunpack.c.h.b16 %v1055
      %v1147 = vunpack.c.l.b16 %v1056
      %v1148 = vunpack.c.h.b16 %v1056
      %v1149 = vunpack.c.l.b16 %v1057
      %v1150 = vunpack.c.h.b16 %v1057
      %v1151 = vunpack.c.l.b16 %v1058
      %v1152 = vunpack.c.h.b16 %v1058
      %v1153 = vunpack.c.l.b16 %v1059
      %v1154 = vunpack.c.h.b16 %v1059
      %v1155 = vunpack.c.l.b16 %v1060
      %v1156 = vunpack.c.h.b16 %v1060
      %v1157 = vunpack.c.l.b16 %v1061
      %v1158 = vunpack.c.h.b16 %v1061
      %v1159 = vunpack.c.l.b16 %v1062
      %v1160 = vunpack.c.h.b16 %v1062
      %v1161 = vunpack.c.l.b16 %v1063
      %v1162 = vunpack.c.h.b16 %v1063
      %v1163 = vunpack.c.l.b16 %v1064
      %v1164 = vunpack.c.h.b16 %v1064
      %v1165 = vunpack.c.l.b16 %v1065
      %v1166 = vunpack.c.h.b16 %v1065
      %v1167 = vunpack.c.l.b16 %v1066
      %v1168 = vunpack.c.h.b16 %v1066
      %v1169 = vunpack.c.l.b16 %v1067
      %v1170 = vunpack.c.h.b16 %v1067
      %v1171 = vunpack.c.l.b16 %v1068
      %v1172 = vunpack.c.h.b16 %v1068
      %v1173 = vunpack.c.l.b16 %v1069
      %v1174 = vunpack.c.h.b16 %v1069
      %v1175 = vunpack.c.l.b16 %v1070
      %v1176 = vunpack.c.h.b16 %v1070
      %v1177 = vunpack.c.l.b16 %v1071
      %v1178 = vunpack.c.h.b16 %v1071
      %v1179 = vunpack.c.l.b16 %v1072
      %v1180 = vunpack.c.h.b16 %v1072
      %v1181 = vunpack.c.l.b16 %v1073
      %v1182 = vunpack.c.h.b16 %v1073
      %v1183 = vunpack.c.l.b16 %v1074
      %v1184 = vunpack.c.h.b16 %v1074
      %v1185 = vunpack.c.l.b16 %v1075
      %v1186 = vunpack.c.h.b16 %v1075
      %v1187 = vunpack.c.l.b16 %v1076
      %v1188 = vunpack.c.h.b16 %v1076
      %v1189 = vunpack.c.l.b16 %v1077
      %v1190 = vunpack.c.h.b16 %v1077
      %v1191 = vunpack.c.l.b16 %v1078
      %v1192 = vunpack.c.h.b16 %v1078
      %v1193 = vunpack.c.l.b16 %v1079
      %v1194 = vunpack.c.h.b16 %v1079
      %v1195 = vunpack.c.l.b16 %v1080
      %v1196 = vunpack.c.h.b16 %v1080
      %v1197 = vunpack.c.l.b16 %v1081
      %v1198 = vunpack.c.h.b16 %v1081
      %v1199 = vpack.c.b16 %v1147, %v1121
      %v1200 = vpack.c.b16 %v1148, %v1122
      %v1201 = vpack.c.b16 %v1149, %v1123
      %v1202 = vpack.c.b16 %v1150, %v1124
      %v1203 = vpack.c.b16 %v1151, %v1125
      %v1204 = vpack.c.b16 %v1152, %v1126
      %v1205 = vpack.c.b16 %v1153, %v1127
      %v1206 = vpack.c.b16 %v1154, %v1128
      %v1207 = vpack.c.b16 %v1155, %v1129
      %v1208 = vpack.c.b16 %v1156, %v1130
      %v1209 = vpack.c.b16 %v1157, %v1131
      %v1210 = vpack.c.b16 %v1158, %v1132
      %v1211 = vpack.c.b16 %v1159, %v1133
      %v1212 = vpack.c.b16 %v1160, %v1134
      %v1213 = vpack.c.b16 %v1161, %v1135
      %v1214 = vpack.c.b16 %v1162, %v1136
      %v1215 = vpack.c.b16 %v1163, %v1137
      %v1216 = vpack.c.b16 %v1164, %v1138
      %v1217 = vpack.c.b16 %v1165, %v1139
      %v1218 = vpack.c.b16 %v1166, %v1140
      %v1219 = vpack.c.b16 %v1167, %v1141
      %v1220 = vpack.c.b16 %v1168, %v1142
      %v1221 = vpack.c.b16 %v1169, %v1143
      %v1222 = vpack.c.b16 %v1170, %v1144
      %v1223 = vpack.c.b16 %v1171, %v1145
      %v1224 = vpack.c.b16 %v1172, %v1146
      %v1225 = vpack.c.b16 %v1173, %v1173
      %v1226 = vpack.c.b16 %v1174, %v1174
      %v1227 = vpack.c.b16 %v1175, %v1175
      %v1228 = vpack.c.b16 %v1176, %v1176
      %v1229 = vpack.c.b16 %v1177, %v1177
      %v1230 = vpack.c.b16 %v1178, %v1178
      %v1231 = vpack.c.b16 %v1179, %v1179
      %v1232 = vpack.c.b16 %v1180, %v1180
      %v1233 = vpack.c.b16 %v1181, %v1181
      %v1234 = vpack.c.b16 %v1182, %v1182
      %v1235 = vpack.c.b16 %v1183, %v1183
      %v1236 = vpack.c.b16 %v1184, %v1184
      %v1237 = vpack.c.b16 %v1185, %v1185
      %v1238 = vpack.c.b16 %v1186, %v1186
      %v1239 = vpack.c.b16 %v1187, %v1187
      %v1240 = vpack.c.b16 %v1188, %v1188
      %v1241 = vpack.c.b16 %v1189, %v1189
      %v1242 = vpack.c.b16 %v1190, %v1190
      %v1243 = vpack.c.b16 %v1191, %v1191
      %v1244 = vpack.c.b16 %v1192, %v1192
      %v1245 = vpack.c.b16 %v1193, %v1193
      %v1246 = vpack.c.b16 %v1194, %v1194
      %v1247 = vpack.c.b16 %v1195, %v1195
      %v1248 = vpack.c.b16 %v1196, %v1196
      %v1249 = vpack.c.b16 %v1197, %v1197
      %v1250 = vpack.c.b16 %v1198, %v1198
      %vm1277 = vcmask 195584
      %v1279 = vsel %vm1277, %v1041, 0
      %v1282 = vsel %vm1277, %v1042, 0
      %vm1284 = vcmask 1043456
      %v1286 = vsel %vm1284, %v1225, 0
      %v1289 = vsel %vm1284, %v1226, 0
      %v1292 = vsel %vm1284, %v1227, 0
      %v1295 = vsel %vm1284, %v1228, 0
      %v1298 = vsel %vm1284, %v1229, 0
      %v1301 = vsel %vm1284, %v1230, 0
      %v1304 = vsel %vm1284, %v1231, 0
      %v1307 = vsel %vm1284, %v1232, 0
      %v1310 = vsel %vm1284, %v1233, 0
      %v1313 = vsel %vm1284, %v1234, 0
      %v1316 = vsel %vm1284, %v1235, 0
      %v1319 = vsel %vm1284, %v1236, 0
      %v1322 = vsel %vm1284, %v1237, 0
      %v1325 = vsel %vm1284, %v1238, 0
      %v1328 = vsel %vm1284, %v1239, 0
      %v1331 = vsel %vm1284, %v1240, 0
      %v1334 = vsel %vm1284, %v1241, 0
      %v1337 = vsel %vm1284, %v1242, 0
      %v1340 = vsel %vm1284, %v1243, 0
      %v1343 = vsel %vm1284, %v1244, 0
      %v1346 = vsel %vm1284, %v1245, 0
      %v1349 = vsel %vm1284, %v1246, 0
      %v1352 = vsel %vm1284, %v1247, 0
      %v1355 = vsel %vm1284, %v1248, 0
      %v1358 = vsel %vm1284, %v1249, 0
      %v1361 = vsel %vm1284, %v1250, 0
      %1363 = vmatpush.bf16.msra.mxu0 0
      %1364 = vmatpush.bf16.msra.mxu0 0
      %1365 = vmatpush.bf16.msra.mxu0 0
      %1366 = vmatpush.bf16.msra.mxu0 0
      %1367 = vmatpush.bf16.msra.mxu0 0
      %1368 = vmatpush.bf16.msra.mxu0 0
      %1369 = vmatpush.bf16.msra.mxu0 %v1286
      %1370 = vmatpush.bf16.msra.mxu0 %v1199
      %1371 = vmatmul.bf16.gmra.mxu0 %v1279
      %v1372 = vpop.f32.mrf.mxu0
      %v1373 = vadd.f32 0.0, %v1372
      %v1374 = vpop.f32.mrf.mxu0
      %v1375 = vadd.f32 0.0, %v1374
      %1376 = vmatmul.bf16.gmra.mxu0 %v1282
      %v1377 = vpop.f32.mrf.mxu0
      %v1378 = vadd.f32 0.0, %v1377
      %v1379 = vpop.f32.mrf.mxu0
      %v1380 = vadd.f32 0.0, %v1379
      %1381 = vdwg.mxu0
      %1382 = vmatpush.bf16.msra.mxu0 0
      %1383 = vmatpush.bf16.msra.mxu0 0
      %1384 = vmatpush.bf16.msra.mxu0 0
      %1385 = vmatpush.bf16.msra.mxu0 0
      %1386 = vmatpush.bf16.msra.mxu0 0
      %1387 = vmatpush.bf16.msra.mxu0 0
      %1388 = vmatpush.bf16.msra.mxu0 %v1289
      %1389 = vmatpush.bf16.msra.mxu0 %v1200
      %1390 = vmatmul.bf16.gmra.mxu0 %v1279
      %v1391 = vpop.f32.mrf.mxu0
      %v1392 = vadd.f32 0.0, %v1391
      %v1393 = vpop.f32.mrf.mxu0
      %v1394 = vadd.f32 0.0, %v1393
      %1395 = vmatmul.bf16.gmra.mxu0 %v1282
      %v1396 = vpop.f32.mrf.mxu0
      %v1397 = vadd.f32 0.0, %v1396
      %v1398 = vpop.f32.mrf.mxu0
      %v1399 = vadd.f32 0.0, %v1398
      %1400 = vdwg.mxu0
      %1401 = vmatpush.bf16.msra.mxu0 0
      %1402 = vmatpush.bf16.msra.mxu0 0
      %1403 = vmatpush.bf16.msra.mxu0 0
      %1404 = vmatpush.bf16.msra.mxu0 0
      %1405 = vmatpush.bf16.msra.mxu0 0
      %1406 = vmatpush.bf16.msra.mxu0 0
      %1407 = vmatpush.bf16.msra.mxu0 %v1292
      %1408 = vmatpush.bf16.msra.mxu0 %v1201
      %1409 = vmatmul.bf16.gmra.mxu0 %v1279
      %v1410 = vpop.f32.mrf.mxu0
      %v1411 = vadd.f32 0.0, %v1410
      %v1412 = vpop.f32.mrf.mxu0
      %v1413 = vadd.f32 0.0, %v1412
      %1414 = vmatmul.bf16.gmra.mxu0 %v1282
      %v1415 = vpop.f32.mrf.mxu0
      %v1416 = vadd.f32 0.0, %v1415
      %v1417 = vpop.f32.mrf.mxu0
      %v1418 = vadd.f32 0.0, %v1417
      %1419 = vdwg.mxu0
      %1420 = vmatpush.bf16.msra.mxu0 0
      %1421 = vmatpush.bf16.msra.mxu0 0
      %1422 = vmatpush.bf16.msra.mxu0 0
      %1423 = vmatpush.bf16.msra.mxu0 0
      %1424 = vmatpush.bf16.msra.mxu0 0
      %1425 = vmatpush.bf16.msra.mxu0 0
      %1426 = vmatpush.bf16.msra.mxu0 %v1295
      %1427 = vmatpush.bf16.msra.mxu0 %v1202
      %1428 = vmatmul.bf16.gmra.mxu0 %v1279
      %v1429 = vpop.f32.mrf.mxu0
      %v1430 = vadd.f32 0.0, %v1429
      %v1431 = vpop.f32.mrf.mxu0
      %v1432 = vadd.f32 0.0, %v1431
      %1433 = vmatmul.bf16.gmra.mxu0 %v1282
      %v1434 = vpop.f32.mrf.mxu0
      %v1435 = vadd.f32 0.0, %v1434
      %v1436 = vpop.f32.mrf.mxu0
      %v1437 = vadd.f32 0.0, %v1436
      %1438 = vdwg.mxu0
      %1439 = vmatpush.bf16.msra.mxu0 0
      %1440 = vmatpush.bf16.msra.mxu0 0
      %1441 = vmatpush.bf16.msra.mxu0 0
      %1442 = vmatpush.bf16.msra.mxu0 0
      %1443 = vmatpush.bf16.msra.mxu0 0
      %1444 = vmatpush.bf16.msra.mxu0 0
      %1445 = vmatpush.bf16.msra.mxu0 %v1298
      %1446 = vmatpush.bf16.msra.mxu0 %v1203
      %1447 = vmatmul.bf16.gmra.mxu0 %v1279
      %v1448 = vpop.f32.mrf.mxu0
      %v1449 = vadd.f32 0.0, %v1448
      %v1450 = vpop.f32.mrf.mxu0
      %v1451 = vadd.f32 0.0, %v1450
      %1452 = vmatmul.bf16.gmra.mxu0 %v1282
      %v1453 = vpop.f32.mrf.mxu0
      %v1454 = vadd.f32 0.0, %v1453
      %v1455 = vpop.f32.mrf.mxu0
      %v1456 = vadd.f32 0.0, %v1455
      %1457 = vdwg.mxu0
      %1458 = vmatpush.bf16.msra.mxu0 0
      %1459 = vmatpush.bf16.msra.mxu0 0
      %1460 = vmatpush.bf16.msra.mxu0 0
      %1461 = vmatpush.bf16.msra.mxu0 0
      %1462 = vmatpush.bf16.msra.mxu0 0
      %1463 = vmatpush.bf16.msra.mxu0 0
      %1464 = vmatpush.bf16.msra.mxu0 %v1301
      %1465 = vmatpush.bf16.msra.mxu0 %v1204
      %1466 = vmatmul.bf16.gmra.mxu0 %v1279
      %v1467 = vpop.f32.mrf.mxu0
      %v1468 = vadd.f32 0.0, %v1467
      %v1469 = vpop.f32.mrf.mxu0
      %v1470 = vadd.f32 0.0, %v1469
      %1471 = vmatmul.bf16.gmra.mxu0 %v1282
      %v1472 = vpop.f32.mrf.mxu0
      %v1473 = vadd.f32 0.0, %v1472
      %v1474 = vpop.f32.mrf.mxu0
      %v1475 = vadd.f32 0.0, %v1474
      %1476 = vdwg.mxu0
      %1477 = vmatpush.bf16.msra.mxu0 0
      %1478 = vmatpush.bf16.msra.mxu0 0
      %1479 = vmatpush.bf16.msra.mxu0 0
      %1480 = vmatpush.bf16.msra.mxu0 0
      %1481 = vmatpush.bf16.msra.mxu0 0
      %1482 = vmatpush.bf16.msra.mxu0 0
      %1483 = vmatpush.bf16.msra.mxu0 %v1304
      %1484 = vmatpush.bf16.msra.mxu0 %v1205
      %1485 = vmatmul.bf16.gmra.mxu0 %v1279
      %v1486 = vpop.f32.mrf.mxu0
      %v1487 = vadd.f32 0.0, %v1486
      %v1488 = vpop.f32.mrf.mxu0
      %v1489 = vadd.f32 0.0, %v1488
      %1490 = vmatmul.bf16.gmra.mxu0 %v1282
      %v1491 = vpop.f32.mrf.mxu0
      %v1492 = vadd.f32 0.0, %v1491
      %v1493 = vpop.f32.mrf.mxu0
      %v1494 = vadd.f32 0.0, %v1493
      %1495 = vdwg.mxu0
      %1496 = vmatpush.bf16.msra.mxu0 0
      %1497 = vmatpush.bf16.msra.mxu0 0
      %1498 = vmatpush.bf16.msra.mxu0 0
      %1499 = vmatpush.bf16.msra.mxu0 0
      %1500 = vmatpush.bf16.msra.mxu0 0
      %1501 = vmatpush.bf16.msra.mxu0 0
      %1502 = vmatpush.bf16.msra.mxu0 %v1307
      %1503 = vmatpush.bf16.msra.mxu0 %v1206
      %1504 = vmatmul.bf16.gmra.mxu0 %v1279
      %v1505 = vpop.f32.mrf.mxu0
      %v1506 = vadd.f32 0.0, %v1505
      %v1507 = vpop.f32.mrf.mxu0
      %v1508 = vadd.f32 0.0, %v1507
      %1509 = vmatmul.bf16.gmra.mxu0 %v1282
      %v1510 = vpop.f32.mrf.mxu0
      %v1511 = vadd.f32 0.0, %v1510
      %v1512 = vpop.f32.mrf.mxu0
      %v1513 = vadd.f32 0.0, %v1512
      %1514 = vdwg.mxu0
      %1515 = vmatpush.bf16.msra.mxu0 0
      %1516 = vmatpush.bf16.msra.mxu0 0
      %1517 = vmatpush.bf16.msra.mxu0 0
      %1518 = vmatpush.bf16.msra.mxu0 0
      %1519 = vmatpush.bf16.msra.mxu0 0
      %1520 = vmatpush.bf16.msra.mxu0 0
      %1521 = vmatpush.bf16.msra.mxu0 %v1310
      %1522 = vmatpush.bf16.msra.mxu0 %v1207
      %1523 = vmatmul.bf16.gmra.mxu0 %v1279
      %v1524 = vpop.f32.mrf.mxu0
      %v1525 = vadd.f32 0.0, %v1524
      %v1526 = vpop.f32.mrf.mxu0
      %v1527 = vadd.f32 0.0, %v1526
      %1528 = vmatmul.bf16.gmra.mxu0 %v1282
      %v1529 = vpop.f32.mrf.mxu0
      %v1530 = vadd.f32 0.0, %v1529
      %v1531 = vpop.f32.mrf.mxu0
      %v1532 = vadd.f32 0.0, %v1531
      %1533 = vdwg.mxu0
      %1534 = vmatpush.bf16.msra.mxu0 0
      %1535 = vmatpush.bf16.msra.mxu0 0
      %1536 = vmatpush.bf16.msra.mxu0 0
      %1537 = vmatpush.bf16.msra.mxu0 0
      %1538 = vmatpush.bf16.msra.mxu0 0
      %1539 = vmatpush.bf16.msra.mxu0 0
      %1540 = vmatpush.bf16.msra.mxu0 %v1313
      %1541 = vmatpush.bf16.msra.mxu0 %v1208
      %1542 = vmatmul.bf16.gmra.mxu0 %v1279
      %v1543 = vpop.f32.mrf.mxu0
      %v1544 = vadd.f32 0.0, %v1543
      %v1545 = vpop.f32.mrf.mxu0
      %v1546 = vadd.f32 0.0, %v1545
      %1547 = vmatmul.bf16.gmra.mxu0 %v1282
      %v1548 = vpop.f32.mrf.mxu0
      %v1549 = vadd.f32 0.0, %v1548
      %v1550 = vpop.f32.mrf.mxu0
      %v1551 = vadd.f32 0.0, %v1550
      %1552 = vdwg.mxu0
      %1553 = vmatpush.bf16.msra.mxu0 0
      %1554 = vmatpush.bf16.msra.mxu0 0
      %1555 = vmatpush.bf16.msra.mxu0 0
      %1556 = vmatpush.bf16.msra.mxu0 0
      %1557 = vmatpush.bf16.msra.mxu0 0
      %1558 = vmatpush.bf16.msra.mxu0 0
      %1559 = vmatpush.bf16.msra.mxu0 %v1316
      %1560 = vmatpush.bf16.msra.mxu0 %v1209
      %1561 = vmatmul.bf16.gmra.mxu0 %v1279
      %v1562 = vpop.f32.mrf.mxu0
      %v1563 = vadd.f32 0.0, %v1562
      %v1564 = vpop.f32.mrf.mxu0
      %v1565 = vadd.f32 0.0, %v1564
      %1566 = vmatmul.bf16.gmra.mxu0 %v1282
      %v1567 = vpop.f32.mrf.mxu0
      %v1568 = vadd.f32 0.0, %v1567
      %v1569 = vpop.f32.mrf.mxu0
      %v1570 = vadd.f32 0.0, %v1569
      %1571 = vdwg.mxu0
      %1572 = vmatpush.bf16.msra.mxu0 0
      %1573 = vmatpush.bf16.msra.mxu0 0
      %1574 = vmatpush.bf16.msra.mxu0 0
      %1575 = vmatpush.bf16.msra.mxu0 0
      %1576 = vmatpush.bf16.msra.mxu0 0
      %1577 = vmatpush.bf16.msra.mxu0 0
      %1578 = vmatpush.bf16.msra.mxu0 %v1319
      %1579 = vmatpush.bf16.msra.mxu0 %v1210
      %1580 = vmatmul.bf16.gmra.mxu0 %v1279
      %v1581 = vpop.f32.mrf.mxu0
      %v1582 = vadd.f32 0.0, %v1581
      %v1583 = vpop.f32.mrf.mxu0
      %v1584 = vadd.f32 0.0, %v1583
      %1585 = vmatmul.bf16.gmra.mxu0 %v1282
      %v1586 = vpop.f32.mrf.mxu0
      %v1587 = vadd.f32 0.0, %v1586
      %v1588 = vpop.f32.mrf.mxu0
      %v1589 = vadd.f32 0.0, %v1588
      %1590 = vdwg.mxu0
      %1591 = vmatpush.bf16.msra.mxu0 0
      %1592 = vmatpush.bf16.msra.mxu0 0
      %1593 = vmatpush.bf16.msra.mxu0 0
      %1594 = vmatpush.bf16.msra.mxu0 0
      %1595 = vmatpush.bf16.msra.mxu0 0
      %1596 = vmatpush.bf16.msra.mxu0 0
      %1597 = vmatpush.bf16.msra.mxu0 %v1322
      %1598 = vmatpush.bf16.msra.mxu0 %v1211
      %1599 = vmatmul.bf16.gmra.mxu0 %v1279
      %v1600 = vpop.f32.mrf.mxu0
      %v1601 = vadd.f32 0.0, %v1600
      %v1602 = vpop.f32.mrf.mxu0
      %v1603 = vadd.f32 0.0, %v1602
      %1604 = vmatmul.bf16.gmra.mxu0 %v1282
      %v1605 = vpop.f32.mrf.mxu0
      %v1606 = vadd.f32 0.0, %v1605
      %v1607 = vpop.f32.mrf.mxu0
      %v1608 = vadd.f32 0.0, %v1607
      %1609 = vdwg.mxu0
      %1610 = vmatpush.bf16.msra.mxu0 0
      %1611 = vmatpush.bf16.msra.mxu0 0
      %1612 = vmatpush.bf16.msra.mxu0 0
      %1613 = vmatpush.bf16.msra.mxu0 0
      %1614 = vmatpush.bf16.msra.mxu0 0
      %1615 = vmatpush.bf16.msra.mxu0 0
      %1616 = vmatpush.bf16.msra.mxu0 %v1325
      %1617 = vmatpush.bf16.msra.mxu0 %v1212
      %1618 = vmatmul.bf16.gmra.mxu0 %v1279
      %v1619 = vpop.f32.mrf.mxu0
      %v1620 = vadd.f32 0.0, %v1619
      %v1621 = vpop.f32.mrf.mxu0
      %v1622 = vadd.f32 0.0, %v1621
      %1623 = vmatmul.bf16.gmra.mxu0 %v1282
      %v1624 = vpop.f32.mrf.mxu0
      %v1625 = vadd.f32 0.0, %v1624
      %v1626 = vpop.f32.mrf.mxu0
      %v1627 = vadd.f32 0.0, %v1626
      %1628 = vdwg.mxu0
      %1629 = vmatpush.bf16.msra.mxu0 0
      %1630 = vmatpush.bf16.msra.mxu0 0
      %1631 = vmatpush.bf16.msra.mxu0 0
      %1632 = vmatpush.bf16.msra.mxu0 0
      %1633 = vmatpush.bf16.msra.mxu0 0
      %1634 = vmatpush.bf16.msra.mxu0 0
      %1635 = vmatpush.bf16.msra.mxu0 %v1328
      %1636 = vmatpush.bf16.msra.mxu0 %v1213
      %1637 = vmatmul.bf16.gmra.mxu0 %v1279
      %v1638 = vpop.f32.mrf.mxu0
      %v1639 = vadd.f32 0.0, %v1638
      %v1640 = vpop.f32.mrf.mxu0
      %v1641 = vadd.f32 0.0, %v1640
      %1642 = vmatmul.bf16.gmra.mxu0 %v1282
      %v1643 = vpop.f32.mrf.mxu0
      %v1644 = vadd.f32 0.0, %v1643
      %v1645 = vpop.f32.mrf.mxu0
      %v1646 = vadd.f32 0.0, %v1645
      %1647 = vdwg.mxu0
      %1648 = vmatpush.bf16.msra.mxu0 0
      %1649 = vmatpush.bf16.msra.mxu0 0
      %1650 = vmatpush.bf16.msra.mxu0 0
      %1651 = vmatpush.bf16.msra.mxu0 0
      %1652 = vmatpush.bf16.msra.mxu0 0
      %1653 = vmatpush.bf16.msra.mxu0 0
      %1654 = vmatpush.bf16.msra.mxu0 %v1331
      %1655 = vmatpush.bf16.msra.mxu0 %v1214
      %1656 = vmatmul.bf16.gmra.mxu0 %v1279
      %v1657 = vpop.f32.mrf.mxu0
      %v1658 = vadd.f32 0.0, %v1657
      %v1659 = vpop.f32.mrf.mxu0
      %v1660 = vadd.f32 0.0, %v1659
      %1661 = vmatmul.bf16.gmra.mxu0 %v1282
      %v1662 = vpop.f32.mrf.mxu0
      %v1663 = vadd.f32 0.0, %v1662
      %v1664 = vpop.f32.mrf.mxu0
      %v1665 = vadd.f32 0.0, %v1664
      %1666 = vdwg.mxu0
      %1667 = vmatpush.bf16.msra.mxu0 0
      %1668 = vmatpush.bf16.msra.mxu0 0
      %1669 = vmatpush.bf16.msra.mxu0 0
      %1670 = vmatpush.bf16.msra.mxu0 0
      %1671 = vmatpush.bf16.msra.mxu0 0
      %1672 = vmatpush.bf16.msra.mxu0 0
      %1673 = vmatpush.bf16.msra.mxu0 %v1334
      %1674 = vmatpush.bf16.msra.mxu0 %v1215
      %1675 = vmatmul.bf16.gmra.mxu0 %v1279
      %v1676 = vpop.f32.mrf.mxu0
      %v1677 = vadd.f32 0.0, %v1676
      %v1678 = vpop.f32.mrf.mxu0
      %v1679 = vadd.f32 0.0, %v1678
      %1680 = vmatmul.bf16.gmra.mxu0 %v1282
      %v1681 = vpop.f32.mrf.mxu0
      %v1682 = vadd.f32 0.0, %v1681
      %v1683 = vpop.f32.mrf.mxu0
      %v1684 = vadd.f32 0.0, %v1683
      %1685 = vdwg.mxu0
      %1686 = vmatpush.bf16.msra.mxu0 0
      %1687 = vmatpush.bf16.msra.mxu0 0
      %1688 = vmatpush.bf16.msra.mxu0 0
      %1689 = vmatpush.bf16.msra.mxu0 0
      %1690 = vmatpush.bf16.msra.mxu0 0
      %1691 = vmatpush.bf16.msra.mxu0 0
      %1692 = vmatpush.bf16.msra.mxu0 %v1337
      %1693 = vmatpush.bf16.msra.mxu0 %v1216
      %1694 = vmatmul.bf16.gmra.mxu0 %v1279
      %v1695 = vpop.f32.mrf.mxu0
      %v1696 = vadd.f32 0.0, %v1695
      %v1697 = vpop.f32.mrf.mxu0
      %v1698 = vadd.f32 0.0, %v1697
      %1699 = vmatmul.bf16.gmra.mxu0 %v1282
      %v1700 = vpop.f32.mrf.mxu0
      %v1701 = vadd.f32 0.0, %v1700
      %v1702 = vpop.f32.mrf.mxu0
      %v1703 = vadd.f32 0.0, %v1702
      %1704 = vdwg.mxu0
      %1705 = vmatpush.bf16.msra.mxu0 0
      %1706 = vmatpush.bf16.msra.mxu0 0
      %1707 = vmatpush.bf16.msra.mxu0 0
      %1708 = vmatpush.bf16.msra.mxu0 0
      %1709 = vmatpush.bf16.msra.mxu0 0
      %1710 = vmatpush.bf16.msra.mxu0 0
      %1711 = vmatpush.bf16.msra.mxu0 %v1340
      %1712 = vmatpush.bf16.msra.mxu0 %v1217
      %1713 = vmatmul.bf16.gmra.mxu0 %v1279
      %v1714 = vpop.f32.mrf.mxu0
      %v1715 = vadd.f32 0.0, %v1714
      %v1716 = vpop.f32.mrf.mxu0
      %v1717 = vadd.f32 0.0, %v1716
      %1718 = vmatmul.bf16.gmra.mxu0 %v1282
      %v1719 = vpop.f32.mrf.mxu0
      %v1720 = vadd.f32 0.0, %v1719
      %v1721 = vpop.f32.mrf.mxu0
      %v1722 = vadd.f32 0.0, %v1721
      %1723 = vdwg.mxu0
      %1724 = vmatpush.bf16.msra.mxu0 0
      %1725 = vmatpush.bf16.msra.mxu0 0
      %1726 = vmatpush.bf16.msra.mxu0 0
      %1727 = vmatpush.bf16.msra.mxu0 0
      %1728 = vmatpush.bf16.msra.mxu0 0
      %1729 = vmatpush.bf16.msra.mxu0 0
      %1730 = vmatpush.bf16.msra.mxu0 %v1343
      %1731 = vmatpush.bf16.msra.mxu0 %v1218
      %1732 = vmatmul.bf16.gmra.mxu0 %v1279
      %v1733 = vpop.f32.mrf.mxu0
      %v1734 = vadd.f32 0.0, %v1733
      %v1735 = vpop.f32.mrf.mxu0
      %v1736 = vadd.f32 0.0, %v1735
      %1737 = vmatmul.bf16.gmra.mxu0 %v1282
      %v1738 = vpop.f32.mrf.mxu0
      %v1739 = vadd.f32 0.0, %v1738
      %v1740 = vpop.f32.mrf.mxu0
      %v1741 = vadd.f32 0.0, %v1740
      %1742 = vdwg.mxu0
      %1743 = vmatpush.bf16.msra.mxu0 0
      %1744 = vmatpush.bf16.msra.mxu0 0
      %1745 = vmatpush.bf16.msra.mxu0 0
      %1746 = vmatpush.bf16.msra.mxu0 0
      %1747 = vmatpush.bf16.msra.mxu0 0
      %1748 = vmatpush.bf16.msra.mxu0 0
      %1749 = vmatpush.bf16.msra.mxu0 %v1346
      %1750 = vmatpush.bf16.msra.mxu0 %v1219
      %1751 = vmatmul.bf16.gmra.mxu0 %v1279
      %v1752 = vpop.f32.mrf.mxu0
      %v1753 = vadd.f32 0.0, %v1752
      %v1754 = vpop.f32.mrf.mxu0
      %v1755 = vadd.f32 0.0, %v1754
      %1756 = vmatmul.bf16.gmra.mxu0 %v1282
      %v1757 = vpop.f32.mrf.mxu0
      %v1758 = vadd.f32 0.0, %v1757
      %v1759 = vpop.f32.mrf.mxu0
      %v1760 = vadd.f32 0.0, %v1759
      %1761 = vdwg.mxu0
      %1762 = vmatpush.bf16.msra.mxu0 0
      %1763 = vmatpush.bf16.msra.mxu0 0
      %1764 = vmatpush.bf16.msra.mxu0 0
      %1765 = vmatpush.bf16.msra.mxu0 0
      %1766 = vmatpush.bf16.msra.mxu0 0
      %1767 = vmatpush.bf16.msra.mxu0 0
      %1768 = vmatpush.bf16.msra.mxu0 %v1349
      %1769 = vmatpush.bf16.msra.mxu0 %v1220
      %1770 = vmatmul.bf16.gmra.mxu0 %v1279
      %v1771 = vpop.f32.mrf.mxu0
      %v1772 = vadd.f32 0.0, %v1771
      %v1773 = vpop.f32.mrf.mxu0
      %v1774 = vadd.f32 0.0, %v1773
      %1775 = vmatmul.bf16.gmra.mxu0 %v1282
      %v1776 = vpop.f32.mrf.mxu0
      %v1777 = vadd.f32 0.0, %v1776
      %v1778 = vpop.f32.mrf.mxu0
      %v1779 = vadd.f32 0.0, %v1778
      %1780 = vdwg.mxu0
      %1781 = vmatpush.bf16.msra.mxu0 0
      %1782 = vmatpush.bf16.msra.mxu0 0
      %1783 = vmatpush.bf16.msra.mxu0 0
      %1784 = vmatpush.bf16.msra.mxu0 0
      %1785 = vmatpush.bf16.msra.mxu0 0
      %1786 = vmatpush.bf16.msra.mxu0 0
      %1787 = vmatpush.bf16.msra.mxu0 %v1352
      %1788 = vmatpush.bf16.msra.mxu0 %v1221
      %1789 = vmatmul.bf16.gmra.mxu0 %v1279
      %v1790 = vpop.f32.mrf.mxu0
      %v1791 = vadd.f32 0.0, %v1790
      %v1792 = vpop.f32.mrf.mxu0
      %v1793 = vadd.f32 0.0, %v1792
      %1794 = vmatmul.bf16.gmra.mxu0 %v1282
      %v1795 = vpop.f32.mrf.mxu0
      %v1796 = vadd.f32 0.0, %v1795
      %v1797 = vpop.f32.mrf.mxu0
      %v1798 = vadd.f32 0.0, %v1797
      %1799 = vdwg.mxu0
      %1800 = vmatpush.bf16.msra.mxu0 0
      %1801 = vmatpush.bf16.msra.mxu0 0
      %1802 = vmatpush.bf16.msra.mxu0 0
      %1803 = vmatpush.bf16.msra.mxu0 0
      %1804 = vmatpush.bf16.msra.mxu0 0
      %1805 = vmatpush.bf16.msra.mxu0 0
      %1806 = vmatpush.bf16.msra.mxu0 %v1355
      %1807 = vmatpush.bf16.msra.mxu0 %v1222
      %1808 = vmatmul.bf16.gmra.mxu0 %v1279
      %v1809 = vpop.f32.mrf.mxu0
      %v1810 = vadd.f32 0.0, %v1809
      %v1811 = vpop.f32.mrf.mxu0
      %v1812 = vadd.f32 0.0, %v1811
      %1813 = vmatmul.bf16.gmra.mxu0 %v1282
      %v1814 = vpop.f32.mrf.mxu0
      %v1815 = vadd.f32 0.0, %v1814
      %v1816 = vpop.f32.mrf.mxu0
      %v1817 = vadd.f32 0.0, %v1816
      %1818 = vdwg.mxu0
      %1819 = vmatpush.bf16.msra.mxu0 0
      %1820 = vmatpush.bf16.msra.mxu0 0
      %1821 = vmatpush.bf16.msra.mxu0 0
      %1822 = vmatpush.bf16.msra.mxu0 0
      %1823 = vmatpush.bf16.msra.mxu0 0
      %1824 = vmatpush.bf16.msra.mxu0 0
      %1825 = vmatpush.bf16.msra.mxu0 %v1358
      %1826 = vmatpush.bf16.msra.mxu0 %v1223
      %1827 = vmatmul.bf16.gmra.mxu0 %v1279
      %v1828 = vpop.f32.mrf.mxu0
      %v1829 = vadd.f32 0.0, %v1828
      %v1830 = vpop.f32.mrf.mxu0
      %v1831 = vadd.f32 0.0, %v1830
      %1832 = vmatmul.bf16.gmra.mxu0 %v1282
      %v1833 = vpop.f32.mrf.mxu0
      %v1834 = vadd.f32 0.0, %v1833
      %v1835 = vpop.f32.mrf.mxu0
      %v1836 = vadd.f32 0.0, %v1835
      %1837 = vdwg.mxu0
      %1838 = vmatpush.bf16.msra.mxu0 0
      %1839 = vmatpush.bf16.msra.mxu0 0
      %1840 = vmatpush.bf16.msra.mxu0 0
      %1841 = vmatpush.bf16.msra.mxu0 0
      %1842 = vmatpush.bf16.msra.mxu0 0
      %1843 = vmatpush.bf16.msra.mxu0 0
      %1844 = vmatpush.bf16.msra.mxu0 %v1361
      %1845 = vmatpush.bf16.msra.mxu0 %v1224
      %1846 = vmatmul.bf16.gmra.mxu0 %v1279
      %v1847 = vpop.f32.mrf.mxu0
      %v1848 = vadd.f32 0.0, %v1847
      %v1849 = vpop.f32.mrf.mxu0
      %v1850 = vadd.f32 0.0, %v1849
      %1851 = vmatmul.bf16.gmra.mxu0 %v1282
      %v1852 = vpop.f32.mrf.mxu0
      %v1853 = vadd.f32 0.0, %v1852
      %v1854 = vpop.f32.mrf.mxu0
      %v1855 = vadd.f32 0.0, %v1854
      %1856 = vdwg.mxu0
      %v1883 = vunpack.c.l.b16 %v1015
      %v1884 = vunpack.c.h.b16 %v1015
      %v1885 = vunpack.c.l.b16 %v1016
      %v1886 = vunpack.c.h.b16 %v1016
      %v1887 = vunpack.c.l.b16 %v1017
      %v1888 = vunpack.c.h.b16 %v1017
      %v1889 = vunpack.c.l.b16 %v1018
      %v1890 = vunpack.c.h.b16 %v1018
      %v1891 = vunpack.c.l.b16 %v1019
      %v1892 = vunpack.c.h.b16 %v1019
      %v1893 = vunpack.c.l.b16 %v1020
      %v1894 = vunpack.c.h.b16 %v1020
      %v1895 = vunpack.c.l.b16 %v1021
      %v1896 = vunpack.c.h.b16 %v1021
      %v1897 = vunpack.c.l.b16 %v1022
      %v1898 = vunpack.c.h.b16 %v1022
      %v1899 = vunpack.c.l.b16 %v1023
      %v1900 = vunpack.c.h.b16 %v1023
      %v1901 = vunpack.c.l.b16 %v1024
      %v1902 = vunpack.c.h.b16 %v1024
      %v1903 = vunpack.c.l.b16 %v1025
      %v1904 = vunpack.c.h.b16 %v1025
      %v1905 = vunpack.c.l.b16 %v1026
      %v1906 = vunpack.c.h.b16 %v1026
      %v1907 = vunpack.c.l.b16 %v1027
      %v1908 = vunpack.c.h.b16 %v1027
      %v1909 = vunpack.c.l.b16 %v1028
      %v1910 = vunpack.c.h.b16 %v1028
      %v1911 = vunpack.c.l.b16 %v1029
      %v1912 = vunpack.c.h.b16 %v1029
      %v1913 = vunpack.c.l.b16 %v1030
      %v1914 = vunpack.c.h.b16 %v1030
      %v1915 = vunpack.c.l.b16 %v1031
      %v1916 = vunpack.c.h.b16 %v1031
      %v1917 = vunpack.c.l.b16 %v1032
      %v1918 = vunpack.c.h.b16 %v1032
      %v1919 = vunpack.c.l.b16 %v1033
      %v1920 = vunpack.c.h.b16 %v1033
      %v1921 = vunpack.c.l.b16 %v1034
      %v1922 = vunpack.c.h.b16 %v1034
      %v1923 = vunpack.c.l.b16 %v1035
      %v1924 = vunpack.c.h.b16 %v1035
      %v1925 = vunpack.c.l.b16 %v1036
      %v1926 = vunpack.c.h.b16 %v1036
      %v1927 = vunpack.c.l.b16 %v1037
      %v1928 = vunpack.c.h.b16 %v1037
      %v1929 = vunpack.c.l.b16 %v1038
      %v1930 = vunpack.c.h.b16 %v1038
      %v1931 = vunpack.c.l.b16 %v1039
      %v1932 = vunpack.c.h.b16 %v1039
      %v1933 = vunpack.c.l.b16 %v1040
      %v1934 = vunpack.c.h.b16 %v1040
      %v1935 = vpack.c.b16 %v1909, %v1883
      %v1936 = vpack.c.b16 %v1910, %v1884
      %v1937 = vpack.c.b16 %v1911, %v1885
      %v1938 = vpack.c.b16 %v1912, %v1886
      %v1939 = vpack.c.b16 %v1913, %v1887
      %v1940 = vpack.c.b16 %v1914, %v1888
      %v1941 = vpack.c.b16 %v1915, %v1889
      %v1942 = vpack.c.b16 %v1916, %v1890
      %v1943 = vpack.c.b16 %v1917, %v1891
      %v1944 = vpack.c.b16 %v1918, %v1892
      %v1945 = vpack.c.b16 %v1919, %v1893
      %v1946 = vpack.c.b16 %v1920, %v1894
      %v1947 = vpack.c.b16 %v1921, %v1895
      %v1948 = vpack.c.b16 %v1922, %v1896
      %v1949 = vpack.c.b16 %v1923, %v1897
      %v1950 = vpack.c.b16 %v1924, %v1898
      %v1951 = vpack.c.b16 %v1925, %v1899
      %v1952 = vpack.c.b16 %v1926, %v1900
      %v1953 = vpack.c.b16 %v1927, %v1901
      %v1954 = vpack.c.b16 %v1928, %v1902
      %v1955 = vpack.c.b16 %v1929, %v1903
      %v1956 = vpack.c.b16 %v1930, %v1904
      %v1957 = vpack.c.b16 %v1931, %v1905
      %v1958 = vpack.c.b16 %v1932, %v1906
      %v1959 = vpack.c.b16 %v1933, %v1907
      %v1960 = vpack.c.b16 %v1934, %v1908
      %v1988 = vsel %vm615, %v1013, 0
      %v1991 = vsel %vm615, %v1014, 0
      %1993 = vmatpush.bf16.msra.mxu0 0
      %1994 = vmatpush.bf16.msra.mxu0 0
      %1995 = vmatpush.bf16.msra.mxu0 0
      %1996 = vmatpush.bf16.msra.mxu0 0
      %1997 = vmatpush.bf16.msra.mxu0 0
      %1998 = vmatpush.bf16.msra.mxu0 0
      %1999 = vmatpush.bf16.msra.mxu0 0
      %2000 = vmatpush.bf16.msra.mxu0 %v1935
      %2001 = vmatmul.bf16.gmra.mxu0 %v1988
      %v2002 = vpop.f32.mrf.mxu0
      %v2003 = vadd.f32 %v1373, %v2002
      %v2004 = vpop.f32.mrf.mxu0
      %v2005 = vadd.f32 %v1375, %v2004
      %2006 = vmatmul.bf16.gmra.mxu0 %v1991
      %v2007 = vpop.f32.mrf.mxu0
      %v2008 = vadd.f32 %v1378, %v2007
      %v2009 = vpop.f32.mrf.mxu0
      %v2010 = vadd.f32 %v1380, %v2009
      %2011 = vdwg.mxu0
      %2012 = vmatpush.bf16.msra.mxu0 0
      %2013 = vmatpush.bf16.msra.mxu0 0
      %2014 = vmatpush.bf16.msra.mxu0 0
      %2015 = vmatpush.bf16.msra.mxu0 0
      %2016 = vmatpush.bf16.msra.mxu0 0
      %2017 = vmatpush.bf16.msra.mxu0 0
      %2018 = vmatpush.bf16.msra.mxu0 0
      %2019 = vmatpush.bf16.msra.mxu0 %v1936
      %2020 = vmatmul.bf16.gmra.mxu0 %v1988
      %v2021 = vpop.f32.mrf.mxu0
      %v2022 = vadd.f32 %v1392, %v2021
      %v2023 = vpop.f32.mrf.mxu0
      %v2024 = vadd.f32 %v1394, %v2023
      %2025 = vmatmul.bf16.gmra.mxu0 %v1991
      %v2026 = vpop.f32.mrf.mxu0
      %v2027 = vadd.f32 %v1397, %v2026
      %v2028 = vpop.f32.mrf.mxu0
      %v2029 = vadd.f32 %v1399, %v2028
      %2030 = vdwg.mxu0
      %2031 = vmatpush.bf16.msra.mxu0 0
      %2032 = vmatpush.bf16.msra.mxu0 0
      %2033 = vmatpush.bf16.msra.mxu0 0
      %2034 = vmatpush.bf16.msra.mxu0 0
      %2035 = vmatpush.bf16.msra.mxu0 0
      %2036 = vmatpush.bf16.msra.mxu0 0
      %2037 = vmatpush.bf16.msra.mxu0 0
      %2038 = vmatpush.bf16.msra.mxu0 %v1937
      %2039 = vmatmul.bf16.gmra.mxu0 %v1988
      %v2040 = vpop.f32.mrf.mxu0
      %v2041 = vadd.f32 %v1411, %v2040
      %v2042 = vpop.f32.mrf.mxu0
      %v2043 = vadd.f32 %v1413, %v2042
      %2044 = vmatmul.bf16.gmra.mxu0 %v1991
      %v2045 = vpop.f32.mrf.mxu0
      %v2046 = vadd.f32 %v1416, %v2045
      %v2047 = vpop.f32.mrf.mxu0
      %v2048 = vadd.f32 %v1418, %v2047
      %2049 = vdwg.mxu0
      %2050 = vmatpush.bf16.msra.mxu0 0
      %2051 = vmatpush.bf16.msra.mxu0 0
      %2052 = vmatpush.bf16.msra.mxu0 0
      %2053 = vmatpush.bf16.msra.mxu0 0
      %2054 = vmatpush.bf16.msra.mxu0 0
      %2055 = vmatpush.bf16.msra.mxu0 0
      %2056 = vmatpush.bf16.msra.mxu0 0
      %2057 = vmatpush.bf16.msra.mxu0 %v1938
      %2058 = vmatmul.bf16.gmra.mxu0 %v1988
      %v2059 = vpop.f32.mrf.mxu0
      %v2060 = vadd.f32 %v1430, %v2059
      %v2061 = vpop.f32.mrf.mxu0
      %v2062 = vadd.f32 %v1432, %v2061
      %2063 = vmatmul.bf16.gmra.mxu0 %v1991
      %v2064 = vpop.f32.mrf.mxu0
      %v2065 = vadd.f32 %v1435, %v2064
      %v2066 = vpop.f32.mrf.mxu0
      %v2067 = vadd.f32 %v1437, %v2066
      %2068 = vdwg.mxu0
      %2069 = vmatpush.bf16.msra.mxu0 0
      %2070 = vmatpush.bf16.msra.mxu0 0
      %2071 = vmatpush.bf16.msra.mxu0 0
      %2072 = vmatpush.bf16.msra.mxu0 0
      %2073 = vmatpush.bf16.msra.mxu0 0
      %2074 = vmatpush.bf16.msra.mxu0 0
      %2075 = vmatpush.bf16.msra.mxu0 0
      %2076 = vmatpush.bf16.msra.mxu0 %v1939
      %2077 = vmatmul.bf16.gmra.mxu0 %v1988
      %v2078 = vpop.f32.mrf.mxu0
      %v2079 = vadd.f32 %v1449, %v2078
      %v2080 = vpop.f32.mrf.mxu0
      %v2081 = vadd.f32 %v1451, %v2080
      %2082 = vmatmul.bf16.gmra.mxu0 %v1991
      %v2083 = vpop.f32.mrf.mxu0
      %v2084 = vadd.f32 %v1454, %v2083
      %v2085 = vpop.f32.mrf.mxu0
      %v2086 = vadd.f32 %v1456, %v2085
      %2087 = vdwg.mxu0
      %2088 = vmatpush.bf16.msra.mxu0 0
      %2089 = vmatpush.bf16.msra.mxu0 0
      %2090 = vmatpush.bf16.msra.mxu0 0
      %2091 = vmatpush.bf16.msra.mxu0 0
      %2092 = vmatpush.bf16.msra.mxu0 0
      %2093 = vmatpush.bf16.msra.mxu0 0
      %2094 = vmatpush.bf16.msra.mxu0 0
      %2095 = vmatpush.bf16.msra.mxu0 %v1940
      %2096 = vmatmul.bf16.gmra.mxu0 %v1988
      %v2097 = vpop.f32.mrf.mxu0
      %v2098 = vadd.f32 %v1468, %v2097
      %v2099 = vpop.f32.mrf.mxu0
      %v2100 = vadd.f32 %v1470, %v2099
      %2101 = vmatmul.bf16.gmra.mxu0 %v1991
      %v2102 = vpop.f32.mrf.mxu0
      %v2103 = vadd.f32 %v1473, %v2102
      %v2104 = vpop.f32.mrf.mxu0
      %v2105 = vadd.f32 %v1475, %v2104
      %2106 = vdwg.mxu0
      %2107 = vmatpush.bf16.msra.mxu0 0
      %2108 = vmatpush.bf16.msra.mxu0 0
      %2109 = vmatpush.bf16.msra.mxu0 0
      %2110 = vmatpush.bf16.msra.mxu0 0
      %2111 = vmatpush.bf16.msra.mxu0 0
      %2112 = vmatpush.bf16.msra.mxu0 0
      %2113 = vmatpush.bf16.msra.mxu0 0
      %2114 = vmatpush.bf16.msra.mxu0 %v1941
      %2115 = vmatmul.bf16.gmra.mxu0 %v1988
      %v2116 = vpop.f32.mrf.mxu0
      %v2117 = vadd.f32 %v1487, %v2116
      %v2118 = vpop.f32.mrf.mxu0
      %v2119 = vadd.f32 %v1489, %v2118
      %2120 = vmatmul.bf16.gmra.mxu0 %v1991
      %v2121 = vpop.f32.mrf.mxu0
      %v2122 = vadd.f32 %v1492, %v2121
      %v2123 = vpop.f32.mrf.mxu0
      %v2124 = vadd.f32 %v1494, %v2123
      %2125 = vdwg.mxu0
      %2126 = vmatpush.bf16.msra.mxu0 0
      %2127 = vmatpush.bf16.msra.mxu0 0
      %2128 = vmatpush.bf16.msra.mxu0 0
      %2129 = vmatpush.bf16.msra.mxu0 0
      %2130 = vmatpush.bf16.msra.mxu0 0
      %2131 = vmatpush.bf16.msra.mxu0 0
      %2132 = vmatpush.bf16.msra.mxu0 0
      %2133 = vmatpush.bf16.msra.mxu0 %v1942
      %2134 = vmatmul.bf16.gmra.mxu0 %v1988
      %v2135 = vpop.f32.mrf.mxu0
      %v2136 = vadd.f32 %v1506, %v2135
      %v2137 = vpop.f32.mrf.mxu0
      %v2138 = vadd.f32 %v1508, %v2137
      %2139 = vmatmul.bf16.gmra.mxu0 %v1991
      %v2140 = vpop.f32.mrf.mxu0
      %v2141 = vadd.f32 %v1511, %v2140
      %v2142 = vpop.f32.mrf.mxu0
      %v2143 = vadd.f32 %v1513, %v2142
      %2144 = vdwg.mxu0
      %2145 = vmatpush.bf16.msra.mxu0 0
      %2146 = vmatpush.bf16.msra.mxu0 0
      %2147 = vmatpush.bf16.msra.mxu0 0
      %2148 = vmatpush.bf16.msra.mxu0 0
      %2149 = vmatpush.bf16.msra.mxu0 0
      %2150 = vmatpush.bf16.msra.mxu0 0
      %2151 = vmatpush.bf16.msra.mxu0 0
      %2152 = vmatpush.bf16.msra.mxu0 %v1943
      %2153 = vmatmul.bf16.gmra.mxu0 %v1988
      %v2154 = vpop.f32.mrf.mxu0
      %v2155 = vadd.f32 %v1525, %v2154
      %v2156 = vpop.f32.mrf.mxu0
      %v2157 = vadd.f32 %v1527, %v2156
      %2158 = vmatmul.bf16.gmra.mxu0 %v1991
      %v2159 = vpop.f32.mrf.mxu0
      %v2160 = vadd.f32 %v1530, %v2159
      %v2161 = vpop.f32.mrf.mxu0
      %v2162 = vadd.f32 %v1532, %v2161
      %2163 = vdwg.mxu0
      %2164 = vmatpush.bf16.msra.mxu0 0
      %2165 = vmatpush.bf16.msra.mxu0 0
      %2166 = vmatpush.bf16.msra.mxu0 0
      %2167 = vmatpush.bf16.msra.mxu0 0
      %2168 = vmatpush.bf16.msra.mxu0 0
      %2169 = vmatpush.bf16.msra.mxu0 0
      %2170 = vmatpush.bf16.msra.mxu0 0
      %2171 = vmatpush.bf16.msra.mxu0 %v1944
      %2172 = vmatmul.bf16.gmra.mxu0 %v1988
      %v2173 = vpop.f32.mrf.mxu0
      %v2174 = vadd.f32 %v1544, %v2173
      %v2175 = vpop.f32.mrf.mxu0
      %v2176 = vadd.f32 %v1546, %v2175
      %2177 = vmatmul.bf16.gmra.mxu0 %v1991
      %v2178 = vpop.f32.mrf.mxu0
      %v2179 = vadd.f32 %v1549, %v2178
      %v2180 = vpop.f32.mrf.mxu0
      %v2181 = vadd.f32 %v1551, %v2180
      %2182 = vdwg.mxu0
      %2183 = vmatpush.bf16.msra.mxu0 0
      %2184 = vmatpush.bf16.msra.mxu0 0
      %2185 = vmatpush.bf16.msra.mxu0 0
      %2186 = vmatpush.bf16.msra.mxu0 0
      %2187 = vmatpush.bf16.msra.mxu0 0
      %2188 = vmatpush.bf16.msra.mxu0 0
      %2189 = vmatpush.bf16.msra.mxu0 0
      %2190 = vmatpush.bf16.msra.mxu0 %v1945
      %2191 = vmatmul.bf16.gmra.mxu0 %v1988
      %v2192 = vpop.f32.mrf.mxu0
      %v2193 = vadd.f32 %v1563, %v2192
      %v2194 = vpop.f32.mrf.mxu0
      %v2195 = vadd.f32 %v1565, %v2194
      %2196 = vmatmul.bf16.gmra.mxu0 %v1991
      %v2197 = vpop.f32.mrf.mxu0
      %v2198 = vadd.f32 %v1568, %v2197
      %v2199 = vpop.f32.mrf.mxu0
      %v2200 = vadd.f32 %v1570, %v2199
      %2201 = vdwg.mxu0
      %2202 = vmatpush.bf16.msra.mxu0 0
      %2203 = vmatpush.bf16.msra.mxu0 0
      %2204 = vmatpush.bf16.msra.mxu0 0
      %2205 = vmatpush.bf16.msra.mxu0 0
      %2206 = vmatpush.bf16.msra.mxu0 0
      %2207 = vmatpush.bf16.msra.mxu0 0
      %2208 = vmatpush.bf16.msra.mxu0 0
      %2209 = vmatpush.bf16.msra.mxu0 %v1946
      %2210 = vmatmul.bf16.gmra.mxu0 %v1988
      %v2211 = vpop.f32.mrf.mxu0
      %v2212 = vadd.f32 %v1582, %v2211
      %v2213 = vpop.f32.mrf.mxu0
      %v2214 = vadd.f32 %v1584, %v2213
      %2215 = vmatmul.bf16.gmra.mxu0 %v1991
      %v2216 = vpop.f32.mrf.mxu0
      %v2217 = vadd.f32 %v1587, %v2216
      %v2218 = vpop.f32.mrf.mxu0
      %v2219 = vadd.f32 %v1589, %v2218
      %2220 = vdwg.mxu0
      %2221 = vmatpush.bf16.msra.mxu0 0
      %2222 = vmatpush.bf16.msra.mxu0 0
      %2223 = vmatpush.bf16.msra.mxu0 0
      %2224 = vmatpush.bf16.msra.mxu0 0
      %2225 = vmatpush.bf16.msra.mxu0 0
      %2226 = vmatpush.bf16.msra.mxu0 0
      %2227 = vmatpush.bf16.msra.mxu0 0
      %2228 = vmatpush.bf16.msra.mxu0 %v1947
      %2229 = vmatmul.bf16.gmra.mxu0 %v1988
      %v2230 = vpop.f32.mrf.mxu0
      %v2231 = vadd.f32 %v1601, %v2230
      %v2232 = vpop.f32.mrf.mxu0
      %v2233 = vadd.f32 %v1603, %v2232
      %2234 = vmatmul.bf16.gmra.mxu0 %v1991
      %v2235 = vpop.f32.mrf.mxu0
      %v2236 = vadd.f32 %v1606, %v2235
      %v2237 = vpop.f32.mrf.mxu0
      %v2238 = vadd.f32 %v1608, %v2237
      %2239 = vdwg.mxu0
      %2240 = vmatpush.bf16.msra.mxu0 0
      %2241 = vmatpush.bf16.msra.mxu0 0
      %2242 = vmatpush.bf16.msra.mxu0 0
      %2243 = vmatpush.bf16.msra.mxu0 0
      %2244 = vmatpush.bf16.msra.mxu0 0
      %2245 = vmatpush.bf16.msra.mxu0 0
      %2246 = vmatpush.bf16.msra.mxu0 0
      %2247 = vmatpush.bf16.msra.mxu0 %v1948
      %2248 = vmatmul.bf16.gmra.mxu0 %v1988
      %v2249 = vpop.f32.mrf.mxu0
      %v2250 = vadd.f32 %v1620, %v2249
      %v2251 = vpop.f32.mrf.mxu0
      %v2252 = vadd.f32 %v1622, %v2251
      %2253 = vmatmul.bf16.gmra.mxu0 %v1991
      %v2254 = vpop.f32.mrf.mxu0
      %v2255 = vadd.f32 %v1625, %v2254
      %v2256 = vpop.f32.mrf.mxu0
      %v2257 = vadd.f32 %v1627, %v2256
      %2258 = vdwg.mxu0
      %2259 = vmatpush.bf16.msra.mxu0 0
      %2260 = vmatpush.bf16.msra.mxu0 0
      %2261 = vmatpush.bf16.msra.mxu0 0
      %2262 = vmatpush.bf16.msra.mxu0 0
      %2263 = vmatpush.bf16.msra.mxu0 0
      %2264 = vmatpush.bf16.msra.mxu0 0
      %2265 = vmatpush.bf16.msra.mxu0 0
      %2266 = vmatpush.bf16.msra.mxu0 %v1949
      %2267 = vmatmul.bf16.gmra.mxu0 %v1988
      %v2268 = vpop.f32.mrf.mxu0
      %v2269 = vadd.f32 %v1639, %v2268
      %v2270 = vpop.f32.mrf.mxu0
      %v2271 = vadd.f32 %v1641, %v2270
      %2272 = vmatmul.bf16.gmra.mxu0 %v1991
      %v2273 = vpop.f32.mrf.mxu0
      %v2274 = vadd.f32 %v1644, %v2273
      %v2275 = vpop.f32.mrf.mxu0
      %v2276 = vadd.f32 %v1646, %v2275
      %2277 = vdwg.mxu0
      %2278 = vmatpush.bf16.msra.mxu0 0
      %2279 = vmatpush.bf16.msra.mxu0 0
      %2280 = vmatpush.bf16.msra.mxu0 0
      %2281 = vmatpush.bf16.msra.mxu0 0
      %2282 = vmatpush.bf16.msra.mxu0 0
      %2283 = vmatpush.bf16.msra.mxu0 0
      %2284 = vmatpush.bf16.msra.mxu0 0
      %2285 = vmatpush.bf16.msra.mxu0 %v1950
      %2286 = vmatmul.bf16.gmra.mxu0 %v1988
      %v2287 = vpop.f32.mrf.mxu0
      %v2288 = vadd.f32 %v1658, %v2287
      %v2289 = vpop.f32.mrf.mxu0
      %v2290 = vadd.f32 %v1660, %v2289
      %2291 = vmatmul.bf16.gmra.mxu0 %v1991
      %v2292 = vpop.f32.mrf.mxu0
      %v2293 = vadd.f32 %v1663, %v2292
      %v2294 = vpop.f32.mrf.mxu0
      %v2295 = vadd.f32 %v1665, %v2294
      %2296 = vdwg.mxu0
      %2297 = vmatpush.bf16.msra.mxu0 0
      %2298 = vmatpush.bf16.msra.mxu0 0
      %2299 = vmatpush.bf16.msra.mxu0 0
      %2300 = vmatpush.bf16.msra.mxu0 0
      %2301 = vmatpush.bf16.msra.mxu0 0
      %2302 = vmatpush.bf16.msra.mxu0 0
      %2303 = vmatpush.bf16.msra.mxu0 0
      %2304 = vmatpush.bf16.msra.mxu0 %v1951
      %2305 = vmatmul.bf16.gmra.mxu0 %v1988
      %v2306 = vpop.f32.mrf.mxu0
      %v2307 = vadd.f32 %v1677, %v2306
      %v2308 = vpop.f32.mrf.mxu0
      %v2309 = vadd.f32 %v1679, %v2308
      %2310 = vmatmul.bf16.gmra.mxu0 %v1991
      %v2311 = vpop.f32.mrf.mxu0
      %v2312 = vadd.f32 %v1682, %v2311
      %v2313 = vpop.f32.mrf.mxu0
      %v2314 = vadd.f32 %v1684, %v2313
      %2315 = vdwg.mxu0
      %2316 = vmatpush.bf16.msra.mxu0 0
      %2317 = vmatpush.bf16.msra.mxu0 0
      %2318 = vmatpush.bf16.msra.mxu0 0
      %2319 = vmatpush.bf16.msra.mxu0 0
      %2320 = vmatpush.bf16.msra.mxu0 0
      %2321 = vmatpush.bf16.msra.mxu0 0
      %2322 = vmatpush.bf16.msra.mxu0 0
      %2323 = vmatpush.bf16.msra.mxu0 %v1952
      %2324 = vmatmul.bf16.gmra.mxu0 %v1988
      %v2325 = vpop.f32.mrf.mxu0
      %v2326 = vadd.f32 %v1696, %v2325
      %v2327 = vpop.f32.mrf.mxu0
      %v2328 = vadd.f32 %v1698, %v2327
      %2329 = vmatmul.bf16.gmra.mxu0 %v1991
      %v2330 = vpop.f32.mrf.mxu0
      %v2331 = vadd.f32 %v1701, %v2330
      %v2332 = vpop.f32.mrf.mxu0
      %v2333 = vadd.f32 %v1703, %v2332
      %2334 = vdwg.mxu0
      %2335 = vmatpush.bf16.msra.mxu0 0
      %2336 = vmatpush.bf16.msra.mxu0 0
      %2337 = vmatpush.bf16.msra.mxu0 0
      %2338 = vmatpush.bf16.msra.mxu0 0
      %2339 = vmatpush.bf16.msra.mxu0 0
      %2340 = vmatpush.bf16.msra.mxu0 0
      %2341 = vmatpush.bf16.msra.mxu0 0
      %2342 = vmatpush.bf16.msra.mxu0 %v1953
      %2343 = vmatmul.bf16.gmra.mxu0 %v1988
      %v2344 = vpop.f32.mrf.mxu0
      %v2345 = vadd.f32 %v1715, %v2344
      %v2346 = vpop.f32.mrf.mxu0
      %v2347 = vadd.f32 %v1717, %v2346
      %2348 = vmatmul.bf16.gmra.mxu0 %v1991
      %v2349 = vpop.f32.mrf.mxu0
      %v2350 = vadd.f32 %v1720, %v2349
      %v2351 = vpop.f32.mrf.mxu0
      %v2352 = vadd.f32 %v1722, %v2351
      %2353 = vdwg.mxu0
      %2354 = vmatpush.bf16.msra.mxu0 0
      %2355 = vmatpush.bf16.msra.mxu0 0
      %2356 = vmatpush.bf16.msra.mxu0 0
      %2357 = vmatpush.bf16.msra.mxu0 0
      %2358 = vmatpush.bf16.msra.mxu0 0
      %2359 = vmatpush.bf16.msra.mxu0 0
      %2360 = vmatpush.bf16.msra.mxu0 0
      %2361 = vmatpush.bf16.msra.mxu0 %v1954
      %2362 = vmatmul.bf16.gmra.mxu0 %v1988
      %v2363 = vpop.f32.mrf.mxu0
      %v2364 = vadd.f32 %v1734, %v2363
      %v2365 = vpop.f32.mrf.mxu0
      %v2366 = vadd.f32 %v1736, %v2365
      %2367 = vmatmul.bf16.gmra.mxu0 %v1991
      %v2368 = vpop.f32.mrf.mxu0
      %v2369 = vadd.f32 %v1739, %v2368
      %v2370 = vpop.f32.mrf.mxu0
      %v2371 = vadd.f32 %v1741, %v2370
      %2372 = vdwg.mxu0
      %2373 = vmatpush.bf16.msra.mxu0 0
      %2374 = vmatpush.bf16.msra.mxu0 0
      %2375 = vmatpush.bf16.msra.mxu0 0
      %2376 = vmatpush.bf16.msra.mxu0 0
      %2377 = vmatpush.bf16.msra.mxu0 0
      %2378 = vmatpush.bf16.msra.mxu0 0
      %2379 = vmatpush.bf16.msra.mxu0 0
      %2380 = vmatpush.bf16.msra.mxu0 %v1955
      %2381 = vmatmul.bf16.gmra.mxu0 %v1988
      %v2382 = vpop.f32.mrf.mxu0
      %v2383 = vadd.f32 %v1753, %v2382
      %v2384 = vpop.f32.mrf.mxu0
      %v2385 = vadd.f32 %v1755, %v2384
      %2386 = vmatmul.bf16.gmra.mxu0 %v1991
      %v2387 = vpop.f32.mrf.mxu0
      %v2388 = vadd.f32 %v1758, %v2387
      %v2389 = vpop.f32.mrf.mxu0
      %v2390 = vadd.f32 %v1760, %v2389
      %2391 = vdwg.mxu0
      %2392 = vmatpush.bf16.msra.mxu0 0
      %2393 = vmatpush.bf16.msra.mxu0 0
      %2394 = vmatpush.bf16.msra.mxu0 0
      %2395 = vmatpush.bf16.msra.mxu0 0
      %2396 = vmatpush.bf16.msra.mxu0 0
      %2397 = vmatpush.bf16.msra.mxu0 0
      %2398 = vmatpush.bf16.msra.mxu0 0
      %2399 = vmatpush.bf16.msra.mxu0 %v1956
      %2400 = vmatmul.bf16.gmra.mxu0 %v1988
      %v2401 = vpop.f32.mrf.mxu0
      %v2402 = vadd.f32 %v1772, %v2401
      %v2403 = vpop.f32.mrf.mxu0
      %v2404 = vadd.f32 %v1774, %v2403
      %2405 = vmatmul.bf16.gmra.mxu0 %v1991
      %v2406 = vpop.f32.mrf.mxu0
      %v2407 = vadd.f32 %v1777, %v2406
      %v2408 = vpop.f32.mrf.mxu0
      %v2409 = vadd.f32 %v1779, %v2408
      %2410 = vdwg.mxu0
      %2411 = vmatpush.bf16.msra.mxu0 0
      %2412 = vmatpush.bf16.msra.mxu0 0
      %2413 = vmatpush.bf16.msra.mxu0 0
      %2414 = vmatpush.bf16.msra.mxu0 0
      %2415 = vmatpush.bf16.msra.mxu0 0
      %2416 = vmatpush.bf16.msra.mxu0 0
      %2417 = vmatpush.bf16.msra.mxu0 0
      %2418 = vmatpush.bf16.msra.mxu0 %v1957
      %2419 = vmatmul.bf16.gmra.mxu0 %v1988
      %v2420 = vpop.f32.mrf.mxu0
      %v2421 = vadd.f32 %v1791, %v2420
      %v2422 = vpop.f32.mrf.mxu0
      %v2423 = vadd.f32 %v1793, %v2422
      %2424 = vmatmul.bf16.gmra.mxu0 %v1991
      %v2425 = vpop.f32.mrf.mxu0
      %v2426 = vadd.f32 %v1796, %v2425
      %v2427 = vpop.f32.mrf.mxu0
      %v2428 = vadd.f32 %v1798, %v2427
      %2429 = vdwg.mxu0
      %2430 = vmatpush.bf16.msra.mxu0 0
      %2431 = vmatpush.bf16.msra.mxu0 0
      %2432 = vmatpush.bf16.msra.mxu0 0
      %2433 = vmatpush.bf16.msra.mxu0 0
      %2434 = vmatpush.bf16.msra.mxu0 0
      %2435 = vmatpush.bf16.msra.mxu0 0
      %2436 = vmatpush.bf16.msra.mxu0 0
      %2437 = vmatpush.bf16.msra.mxu0 %v1958
      %2438 = vmatmul.bf16.gmra.mxu0 %v1988
      %v2439 = vpop.f32.mrf.mxu0
      %v2440 = vadd.f32 %v1810, %v2439
      %v2441 = vpop.f32.mrf.mxu0
      %v2442 = vadd.f32 %v1812, %v2441
      %2443 = vmatmul.bf16.gmra.mxu0 %v1991
      %v2444 = vpop.f32.mrf.mxu0
      %v2445 = vadd.f32 %v1815, %v2444
      %v2446 = vpop.f32.mrf.mxu0
      %v2447 = vadd.f32 %v1817, %v2446
      %2448 = vdwg.mxu0
      %2449 = vmatpush.bf16.msra.mxu0 0
      %2450 = vmatpush.bf16.msra.mxu0 0
      %2451 = vmatpush.bf16.msra.mxu0 0
      %2452 = vmatpush.bf16.msra.mxu0 0
      %2453 = vmatpush.bf16.msra.mxu0 0
      %2454 = vmatpush.bf16.msra.mxu0 0
      %2455 = vmatpush.bf16.msra.mxu0 0
      %2456 = vmatpush.bf16.msra.mxu0 %v1959
      %2457 = vmatmul.bf16.gmra.mxu0 %v1988
      %v2458 = vpop.f32.mrf.mxu0
      %v2459 = vadd.f32 %v1829, %v2458
      %v2460 = vpop.f32.mrf.mxu0
      %v2461 = vadd.f32 %v1831, %v2460
      %2462 = vmatmul.bf16.gmra.mxu0 %v1991
      %v2463 = vpop.f32.mrf.mxu0
      %v2464 = vadd.f32 %v1834, %v2463
      %v2465 = vpop.f32.mrf.mxu0
      %v2466 = vadd.f32 %v1836, %v2465
      %2467 = vdwg.mxu0
      %2468 = vmatpush.bf16.msra.mxu0 0
      %2469 = vmatpush.bf16.msra.mxu0 0
      %2470 = vmatpush.bf16.msra.mxu0 0
      %2471 = vmatpush.bf16.msra.mxu0 0
      %2472 = vmatpush.bf16.msra.mxu0 0
      %2473 = vmatpush.bf16.msra.mxu0 0
      %2474 = vmatpush.bf16.msra.mxu0 0
      %2475 = vmatpush.bf16.msra.mxu0 %v1960
      %2476 = vmatmul.bf16.gmra.mxu0 %v1988
      %v2477 = vpop.f32.mrf.mxu0
      %v2478 = vadd.f32 %v1848, %v2477
      %v2479 = vpop.f32.mrf.mxu0
      %v2480 = vadd.f32 %v1850, %v2479
      %2481 = vmatmul.bf16.gmra.mxu0 %v1991
      %v2482 = vpop.f32.mrf.mxu0
      %v2483 = vadd.f32 %v1853, %v2482
      %v2484 = vpop.f32.mrf.mxu0
      %v2485 = vadd.f32 %v1855, %v2484
      %2486 = vdwg.mxu0
      %v2487 = vmul.f32 %v2003, %v2250
      %v2488 = vmul.f32 %v2022, %v2269
      %v2489 = vmul.f32 %v2041, %v2288
      %v2490 = vmul.f32 %v2060, %v2307
      %v2491 = vmul.f32 %v2079, %v2326
      %v2492 = vmul.f32 %v2098, %v2345
      %v2493 = vmul.f32 %v2117, %v2364
      %v2494 = vmul.f32 %v2136, %v2383
      %v2495 = vmul.f32 %v2155, %v2402
      %v2496 = vmul.f32 %v2174, %v2421
      %v2497 = vmul.f32 %v2193, %v2440
      %v2498 = vmul.f32 %v2212, %v2459
      %v2499 = vmul.f32 %v2231, %v2478
      %v2500 = vmul.f32 %v2005, %v2252
      %v2501 = vmul.f32 %v2024, %v2271
      %v2502 = vmul.f32 %v2043, %v2290
      %v2503 = vmul.f32 %v2062, %v2309
      %v2504 = vmul.f32 %v2081, %v2328
      %v2505 = vmul.f32 %v2100, %v2347
      %v2506 = vmul.f32 %v2119, %v2366
      %v2507 = vmul.f32 %v2138, %v2385
      %v2508 = vmul.f32 %v2157, %v2404
      %v2509 = vmul.f32 %v2176, %v2423
      %v2510 = vmul.f32 %v2195, %v2442
      %v2511 = vmul.f32 %v2214, %v2461
      %v2512 = vmul.f32 %v2233, %v2480
      %v2513 = vmul.f32 %v2008, %v2255
      %v2514 = vmul.f32 %v2027, %v2274
      %v2515 = vmul.f32 %v2046, %v2293
      %v2516 = vmul.f32 %v2065, %v2312
      %v2517 = vmul.f32 %v2084, %v2331
      %v2518 = vmul.f32 %v2103, %v2350
      %v2519 = vmul.f32 %v2122, %v2369
      %v2520 = vmul.f32 %v2141, %v2388
      %v2521 = vmul.f32 %v2160, %v2407
      %v2522 = vmul.f32 %v2179, %v2426
      %v2523 = vmul.f32 %v2198, %v2445
      %v2524 = vmul.f32 %v2217, %v2464
      %v2525 = vmul.f32 %v2236, %v2483
      %v2526 = vmul.f32 %v2010, %v2257
      %v2527 = vmul.f32 %v2029, %v2276
      %v2528 = vmul.f32 %v2048, %v2295
      %v2529 = vmul.f32 %v2067, %v2314
      %v2530 = vmul.f32 %v2086, %v2333
      %v2531 = vmul.f32 %v2105, %v2352
      %v2532 = vmul.f32 %v2124, %v2371
      %v2533 = vmul.f32 %v2143, %v2390
      %v2534 = vmul.f32 %v2162, %v2409
      %v2535 = vmul.f32 %v2181, %v2428
      %v2536 = vmul.f32 %v2200, %v2447
      %v2537 = vmul.f32 %v2219, %v2466
      %v2538 = vmul.f32 %v2238, %v2485
      %v2539 = vpack.c.bf16 %v2500, %v2487
      %v2540 = vpack.c.bf16 %v2501, %v2488
      %v2541 = vpack.c.bf16 %v2502, %v2489
      %v2542 = vpack.c.bf16 %v2503, %v2490
      %v2543 = vpack.c.bf16 %v2504, %v2491
      %v2544 = vpack.c.bf16 %v2505, %v2492
      %v2545 = vpack.c.bf16 %v2506, %v2493
      %v2546 = vpack.c.bf16 %v2507, %v2494
      %v2547 = vpack.c.bf16 %v2508, %v2495
      %v2548 = vpack.c.bf16 %v2509, %v2496
      %v2549 = vpack.c.bf16 %v2510, %v2497
      %v2550 = vpack.c.bf16 %v2511, %v2498
      %v2551 = vpack.c.bf16 %v2512, %v2499
      %v2552 = vpack.c.bf16 %v2526, %v2513
      %v2553 = vpack.c.bf16 %v2527, %v2514
      %v2554 = vpack.c.bf16 %v2528, %v2515
      %v2555 = vpack.c.bf16 %v2529, %v2516
      %v2556 = vpack.c.bf16 %v2530, %v2517
      %v2557 = vpack.c.bf16 %v2531, %v2518
      %v2558 = vpack.c.bf16 %v2532, %v2519
      %v2559 = vpack.c.bf16 %v2533, %v2520
      %v2560 = vpack.c.bf16 %v2534, %v2521
      %v2561 = vpack.c.bf16 %v2535, %v2522
      %v2562 = vpack.c.bf16 %v2536, %v2523
      %v2563 = vpack.c.bf16 %v2537, %v2524
      %v2564 = vpack.c.bf16 %v2538, %v2525
      %v2565 = vld [vmem:[%s11] sm:$0xf]
      %v2566 = vld [vmem:[%s11 + $0x4] sm:$0xf]
      %v2567 = vld [vmem:[%s11 + $0x8] sm:$0xf]
      %v2568 = vld [vmem:[%s11 + $0xc] sm:$0xf]
      %v2569 = vld [vmem:[%s11 + $0x10] sm:$0xf]
      %v2570 = vld [vmem:[%s11 + $0x14] sm:$0xf]
      %v2571 = vld [vmem:[%s11 + $0x18] sm:$0xf]
      %v2572 = vld [vmem:[%s11 + $0x1c] sm:$0xf]
      %v2573 = vld [vmem:[%s11 + $0x20] sm:$0xf]
      %v2574 = vld [vmem:[%s11 + $0x24] sm:$0xf]
      %v2575 = vld [vmem:[%s11 + $0x28] sm:$0xf]
      %v2576 = vld [vmem:[%s11 + $0x2c] sm:$0xf]
      %v2577 = vld [vmem:[%s11 + $0x30] sm:$0xf]
      %v2578 = vld [vmem:[%s11 + $0x34] sm:$0xf]
      %v2579 = vld [vmem:[%s11 + $0x38] sm:$0xf]
      %v2580 = vld [vmem:[%s11 + $0x3c] sm:$0xf]
      %v2581 = vld [vmem:[%s11 + $0x40] sm:$0xf]
      %v2582 = vld [vmem:[%s11 + $0x44] sm:$0xf]
      %v2583 = vld [vmem:[%s11 + $0x48] sm:$0xf]
      %v2584 = vld [vmem:[%s11 + $0x4c] sm:$0xf]
      %v2585 = vld [vmem:[%s11 + $0x50] sm:$0xf]
      %v2586 = vld [vmem:[%s11 + $0x54] sm:$0xf]
      %v2587 = vld [vmem:[%s11 + $0x58] sm:$0xf]
      %v2588 = vld [vmem:[%s11 + $0x5c] sm:$0xf]
      %v2589 = vld [vmem:[%s11 + $0x60] sm:$0xf]
      %v2590 = vld [vmem:[%s11 + $0x64] sm:$0xf]
      %v2591 = vld [vmem:[%s11 + $0x68] sm:$0xf]
      %v2592 = vld [vmem:[%s11 + $0x6c] sm:$0xf]
      %v2593 = vld [vmem:[%s11 + $0x70] sm:$0xf]
      %v2594 = vld [vmem:[%s11 + $0x74] sm:$0xf]
      %v2595 = vld [vmem:[%s11 + $0x78] sm:$0xf]
      %v2596 = vld [vmem:[%s11 + $0x7c] sm:$0xf]
      %v2597 = vld [vmem:[%s11 + $0x80] sm:$0xf]
      %v2598 = vld [vmem:[%s11 + $0x84] sm:$0xf]
      %v2599 = vld [vmem:[%s11 + $0x88] sm:$0xf]
      %v2600 = vld [vmem:[%s11 + $0x8c] sm:$0xf]
      %v2601 = vld [vmem:[%s11 + $0x90] sm:$0xf]
      %v2602 = vld [vmem:[%s11 + $0x94] sm:$0xf]
      %v2603 = vld [vmem:[%s11 + $0x98] sm:$0xf]
      %v2604 = vld [vmem:[%s11 + $0x9c] sm:$0xf]
      %v2605 = vld [vmem:[%s11 + $0xa0] sm:$0xf]
      %v2606 = vld [vmem:[%s11 + $0xa4] sm:$0xf]
      %v2607 = vld [vmem:[%s11 + $0xa8] sm:$0xf]
      %v2608 = vld [vmem:[%s11 + $0xac] sm:$0xf]
      %v2609 = vld [vmem:[%s11 + $0xb0] sm:$0xf]
      %v2610 = vld [vmem:[%s11 + $0xb4] sm:$0xf]
      %v2611 = vld [vmem:[%s11 + $0xb8] sm:$0xf]
      %v2612 = vld [vmem:[%s11 + $0xbc] sm:$0xf]
      %v2613 = vld [vmem:[%s11 + $0xc0] sm:$0xf]
      %v2614 = vld [vmem:[%s11 + $0xc4] sm:$0xf]
      %v2615 = vld [vmem:[%s11 + $0xc8] sm:$0xf]
      %v2616 = vld [vmem:[%s11 + $0xcc] sm:$0xf]
      %v2617 = vld [vmem:[%s11 + $0xd0] sm:$0xf]
      %v2618 = vld [vmem:[%s11 + $0xd4] sm:$0xf]
      %v2619 = vld [vmem:[%s11 + $0xd8] sm:$0xf]
      %v2620 = vld [vmem:[%s11 + $0xdc] sm:$0xf]
      %v2621 = vld [vmem:[%s11 + $0xe0] sm:$0xf]
      %v2622 = vld [vmem:[%s11 + $0xe4] sm:$0xf]
      %v2623 = vld [vmem:[%s11 + $0xe8] sm:$0xf]
      %v2624 = vld [vmem:[%s11 + $0xec] sm:$0xf]
      %v2625 = vld [vmem:[%s11 + $0xf0] sm:$0xf]
      %v2626 = vld [vmem:[%s11 + $0xf4] sm:$0xf]
      %v2627 = vld [vmem:[%s11 + $0xf8] sm:$0xf]
      %v2628 = vld [vmem:[%s11 + $0xfc] sm:$0xf]
      %v2629 = vld [vmem:[%s11 + $0x100] sm:$0xf]
      %v2630 = vld [vmem:[%s11 + $0x104] sm:$0xf]
      %v2631 = vld [vmem:[%s11 + $0x108] sm:$0xf]
      %v2632 = vld [vmem:[%s11 + $0x10c] sm:$0xf]
      %v2633 = vld [vmem:[%s11 + $0x110] sm:$0xf]
      %v2634 = vld [vmem:[%s11 + $0x114] sm:$0xf]
      %v2635 = vld [vmem:[%s11 + $0x118] sm:$0xf]
      %v2636 = vld [vmem:[%s11 + $0x11c] sm:$0xf]
      %v2637 = vld [vmem:[%s11 + $0x120] sm:$0xf]
      %v2638 = vld [vmem:[%s11 + $0x124] sm:$0xf]
      %v2639 = vld [vmem:[%s11 + $0x128] sm:$0xf]
      %v2640 = vld [vmem:[%s11 + $0x12c] sm:$0xf]
      %v2641 = vld [vmem:[%s11 + $0x130] sm:$0xf]
      %v2642 = vld [vmem:[%s11 + $0x134] sm:$0xf]
      %v2643 = vld [vmem:[%s11 + $0x138] sm:$0xf]
      %v2644 = vld [vmem:[%s11 + $0x13c] sm:$0xf]
      %v2645 = vld [vmem:[%s11 + $0x140] sm:$0xf]
      %v2646 = vld [vmem:[%s11 + $0x144] sm:$0xf]
      %v2647 = vld [vmem:[%s11 + $0x148] sm:$0xf]
      %v2648 = vld [vmem:[%s11 + $0x14c] sm:$0xf]
      %v2649 = vld [vmem:[%s11 + $0x150] sm:$0xf]
      %v2650 = vld [vmem:[%s11 + $0x154] sm:$0xf]
      %v2651 = vld [vmem:[%s11 + $0x158] sm:$0xf]
      %v2652 = vld [vmem:[%s11 + $0x15c] sm:$0xf]
      %v2653 = vld [vmem:[%s11 + $0x160] sm:$0xf]
      %v2654 = vld [vmem:[%s11 + $0x164] sm:$0xf]
      %v2655 = vld [vmem:[%s11 + $0x168] sm:$0xf]
      %v2656 = vld [vmem:[%s11 + $0x16c] sm:$0xf]
      %v2657 = vld [vmem:[%s11 + $0x170] sm:$0xf]
      %v2658 = vld [vmem:[%s11 + $0x174] sm:$0xf]
      %v2659 = vld [vmem:[%s11 + $0x178] sm:$0xf]
      %v2660 = vld [vmem:[%s11 + $0x17c] sm:$0xf]
      %v2661 = vld [vmem:[%s11 + $0x180] sm:$0xf]
      %v2662 = vld [vmem:[%s11 + $0x184] sm:$0xf]
      %v2663 = vld [vmem:[%s11 + $0x188] sm:$0xf]
      %v2664 = vld [vmem:[%s11 + $0x18c] sm:$0xf]
      %v2665 = vld [vmem:[%s11 + $0x190] sm:$0xf]
      %v2666 = vld [vmem:[%s11 + $0x194] sm:$0xf]
      %v2667 = vld [vmem:[%s11 + $0x198] sm:$0xf]
      %v2668 = vld [vmem:[%s11 + $0x19c] sm:$0xf]
      %v2669 = vld [vmem:[%s11 + $0x1a0] sm:$0xf]
      %v2670 = vld [vmem:[%s11 + $0x1a4] sm:$0xf]
      %v2671 = vld [vmem:[%s11 + $0x1a8] sm:$0xf]
      %v2672 = vld [vmem:[%s11 + $0x1ac] sm:$0xf]
      %v2673 = vld [vmem:[%s11 + $0x1b0] sm:$0xf]
      %v2674 = vld [vmem:[%s11 + $0x1b4] sm:$0xf]
      %v2675 = vld [vmem:[%s11 + $0x1b8] sm:$0xf]
      %v2676 = vld [vmem:[%s11 + $0x1bc] sm:$0xf]
      %v2677 = vld [vmem:[%s11 + $0x1c0] sm:$0xf]
      %v2678 = vld [vmem:[%s11 + $0x1c4] sm:$0xf]
      %v2679 = vld [vmem:[%s11 + $0x1c8] sm:$0xf]
      %v2680 = vld [vmem:[%s11 + $0x1cc] sm:$0xf]
      %v2681 = vld [vmem:[%s11 + $0x1d0] sm:$0xf]
      %v2682 = vld [vmem:[%s11 + $0x1d4] sm:$0xf]
      %v2683 = vld [vmem:[%s11 + $0x1d8] sm:$0xf]
      %v2684 = vld [vmem:[%s11 + $0x1dc] sm:$0xf]
      %v2685 = vld [vmem:[%s11 + $0x1e0] sm:$0xf]
      %v2686 = vld [vmem:[%s11 + $0x1e4] sm:$0xf]
      %v2687 = vld [vmem:[%s11 + $0x1e8] sm:$0xf]
      %v2688 = vld [vmem:[%s11 + $0x1ec] sm:$0xf]
      %v2689 = vld [vmem:[%s11 + $0x1f0] sm:$0xf]
      %v2690 = vld [vmem:[%s11 + $0x1f4] sm:$0xf]
      %v2691 = vld [vmem:[%s11 + $0x1f8] sm:$0xf]
      %v2692 = vld [vmem:[%s11 + $0x1fc] sm:$0xf]
      %v2693 = vld [vmem:[%s11 + $0x200] sm:$0xf]
      %v2694 = vld [vmem:[%s11 + $0x204] sm:$0xf]
      %v2695 = vld [vmem:[%s11 + $0x208] sm:$0xf]
      %v2696 = vld [vmem:[%s11 + $0x20c] sm:$0xf]
      %v2697 = vld [vmem:[%s11 + $0x210] sm:$0xf]
      %v2698 = vld [vmem:[%s11 + $0x214] sm:$0xf]
      %v2699 = vld [vmem:[%s11 + $0x218] sm:$0xf]
      %v2700 = vld [vmem:[%s11 + $0x21c] sm:$0xf]
      %v2701 = vld [vmem:[%s11 + $0x220] sm:$0xf]
      %v2702 = vld [vmem:[%s11 + $0x224] sm:$0xf]
      %v2703 = vld [vmem:[%s11 + $0x228] sm:$0xf]
      %v2704 = vld [vmem:[%s11 + $0x22c] sm:$0xf]
      %v2705 = vld [vmem:[%s11 + $0x230] sm:$0xf]
      %v2706 = vld [vmem:[%s11 + $0x234] sm:$0xf]
      %v2707 = vld [vmem:[%s11 + $0x238] sm:$0xf]
      %v2708 = vld [vmem:[%s11 + $0x23c] sm:$0xf]
      %v2709 = vld [vmem:[%s11 + $0x240] sm:$0xf]
      %v2710 = vld [vmem:[%s11 + $0x244] sm:$0xf]
      %v2711 = vld [vmem:[%s11 + $0x248] sm:$0xf]
      %v2712 = vld [vmem:[%s11 + $0x24c] sm:$0xf]
      %v2713 = vld [vmem:[%s11 + $0x250] sm:$0xf]
      %v2714 = vld [vmem:[%s11 + $0x254] sm:$0xf]
      %v2715 = vld [vmem:[%s11 + $0x258] sm:$0xf]
      %v2716 = vld [vmem:[%s11 + $0x25c] sm:$0xf]
      %v2717 = vld [vmem:[%s11 + $0x260] sm:$0xf]
      %v2718 = vld [vmem:[%s11 + $0x264] sm:$0xf]
      %v2719 = vld [vmem:[%s11 + $0x268] sm:$0xf]
      %v2720 = vld [vmem:[%s11 + $0x26c] sm:$0xf]
      %v2721 = vld [vmem:[%s11 + $0x270] sm:$0xf]
      %v2722 = vld [vmem:[%s11 + $0x274] sm:$0xf]
      %v2723 = vld [vmem:[%s11 + $0x278] sm:$0xf]
      %v2724 = vld [vmem:[%s11 + $0x27c] sm:$0xf]
      %v2725 = vld [vmem:[%s11 + $0x280] sm:$0xf]
      %v2726 = vld [vmem:[%s11 + $0x284] sm:$0xf]
      %v2727 = vld [vmem:[%s11 + $0x288] sm:$0xf]
      %v2728 = vld [vmem:[%s11 + $0x28c] sm:$0xf]
      %v2729 = vld [vmem:[%s11 + $0x290] sm:$0xf]
      %v2730 = vld [vmem:[%s11 + $0x294] sm:$0xf]
      %v2731 = vld [vmem:[%s11 + $0x298] sm:$0xf]
      %v2732 = vld [vmem:[%s11 + $0x29c] sm:$0xf]
      %v2733 = vld [vmem:[%s11 + $0x2a0] sm:$0xf]
      %v2734 = vld [vmem:[%s11 + $0x2a4] sm:$0xf]
      %v2735 = vld [vmem:[%s11 + $0x2a8] sm:$0xf]
      %v2736 = vld [vmem:[%s11 + $0x2ac] sm:$0xf]
      %v2737 = vld [vmem:[%s11 + $0x2b0] sm:$0xf]
      %v2738 = vld [vmem:[%s11 + $0x2b4] sm:$0xf]
      %v2739 = vld [vmem:[%s11 + $0x2b8] sm:$0xf]
      %v2740 = vld [vmem:[%s11 + $0x2bc] sm:$0xf]
      %v2741 = vld [vmem:[%s11 + $0x2c0] sm:$0xf]
      %v2742 = vld [vmem:[%s11 + $0x2c4] sm:$0xf]
      %v2743 = vld [vmem:[%s11 + $0x2c8] sm:$0xf]
      %v2744 = vld [vmem:[%s11 + $0x2cc] sm:$0xf]
      %v2745 = vld [vmem:[%s11 + $0x2d0] sm:$0xf]
      %v2746 = vld [vmem:[%s11 + $0x2d4] sm:$0xf]
      %v2747 = vld [vmem:[%s11 + $0x2d8] sm:$0xf]
      %v2748 = vld [vmem:[%s11 + $0x2dc] sm:$0xf]
      %v2749 = vld [vmem:[%s11 + $0x2e0] sm:$0xf]
      %v2750 = vld [vmem:[%s11 + $0x2e4] sm:$0xf]
      %v2751 = vld [vmem:[%s11 + $0x2e8] sm:$0xf]
      %v2752 = vld [vmem:[%s11 + $0x2ec] sm:$0xf]
      %v2753 = vld [vmem:[%s11 + $0x2f0] sm:$0xf]
      %v2754 = vld [vmem:[%s11 + $0x2f4] sm:$0xf]
      %v2755 = vld [vmem:[%s11 + $0x2f8] sm:$0xf]
      %v2756 = vld [vmem:[%s11 + $0x2fc] sm:$0xf]
      %v2757 = vld [vmem:[%s11 + $0x300] sm:$0xf]
      %v2758 = vld [vmem:[%s11 + $0x304] sm:$0xf]
      %v2759 = vld [vmem:[%s11 + $0x308] sm:$0xf]
      %v2760 = vld [vmem:[%s11 + $0x30c] sm:$0xf]
      %v2761 = vld [vmem:[%s11 + $0x310] sm:$0xf]
      %v2762 = vld [vmem:[%s11 + $0x314] sm:$0xf]
      %v2763 = vld [vmem:[%s11 + $0x318] sm:$0xf]
      %v2764 = vld [vmem:[%s11 + $0x31c] sm:$0xf]
      %v2765 = vld [vmem:[%s11 + $0x320] sm:$0xf]
      %v2766 = vld [vmem:[%s11 + $0x324] sm:$0xf]
      %v2767 = vld [vmem:[%s11 + $0x328] sm:$0xf]
      %v2768 = vld [vmem:[%s11 + $0x32c] sm:$0xf]
      %v2769 = vld [vmem:[%s11 + $0x330] sm:$0xf]
      %v2770 = vld [vmem:[%s11 + $0x334] sm:$0xf]
      %v2771 = vld [vmem:[%s11 + $0x338] sm:$0xf]
      %v2772 = vld [vmem:[%s11 + $0x33c] sm:$0xf]
      %v2773 = vld [vmem:[%s12] sm:$0xf]
      %v2774 = vld [vmem:[%s12 + $0x4] sm:$0xf]
      %v2777 = vunpack.c.l.b16 %v2773
      %v2778 = vunpack.c.l.b16 %v2774
      %v2779 = vpack.c.b16 %v2778, %v2777
      %2781 = vmatpush.bf16.msra.mxu0 0
      %2782 = vmatpush.bf16.msra.mxu0 0
      %2783 = vmatpush.bf16.msra.mxu0 0
      %2784 = vmatpush.bf16.msra.mxu0 0
      %2785 = vmatpush.bf16.msra.mxu0 0
      %2786 = vmatpush.bf16.msra.mxu0 0
      %2787 = vmatpush.bf16.msra.mxu0 0
      %2788 = vmatpush.bf16.msra.mxu0 %v2779
      %2789 = vmatmul.bf16.gmra.mxu0 %v1988
      %v2790 = vpop.f32.mrf.mxu0
      %v2791 = vadd.f32 0.0, %v2790
      %v2792 = vpop.f32.mrf.mxu0
      %v2793 = vadd.f32 0.0, %v2792
      %2794 = vmatmul.bf16.gmra.mxu0 %v1991
      %v2795 = vpop.f32.mrf.mxu0
      %v2796 = vadd.f32 0.0, %v2795
      %v2797 = vpop.f32.mrf.mxu0
      %v2798 = vadd.f32 0.0, %v2797
      %2799 = vdwg.mxu0
      %v3008 = vunpack.c.l.b16 %v2565
      %v3009 = vunpack.c.l.b16 %v2566
      %v3010 = vunpack.c.l.b16 %v2567
      %v3011 = vunpack.c.l.b16 %v2568
      %v3012 = vunpack.c.l.b16 %v2569
      %v3013 = vunpack.c.l.b16 %v2570
      %v3014 = vunpack.c.l.b16 %v2571
      %v3015 = vunpack.c.l.b16 %v2572
      %v3016 = vunpack.c.l.b16 %v2573
      %v3017 = vunpack.c.l.b16 %v2574
      %v3018 = vunpack.c.l.b16 %v2575
      %v3019 = vunpack.c.l.b16 %v2576
      %v3020 = vunpack.c.l.b16 %v2577
      %v3021 = vunpack.c.l.b16 %v2578
      %v3022 = vunpack.c.l.b16 %v2579
      %v3023 = vunpack.c.l.b16 %v2580
      %v3024 = vunpack.c.l.b16 %v2581
      %v3025 = vunpack.c.l.b16 %v2582
      %v3026 = vunpack.c.l.b16 %v2583
      %v3027 = vunpack.c.l.b16 %v2584
      %v3028 = vunpack.c.l.b16 %v2585
      %v3029 = vunpack.c.l.b16 %v2586
      %v3030 = vunpack.c.l.b16 %v2587
      %v3031 = vunpack.c.l.b16 %v2588
      %v3032 = vunpack.c.l.b16 %v2589
      %v3033 = vunpack.c.l.b16 %v2590
      %v3034 = vunpack.c.l.b16 %v2591
      %v3035 = vunpack.c.l.b16 %v2592
      %v3036 = vunpack.c.l.b16 %v2593
      %v3037 = vunpack.c.l.b16 %v2594
      %v3038 = vunpack.c.l.b16 %v2595
      %v3039 = vunpack.c.l.b16 %v2596
      %v3040 = vunpack.c.l.b16 %v2597
      %v3041 = vunpack.c.l.b16 %v2598
      %v3042 = vunpack.c.l.b16 %v2599
      %v3043 = vunpack.c.l.b16 %v2600
      %v3044 = vunpack.c.l.b16 %v2601
      %v3045 = vunpack.c.l.b16 %v2602
      %v3046 = vunpack.c.l.b16 %v2603
      %v3047 = vunpack.c.l.b16 %v2604
      %v3048 = vunpack.c.l.b16 %v2605
      %v3049 = vunpack.c.l.b16 %v2606
      %v3050 = vunpack.c.l.b16 %v2607
      %v3051 = vunpack.c.l.b16 %v2608
      %v3052 = vunpack.c.l.b16 %v2609
      %v3053 = vunpack.c.l.b16 %v2610
      %v3054 = vunpack.c.l.b16 %v2611
      %v3055 = vunpack.c.l.b16 %v2612
      %v3056 = vunpack.c.l.b16 %v2613
      %v3057 = vunpack.c.l.b16 %v2614
      %v3058 = vunpack.c.l.b16 %v2615
      %v3059 = vunpack.c.l.b16 %v2616
      %v3060 = vunpack.c.l.b16 %v2617
      %v3061 = vunpack.c.l.b16 %v2618
      %v3062 = vunpack.c.l.b16 %v2619
      %v3063 = vunpack.c.l.b16 %v2620
      %v3064 = vunpack.c.l.b16 %v2621
      %v3065 = vunpack.c.l.b16 %v2622
      %v3066 = vunpack.c.l.b16 %v2623
      %v3067 = vunpack.c.l.b16 %v2624
      %v3068 = vunpack.c.l.b16 %v2625
      %v3069 = vunpack.c.l.b16 %v2626
      %v3070 = vunpack.c.l.b16 %v2627
      %v3071 = vunpack.c.l.b16 %v2628
      %v3072 = vunpack.c.l.b16 %v2629
      %v3073 = vunpack.c.l.b16 %v2630
      %v3074 = vunpack.c.l.b16 %v2631
      %v3075 = vunpack.c.l.b16 %v2632
      %v3076 = vunpack.c.l.b16 %v2633
      %v3077 = vunpack.c.l.b16 %v2634
      %v3078 = vunpack.c.l.b16 %v2635
      %v3079 = vunpack.c.l.b16 %v2636
      %v3080 = vunpack.c.l.b16 %v2637
      %v3081 = vunpack.c.l.b16 %v2638
      %v3082 = vunpack.c.l.b16 %v2639
      %v3083 = vunpack.c.l.b16 %v2640
      %v3084 = vunpack.c.l.b16 %v2641
      %v3085 = vunpack.c.l.b16 %v2642
      %v3086 = vunpack.c.l.b16 %v2643
      %v3087 = vunpack.c.l.b16 %v2644
      %v3088 = vunpack.c.l.b16 %v2645
      %v3089 = vunpack.c.l.b16 %v2646
      %v3090 = vunpack.c.l.b16 %v2647
      %v3091 = vunpack.c.l.b16 %v2648
      %v3092 = vunpack.c.l.b16 %v2649
      %v3093 = vunpack.c.l.b16 %v2650
      %v3094 = vunpack.c.l.b16 %v2651
      %v3095 = vunpack.c.l.b16 %v2652
      %v3096 = vunpack.c.l.b16 %v2653
      %v3097 = vunpack.c.l.b16 %v2654
      %v3098 = vunpack.c.l.b16 %v2655
      %v3099 = vunpack.c.l.b16 %v2656
      %v3100 = vunpack.c.l.b16 %v2657
      %v3101 = vunpack.c.l.b16 %v2658
      %v3102 = vunpack.c.l.b16 %v2659
      %v3103 = vunpack.c.l.b16 %v2660
      %v3104 = vunpack.c.l.b16 %v2661
      %v3105 = vunpack.c.l.b16 %v2662
      %v3106 = vunpack.c.l.b16 %v2663
      %v3107 = vunpack.c.l.b16 %v2664
      %v3108 = vunpack.c.l.b16 %v2665
      %v3109 = vunpack.c.l.b16 %v2666
      %v3110 = vunpack.c.l.b16 %v2667
      %v3111 = vunpack.c.l.b16 %v2668
      %v3112 = vunpack.c.l.b16 %v2669
      %v3113 = vunpack.c.l.b16 %v2670
      %v3114 = vunpack.c.l.b16 %v2671
      %v3115 = vunpack.c.l.b16 %v2672
      %v3116 = vunpack.c.l.b16 %v2673
      %v3117 = vunpack.c.l.b16 %v2674
      %v3118 = vunpack.c.l.b16 %v2675
      %v3119 = vunpack.c.l.b16 %v2676
      %v3120 = vunpack.c.l.b16 %v2677
      %v3121 = vunpack.c.l.b16 %v2678
      %v3122 = vunpack.c.l.b16 %v2679
      %v3123 = vunpack.c.l.b16 %v2680
      %v3124 = vunpack.c.l.b16 %v2681
      %v3125 = vunpack.c.l.b16 %v2682
      %v3126 = vunpack.c.l.b16 %v2683
      %v3127 = vunpack.c.l.b16 %v2684
      %v3128 = vunpack.c.l.b16 %v2685
      %v3129 = vunpack.c.l.b16 %v2686
      %v3130 = vunpack.c.l.b16 %v2687
      %v3131 = vunpack.c.l.b16 %v2688
      %v3132 = vunpack.c.l.b16 %v2689
      %v3133 = vunpack.c.l.b16 %v2690
      %v3134 = vunpack.c.l.b16 %v2691
      %v3135 = vunpack.c.l.b16 %v2692
      %v3136 = vunpack.c.l.b16 %v2693
      %v3137 = vunpack.c.l.b16 %v2694
      %v3138 = vunpack.c.l.b16 %v2695
      %v3139 = vunpack.c.l.b16 %v2696
      %v3140 = vunpack.c.l.b16 %v2697
      %v3141 = vunpack.c.l.b16 %v2698
      %v3142 = vunpack.c.l.b16 %v2699
      %v3143 = vunpack.c.l.b16 %v2700
      %v3144 = vunpack.c.l.b16 %v2701
      %v3145 = vunpack.c.l.b16 %v2702
      %v3146 = vunpack.c.l.b16 %v2703
      %v3147 = vunpack.c.l.b16 %v2704
      %v3148 = vunpack.c.l.b16 %v2705
      %v3149 = vunpack.c.l.b16 %v2706
      %v3150 = vunpack.c.l.b16 %v2707
      %v3151 = vunpack.c.l.b16 %v2708
      %v3152 = vunpack.c.l.b16 %v2709
      %v3153 = vunpack.c.l.b16 %v2710
      %v3154 = vunpack.c.l.b16 %v2711
      %v3155 = vunpack.c.l.b16 %v2712
      %v3156 = vunpack.c.l.b16 %v2713
      %v3157 = vunpack.c.l.b16 %v2714
      %v3158 = vunpack.c.l.b16 %v2715
      %v3159 = vunpack.c.l.b16 %v2716
      %v3160 = vunpack.c.l.b16 %v2717
      %v3161 = vunpack.c.l.b16 %v2718
      %v3162 = vunpack.c.l.b16 %v2719
      %v3163 = vunpack.c.l.b16 %v2720
      %v3164 = vunpack.c.l.b16 %v2721
      %v3165 = vunpack.c.l.b16 %v2722
      %v3166 = vunpack.c.l.b16 %v2723
      %v3167 = vunpack.c.l.b16 %v2724
      %v3168 = vunpack.c.l.b16 %v2725
      %v3169 = vunpack.c.l.b16 %v2726
      %v3170 = vunpack.c.l.b16 %v2727
      %v3171 = vunpack.c.l.b16 %v2728
      %v3172 = vunpack.c.l.b16 %v2729
      %v3173 = vunpack.c.l.b16 %v2730
      %v3174 = vunpack.c.l.b16 %v2731
      %v3175 = vunpack.c.l.b16 %v2732
      %v3176 = vunpack.c.l.b16 %v2733
      %v3177 = vunpack.c.l.b16 %v2734
      %v3178 = vunpack.c.l.b16 %v2735
      %v3179 = vunpack.c.l.b16 %v2736
      %v3180 = vunpack.c.l.b16 %v2737
      %v3181 = vunpack.c.l.b16 %v2738
      %v3182 = vunpack.c.l.b16 %v2739
      %v3183 = vunpack.c.l.b16 %v2740
      %v3184 = vunpack.c.l.b16 %v2741
      %v3185 = vunpack.c.l.b16 %v2742
      %v3186 = vunpack.c.l.b16 %v2743
      %v3187 = vunpack.c.l.b16 %v2744
      %v3188 = vunpack.c.l.b16 %v2745
      %v3189 = vunpack.c.l.b16 %v2746
      %v3190 = vunpack.c.l.b16 %v2747
      %v3191 = vunpack.c.l.b16 %v2748
      %v3192 = vunpack.c.l.b16 %v2749
      %v3193 = vunpack.c.l.b16 %v2750
      %v3194 = vunpack.c.l.b16 %v2751
      %v3195 = vunpack.c.l.b16 %v2752
      %v3196 = vunpack.c.l.b16 %v2753
      %v3197 = vunpack.c.l.b16 %v2754
      %v3198 = vunpack.c.l.b16 %v2755
      %v3199 = vunpack.c.l.b16 %v2756
      %v3200 = vunpack.c.l.b16 %v2757
      %v3201 = vunpack.c.l.b16 %v2758
      %v3202 = vunpack.c.l.b16 %v2759
      %v3203 = vunpack.c.l.b16 %v2760
      %v3204 = vunpack.c.l.b16 %v2761
      %v3205 = vunpack.c.l.b16 %v2762
      %v3206 = vunpack.c.l.b16 %v2763
      %v3207 = vunpack.c.l.b16 %v2764
      %v3208 = vunpack.c.l.b16 %v2765
      %v3209 = vunpack.c.l.b16 %v2766
      %v3210 = vunpack.c.l.b16 %v2767
      %v3211 = vunpack.c.l.b16 %v2768
      %v3212 = vunpack.c.l.b16 %v2769
      %v3213 = vunpack.c.l.b16 %v2770
      %v3214 = vunpack.c.l.b16 %v2771
      %v3215 = vunpack.c.l.b16 %v2772
      %v3216 = vpack.c.b16 %v3009, %v3008
      %v3217 = vpack.c.b16 %v3011, %v3010
      %v3218 = vpack.c.b16 %v3013, %v3012
      %v3219 = vpack.c.b16 %v3015, %v3014
      %v3220 = vpack.c.b16 %v3017, %v3016
      %v3221 = vpack.c.b16 %v3019, %v3018
      %v3222 = vpack.c.b16 %v3021, %v3020
      %v3223 = vpack.c.b16 %v3023, %v3022
      %v3224 = vpack.c.b16 %v3025, %v3024
      %v3225 = vpack.c.b16 %v3027, %v3026
      %v3226 = vpack.c.b16 %v3029, %v3028
      %v3227 = vpack.c.b16 %v3031, %v3030
      %v3228 = vpack.c.b16 %v3033, %v3032
      %v3229 = vpack.c.b16 %v3035, %v3034
      %v3230 = vpack.c.b16 %v3037, %v3036
      %v3231 = vpack.c.b16 %v3039, %v3038
      %v3232 = vpack.c.b16 %v3041, %v3040
      %v3233 = vpack.c.b16 %v3043, %v3042
      %v3234 = vpack.c.b16 %v3045, %v3044
      %v3235 = vpack.c.b16 %v3047, %v3046
      %v3236 = vpack.c.b16 %v3049, %v3048
      %v3237 = vpack.c.b16 %v3051, %v3050
      %v3238 = vpack.c.b16 %v3053, %v3052
      %v3239 = vpack.c.b16 %v3055, %v3054
      %v3240 = vpack.c.b16 %v3057, %v3056
      %v3241 = vpack.c.b16 %v3059, %v3058
      %v3242 = vpack.c.b16 %v3061, %v3060
      %v3243 = vpack.c.b16 %v3063, %v3062
      %v3244 = vpack.c.b16 %v3065, %v3064
      %v3245 = vpack.c.b16 %v3067, %v3066
      %v3246 = vpack.c.b16 %v3069, %v3068
      %v3247 = vpack.c.b16 %v3071, %v3070
      %v3248 = vpack.c.b16 %v3073, %v3072
      %v3249 = vpack.c.b16 %v3075, %v3074
      %v3250 = vpack.c.b16 %v3077, %v3076
      %v3251 = vpack.c.b16 %v3079, %v3078
      %v3252 = vpack.c.b16 %v3081, %v3080
      %v3253 = vpack.c.b16 %v3083, %v3082
      %v3254 = vpack.c.b16 %v3085, %v3084
      %v3255 = vpack.c.b16 %v3087, %v3086
      %v3256 = vpack.c.b16 %v3089, %v3088
      %v3257 = vpack.c.b16 %v3091, %v3090
      %v3258 = vpack.c.b16 %v3093, %v3092
      %v3259 = vpack.c.b16 %v3095, %v3094
      %v3260 = vpack.c.b16 %v3097, %v3096
      %v3261 = vpack.c.b16 %v3099, %v3098
      %v3262 = vpack.c.b16 %v3101, %v3100
      %v3263 = vpack.c.b16 %v3103, %v3102
      %v3264 = vpack.c.b16 %v3105, %v3104
      %v3265 = vpack.c.b16 %v3107, %v3106
      %v3266 = vpack.c.b16 %v3109, %v3108
      %v3267 = vpack.c.b16 %v3111, %v3110
      %v3268 = vpack.c.b16 %v3113, %v3112
      %v3269 = vpack.c.b16 %v3115, %v3114
      %v3270 = vpack.c.b16 %v3117, %v3116
      %v3271 = vpack.c.b16 %v3119, %v3118
      %v3272 = vpack.c.b16 %v3121, %v3120
      %v3273 = vpack.c.b16 %v3123, %v3122
      %v3274 = vpack.c.b16 %v3125, %v3124
      %v3275 = vpack.c.b16 %v3127, %v3126
      %v3276 = vpack.c.b16 %v3129, %v3128
      %v3277 = vpack.c.b16 %v3131, %v3130
      %v3278 = vpack.c.b16 %v3133, %v3132
      %v3279 = vpack.c.b16 %v3135, %v3134
      %v3280 = vpack.c.b16 %v3137, %v3136
      %v3281 = vpack.c.b16 %v3139, %v3138
      %v3282 = vpack.c.b16 %v3141, %v3140
      %v3283 = vpack.c.b16 %v3143, %v3142
      %v3284 = vpack.c.b16 %v3145, %v3144
      %v3285 = vpack.c.b16 %v3147, %v3146
      %v3286 = vpack.c.b16 %v3149, %v3148
      %v3287 = vpack.c.b16 %v3151, %v3150
      %v3288 = vpack.c.b16 %v3153, %v3152
      %v3289 = vpack.c.b16 %v3155, %v3154
      %v3290 = vpack.c.b16 %v3157, %v3156
      %v3291 = vpack.c.b16 %v3159, %v3158
      %v3292 = vpack.c.b16 %v3161, %v3160
      %v3293 = vpack.c.b16 %v3163, %v3162
      %v3294 = vpack.c.b16 %v3165, %v3164
      %v3295 = vpack.c.b16 %v3167, %v3166
      %v3296 = vpack.c.b16 %v3169, %v3168
      %v3297 = vpack.c.b16 %v3171, %v3170
      %v3298 = vpack.c.b16 %v3173, %v3172
      %v3299 = vpack.c.b16 %v3175, %v3174
      %v3300 = vpack.c.b16 %v3177, %v3176
      %v3301 = vpack.c.b16 %v3179, %v3178
      %v3302 = vpack.c.b16 %v3181, %v3180
      %v3303 = vpack.c.b16 %v3183, %v3182
      %v3304 = vpack.c.b16 %v3185, %v3184
      %v3305 = vpack.c.b16 %v3187, %v3186
      %v3306 = vpack.c.b16 %v3189, %v3188
      %v3307 = vpack.c.b16 %v3191, %v3190
      %v3308 = vpack.c.b16 %v3193, %v3192
      %v3309 = vpack.c.b16 %v3195, %v3194
      %v3310 = vpack.c.b16 %v3197, %v3196
      %v3311 = vpack.c.b16 %v3199, %v3198
      %v3312 = vpack.c.b16 %v3201, %v3200
      %v3313 = vpack.c.b16 %v3203, %v3202
      %v3314 = vpack.c.b16 %v3205, %v3204
      %v3315 = vpack.c.b16 %v3207, %v3206
      %v3316 = vpack.c.b16 %v3209, %v3208
      %v3317 = vpack.c.b16 %v3211, %v3210
      %v3318 = vpack.c.b16 %v3213, %v3212
      %v3319 = vpack.c.b16 %v3215, %v3214
      %3424 = vmatpush.bf16.msra.mxu0 %v3223
      %3425 = vmatpush.bf16.msra.mxu0 %v3222
      %3426 = vmatpush.bf16.msra.mxu0 %v3221
      %3427 = vmatpush.bf16.msra.mxu0 %v3220
      %3428 = vmatpush.bf16.msra.mxu0 %v3219
      %3429 = vmatpush.bf16.msra.mxu0 %v3218
      %3430 = vmatpush.bf16.msra.mxu0 %v3217
      %3431 = vmatpush.bf16.msra.mxu0 %v3216
      %3432 = vmatmul.bf16.gmra.mxu0 %v2539
      %v3433 = vpop.f32.mrf.mxu0
      %v3434 = vadd.f32 %v2791, %v3433
      %v3435 = vpop.f32.mrf.mxu0
      %v3436 = vadd.f32 %v2793, %v3435
      %3437 = vmatmul.bf16.gmra.mxu0 %v2552
      %v3438 = vpop.f32.mrf.mxu0
      %v3439 = vadd.f32 %v2796, %v3438
      %v3440 = vpop.f32.mrf.mxu0
      %v3441 = vadd.f32 %v2798, %v3440
      %3442 = vdwg.mxu0
      %3443 = vmatpush.bf16.msra.mxu0 %v3231
      %3444 = vmatpush.bf16.msra.mxu0 %v3230
      %3445 = vmatpush.bf16.msra.mxu0 %v3229
      %3446 = vmatpush.bf16.msra.mxu0 %v3228
      %3447 = vmatpush.bf16.msra.mxu0 %v3227
      %3448 = vmatpush.bf16.msra.mxu0 %v3226
      %3449 = vmatpush.bf16.msra.mxu0 %v3225
      %3450 = vmatpush.bf16.msra.mxu0 %v3224
      %3451 = vmatmul.bf16.gmra.mxu0 %v2540
      %v3452 = vpop.f32.mrf.mxu0
      %v3453 = vadd.f32 %v3434, %v3452
      %v3454 = vpop.f32.mrf.mxu0
      %v3455 = vadd.f32 %v3436, %v3454
      %3456 = vmatmul.bf16.gmra.mxu0 %v2553
      %v3457 = vpop.f32.mrf.mxu0
      %v3458 = vadd.f32 %v3439, %v3457
      %v3459 = vpop.f32.mrf.mxu0
      %v3460 = vadd.f32 %v3441, %v3459
      %3461 = vdwg.mxu0
      %3462 = vmatpush.bf16.msra.mxu0 %v3239
      %3463 = vmatpush.bf16.msra.mxu0 %v3238
      %3464 = vmatpush.bf16.msra.mxu0 %v3237
      %3465 = vmatpush.bf16.msra.mxu0 %v3236
      %3466 = vmatpush.bf16.msra.mxu0 %v3235
      %3467 = vmatpush.bf16.msra.mxu0 %v3234
      %3468 = vmatpush.bf16.msra.mxu0 %v3233
      %3469 = vmatpush.bf16.msra.mxu0 %v3232
      %3470 = vmatmul.bf16.gmra.mxu0 %v2541
      %v3471 = vpop.f32.mrf.mxu0
      %v3472 = vadd.f32 %v3453, %v3471
      %v3473 = vpop.f32.mrf.mxu0
      %v3474 = vadd.f32 %v3455, %v3473
      %3475 = vmatmul.bf16.gmra.mxu0 %v2554
      %v3476 = vpop.f32.mrf.mxu0
      %v3477 = vadd.f32 %v3458, %v3476
      %v3478 = vpop.f32.mrf.mxu0
      %v3479 = vadd.f32 %v3460, %v3478
      %3480 = vdwg.mxu0
      %3481 = vmatpush.bf16.msra.mxu0 %v3247
      %3482 = vmatpush.bf16.msra.mxu0 %v3246
      %3483 = vmatpush.bf16.msra.mxu0 %v3245
      %3484 = vmatpush.bf16.msra.mxu0 %v3244
      %3485 = vmatpush.bf16.msra.mxu0 %v3243
      %3486 = vmatpush.bf16.msra.mxu0 %v3242
      %3487 = vmatpush.bf16.msra.mxu0 %v3241
      %3488 = vmatpush.bf16.msra.mxu0 %v3240
      %3489 = vmatmul.bf16.gmra.mxu0 %v2542
      %v3490 = vpop.f32.mrf.mxu0
      %v3491 = vadd.f32 %v3472, %v3490
      %v3492 = vpop.f32.mrf.mxu0
      %v3493 = vadd.f32 %v3474, %v3492
      %3494 = vmatmul.bf16.gmra.mxu0 %v2555
      %v3495 = vpop.f32.mrf.mxu0
      %v3496 = vadd.f32 %v3477, %v3495
      %v3497 = vpop.f32.mrf.mxu0
      %v3498 = vadd.f32 %v3479, %v3497
      %3499 = vdwg.mxu0
      %3500 = vmatpush.bf16.msra.mxu0 %v3255
      %3501 = vmatpush.bf16.msra.mxu0 %v3254
      %3502 = vmatpush.bf16.msra.mxu0 %v3253
      %3503 = vmatpush.bf16.msra.mxu0 %v3252
      %3504 = vmatpush.bf16.msra.mxu0 %v3251
      %3505 = vmatpush.bf16.msra.mxu0 %v3250
      %3506 = vmatpush.bf16.msra.mxu0 %v3249
      %3507 = vmatpush.bf16.msra.mxu0 %v3248
      %3508 = vmatmul.bf16.gmra.mxu0 %v2543
      %v3509 = vpop.f32.mrf.mxu0
      %v3510 = vadd.f32 %v3491, %v3509
      %v3511 = vpop.f32.mrf.mxu0
      %v3512 = vadd.f32 %v3493, %v3511
      %3513 = vmatmul.bf16.gmra.mxu0 %v2556
      %v3514 = vpop.f32.mrf.mxu0
      %v3515 = vadd.f32 %v3496, %v3514
      %v3516 = vpop.f32.mrf.mxu0
      %v3517 = vadd.f32 %v3498, %v3516
      %3518 = vdwg.mxu0
      %3519 = vmatpush.bf16.msra.mxu0 %v3263
      %3520 = vmatpush.bf16.msra.mxu0 %v3262
      %3521 = vmatpush.bf16.msra.mxu0 %v3261
      %3522 = vmatpush.bf16.msra.mxu0 %v3260
      %3523 = vmatpush.bf16.msra.mxu0 %v3259
      %3524 = vmatpush.bf16.msra.mxu0 %v3258
      %3525 = vmatpush.bf16.msra.mxu0 %v3257
      %3526 = vmatpush.bf16.msra.mxu0 %v3256
      %3527 = vmatmul.bf16.gmra.mxu0 %v2544
      %v3528 = vpop.f32.mrf.mxu0
      %v3529 = vadd.f32 %v3510, %v3528
      %v3530 = vpop.f32.mrf.mxu0
      %v3531 = vadd.f32 %v3512, %v3530
      %3532 = vmatmul.bf16.gmra.mxu0 %v2557
      %v3533 = vpop.f32.mrf.mxu0
      %v3534 = vadd.f32 %v3515, %v3533
      %v3535 = vpop.f32.mrf.mxu0
      %v3536 = vadd.f32 %v3517, %v3535
      %3537 = vdwg.mxu0
      %3538 = vmatpush.bf16.msra.mxu0 %v3271
      %3539 = vmatpush.bf16.msra.mxu0 %v3270
      %3540 = vmatpush.bf16.msra.mxu0 %v3269
      %3541 = vmatpush.bf16.msra.mxu0 %v3268
      %3542 = vmatpush.bf16.msra.mxu0 %v3267
      %3543 = vmatpush.bf16.msra.mxu0 %v3266
      %3544 = vmatpush.bf16.msra.mxu0 %v3265
      %3545 = vmatpush.bf16.msra.mxu0 %v3264
      %3546 = vmatmul.bf16.gmra.mxu0 %v2545
      %v3547 = vpop.f32.mrf.mxu0
      %v3548 = vadd.f32 %v3529, %v3547
      %v3549 = vpop.f32.mrf.mxu0
      %v3550 = vadd.f32 %v3531, %v3549
      %3551 = vmatmul.bf16.gmra.mxu0 %v2558
      %v3552 = vpop.f32.mrf.mxu0
      %v3553 = vadd.f32 %v3534, %v3552
      %v3554 = vpop.f32.mrf.mxu0
      %v3555 = vadd.f32 %v3536, %v3554
      %3556 = vdwg.mxu0
      %3557 = vmatpush.bf16.msra.mxu0 %v3279
      %3558 = vmatpush.bf16.msra.mxu0 %v3278
      %3559 = vmatpush.bf16.msra.mxu0 %v3277
      %3560 = vmatpush.bf16.msra.mxu0 %v3276
      %3561 = vmatpush.bf16.msra.mxu0 %v3275
      %3562 = vmatpush.bf16.msra.mxu0 %v3274
      %3563 = vmatpush.bf16.msra.mxu0 %v3273
      %3564 = vmatpush.bf16.msra.mxu0 %v3272
      %3565 = vmatmul.bf16.gmra.mxu0 %v2546
      %v3566 = vpop.f32.mrf.mxu0
      %v3567 = vadd.f32 %v3548, %v3566
      %v3568 = vpop.f32.mrf.mxu0
      %v3569 = vadd.f32 %v3550, %v3568
      %3570 = vmatmul.bf16.gmra.mxu0 %v2559
      %v3571 = vpop.f32.mrf.mxu0
      %v3572 = vadd.f32 %v3553, %v3571
      %v3573 = vpop.f32.mrf.mxu0
      %v3574 = vadd.f32 %v3555, %v3573
      %3575 = vdwg.mxu0
      %3576 = vmatpush.bf16.msra.mxu0 %v3287
      %3577 = vmatpush.bf16.msra.mxu0 %v3286
      %3578 = vmatpush.bf16.msra.mxu0 %v3285
      %3579 = vmatpush.bf16.msra.mxu0 %v3284
      %3580 = vmatpush.bf16.msra.mxu0 %v3283
      %3581 = vmatpush.bf16.msra.mxu0 %v3282
      %3582 = vmatpush.bf16.msra.mxu0 %v3281
      %3583 = vmatpush.bf16.msra.mxu0 %v3280
      %3584 = vmatmul.bf16.gmra.mxu0 %v2547
      %v3585 = vpop.f32.mrf.mxu0
      %v3586 = vadd.f32 %v3567, %v3585
      %v3587 = vpop.f32.mrf.mxu0
      %v3588 = vadd.f32 %v3569, %v3587
      %3589 = vmatmul.bf16.gmra.mxu0 %v2560
      %v3590 = vpop.f32.mrf.mxu0
      %v3591 = vadd.f32 %v3572, %v3590
      %v3592 = vpop.f32.mrf.mxu0
      %v3593 = vadd.f32 %v3574, %v3592
      %3594 = vdwg.mxu0
      %3595 = vmatpush.bf16.msra.mxu0 %v3295
      %3596 = vmatpush.bf16.msra.mxu0 %v3294
      %3597 = vmatpush.bf16.msra.mxu0 %v3293
      %3598 = vmatpush.bf16.msra.mxu0 %v3292
      %3599 = vmatpush.bf16.msra.mxu0 %v3291
      %3600 = vmatpush.bf16.msra.mxu0 %v3290
      %3601 = vmatpush.bf16.msra.mxu0 %v3289
      %3602 = vmatpush.bf16.msra.mxu0 %v3288
      %3603 = vmatmul.bf16.gmra.mxu0 %v2548
      %v3604 = vpop.f32.mrf.mxu0
      %v3605 = vadd.f32 %v3586, %v3604
      %v3606 = vpop.f32.mrf.mxu0
      %v3607 = vadd.f32 %v3588, %v3606
      %3608 = vmatmul.bf16.gmra.mxu0 %v2561
      %v3609 = vpop.f32.mrf.mxu0
      %v3610 = vadd.f32 %v3591, %v3609
      %v3611 = vpop.f32.mrf.mxu0
      %v3612 = vadd.f32 %v3593, %v3611
      %3613 = vdwg.mxu0
      %3614 = vmatpush.bf16.msra.mxu0 %v3303
      %3615 = vmatpush.bf16.msra.mxu0 %v3302
      %3616 = vmatpush.bf16.msra.mxu0 %v3301
      %3617 = vmatpush.bf16.msra.mxu0 %v3300
      %3618 = vmatpush.bf16.msra.mxu0 %v3299
      %3619 = vmatpush.bf16.msra.mxu0 %v3298
      %3620 = vmatpush.bf16.msra.mxu0 %v3297
      %3621 = vmatpush.bf16.msra.mxu0 %v3296
      %3622 = vmatmul.bf16.gmra.mxu0 %v2549
      %v3623 = vpop.f32.mrf.mxu0
      %v3624 = vadd.f32 %v3605, %v3623
      %v3625 = vpop.f32.mrf.mxu0
      %v3626 = vadd.f32 %v3607, %v3625
      %3627 = vmatmul.bf16.gmra.mxu0 %v2562
      %v3628 = vpop.f32.mrf.mxu0
      %v3629 = vadd.f32 %v3610, %v3628
      %v3630 = vpop.f32.mrf.mxu0
      %v3631 = vadd.f32 %v3612, %v3630
      %3632 = vdwg.mxu0
      %3633 = vmatpush.bf16.msra.mxu0 %v3311
      %3634 = vmatpush.bf16.msra.mxu0 %v3310
      %3635 = vmatpush.bf16.msra.mxu0 %v3309
      %3636 = vmatpush.bf16.msra.mxu0 %v3308
      %3637 = vmatpush.bf16.msra.mxu0 %v3307
      %3638 = vmatpush.bf16.msra.mxu0 %v3306
      %3639 = vmatpush.bf16.msra.mxu0 %v3305
      %3640 = vmatpush.bf16.msra.mxu0 %v3304
      %3641 = vmatmul.bf16.gmra.mxu0 %v2550
      %v3642 = vpop.f32.mrf.mxu0
      %v3643 = vadd.f32 %v3624, %v3642
      %v3644 = vpop.f32.mrf.mxu0
      %v3645 = vadd.f32 %v3626, %v3644
      %3646 = vmatmul.bf16.gmra.mxu0 %v2563
      %v3647 = vpop.f32.mrf.mxu0
      %v3648 = vadd.f32 %v3629, %v3647
      %v3649 = vpop.f32.mrf.mxu0
      %v3650 = vadd.f32 %v3631, %v3649
      %3651 = vdwg.mxu0
      %3652 = vmatpush.bf16.msra.mxu0 %v3319
      %3653 = vmatpush.bf16.msra.mxu0 %v3318
      %3654 = vmatpush.bf16.msra.mxu0 %v3317
      %3655 = vmatpush.bf16.msra.mxu0 %v3316
      %3656 = vmatpush.bf16.msra.mxu0 %v3315
      %3657 = vmatpush.bf16.msra.mxu0 %v3314
      %3658 = vmatpush.bf16.msra.mxu0 %v3313
      %3659 = vmatpush.bf16.msra.mxu0 %v3312
      %3660 = vmatmul.bf16.gmra.mxu0 %v2551
      %v3661 = vpop.f32.mrf.mxu0
      %v3662 = vadd.f32 %v3643, %v3661
      %v3663 = vpop.f32.mrf.mxu0
      %v3664 = vadd.f32 %v3645, %v3663
      %3665 = vmatmul.bf16.gmra.mxu0 %v2564
      %v3666 = vpop.f32.mrf.mxu0
      %v3667 = vadd.f32 %v3648, %v3666
      %v3668 = vpop.f32.mrf.mxu0
      %v3669 = vadd.f32 %v3650, %v3668
      %3670 = vdwg.mxu0
      %v3671 = vld [vmem:[%s13] sm:$0x1]
      %v3673 = vperm.slane %v3671, 0
      %v3675 = vadd.f32 %v3662, %v3673
      %v3676 = vadd.f32 %v3664, %v3673
      %v3677 = vadd.f32 %v3667, %v3673
      %v3678 = vadd.f32 %v3669, %v3673
      %v3679 = vmax.f32 %v3675, 0.0
      %v3680 = vmax.f32 %v3676, 0.0
      %v3681 = vmax.f32 %v3677, 0.0
      %v3682 = vmax.f32 %v3678, 0.0
      %v3683 = vpack.c.bf16 %v3680, %v3679
      %v3684 = vpack.c.bf16 %v3682, %v3681
      %v3685 = vld [vmem:[%s14] sm:$0xf]
      %v3686 = vld [vmem:[%s14 + $0x4] sm:$0xf]
      %v3687 = vld [vmem:[%s14 + $0x8] sm:$0xf]
      %v3688 = vld [vmem:[%s14 + $0xc] sm:$0xf]
      %v3689 = vld [vmem:[%s14 + $0x10] sm:$0xf]
      %v3690 = vld [vmem:[%s14 + $0x14] sm:$0xf]
      %v3691 = vld [vmem:[%s14 + $0x18] sm:$0xf]
      %v3692 = vld [vmem:[%s14 + $0x1c] sm:$0xf]
      %v3693 = vld [vmem:[%s15] sm:$0x1]
      %v3695 = vperm.slane %v3693, 0
      %v3705 = vunpack.c.l.b16 %v3685
      %v3706 = vunpack.c.l.b16 %v3686
      %v3707 = vunpack.c.l.b16 %v3687
      %v3708 = vunpack.c.l.b16 %v3688
      %v3709 = vunpack.c.l.b16 %v3689
      %v3710 = vunpack.c.l.b16 %v3690
      %v3711 = vunpack.c.l.b16 %v3691
      %v3712 = vunpack.c.l.b16 %v3692
      %v3713 = vpack.c.b16 %v3706, %v3705
      %v3714 = vpack.c.b16 %v3708, %v3707
      %v3715 = vpack.c.b16 %v3710, %v3709
      %v3716 = vpack.c.b16 %v3712, %v3711
      %vm3721 = vcmask 523264
      %v3723 = vsel %vm3721, %v3683, 0
      %v3726 = vsel %vm3721, %v3684, 0
      %3728 = vmatpush.bf16.msra.mxu0 0
      %3729 = vmatpush.bf16.msra.mxu0 0
      %3730 = vmatpush.bf16.msra.mxu0 0
      %3731 = vmatpush.bf16.msra.mxu0 0
      %3732 = vmatpush.bf16.msra.mxu0 %v3716
      %3733 = vmatpush.bf16.msra.mxu0 %v3715
      %3734 = vmatpush.bf16.msra.mxu0 %v3714
      %3735 = vmatpush.bf16.msra.mxu0 %v3713
      %3736 = vmatmul.bf16.gmra.mxu0 %v3723
      %v3737 = vpop.f32.mrf.mxu0
      %v3738 = vadd.f32 %v3695, %v3737
      %v3739 = vpop.f32.mrf.mxu0
      %v3740 = vadd.f32 %v3695, %v3739
      %3741 = vmatmul.bf16.gmra.mxu0 %v3726
      %v3742 = vpop.f32.mrf.mxu0
      %v3743 = vadd.f32 %v3695, %v3742
      %v3744 = vpop.f32.mrf.mxu0
      %v3745 = vadd.f32 %v3695, %v3744
      %3746 = vdwg.mxu0
      %v3747 = vmax.f32 %v3738, 0.0
      %v3748 = vmax.f32 %v3740, 0.0
      %v3749 = vmax.f32 %v3743, 0.0
      %v3750 = vmax.f32 %v3745, 0.0
      %v3751 = vpack.c.bf16 %v3748, %v3747
      %v3752 = vpack.c.bf16 %v3750, %v3749
      %v3753 = vld [vmem:[%s16] sm:$0xf]
      %v3754 = vld [vmem:[%s16 + $0x4] sm:$0xf]
      %v3755 = vld [vmem:[%s16 + $0x8] sm:$0xf]
      %v3756 = vld [vmem:[%s16 + $0xc] sm:$0xf]
      %v3757 = vld [vmem:[%s17] sm:$0x1]
      %v3759 = vperm.slane %v3757, 0
      %v3765 = vunpack.c.l.b16 %v3753
      %v3766 = vunpack.c.l.b16 %v3754
      %v3767 = vunpack.c.l.b16 %v3755
      %v3768 = vunpack.c.l.b16 %v3756
      %v3769 = vpack.c.b16 %v3766, %v3765
      %v3770 = vpack.c.b16 %v3768, %v3767
      %v3774 = vsel %vm667, %v3751, 0
      %v3777 = vsel %vm667, %v3752, 0
      %3779 = vmatpush.bf16.msra.mxu0 0
      %3780 = vmatpush.bf16.msra.mxu0 0
      %3781 = vmatpush.bf16.msra.mxu0 0
      %3782 = vmatpush.bf16.msra.mxu0 0
      %3783 = vmatpush.bf16.msra.mxu0 0
      %3784 = vmatpush.bf16.msra.mxu0 0
      %3785 = vmatpush.bf16.msra.mxu0 %v3770
      %3786 = vmatpush.bf16.msra.mxu0 %v3769
      %3787 = vmatmul.bf16.gmra.mxu0 %v3774
      %v3788 = vpop.f32.mrf.mxu0
      %v3789 = vadd.f32 %v3759, %v3788
      %v3790 = vpop.f32.mrf.mxu0
      %v3791 = vadd.f32 %v3759, %v3790
      %3792 = vmatmul.bf16.gmra.mxu0 %v3777
      %v3793 = vpop.f32.mrf.mxu0
      %v3794 = vadd.f32 %v3759, %v3793
      %v3795 = vpop.f32.mrf.mxu0
      %v3796 = vadd.f32 %v3759, %v3795
      %3797 = vdwg.mxu0
      %3798 = vxpose.xlu0.b32.start [1/16] %v3789, 128
      %3799 = vxpose.xlu0.b32.cont [2/16] %v3791, 128
      %3800 = vxpose.xlu0.b32.cont [3/16] %v3794, 128
      %3801 = vxpose.xlu0.b32.cont [4/16] %v3796, 128
      %3802 = vxpose.xlu0.b32.cont [5/16] 0.0, 128
      %3803 = vxpose.xlu0.b32.cont [6/16] 0.0, 128
      %3804 = vxpose.xlu0.b32.cont [7/16] 0.0, 128
      %3805 = vxpose.xlu0.b32.cont [8/16] 0.0, 128
      %3806 = vxpose.xlu0.b32.cont [9/16] 0.0, 128
      %3807 = vxpose.xlu0.b32.cont [10/16] 0.0, 128
      %3808 = vxpose.xlu0.b32.cont [11/16] 0.0, 128
      %3809 = vxpose.xlu0.b32.cont [12/16] 0.0, 128
      %3810 = vxpose.xlu0.b32.cont [13/16] 0.0, 128
      %3811 = vxpose.xlu0.b32.cont [14/16] 0.0, 128
      %3812 = vxpose.xlu0.b32.cont [15/16] 0.0, 128
      %3813 = vxpose.xlu0.b32.end [16/16] 0.0, 128
      %v3814 = vpop.trf.xlu0
      %v3815 = vpop.trf.xlu0
      %v3816 = vpop.trf.xlu0
      %v3817 = vpop.trf.xlu0
      %v3818 = vpop.trf.xlu0
      %v3819 = vpop.trf.xlu0
      %v3820 = vpop.trf.xlu0
      %v3821 = vpop.trf.xlu0
      %v3822 = vpop.trf.xlu0
      %v3823 = vpop.trf.xlu0
      %v3824 = vpop.trf.xlu0
      %v3825 = vpop.trf.xlu0
      %v3826 = vpop.trf.xlu0
      %v3827 = vpop.trf.xlu0
      %v3828 = vpop.trf.xlu0
      %v3829 = vpop.trf.xlu0
      %vm3830 = vcmask 253952
      %3831 = vst.msk [vmem:[%s595] sm:$0x1] %vm3830, %v3814
      %p3832 = scmp.lt.s32.totalorder %s29, 1
      %s3833 = scalar_select %p3832, %s29, 1
      %s3834 = scalar_lea.vmem %s18, %s3833
      // Predicated region
      $region93: #{dlrm_forward.1} parent=91 // pred_check
        %p3835 = pneg %p435
      $region94: #{dlrm_forward.1} parent=91 // pred_check_branch
        %3837 = sbr.rel (%p3835) target = $region96
      $region95: #{dlrm_forward.1} parent=91 // pred_region
        _
      $region96: #{dlrm_forward.1} parent=91 // pred_fallthru
        _
    $region92: #{dlrm_forward.1} parent=5 // pred_fallthru
      _
    %p3838 = scmp.le.s32.totalorder 2, %s24
    // Predicated region
    $region97: #{dlrm_forward.1} parent=5 // pred_check
      %p3839 = pneg %p3838
    $region98: #{dlrm_forward.1} parent=5 // pred_check_branch
      %3841 = sbr.rel (%p3839) target = $region100
    $region99: #{dlrm_forward.1} parent=5 // pred_region
      %s3842 = ssub.s32 %s24, 2
      // Predicated region
      $region101: #{dlrm_forward.1} parent=99 // pred_check
        %p3843 = pneg %p441
      $region102: #{dlrm_forward.1} parent=99 // pred_check_branch
        %3845 = sbr.rel (%p3843) target = $region104
      $region103: #{dlrm_forward.1} parent=99 // pred_region
        %p3846 = scmp.lt.s32.totalorder %s30, 1
        %s3847 = scalar_select %p3846, %s30, 1
        %s3848 = scalar_lea.vmem %s18, %s3847
      $region104: #{dlrm_forward.1} parent=99 // pred_fallthru
        _
    $region100: #{dlrm_forward.1} parent=5 // pred_fallthru
      _
  $region6: #{dlrm_forward.1} parent=0 // loop_footer
    %s28 = sadd.s32 1, %s24
  $region7: #{dlrm_forward.1} parent=0 // loop_footer_branch
    %23 = sbr.rel target = $region3
  $region8: #{dlrm_forward.1} parent=0 // loop_exit
    _

// kernel: dlrm_forward.1
$region0: #{dlrm_forward.1}
  #allocation0 [shape = 'u32[]', space=smem, size = 0x4, offset = 0x4, fixed_abs, tag = 'smem constant byte address 0x4 - core index']
  #allocation1 [shape = 'u32[72,128]{1,0:T(1,128)}', space=vmem, size = 0x9000, scoped, tag = 'internal scratch']
  %s0 = inlined_call_operand.vmem [shape: f32[64,16], index: 0, kind: input, shape index: {}]
  %s1 = inlined_call_operand.vmem [shape: s32[64,3], index: 1, kind: input, shape index: {}]
  %s2 = inlined_call_operand.vmem [shape: bf16[16,32], index: 2, kind: input, shape index: {}]
  %s3 = inlined_call_operand.vmem [shape: f32[1,32], index: 3, kind: input, shape index: {}]
  %s4 = inlined_call_operand.vmem [shape: bf16[32,32], index: 4, kind: input, shape index: {}]
  %s5 = inlined_call_operand.vmem [shape: f32[1,32], index: 5, kind: input, shape index: {}]
  %s6 = inlined_call_operand.vmem [shape: bf16[32,16], index: 6, kind: input, shape index: {}]
  %s7 = inlined_call_operand.vmem [shape: f32[1,16], index: 7, kind: input, shape index: {}]
  %s8 = inlined_call_operand.vmem [shape: bf16[256,24], index: 8, kind: input, shape index: {}]
  %s9 = inlined_call_operand.vmem [shape: bf16[16,3328], index: 9, kind: input, shape index: {}]
  %s10 = inlined_call_operand.vmem [shape: bf16[24,3328], index: 10, kind: input, shape index: {}]
  %s11 = inlined_call_operand.vmem [shape: bf16[1664,64], index: 11, kind: input, shape index: {}]
  %s12 = inlined_call_operand.vmem [shape: bf16[16,64], index: 12, kind: input, shape index: {}]
  %s13 = inlined_call_operand.vmem [shape: f32[1,64], index: 13, kind: input, shape index: {}]
  %s14 = inlined_call_operand.vmem [shape: bf16[64,32], index: 14, kind: input, shape index: {}]
  %s15 = inlined_call_operand.vmem [shape: f32[1,32], index: 15, kind: input, shape index: {}]
  %s16 = inlined_call_operand.vmem [shape: bf16[32,128], index: 16, kind: input, shape index: {}]
  %s17 = inlined_call_operand.vmem [shape: f32[1,128], index: 17, kind: input, shape index: {}]
  %s18 = inlined_call_operand.vmem [shape: f32[2,1,32], index: 18, kind: output, shape index: {}]
  %s19 = sld [smem:[#allocation0]]
  $region105: #{dlrm_forward.1} parent=0
    _
  %s21 = ssub.s32 1, %s19
  %s22 = scalar_select 0, %s21, %s19
  loop: start=0, step=1, limit=4
  $region2: #{dlrm_forward.1} parent=0 // loop_pre_header
    _
  $region3: #{dlrm_forward.1} parent=0 // loop_header
    %s24 = sphi 0, %s28
    %p25 = scmp.ge.s32.totalorder %s24, 4
    %s34 = sphi 0, %s36
    %s37 = sphi 0, %s34
    %s38 = sphi 0, %s37
    %s54 = sphi 0, %s38
    %s60 = sphi 0, %s62
    %s63 = sphi 0, %s60
    %s64 = sphi 0, %s63
    %s80 = sphi 0, %s64
    %s84 = sphi 0, %s84
    %s86 = sphi 0, %s84
    %s87 = sphi 0, %s86
    %s101 = sphi 0, %s87
    %s105 = sphi 0, %s105
    %s107 = sphi 0, %s105
    %s108 = sphi 0, %s107
    %s122 = sphi 0, %s108
    %s126 = sphi 0, %s126
    %s128 = sphi 0, %s126
    %s129 = sphi 0, %s128
    %s143 = sphi 0, %s129
    %s147 = sphi 0, %s147
    %s149 = sphi 0, %s147
    %s150 = sphi 0, %s149
    %s164 = sphi 0, %s150
    %s168 = sphi 0, %s168
    %s170 = sphi 0, %s168
    %s171 = sphi 0, %s170
    %s185 = sphi 0, %s171
    %s189 = sphi 0, %s189
    %s191 = sphi 0, %s189
    %s192 = sphi 0, %s191
    %s206 = sphi 0, %s192
    %s210 = sphi 0, %s210
    %s212 = sphi 0, %s210
    %s213 = sphi 0, %s212
    %s227 = sphi 0, %s213
    %s231 = sphi 0, %s231
    %s233 = sphi 0, %s231
    %s234 = sphi 0, %s233
    %s248 = sphi 0, %s234
    %s252 = sphi 0, %s252
    %s254 = sphi 0, %s252
    %s255 = sphi 0, %s254
    %s269 = sphi 0, %s255
    %s273 = sphi 0, %s273
    %s275 = sphi 0, %s273
    %s276 = sphi 0, %s275
    %s290 = sphi 0, %s276
    %s294 = sphi 0, %s294
    %s296 = sphi 0, %s294
    %s297 = sphi 0, %s296
    %s311 = sphi 0, %s297
    %s315 = sphi 0, %s315
    %s317 = sphi 0, %s315
    %s318 = sphi 0, %s317
    %s332 = sphi 0, %s318
    %s336 = sphi 0, %s336
    %s338 = sphi 0, %s336
    %s339 = sphi 0, %s338
    %s353 = sphi 0, %s339
    %s357 = sphi 0, %s357
    %s359 = sphi 0, %s357
    %s360 = sphi 0, %s359
    %s374 = sphi 0, %s360
    %s378 = sphi 0, %s378
    %s380 = sphi 0, %s378
    %s381 = sphi 0, %s380
    %s395 = sphi 0, %s381
    %s399 = sphi 0, %s399
    %s401 = sphi 0, %s399
    %s402 = sphi 0, %s401
    %s416 = sphi 0, %s402
    %s422 = sphi 0, %s424
    %s425 = sphi 0, %s422
    %s426 = sphi 0, %s425
    %s442 = sphi 0, %s426
  $region4: #{dlrm_forward.1} parent=0 // loop_header_branch
    %27 = sbr.rel (%p25) target = $region8
  $region5: #{dlrm_forward.1} parent=0 // loop_body
    %s29 = ssub.s32 %s24, 1
    %s30 = ssub.s32 %s24, 2
    %s31 = sadd.s32 %s24, 1
    %s32 = ssub.s32 %s24, %s31
    %p33 = scmp.eq.s32.totalorder %s32, 0
    %s35 = sadd.s32 %s34, 1
    %s36 = scalar_select %p33, %s34, %s35
    %p39 = pneg %p33
    %p40 = scmp.eq.s32.totalorder %s24, 1
    %p41 = por %p39, %p40
    %p42 = scmp.ne.s32.totalorder %s34, %s37
    %p43 = scmp.eq.s32.totalorder %s24, 0
    %p44 = por %p42, %p43
    %p45 = scmp.ne.s32.totalorder %s34, %s37
    %p46 = scmp.eq.s32.totalorder %s29, 1
    %p47 = por %p45, %p46
    %p48 = scmp.ne.s32.totalorder %s37, %s38
    %p49 = scmp.eq.s32.totalorder %s29, 0
    %p50 = por %p48, %p49
    %p51 = scmp.ne.s32.totalorder %s37, %s38
    %p52 = scmp.eq.s32.totalorder %s30, 1
    %p53 = por %p51, %p52
    %p55 = scmp.ne.s32.totalorder %s38, %s54
    %p56 = scmp.eq.s32.totalorder %s30, 0
    %p57 = por %p55, %p56
    %s58 = ssub.s32 %s24, %s31
    %p59 = scmp.eq.s32.totalorder %s58, 0
    %s61 = sadd.s32 %s60, 1
    %s62 = scalar_select %p59, %s60, %s61
    %p65 = pneg %p59
    %p66 = scmp.eq.s32.totalorder %s24, 1
    %p67 = por %p65, %p66
    %p68 = scmp.ne.s32.totalorder %s60, %s63
    %p69 = scmp.eq.s32.totalorder %s24, 0
    %p70 = por %p68, %p69
    %p71 = scmp.ne.s32.totalorder %s60, %s63
    %p72 = scmp.eq.s32.totalorder %s29, 1
    %p73 = por %p71, %p72
    %p74 = scmp.ne.s32.totalorder %s63, %s64
    %p75 = scmp.eq.s32.totalorder %s29, 0
    %p76 = por %p74, %p75
    %p77 = scmp.ne.s32.totalorder %s63, %s64
    %p78 = scmp.eq.s32.totalorder %s30, 1
    %p79 = por %p77, %p78
    %p81 = scmp.ne.s32.totalorder %s64, %s80
    %p82 = scmp.eq.s32.totalorder %s30, 0
    %p83 = por %p81, %p82
    %s85 = sadd.s32 %s84, 1
    %p88 = scmp.eq.s32.totalorder %s24, 1
    %p89 = scmp.ne.s32.totalorder %s84, %s86
    %p90 = scmp.eq.s32.totalorder %s24, 0
    %p91 = por %p89, %p90
    %p92 = scmp.ne.s32.totalorder %s84, %s86
    %p93 = scmp.eq.s32.totalorder %s29, 1
    %p94 = por %p92, %p93
    %p95 = scmp.ne.s32.totalorder %s86, %s87
    %p96 = scmp.eq.s32.totalorder %s29, 0
    %p97 = por %p95, %p96
    %p98 = scmp.ne.s32.totalorder %s86, %s87
    %p99 = scmp.eq.s32.totalorder %s30, 1
    %p100 = por %p98, %p99
    %p102 = scmp.ne.s32.totalorder %s87, %s101
    %p103 = scmp.eq.s32.totalorder %s30, 0
    %p104 = por %p102, %p103
    %s106 = sadd.s32 %s105, 1
    %p109 = scmp.eq.s32.totalorder %s24, 1
    %p110 = scmp.ne.s32.totalorder %s105, %s107
    %p111 = scmp.eq.s32.totalorder %s24, 0
    %p112 = por %p110, %p111
    %p113 = scmp.ne.s32.totalorder %s105, %s107
    %p114 = scmp.eq.s32.totalorder %s29, 1
    %p115 = por %p113, %p114
    %p116 = scmp.ne.s32.totalorder %s107, %s108
    %p117 = scmp.eq.s32.totalorder %s29, 0
    %p118 = por %p116, %p117
    %p119 = scmp.ne.s32.totalorder %s107, %s108
    %p120 = scmp.eq.s32.totalorder %s30, 1
    %p121 = por %p119, %p120
    %p123 = scmp.ne.s32.totalorder %s108, %s122
    %p124 = scmp.eq.s32.totalorder %s30, 0
    %p125 = por %p123, %p124
    %s127 = sadd.s32 %s126, 1
    %p130 = scmp.eq.s32.totalorder %s24, 1
    %p131 = scmp.ne.s32.totalorder %s126, %s128
    %p132 = scmp.eq.s32.totalorder %s24, 0
    %p133 = por %p131, %p132
    %p134 = scmp.ne.s32.totalorder %s126, %s128
    %p135 = scmp.eq.s32.totalorder %s29, 1
    %p136 = por %p134, %p135
    %p137 = scmp.ne.s32.totalorder %s128, %s129
    %p138 = scmp.eq.s32.totalorder %s29, 0
    %p139 = por %p137, %p138
    %p140 = scmp.ne.s32.totalorder %s128, %s129
    %p141 = scmp.eq.s32.totalorder %s30, 1
    %p142 = por %p140, %p141
    %p144 = scmp.ne.s32.totalorder %s129, %s143
    %p145 = scmp.eq.s32.totalorder %s30, 0
    %p146 = por %p144, %p145
    %s148 = sadd.s32 %s147, 1
    %p151 = scmp.eq.s32.totalorder %s24, 1
    %p152 = scmp.ne.s32.totalorder %s147, %s149
    %p153 = scmp.eq.s32.totalorder %s24, 0
    %p154 = por %p152, %p153
    %p155 = scmp.ne.s32.totalorder %s147, %s149
    %p156 = scmp.eq.s32.totalorder %s29, 1
    %p157 = por %p155, %p156
    %p158 = scmp.ne.s32.totalorder %s149, %s150
    %p159 = scmp.eq.s32.totalorder %s29, 0
    %p160 = por %p158, %p159
    %p161 = scmp.ne.s32.totalorder %s149, %s150
    %p162 = scmp.eq.s32.totalorder %s30, 1
    %p163 = por %p161, %p162
    %p165 = scmp.ne.s32.totalorder %s150, %s164
    %p166 = scmp.eq.s32.totalorder %s30, 0
    %p167 = por %p165, %p166
    %s169 = sadd.s32 %s168, 1
    %p172 = scmp.eq.s32.totalorder %s24, 1
    %p173 = scmp.ne.s32.totalorder %s168, %s170
    %p174 = scmp.eq.s32.totalorder %s24, 0
    %p175 = por %p173, %p174
    %p176 = scmp.ne.s32.totalorder %s168, %s170
    %p177 = scmp.eq.s32.totalorder %s29, 1
    %p178 = por %p176, %p177
    %p179 = scmp.ne.s32.totalorder %s170, %s171
    %p180 = scmp.eq.s32.totalorder %s29, 0
    %p181 = por %p179, %p180
    %p182 = scmp.ne.s32.totalorder %s170, %s171
    %p183 = scmp.eq.s32.totalorder %s30, 1
    %p184 = por %p182, %p183
    %p186 = scmp.ne.s32.totalorder %s171, %s185
    %p187 = scmp.eq.s32.totalorder %s30, 0
    %p188 = por %p186, %p187
    %s190 = sadd.s32 %s189, 1
    %p193 = scmp.eq.s32.totalorder %s24, 1
    %p194 = scmp.ne.s32.totalorder %s189, %s191
    %p195 = scmp.eq.s32.totalorder %s24, 0
    %p196 = por %p194, %p195
    %p197 = scmp.ne.s32.totalorder %s189, %s191
    %p198 = scmp.eq.s32.totalorder %s29, 1
    %p199 = por %p197, %p198
    %p200 = scmp.ne.s32.totalorder %s191, %s192
    %p201 = scmp.eq.s32.totalorder %s29, 0
    %p202 = por %p200, %p201
    %p203 = scmp.ne.s32.totalorder %s191, %s192
    %p204 = scmp.eq.s32.totalorder %s30, 1
    %p205 = por %p203, %p204
    %p207 = scmp.ne.s32.totalorder %s192, %s206
    %p208 = scmp.eq.s32.totalorder %s30, 0
    %p209 = por %p207, %p208
    %s211 = sadd.s32 %s210, 1
    %p214 = scmp.eq.s32.totalorder %s24, 1
    %p215 = scmp.ne.s32.totalorder %s210, %s212
    %p216 = scmp.eq.s32.totalorder %s24, 0
    %p217 = por %p215, %p216
    %p218 = scmp.ne.s32.totalorder %s210, %s212
    %p219 = scmp.eq.s32.totalorder %s29, 1
    %p220 = por %p218, %p219
    %p221 = scmp.ne.s32.totalorder %s212, %s213
    %p222 = scmp.eq.s32.totalorder %s29, 0
    %p223 = por %p221, %p222
    %p224 = scmp.ne.s32.totalorder %s212, %s213
    %p225 = scmp.eq.s32.totalorder %s30, 1
    %p226 = por %p224, %p225
    %p228 = scmp.ne.s32.totalorder %s213, %s227
    %p229 = scmp.eq.s32.totalorder %s30, 0
    %p230 = por %p228, %p229
    %s232 = sadd.s32 %s231, 1
    %p235 = scmp.eq.s32.totalorder %s24, 1
    %p236 = scmp.ne.s32.totalorder %s231, %s233
    %p237 = scmp.eq.s32.totalorder %s24, 0
    %p238 = por %p236, %p237
    %p239 = scmp.ne.s32.totalorder %s231, %s233
    %p240 = scmp.eq.s32.totalorder %s29, 1
    %p241 = por %p239, %p240
    %p242 = scmp.ne.s32.totalorder %s233, %s234
    %p243 = scmp.eq.s32.totalorder %s29, 0
    %p244 = por %p242, %p243
    %p245 = scmp.ne.s32.totalorder %s233, %s234
    %p246 = scmp.eq.s32.totalorder %s30, 1
    %p247 = por %p245, %p246
    %p249 = scmp.ne.s32.totalorder %s234, %s248
    %p250 = scmp.eq.s32.totalorder %s30, 0
    %p251 = por %p249, %p250
    %s253 = sadd.s32 %s252, 1
    %p256 = scmp.eq.s32.totalorder %s24, 1
    %p257 = scmp.ne.s32.totalorder %s252, %s254
    %p258 = scmp.eq.s32.totalorder %s24, 0
    %p259 = por %p257, %p258
    %p260 = scmp.ne.s32.totalorder %s252, %s254
    %p261 = scmp.eq.s32.totalorder %s29, 1
    %p262 = por %p260, %p261
    %p263 = scmp.ne.s32.totalorder %s254, %s255
    %p264 = scmp.eq.s32.totalorder %s29, 0
    %p265 = por %p263, %p264
    %p266 = scmp.ne.s32.totalorder %s254, %s255
    %p267 = scmp.eq.s32.totalorder %s30, 1
    %p268 = por %p266, %p267
    %p270 = scmp.ne.s32.totalorder %s255, %s269
    %p271 = scmp.eq.s32.totalorder %s30, 0
    %p272 = por %p270, %p271
    %s274 = sadd.s32 %s273, 1
    %p277 = scmp.eq.s32.totalorder %s24, 1
    %p278 = scmp.ne.s32.totalorder %s273, %s275
    %p279 = scmp.eq.s32.totalorder %s24, 0
    %p280 = por %p278, %p279
    %p281 = scmp.ne.s32.totalorder %s273, %s275
    %p282 = scmp.eq.s32.totalorder %s29, 1
    %p283 = por %p281, %p282
    %p284 = scmp.ne.s32.totalorder %s275, %s276
    %p285 = scmp.eq.s32.totalorder %s29, 0
    %p286 = por %p284, %p285
    %p287 = scmp.ne.s32.totalorder %s275, %s276
    %p288 = scmp.eq.s32.totalorder %s30, 1
    %p289 = por %p287, %p288
    %p291 = scmp.ne.s32.totalorder %s276, %s290
    %p292 = scmp.eq.s32.totalorder %s30, 0
    %p293 = por %p291, %p292
    %s295 = sadd.s32 %s294, 1
    %p298 = scmp.eq.s32.totalorder %s24, 1
    %p299 = scmp.ne.s32.totalorder %s294, %s296
    %p300 = scmp.eq.s32.totalorder %s24, 0
    %p301 = por %p299, %p300
    %p302 = scmp.ne.s32.totalorder %s294, %s296
    %p303 = scmp.eq.s32.totalorder %s29, 1
    %p304 = por %p302, %p303
    %p305 = scmp.ne.s32.totalorder %s296, %s297
    %p306 = scmp.eq.s32.totalorder %s29, 0
    %p307 = por %p305, %p306
    %p308 = scmp.ne.s32.totalorder %s296, %s297
    %p309 = scmp.eq.s32.totalorder %s30, 1
    %p310 = por %p308, %p309
    %p312 = scmp.ne.s32.totalorder %s297, %s311
    %p313 = scmp.eq.s32.totalorder %s30, 0
    %p314 = por %p312, %p313
    %s316 = sadd.s32 %s315, 1
    %p319 = scmp.eq.s32.totalorder %s24, 1
    %p320 = scmp.ne.s32.totalorder %s315, %s317
    %p321 = scmp.eq.s32.totalorder %s24, 0
    %p322 = por %p320, %p321
    %p323 = scmp.ne.s32.totalorder %s315, %s317
    %p324 = scmp.eq.s32.totalorder %s29, 1
    %p325 = por %p323, %p324
    %p326 = scmp.ne.s32.totalorder %s317, %s318
    %p327 = scmp.eq.s32.totalorder %s29, 0
    %p328 = por %p326, %p327
    %p329 = scmp.ne.s32.totalorder %s317, %s318
    %p330 = scmp.eq.s32.totalorder %s30, 1
    %p331 = por %p329, %p330
    %p333 = scmp.ne.s32.totalorder %s318, %s332
    %p334 = scmp.eq.s32.totalorder %s30, 0
    %p335 = por %p333, %p334
    %s337 = sadd.s32 %s336, 1
    %p340 = scmp.eq.s32.totalorder %s24, 1
    %p341 = scmp.ne.s32.totalorder %s336, %s338
    %p342 = scmp.eq.s32.totalorder %s24, 0
    %p343 = por %p341, %p342
    %p344 = scmp.ne.s32.totalorder %s336, %s338
    %p345 = scmp.eq.s32.totalorder %s29, 1
    %p346 = por %p344, %p345
    %p347 = scmp.ne.s32.totalorder %s338, %s339
    %p348 = scmp.eq.s32.totalorder %s29, 0
    %p349 = por %p347, %p348
    %p350 = scmp.ne.s32.totalorder %s338, %s339
    %p351 = scmp.eq.s32.totalorder %s30, 1
    %p352 = por %p350, %p351
    %p354 = scmp.ne.s32.totalorder %s339, %s353
    %p355 = scmp.eq.s32.totalorder %s30, 0
    %p356 = por %p354, %p355
    %s358 = sadd.s32 %s357, 1
    %p361 = scmp.eq.s32.totalorder %s24, 1
    %p362 = scmp.ne.s32.totalorder %s357, %s359
    %p363 = scmp.eq.s32.totalorder %s24, 0
    %p364 = por %p362, %p363
    %p365 = scmp.ne.s32.totalorder %s357, %s359
    %p366 = scmp.eq.s32.totalorder %s29, 1
    %p367 = por %p365, %p366
    %p368 = scmp.ne.s32.totalorder %s359, %s360
    %p369 = scmp.eq.s32.totalorder %s29, 0
    %p370 = por %p368, %p369
    %p371 = scmp.ne.s32.totalorder %s359, %s360
    %p372 = scmp.eq.s32.totalorder %s30, 1
    %p373 = por %p371, %p372
    %p375 = scmp.ne.s32.totalorder %s360, %s374
    %p376 = scmp.eq.s32.totalorder %s30, 0
    %p377 = por %p375, %p376
    %s379 = sadd.s32 %s378, 1
    %p382 = scmp.eq.s32.totalorder %s24, 1
    %p383 = scmp.ne.s32.totalorder %s378, %s380
    %p384 = scmp.eq.s32.totalorder %s24, 0
    %p385 = por %p383, %p384
    %p386 = scmp.ne.s32.totalorder %s378, %s380
    %p387 = scmp.eq.s32.totalorder %s29, 1
    %p388 = por %p386, %p387
    %p389 = scmp.ne.s32.totalorder %s380, %s381
    %p390 = scmp.eq.s32.totalorder %s29, 0
    %p391 = por %p389, %p390
    %p392 = scmp.ne.s32.totalorder %s380, %s381
    %p393 = scmp.eq.s32.totalorder %s30, 1
    %p394 = por %p392, %p393
    %p396 = scmp.ne.s32.totalorder %s381, %s395
    %p397 = scmp.eq.s32.totalorder %s30, 0
    %p398 = por %p396, %p397
    %s400 = sadd.s32 %s399, 1
    %p403 = scmp.eq.s32.totalorder %s24, 1
    %p404 = scmp.ne.s32.totalorder %s399, %s401
    %p405 = scmp.eq.s32.totalorder %s24, 0
    %p406 = por %p404, %p405
    %p407 = scmp.ne.s32.totalorder %s399, %s401
    %p408 = scmp.eq.s32.totalorder %s29, 1
    %p409 = por %p407, %p408
    %p410 = scmp.ne.s32.totalorder %s401, %s402
    %p411 = scmp.eq.s32.totalorder %s29, 0
    %p412 = por %p410, %p411
    %p413 = scmp.ne.s32.totalorder %s401, %s402
    %p414 = scmp.eq.s32.totalorder %s30, 1
    %p415 = por %p413, %p414
    %p417 = scmp.ne.s32.totalorder %s402, %s416
    %p418 = scmp.eq.s32.totalorder %s30, 0
    %p419 = por %p417, %p418
    %s420 = ssub.s32 %s24, %s31
    %p421 = scmp.eq.s32.totalorder %s420, 0
    %s423 = sadd.s32 %s422, 1
    %s424 = scalar_select %p421, %s422, %s423
    %p427 = pneg %p421
    %p428 = scmp.eq.s32.totalorder %s24, 1
    %p429 = por %p427, %p428
    %p430 = scmp.ne.s32.totalorder %s422, %s425
    %p431 = scmp.eq.s32.totalorder %s24, 0
    %p432 = por %p430, %p431
    %p433 = scmp.ne.s32.totalorder %s422, %s425
    %p434 = scmp.eq.s32.totalorder %s29, 1
    %p435 = por %p433, %p434
    %p436 = scmp.ne.s32.totalorder %s425, %s426
    %p437 = scmp.eq.s32.totalorder %s29, 0
    %p438 = por %p436, %p437
    %p439 = scmp.ne.s32.totalorder %s425, %s426
    %p440 = scmp.eq.s32.totalorder %s30, 1
    %p441 = por %p439, %p440
    %p443 = scmp.ne.s32.totalorder %s426, %s442
    %p444 = scmp.eq.s32.totalorder %s30, 0
    %p445 = por %p443, %p444
    %p446 = scmp.le.s32.totalorder 1, %s24
    %p447 = scmp.lt.s32.totalorder %s24, 3
    %p448 = pnand %p446, %p447
    %p449 = pneg %p448
    // Predicated region
    $region9: #{dlrm_forward.1} parent=5 // pred_check
      _
    $region10: #{dlrm_forward.1} parent=5 // pred_check_branch
      %451 = sbr.rel (%p448) target = $region12
    $region11: #{dlrm_forward.1} parent=5 // pred_region
      %s452 = ssub.s32 %s24, 1
      // Predicated region
      $region13: #{dlrm_forward.1} parent=11 // pred_check
        %p453 = pneg %p97
      $region14: #{dlrm_forward.1} parent=11 // pred_check_branch
        %455 = sbr.rel (%p453) target = $region16
      $region15: #{dlrm_forward.1} parent=11 // pred_region
        _
      $region16: #{dlrm_forward.1} parent=11 // pred_fallthru
        _
      // Predicated region
      $region17: #{dlrm_forward.1} parent=11 // pred_check
        %p456 = pneg %p118
      $region18: #{dlrm_forward.1} parent=11 // pred_check_branch
        %458 = sbr.rel (%p456) target = $region20
      $region19: #{dlrm_forward.1} parent=11 // pred_region
        _
      $region20: #{dlrm_forward.1} parent=11 // pred_fallthru
        _
      // Predicated region
      $region21: #{dlrm_forward.1} parent=11 // pred_check
        %p459 = pneg %p139
      $region22: #{dlrm_forward.1} parent=11 // pred_check_branch
        %461 = sbr.rel (%p459) target = $region24
      $region23: #{dlrm_forward.1} parent=11 // pred_region
        _
      $region24: #{dlrm_forward.1} parent=11 // pred_fallthru
        _
      // Predicated region
      $region25: #{dlrm_forward.1} parent=11 // pred_check
        %p462 = pneg %p160
      $region26: #{dlrm_forward.1} parent=11 // pred_check_branch
        %464 = sbr.rel (%p462) target = $region28
      $region27: #{dlrm_forward.1} parent=11 // pred_region
        _
      $region28: #{dlrm_forward.1} parent=11 // pred_fallthru
        _
      // Predicated region
      $region29: #{dlrm_forward.1} parent=11 // pred_check
        %p465 = pneg %p181
      $region30: #{dlrm_forward.1} parent=11 // pred_check_branch
        %467 = sbr.rel (%p465) target = $region32
      $region31: #{dlrm_forward.1} parent=11 // pred_region
        _
      $region32: #{dlrm_forward.1} parent=11 // pred_fallthru
        _
      // Predicated region
      $region33: #{dlrm_forward.1} parent=11 // pred_check
        %p468 = pneg %p202
      $region34: #{dlrm_forward.1} parent=11 // pred_check_branch
        %470 = sbr.rel (%p468) target = $region36
      $region35: #{dlrm_forward.1} parent=11 // pred_region
        _
      $region36: #{dlrm_forward.1} parent=11 // pred_fallthru
        _
      // Predicated region
      $region37: #{dlrm_forward.1} parent=11 // pred_check
        %p471 = pneg %p223
      $region38: #{dlrm_forward.1} parent=11 // pred_check_branch
        %473 = sbr.rel (%p471) target = $region40
      $region39: #{dlrm_forward.1} parent=11 // pred_region
        _
      $region40: #{dlrm_forward.1} parent=11 // pred_fallthru
        _
      // Predicated region
      $region41: #{dlrm_forward.1} parent=11 // pred_check
        %p474 = pneg %p244
      $region42: #{dlrm_forward.1} parent=11 // pred_check_branch
        %476 = sbr.rel (%p474) target = $region44
      $region43: #{dlrm_forward.1} parent=11 // pred_region
        _
      $region44: #{dlrm_forward.1} parent=11 // pred_fallthru
        _
      // Predicated region
      $region45: #{dlrm_forward.1} parent=11 // pred_check
        %p477 = pneg %p265
      $region46: #{dlrm_forward.1} parent=11 // pred_check_branch
        %479 = sbr.rel (%p477) target = $region48
      $region47: #{dlrm_forward.1} parent=11 // pred_region
        _
      $region48: #{dlrm_forward.1} parent=11 // pred_fallthru
        _
      // Predicated region
      $region49: #{dlrm_forward.1} parent=11 // pred_check
        %p480 = pneg %p286
      $region50: #{dlrm_forward.1} parent=11 // pred_check_branch
        %482 = sbr.rel (%p480) target = $region52
      $region51: #{dlrm_forward.1} parent=11 // pred_region
        _
      $region52: #{dlrm_forward.1} parent=11 // pred_fallthru
        _
      // Predicated region
      $region53: #{dlrm_forward.1} parent=11 // pred_check
        %p483 = pneg %p307
      $region54: #{dlrm_forward.1} parent=11 // pred_check_branch
        %485 = sbr.rel (%p483) target = $region56
      $region55: #{dlrm_forward.1} parent=11 // pred_region
        _
      $region56: #{dlrm_forward.1} parent=11 // pred_fallthru
        _
      // Predicated region
      $region57: #{dlrm_forward.1} parent=11 // pred_check
        %p486 = pneg %p328
      $region58: #{dlrm_forward.1} parent=11 // pred_check_branch
        %488 = sbr.rel (%p486) target = $region60
      $region59: #{dlrm_forward.1} parent=11 // pred_region
        _
      $region60: #{dlrm_forward.1} parent=11 // pred_fallthru
        _
      // Predicated region
      $region61: #{dlrm_forward.1} parent=11 // pred_check
        %p489 = pneg %p349
      $region62: #{dlrm_forward.1} parent=11 // pred_check_branch
        %491 = sbr.rel (%p489) target = $region64
      $region63: #{dlrm_forward.1} parent=11 // pred_region
        _
      $region64: #{dlrm_forward.1} parent=11 // pred_fallthru
        _
      // Predicated region
      $region65: #{dlrm_forward.1} parent=11 // pred_check
        %p492 = pneg %p370
      $region66: #{dlrm_forward.1} parent=11 // pred_check_branch
        %494 = sbr.rel (%p492) target = $region68
      $region67: #{dlrm_forward.1} parent=11 // pred_region
        _
      $region68: #{dlrm_forward.1} parent=11 // pred_fallthru
        _
      // Predicated region
      $region69: #{dlrm_forward.1} parent=11 // pred_check
        %p495 = pneg %p391
      $region70: #{dlrm_forward.1} parent=11 // pred_check_branch
        %497 = sbr.rel (%p495) target = $region72
      $region71: #{dlrm_forward.1} parent=11 // pred_region
        _
      $region72: #{dlrm_forward.1} parent=11 // pred_fallthru
        _
      // Predicated region
      $region73: #{dlrm_forward.1} parent=11 // pred_check
        %p498 = pneg %p412
      $region74: #{dlrm_forward.1} parent=11 // pred_check_branch
        %500 = sbr.rel (%p498) target = $region76
      $region75: #{dlrm_forward.1} parent=11 // pred_region
        _
      $region76: #{dlrm_forward.1} parent=11 // pred_fallthru
        _
    $region12: #{dlrm_forward.1} parent=5 // pred_fallthru
      _
    %p501 = scmp.lt.s32.totalorder %s24, 2
    // Predicated region
    $region77: #{dlrm_forward.1} parent=5 // pred_check
      %p502 = pneg %p501
    $region78: #{dlrm_forward.1} parent=5 // pred_check_branch
      %504 = sbr.rel (%p502) target = $region80
    $region79: #{dlrm_forward.1} parent=5 // pred_region
      // Predicated region
      $region81: #{dlrm_forward.1} parent=79 // pred_check
        %p505 = pneg %p44
      $region82: #{dlrm_forward.1} parent=79 // pred_check_branch
        %507 = sbr.rel (%p505) target = $region84
      $region83: #{dlrm_forward.1} parent=79 // pred_region
        %s508 = smul.u32 4, %s24
        %p509 = scmp.lt.s32.totalorder %s508, 7
        %s510 = scalar_select %p509, %s508, 7
        %s511 = smul.addr %s510, 8
        %s512 = scalar_lea.vmem %s0, %s511
        %s513 = smul.u32 4, %s24
      $region84: #{dlrm_forward.1} parent=79 // pred_fallthru
        _
      // Predicated region
      $region85: #{dlrm_forward.1} parent=79 // pred_check
        %p514 = pneg %p70
      $region86: #{dlrm_forward.1} parent=79 // pred_check_branch
        %516 = sbr.rel (%p514) target = $region88
      $region87: #{dlrm_forward.1} parent=79 // pred_region
        %s517 = smul.u32 4, %s24
        %p518 = scmp.lt.s32.totalorder %s517, 7
        %s519 = scalar_select %p518, %s517, 7
        %s520 = smul.addr %s519, 8
        %s521 = scalar_lea.vmem %s1, %s520
        %s522 = smul.u32 4, %s24
      $region88: #{dlrm_forward.1} parent=79 // pred_fallthru
        _
    $region80: #{dlrm_forward.1} parent=5 // pred_fallthru
      _
    %p523 = scmp.le.s32.totalorder 1, %s24
    %p524 = scmp.lt.s32.totalorder %s24, 3
    %p525 = pnand %p523, %p524
    %p526 = pneg %p525
    // Predicated region
    $region89: #{dlrm_forward.1} parent=5 // pred_check
      _
    $region90: #{dlrm_forward.1} parent=5 // pred_check_branch
      %528 = sbr.rel (%p525) target = $region92
    $region91: #{dlrm_forward.1} parent=5 // pred_region
      %s529 = ssub.s32 %s24, 1
      %s530 = smul.u32 4, %s29
      %p531 = scmp.lt.s32.totalorder %s530, 7
      %s532 = scalar_select %p531, %s530, 7
      %s533 = smul.addr %s532, 8
      %s534 = scalar_lea.vmem %s0, %s533
      %p535 = pneg %p50
      %p536 = pneg %p47
      %s537 = smul.u32 4, %s29
      %p538 = scmp.lt.s32.totalorder %s537, 7
      %s539 = scalar_select %p538, %s537, 7
      %s540 = smul.addr %s539, 8
      %s541 = scalar_lea.vmem %s1, %s540
      %p542 = pneg %p76
      %p543 = pneg %p73
      %p544 = pneg %p97
      %p545 = pneg %p94
      %p546 = pneg %p118
      %p547 = pneg %p115
      %p548 = pneg %p139
      %p549 = pneg %p136
      %p550 = pneg %p160
      %p551 = pneg %p157
      %p552 = pneg %p181
      %p553 = pneg %p178
      %p554 = pneg %p202
      %p555 = pneg %p199
      %p556 = pneg %p223
      %p557 = pneg %p220
      %p558 = pneg %p244
      %p559 = pneg %p241
      %p560 = pneg %p265
      %p561 = pneg %p262
      %p562 = pneg %p286
      %p563 = pneg %p283
      %p564 = pneg %p307
      %p565 = pneg %p304
      %p566 = pneg %p328
      %p567 = pneg %p325
      %p568 = pneg %p349
      %p569 = pneg %p346
      %p570 = pneg %p370
      %p571 = pneg %p367
      %p572 = pneg %p391
      %p573 = pneg %p388
      %p574 = pneg %p412
      %p575 = pneg %p409
      %p576 = pneg %p438
      %p577 = pneg %p435
      %p578 = scmp.lt.s32.totalorder %s29, 1
      %s579 = scalar_select %p578, %s29, 1
      %s580 = scalar_lea.vmem %s18, %s579
      %s581 = smul.u32 4, %s29
      %p582 = scmp.lt.s32.totalorder %s581, 7
      %s583 = scalar_select %p582, %s581, 7
      %s584 = smul.addr %s583, 8
      %s585 = scalar_lea.vmem %s0, %s584
      %s586 = smul.u32 4, %s29
      %s587 = smul.u32 4, %s29
      %p588 = scmp.lt.s32.totalorder %s587, 7
      %s589 = scalar_select %p588, %s587, 7
      %s590 = smul.addr %s589, 8
      %s591 = scalar_lea.vmem %s1, %s590
      %s592 = smul.u32 4, %s29
      %p593 = scmp.lt.s32.totalorder %s29, 1
      %s594 = scalar_select %p593, %s29, 1
      %s595 = scalar_lea.vmem %s18, %s594
      %v597 = vld [vmem:[%s585] sm:$0xff]
      %v598 = vld [vmem:[%s585 + $0x8] sm:$0xff]
      %v599 = vld [vmem:[%s585 + $0x10] sm:$0xff]
      %v600 = vld [vmem:[%s585 + $0x18] sm:$0xff]
      %v601 = vpack.c.bf16 %v598, %v597
      %v602 = vpack.c.bf16 %v600, %v599
      %v603 = vld [vmem:[%s2] sm:$0xf]
      %v604 = vld [vmem:[%s2 + $0x4] sm:$0xf]
      %v605 = vld [vmem:[%s3] sm:$0x1]
      %v607 = vperm.slane %v605, 0
      %v611 = vunpack.c.l.b16 %v603
      %v612 = vunpack.c.l.b16 %v604
      %v613 = vpack.c.b16 %v612, %v611
      %vm615 = vcmask 130048
      %v617 = vsel %vm615, %v601, 0
      %v620 = vsel %vm615, %v602, 0
      %622 = vmatpush.bf16.msra.mxu0 0
      %623 = vmatpush.bf16.msra.mxu0 0
      %624 = vmatpush.bf16.msra.mxu0 0
      %625 = vmatpush.bf16.msra.mxu0 0
      %626 = vmatpush.bf16.msra.mxu0 0
      %627 = vmatpush.bf16.msra.mxu0 0
      %628 = vmatpush.bf16.msra.mxu0 0
      %629 = vmatpush.bf16.msra.mxu0 %v613
      %630 = vmatmul.bf16.gmra.mxu0 %v617
      %v631 = vpop.f32.mrf.mxu0
      %v632 = vadd.f32 %v607, %v631
      %v633 = vpop.f32.mrf.mxu0
      %v634 = vadd.f32 %v607, %v633
      %635 = vmatmul.bf16.gmra.mxu0 %v620
      %v636 = vpop.f32.mrf.mxu0
      %v637 = vadd.f32 %v607, %v636
      %v638 = vpop.f32.mrf.mxu0
      %v639 = vadd.f32 %v607, %v638
      %640 = vdwg.mxu0
      %v641 = vmax.f32 %v632, 0.0
      %v642 = vmax.f32 %v634, 0.0
      %v643 = vmax.f32 %v637, 0.0
      %v644 = vmax.f32 %v639, 0.0
      %v645 = vpack.c.bf16 %v642, %v641
      %v646 = vpack.c.bf16 %v644, %v643
      %v647 = vld [vmem:[%s4] sm:$0xf]
      %v648 = vld [vmem:[%s4 + $0x4] sm:$0xf]
      %v649 = vld [vmem:[%s4 + $0x8] sm:$0xf]
      %v650 = vld [vmem:[%s4 + $0xc] sm:$0xf]
      %v651 = vld [vmem:[%s5] sm:$0x1]
      %v653 = vperm.slane %v651, 0
      %v659 = vunpack.c.l.b16 %v647
      %v660 = vunpack.c.l.b16 %v648
      %v661 = vunpack.c.l.b16 %v649
      %v662 = vunpack.c.l.b16 %v650
      %v663 = vpack.c.b16 %v660, %v659
      %v664 = vpack.c.b16 %v662, %v661
      %vm667 = vcmask 261120
      %v669 = vsel %vm667, %v645, 0
      %v672 = vsel %vm667, %v646, 0
      %674 = vmatpush.bf16.msra.mxu0 0
      %675 = vmatpush.bf16.msra.mxu0 0
      %676 = vmatpush.bf16.msra.mxu0 0
      %677 = vmatpush.bf16.msra.mxu0 0
      %678 = vmatpush.bf16.msra.mxu0 0
      %679 = vmatpush.bf16.msra.mxu0 0
      %680 = vmatpush.bf16.msra.mxu0 %v664
      %681 = vmatpush.bf16.msra.mxu0 %v663
      %682 = vmatmul.bf16.gmra.mxu0 %v669
      %v683 = vpop.f32.mrf.mxu0
      %v684 = vadd.f32 %v653, %v683
      %v685 = vpop.f32.mrf.mxu0
      %v686 = vadd.f32 %v653, %v685
      %687 = vmatmul.bf16.gmra.mxu0 %v672
      %v688 = vpop.f32.mrf.mxu0
      %v689 = vadd.f32 %v653, %v688
      %v690 = vpop.f32.mrf.mxu0
      %v691 = vadd.f32 %v653, %v690
      %692 = vdwg.mxu0
      %v693 = vmax.f32 %v684, 0.0
      %v694 = vmax.f32 %v686, 0.0
      %v695 = vmax.f32 %v689, 0.0
      %v696 = vmax.f32 %v691, 0.0
      %v697 = vpack.c.bf16 %v694, %v693
      %v698 = vpack.c.bf16 %v696, %v695
      %v699 = vld [vmem:[%s6] sm:$0xf]
      %v700 = vld [vmem:[%s6 + $0x4] sm:$0xf]
      %v701 = vld [vmem:[%s6 + $0x8] sm:$0xf]
      %v702 = vld [vmem:[%s6 + $0xc] sm:$0xf]
      %v703 = vld [vmem:[%s7] sm:$0x1]
      %v705 = vperm.slane %v703, 0
      %v711 = vunpack.c.l.b16 %v699
      %v712 = vunpack.c.l.b16 %v700
      %v713 = vunpack.c.l.b16 %v701
      %v714 = vunpack.c.l.b16 %v702
      %v715 = vpack.c.b16 %v712, %v711
      %v716 = vpack.c.b16 %v714, %v713
      %v720 = vsel %vm667, %v697, 0
      %v723 = vsel %vm667, %v698, 0
      %725 = vmatpush.bf16.msra.mxu0 0
      %726 = vmatpush.bf16.msra.mxu0 0
      %727 = vmatpush.bf16.msra.mxu0 0
      %728 = vmatpush.bf16.msra.mxu0 0
      %729 = vmatpush.bf16.msra.mxu0 0
      %730 = vmatpush.bf16.msra.mxu0 0
      %731 = vmatpush.bf16.msra.mxu0 %v716
      %732 = vmatpush.bf16.msra.mxu0 %v715
      %733 = vmatmul.bf16.gmra.mxu0 %v720
      %v734 = vpop.f32.mrf.mxu0
      %v735 = vadd.f32 %v705, %v734
      %v736 = vpop.f32.mrf.mxu0
      %v737 = vadd.f32 %v705, %v736
      %738 = vmatmul.bf16.gmra.mxu0 %v723
      %v739 = vpop.f32.mrf.mxu0
      %v740 = vadd.f32 %v705, %v739
      %v741 = vpop.f32.mrf.mxu0
      %v742 = vadd.f32 %v705, %v741
      %743 = vdwg.mxu0
      %v744 = vlaneseq
      %v745 = vand.u32 %v744, 127
      %v746 = vadd.s32 %v745, 128
      %v747 = vld [vmem:[%s591] sm:$0xff]
      %v748 = vld [vmem:[%s591 + $0x8] sm:$0xff]
      %v749 = vld [vmem:[%s591 + $0x10] sm:$0xff]
      %v750 = vld [vmem:[%s591 + $0x18] sm:$0xff]
      %751 = vset.pattern.permute.xlu0 0
      %752 = vperm.xlu0 %751, %v747
      %v753 = vpop.permute.xlu0 %752
      %754 = vset.pattern.permute.xlu0 0
      %755 = vperm.xlu0 %754, %v748
      %v756 = vpop.permute.xlu0 %755
      %757 = vset.pattern.permute.xlu0 0
      %758 = vperm.xlu0 %757, %v749
      %v759 = vpop.permute.xlu0 %758
      %760 = vset.pattern.permute.xlu0 0
      %761 = vperm.xlu0 %760, %v750
      %v762 = vpop.permute.xlu0 %761
      %vm763 = vcmp.eq.s32.totalorder %v745, %v753
      %vm764 = vcmp.eq.s32.totalorder %v746, %v753
      %vm765 = vcmp.eq.s32.totalorder %v745, %v756
      %vm766 = vcmp.eq.s32.totalorder %v746, %v756
      %vm767 = vcmp.eq.s32.totalorder %v745, %v759
      %vm768 = vcmp.eq.s32.totalorder %v746, %v759
      %vm769 = vcmp.eq.s32.totalorder %v745, %v762
      %vm770 = vcmp.eq.s32.totalorder %v746, %v762
      %771 = vset.pattern.permute.xlu0 1
      %772 = vperm.xlu0 %771, %v747
      %v773 = vpop.permute.xlu0 %772
      %774 = vset.pattern.permute.xlu0 1
      %775 = vperm.xlu0 %774, %v748
      %v776 = vpop.permute.xlu0 %775
      %777 = vset.pattern.permute.xlu0 1
      %778 = vperm.xlu0 %777, %v749
      %v779 = vpop.permute.xlu0 %778
      %780 = vset.pattern.permute.xlu0 1
      %781 = vperm.xlu0 %780, %v750
      %v782 = vpop.permute.xlu0 %781
      %vm783 = vcmp.eq.s32.totalorder %v745, %v773
      %vm784 = vcmp.eq.s32.totalorder %v746, %v773
      %vm785 = vcmp.eq.s32.totalorder %v745, %v776
      %vm786 = vcmp.eq.s32.totalorder %v746, %v776
      %vm787 = vcmp.eq.s32.totalorder %v745, %v779
      %vm788 = vcmp.eq.s32.totalorder %v746, %v779
      %vm789 = vcmp.eq.s32.totalorder %v745, %v782
      %vm790 = vcmp.eq.s32.totalorder %v746, %v782
      %vm791 = vmor %vm763, %vm783
      %vm792 = vmor %vm764, %vm784
      %vm793 = vmor %vm765, %vm785
      %vm794 = vmor %vm766, %vm786
      %vm795 = vmor %vm767, %vm787
      %vm796 = vmor %vm768, %vm788
      %vm797 = vmor %vm769, %vm789
      %vm798 = vmor %vm770, %vm790
      %799 = vset.pattern.permute.xlu0 2
      %800 = vperm.xlu0 %799, %v747
      %v801 = vpop.permute.xlu0 %800
      %802 = vset.pattern.permute.xlu0 2
      %803 = vperm.xlu0 %802, %v748
      %v804 = vpop.permute.xlu0 %803
      %805 = vset.pattern.permute.xlu0 2
      %806 = vperm.xlu0 %805, %v749
      %v807 = vpop.permute.xlu0 %806
      %808 = vset.pattern.permute.xlu0 2
      %809 = vperm.xlu0 %808, %v750
      %v810 = vpop.permute.xlu0 %809
      %vm811 = vcmp.eq.s32.totalorder %v745, %v801
      %vm812 = vcmp.eq.s32.totalorder %v746, %v801
      %vm813 = vcmp.eq.s32.totalorder %v745, %v804
      %vm814 = vcmp.eq.s32.totalorder %v746, %v804
      %vm815 = vcmp.eq.s32.totalorder %v745, %v807
      %vm816 = vcmp.eq.s32.totalorder %v746, %v807
      %vm817 = vcmp.eq.s32.totalorder %v745, %v810
      %vm818 = vcmp.eq.s32.totalorder %v746, %v810
      %vm819 = vmor %vm791, %vm811
      %vm820 = vmor %vm792, %vm812
      %vm821 = vmor %vm793, %vm813
      %vm822 = vmor %vm794, %vm814
      %vm823 = vmor %vm795, %vm815
      %vm824 = vmor %vm796, %vm816
      %vm825 = vmor %vm797, %vm817
      %vm826 = vmor %vm798, %vm818
      %v827 = vsel %vm819, 1, 0
      %v828 = vsel %vm820, 1, 0
      %v829 = vsel %vm821, 1, 0
      %v830 = vsel %vm822, 1, 0
      %v831 = vsel %vm823, 1, 0
      %v832 = vsel %vm824, 1, 0
      %v833 = vsel %vm825, 1, 0
      %v834 = vsel %vm826, 1, 0
      %v835 = vcvt.s32.f32 %v827
      %v836 = vcvt.s32.f32 %v828
      %v837 = vcvt.s32.f32 %v829
      %v838 = vcvt.s32.f32 %v830
      %v839 = vcvt.s32.f32 %v831
      %v840 = vcvt.s32.f32 %v832
      %v841 = vcvt.s32.f32 %v833
      %v842 = vcvt.s32.f32 %v834
      %v843 = vpack.c.bf16 %v837, %v835
      %v844 = vpack.c.bf16 %v838, %v836
      %v845 = vpack.c.bf16 %v841, %v839
      %v846 = vpack.c.bf16 %v842, %v840
      %v847 = vld [vmem:[%s8] sm:$0xf]
      %v848 = vld [vmem:[%s8 + $0x4] sm:$0xf]
      %v849 = vld [vmem:[%s8 + $0x8] sm:$0xf]
      %v850 = vld [vmem:[%s8 + $0xc] sm:$0xf]
      %v851 = vld [vmem:[%s8 + $0x10] sm:$0xf]
      %v852 = vld [vmem:[%s8 + $0x14] sm:$0xf]
      %v853 = vld [vmem:[%s8 + $0x18] sm:$0xf]
      %v854 = vld [vmem:[%s8 + $0x1c] sm:$0xf]
      %v855 = vld [vmem:[%s8 + $0x20] sm:$0xf]
      %v856 = vld [vmem:[%s8 + $0x24] sm:$0xf]
      %v857 = vld [vmem:[%s8 + $0x28] sm:$0xf]
      %v858 = vld [vmem:[%s8 + $0x2c] sm:$0xf]
      %v859 = vld [vmem:[%s8 + $0x30] sm:$0xf]
      %v860 = vld [vmem:[%s8 + $0x34] sm:$0xf]
      %v861 = vld [vmem:[%s8 + $0x38] sm:$0xf]
      %v862 = vld [vmem:[%s8 + $0x3c] sm:$0xf]
      %v863 = vld [vmem:[%s8 + $0x40] sm:$0xf]
      %v864 = vld [vmem:[%s8 + $0x44] sm:$0xf]
      %v865 = vld [vmem:[%s8 + $0x48] sm:$0xf]
      %v866 = vld [vmem:[%s8 + $0x4c] sm:$0xf]
      %v867 = vld [vmem:[%s8 + $0x50] sm:$0xf]
      %v868 = vld [vmem:[%s8 + $0x54] sm:$0xf]
      %v869 = vld [vmem:[%s8 + $0x58] sm:$0xf]
      %v870 = vld [vmem:[%s8 + $0x5c] sm:$0xf]
      %v871 = vld [vmem:[%s8 + $0x60] sm:$0xf]
      %v872 = vld [vmem:[%s8 + $0x64] sm:$0xf]
      %v873 = vld [vmem:[%s8 + $0x68] sm:$0xf]
      %v874 = vld [vmem:[%s8 + $0x6c] sm:$0xf]
      %v875 = vld [vmem:[%s8 + $0x70] sm:$0xf]
      %v876 = vld [vmem:[%s8 + $0x74] sm:$0xf]
      %v877 = vld [vmem:[%s8 + $0x78] sm:$0xf]
      %v878 = vld [vmem:[%s8 + $0x7c] sm:$0xf]
      %v911 = vunpack.c.l.b16 %v847
      %v912 = vunpack.c.l.b16 %v848
      %v913 = vunpack.c.l.b16 %v849
      %v914 = vunpack.c.l.b16 %v850
      %v915 = vunpack.c.l.b16 %v851
      %v916 = vunpack.c.l.b16 %v852
      %v917 = vunpack.c.l.b16 %v853
      %v918 = vunpack.c.l.b16 %v854
      %v919 = vunpack.c.l.b16 %v855
      %v920 = vunpack.c.l.b16 %v856
      %v921 = vunpack.c.l.b16 %v857
      %v922 = vunpack.c.l.b16 %v858
      %v923 = vunpack.c.l.b16 %v859
      %v924 = vunpack.c.l.b16 %v860
      %v925 = vunpack.c.l.b16 %v861
      %v926 = vunpack.c.l.b16 %v862
      %v927 = vunpack.c.l.b16 %v863
      %v928 = vunpack.c.l.b16 %v864
      %v929 = vunpack.c.l.b16 %v865
      %v930 = vunpack.c.l.b16 %v866
      %v931 = vunpack.c.l.b16 %v867
      %v932 = vunpack.c.l.b16 %v868
      %v933 = vunpack.c.l.b16 %v869
      %v934 = vunpack.c.l.b16 %v870
      %v935 = vunpack.c.l.b16 %v871
      %v936 = vunpack.c.l.b16 %v872
      %v937 = vunpack.c.l.b16 %v873
      %v938 = vunpack.c.l.b16 %v874
      %v939 = vunpack.c.l.b16 %v875
      %v940 = vunpack.c.l.b16 %v876
      %v941 = vunpack.c.l.b16 %v877
      %v942 = vunpack.c.l.b16 %v878
      %v943 = vpack.c.b16 %v912, %v911
      %v944 = vpack.c.b16 %v914, %v913
      %v945 = vpack.c.b16 %v916, %v915
      %v946 = vpack.c.b16 %v918, %v917
      %v947 = vpack.c.b16 %v920, %v919
      %v948 = vpack.c.b16 %v922, %v921
      %v949 = vpack.c.b16 %v924, %v923
      %v950 = vpack.c.b16 %v926, %v925
      %v951 = vpack.c.b16 %v928, %v927
      %v952 = vpack.c.b16 %v930, %v929
      %v953 = vpack.c.b16 %v932, %v931
      %v954 = vpack.c.b16 %v934, %v933
      %v955 = vpack.c.b16 %v936, %v935
      %v956 = vpack.c.b16 %v938, %v937
      %v957 = vpack.c.b16 %v940, %v939
      %v958 = vpack.c.b16 %v942, %v941
      %975 = vmatpush.bf16.msra.mxu0 %v950
      %976 = vmatpush.bf16.msra.mxu0 %v949
      %977 = vmatpush.bf16.msra.mxu0 %v948
      %978 = vmatpush.bf16.msra.mxu0 %v947
      %979 = vmatpush.bf16.msra.mxu0 %v946
      %980 = vmatpush.bf16.msra.mxu0 %v945
      %981 = vmatpush.bf16.msra.mxu0 %v944
      %982 = vmatpush.bf16.msra.mxu0 %v943
      %983 = vmatmul.bf16.gmra.mxu0 %v843
      %v984 = vpop.f32.mrf.mxu0
      %v985 = vadd.f32 0.0, %v984
      %v986 = vpop.f32.mrf.mxu0
      %v987 = vadd.f32 0.0, %v986
      %988 = vmatmul.bf16.gmra.mxu0 %v845
      %v989 = vpop.f32.mrf.mxu0
      %v990 = vadd.f32 0.0, %v989
      %v991 = vpop.f32.mrf.mxu0
      %v992 = vadd.f32 0.0, %v991
      %993 = vdwg.mxu0
      %994 = vmatpush.bf16.msra.mxu0 %v958
      %995 = vmatpush.bf16.msra.mxu0 %v957
      %996 = vmatpush.bf16.msra.mxu0 %v956
      %997 = vmatpush.bf16.msra.mxu0 %v955
      %998 = vmatpush.bf16.msra.mxu0 %v954
      %999 = vmatpush.bf16.msra.mxu0 %v953
      %1000 = vmatpush.bf16.msra.mxu0 %v952
      %1001 = vmatpush.bf16.msra.mxu0 %v951
      %1002 = vmatmul.bf16.gmra.mxu0 %v844
      %v1003 = vpop.f32.mrf.mxu0
      %v1004 = vadd.f32 %v985, %v1003
      %v1005 = vpop.f32.mrf.mxu0
      %v1006 = vadd.f32 %v987, %v1005
      %1007 = vmatmul.bf16.gmra.mxu0 %v846
      %v1008 = vpop.f32.mrf.mxu0
      %v1009 = vadd.f32 %v990, %v1008
      %v1010 = vpop.f32.mrf.mxu0
      %v1011 = vadd.f32 %v992, %v1010
      %1012 = vdwg.mxu0
      %v1013 = vpack.c.bf16 %v737, %v735
      %v1014 = vpack.c.bf16 %v742, %v740
      %v1015 = vld [vmem:[%s9] sm:$0xff]
      %v1016 = vld [vmem:[%s9 + $0x8] sm:$0xff]
      %v1017 = vld [vmem:[%s9 + $0x10] sm:$0xff]
      %v1018 = vld [vmem:[%s9 + $0x18] sm:$0xff]
      %v1019 = vld [vmem:[%s9 + $0x20] sm:$0xff]
      %v1020 = vld [vmem:[%s9 + $0x28] sm:$0xff]
      %v1021 = vld [vmem:[%s9 + $0x30] sm:$0xff]
      %v1022 = vld [vmem:[%s9 + $0x38] sm:$0xff]
      %v1023 = vld [vmem:[%s9 + $0x40] sm:$0xff]
      %v1024 = vld [vmem:[%s9 + $0x48] sm:$0xff]
      %v1025 = vld [vmem:[%s9 + $0x50] sm:$0xff]
      %v1026 = vld [vmem:[%s9 + $0x58] sm:$0xff]
      %v1027 = vld [vmem:[%s9 + $0x60] sm:$0xff]
      %v1028 = vld [vmem:[%s9 + $0x68] sm:$0xff]
      %v1029 = vld [vmem:[%s9 + $0x70] sm:$0xff]
      %v1030 = vld [vmem:[%s9 + $0x78] sm:$0xff]
      %v1031 = vld [vmem:[%s9 + $0x80] sm:$0xff]
      %v1032 = vld [vmem:[%s9 + $0x88] sm:$0xff]
      %v1033 = vld [vmem:[%s9 + $0x90] sm:$0xff]
      %v1034 = vld [vmem:[%s9 + $0x98] sm:$0xff]
      %v1035 = vld [vmem:[%s9 + $0xa0] sm:$0xff]
      %v1036 = vld [vmem:[%s9 + $0xa8] sm:$0xff]
      %v1037 = vld [vmem:[%s9 + $0xb0] sm:$0xff]
      %v1038 = vld [vmem:[%s9 + $0xb8] sm:$0xff]
      %v1039 = vld [vmem:[%s9 + $0xc0] sm:$0xff]
      %v1040 = vld [vmem:[%s9 + $0xc8] sm:$0xff]
      %v1041 = vpack.c.bf16 %v1006, %v1004
      %v1042 = vpack.c.bf16 %v1011, %v1009
      %v1043 = vld [vmem:[%s10] sm:$0xff]
      %v1044 = vld [vmem:[%s10 + $0x8] sm:$0xff]
      %v1045 = vld [vmem:[%s10 + $0x10] sm:$0xff]
      %v1046 = vld [vmem:[%s10 + $0x18] sm:$0xff]
      %v1047 = vld [vmem:[%s10 + $0x20] sm:$0xff]
      %v1048 = vld [vmem:[%s10 + $0x28] sm:$0xff]
      %v1049 = vld [vmem:[%s10 + $0x30] sm:$0xff]
      %v1050 = vld [vmem:[%s10 + $0x38] sm:$0xff]
      %v1051 = vld [vmem:[%s10 + $0x40] sm:$0xff]
      %v1052 = vld [vmem:[%s10 + $0x48] sm:$0xff]
      %v1053 = vld [vmem:[%s10 + $0x50] sm:$0xff]
      %v1054 = vld [vmem:[%s10 + $0x58] sm:$0xff]
      %v1055 = vld [vmem:[%s10 + $0x60] sm:$0xff]
      %v1056 = vld [vmem:[%s10 + $0x68] sm:$0xff]
      %v1057 = vld [vmem:[%s10 + $0x70] sm:$0xff]
      %v1058 = vld [vmem:[%s10 + $0x78] sm:$0xff]
      %v1059 = vld [vmem:[%s10 + $0x80] sm:$0xff]
      %v1060 = vld [vmem:[%s10 + $0x88] sm:$0xff]
      %v1061 = vld [vmem:[%s10 + $0x90] sm:$0xff]
      %v1062 = vld [vmem:[%s10 + $0x98] sm:$0xff]
      %v1063 = vld [vmem:[%s10 + $0xa0] sm:$0xff]
      %v1064 = vld [vmem:[%s10 + $0xa8] sm:$0xff]
      %v1065 = vld [vmem:[%s10 + $0xb0] sm:$0xff]
      %v1066 = vld [vmem:[%s10 + $0xb8] sm:$0xff]
      %v1067 = vld [vmem:[%s10 + $0xc0] sm:$0xff]
      %v1068 = vld [vmem:[%s10 + $0xc8] sm:$0xff]
      %v1069 = vld [vmem:[%s10 + $0xd0] sm:$0xff]
      %v1070 = vld [vmem:[%s10 + $0xd8] sm:$0xff]
      %v1071 = vld [vmem:[%s10 + $0xe0] sm:$0xff]
      %v1072 = vld [vmem:[%s10 + $0xe8] sm:$0xff]
      %v1073 = vld [vmem:[%s10 + $0xf0] sm:$0xff]
      %v1074 = vld [vmem:[%s10 + $0xf8] sm:$0xff]
      %v1075 = vld [vmem:[%s10 + $0x100] sm:$0xff]
      %v1076 = vld [vmem:[%s10 + $0x108] sm:$0xff]
      %v1077 = vld [vmem:[%s10 + $0x110] sm:$0xff]
      %v1078 = vld [vmem:[%s10 + $0x118] sm:$0xff]
      %v1079 = vld [vmem:[%s10 + $0x120] sm:$0xff]
      %v1080 = vld [vmem:[%s10 + $0x128] sm:$0xff]
      %v1081 = vld [vmem:[%s10 + $0x130] sm:$0xff]
      %v1121 = vunpack.c.l.b16 %v1043
      %v1122 = vunpack.c.h.b16 %v1043
      %v1123 = vunpack.c.l.b16 %v1044
      %v1124 = vunpack.c.h.b16 %v1044
      %v1125 = vunpack.c.l.b16 %v1045
      %v1126 = vunpack.c.h.b16 %v1045
      %v1127 = vunpack.c.l.b16 %v1046
      %v1128 = vunpack.c.h.b16 %v1046
      %v1129 = vunpack.c.l.b16 %v1047
      %v1130 = vunpack.c.h.b16 %v1047
      %v1131 = vunpack.c.l.b16 %v1048
      %v1132 = vunpack.c.h.b16 %v1048
      %v1133 = vunpack.c.l.b16 %v1049
      %v1134 = vunpack.c.h.b16 %v1049
      %v1135 = vunpack.c.l.b16 %v1050
      %v1136 = vunpack.c.h.b16 %v1050
      %v1137 = vunpack.c.l.b16 %v1051
      %v1138 = vunpack.c.h.b16 %v1051
      %v1139 = vunpack.c.l.b16 %v1052
      %v1140 = vunpack.c.h.b16 %v1052
      %v1141 = vunpack.c.l.b16 %v1053
      %v1142 = vunpack.c.h.b16 %v1053
      %v1143 = vunpack.c.l.b16 %v1054
      %v1144 = vunpack.c.h.b16 %v1054
      %v1145 = vunpack.c.l.b16 %v1055
      %v1146 = vunpack.c.h.b16 %v1055
      %v1147 = vunpack.c.l.b16 %v1056
      %v1148 = vunpack.c.h.b16 %v1056
      %v1149 = vunpack.c.l.b16 %v1057
      %v1150 = vunpack.c.h.b16 %v1057
      %v1151 = vunpack.c.l.b16 %v1058
      %v1152 = vunpack.c.h.b16 %v1058
      %v1153 = vunpack.c.l.b16 %v1059
      %v1154 = vunpack.c.h.b16 %v1059
      %v1155 = vunpack.c.l.b16 %v1060
      %v1156 = vunpack.c.h.b16 %v1060
      %v1157 = vunpack.c.l.b16 %v1061
      %v1158 = vunpack.c.h.b16 %v1061
      %v1159 = vunpack.c.l.b16 %v1062
      %v1160 = vunpack.c.h.b16 %v1062
      %v1161 = vunpack.c.l.b16 %v1063
      %v1162 = vunpack.c.h.b16 %v1063
      %v1163 = vunpack.c.l.b16 %v1064
      %v1164 = vunpack.c.h.b16 %v1064
      %v1165 = vunpack.c.l.b16 %v1065
      %v1166 = vunpack.c.h.b16 %v1065
      %v1167 = vunpack.c.l.b16 %v1066
      %v1168 = vunpack.c.h.b16 %v1066
      %v1169 = vunpack.c.l.b16 %v1067
      %v1170 = vunpack.c.h.b16 %v1067
      %v1171 = vunpack.c.l.b16 %v1068
      %v1172 = vunpack.c.h.b16 %v1068
      %v1173 = vunpack.c.l.b16 %v1069
      %v1174 = vunpack.c.h.b16 %v1069
      %v1175 = vunpack.c.l.b16 %v1070
      %v1176 = vunpack.c.h.b16 %v1070
      %v1177 = vunpack.c.l.b16 %v1071
      %v1178 = vunpack.c.h.b16 %v1071
      %v1179 = vunpack.c.l.b16 %v1072
      %v1180 = vunpack.c.h.b16 %v1072
      %v1181 = vunpack.c.l.b16 %v1073
      %v1182 = vunpack.c.h.b16 %v1073
      %v1183 = vunpack.c.l.b16 %v1074
      %v1184 = vunpack.c.h.b16 %v1074
      %v1185 = vunpack.c.l.b16 %v1075
      %v1186 = vunpack.c.h.b16 %v1075
      %v1187 = vunpack.c.l.b16 %v1076
      %v1188 = vunpack.c.h.b16 %v1076
      %v1189 = vunpack.c.l.b16 %v1077
      %v1190 = vunpack.c.h.b16 %v1077
      %v1191 = vunpack.c.l.b16 %v1078
      %v1192 = vunpack.c.h.b16 %v1078
      %v1193 = vunpack.c.l.b16 %v1079
      %v1194 = vunpack.c.h.b16 %v1079
      %v1195 = vunpack.c.l.b16 %v1080
      %v1196 = vunpack.c.h.b16 %v1080
      %v1197 = vunpack.c.l.b16 %v1081
      %v1198 = vunpack.c.h.b16 %v1081
      %v1199 = vpack.c.b16 %v1147, %v1121
      %v1200 = vpack.c.b16 %v1148, %v1122
      %v1201 = vpack.c.b16 %v1149, %v1123
      %v1202 = vpack.c.b16 %v1150, %v1124
      %v1203 = vpack.c.b16 %v1151, %v1125
      %v1204 = vpack.c.b16 %v1152, %v1126
      %v1205 = vpack.c.b16 %v1153, %v1127
      %v1206 = vpack.c.b16 %v1154, %v1128
      %v1207 = vpack.c.b16 %v1155, %v1129
      %v1208 = vpack.c.b16 %v1156, %v1130
      %v1209 = vpack.c.b16 %v1157, %v1131
      %v1210 = vpack.c.b16 %v1158, %v1132
      %v1211 = vpack.c.b16 %v1159, %v1133
      %v1212 = vpack.c.b16 %v1160, %v1134
      %v1213 = vpack.c.b16 %v1161, %v1135
      %v1214 = vpack.c.b16 %v1162, %v1136
      %v1215 = vpack.c.b16 %v1163, %v1137
      %v1216 = vpack.c.b16 %v1164, %v1138
      %v1217 = vpack.c.b16 %v1165, %v1139
      %v1218 = vpack.c.b16 %v1166, %v1140
      %v1219 = vpack.c.b16 %v1167, %v1141
      %v1220 = vpack.c.b16 %v1168, %v1142
      %v1221 = vpack.c.b16 %v1169, %v1143
      %v1222 = vpack.c.b16 %v1170, %v1144
      %v1223 = vpack.c.b16 %v1171, %v1145
      %v1224 = vpack.c.b16 %v1172, %v1146
      %v1225 = vpack.c.b16 %v1173, %v1173
      %v1226 = vpack.c.b16 %v1174, %v1174
      %v1227 = vpack.c.b16 %v1175, %v1175
      %v1228 = vpack.c.b16 %v1176, %v1176
      %v1229 = vpack.c.b16 %v1177, %v1177
      %v1230 = vpack.c.b16 %v1178, %v1178
      %v1231 = vpack.c.b16 %v1179, %v1179
      %v1232 = vpack.c.b16 %v1180, %v1180
      %v1233 = vpack.c.b16 %v1181, %v1181
      %v1234 = vpack.c.b16 %v1182, %v1182
      %v1235 = vpack.c.b16 %v1183, %v1183
      %v1236 = vpack.c.b16 %v1184, %v1184
      %v1237 = vpack.c.b16 %v1185, %v1185
      %v1238 = vpack.c.b16 %v1186, %v1186
      %v1239 = vpack.c.b16 %v1187, %v1187
      %v1240 = vpack.c.b16 %v1188, %v1188
      %v1241 = vpack.c.b16 %v1189, %v1189
      %v1242 = vpack.c.b16 %v1190, %v1190
      %v1243 = vpack.c.b16 %v1191, %v1191
      %v1244 = vpack.c.b16 %v1192, %v1192
      %v1245 = vpack.c.b16 %v1193, %v1193
      %v1246 = vpack.c.b16 %v1194, %v1194
      %v1247 = vpack.c.b16 %v1195, %v1195
      %v1248 = vpack.c.b16 %v1196, %v1196
      %v1249 = vpack.c.b16 %v1197, %v1197
      %v1250 = vpack.c.b16 %v1198, %v1198
      %vm1277 = vcmask 195584
      %v1279 = vsel %vm1277, %v1041, 0
      %v1282 = vsel %vm1277, %v1042, 0
      %vm1284 = vcmask 1043456
      %v1286 = vsel %vm1284, %v1225, 0
      %v1289 = vsel %vm1284, %v1226, 0
      %v1292 = vsel %vm1284, %v1227, 0
      %v1295 = vsel %vm1284, %v1228, 0
      %v1298 = vsel %vm1284, %v1229, 0
      %v1301 = vsel %vm1284, %v1230, 0
      %v1304 = vsel %vm1284, %v1231, 0
      %v1307 = vsel %vm1284, %v1232, 0
      %v1310 = vsel %vm1284, %v1233, 0
      %v1313 = vsel %vm1284, %v1234, 0
      %v1316 = vsel %vm1284, %v1235, 0
      %v1319 = vsel %vm1284, %v1236, 0
      %v1322 = vsel %vm1284, %v1237, 0
      %v1325 = vsel %vm1284, %v1238, 0
      %v1328 = vsel %vm1284, %v1239, 0
      %v1331 = vsel %vm1284, %v1240, 0
      %v1334 = vsel %vm1284, %v1241, 0
      %v1337 = vsel %vm1284, %v1242, 0
      %v1340 = vsel %vm1284, %v1243, 0
      %v1343 = vsel %vm1284, %v1244, 0
      %v1346 = vsel %vm1284, %v1245, 0
      %v1349 = vsel %vm1284, %v1246, 0
      %v1352 = vsel %vm1284, %v1247, 0
      %v1355 = vsel %vm1284, %v1248, 0
      %v1358 = vsel %vm1284, %v1249, 0
      %v1361 = vsel %vm1284, %v1250, 0
      %1363 = vmatpush.bf16.msra.mxu0 0
      %1364 = vmatpush.bf16.msra.mxu0 0
      %1365 = vmatpush.bf16.msra.mxu0 0
      %1366 = vmatpush.bf16.msra.mxu0 0
      %1367 = vmatpush.bf16.msra.mxu0 0
      %1368 = vmatpush.bf16.msra.mxu0 0
      %1369 = vmatpush.bf16.msra.mxu0 %v1286
      %1370 = vmatpush.bf16.msra.mxu0 %v1199
      %1371 = vmatmul.bf16.gmra.mxu0 %v1279
      %v1372 = vpop.f32.mrf.mxu0
      %v1373 = vadd.f32 0.0, %v1372
      %v1374 = vpop.f32.mrf.mxu0
      %v1375 = vadd.f32 0.0, %v1374
      %1376 = vmatmul.bf16.gmra.mxu0 %v1282
      %v1377 = vpop.f32.mrf.mxu0
      %v1378 = vadd.f32 0.0, %v1377
      %v1379 = vpop.f32.mrf.mxu0
      %v1380 = vadd.f32 0.0, %v1379
      %1381 = vdwg.mxu0
      %1382 = vmatpush.bf16.msra.mxu0 0
      %1383 = vmatpush.bf16.msra.mxu0 0
      %1384 = vmatpush.bf16.msra.mxu0 0
      %1385 = vmatpush.bf16.msra.mxu0 0
      %1386 = vmatpush.bf16.msra.mxu0 0
      %1387 = vmatpush.bf16.msra.mxu0 0
      %1388 = vmatpush.bf16.msra.mxu0 %v1289
      %1389 = vmatpush.bf16.msra.mxu0 %v1200
      %1390 = vmatmul.bf16.gmra.mxu0 %v1279
      %v1391 = vpop.f32.mrf.mxu0
      %v1392 = vadd.f32 0.0, %v1391
      %v1393 = vpop.f32.mrf.mxu0
      %v1394 = vadd.f32 0.0, %v1393
      %1395 = vmatmul.bf16.gmra.mxu0 %v1282
      %v1396 = vpop.f32.mrf.mxu0
      %v1397 = vadd.f32 0.0, %v1396
      %v1398 = vpop.f32.mrf.mxu0
      %v1399 = vadd.f32 0.0, %v1398
      %1400 = vdwg.mxu0
      %1401 = vmatpush.bf16.msra.mxu0 0
      %1402 = vmatpush.bf16.msra.mxu0 0
      %1403 = vmatpush.bf16.msra.mxu0 0
      %1404 = vmatpush.bf16.msra.mxu0 0
      %1405 = vmatpush.bf16.msra.mxu0 0
      %1406 = vmatpush.bf16.msra.mxu0 0
      %1407 = vmatpush.bf16.msra.mxu0 %v1292
      %1408 = vmatpush.bf16.msra.mxu0 %v1201
      %1409 = vmatmul.bf16.gmra.mxu0 %v1279
      %v1410 = vpop.f32.mrf.mxu0
      %v1411 = vadd.f32 0.0, %v1410
      %v1412 = vpop.f32.mrf.mxu0
      %v1413 = vadd.f32 0.0, %v1412
      %1414 = vmatmul.bf16.gmra.mxu0 %v1282
      %v1415 = vpop.f32.mrf.mxu0
      %v1416 = vadd.f32 0.0, %v1415
      %v1417 = vpop.f32.mrf.mxu0
      %v1418 = vadd.f32 0.0, %v1417
      %1419 = vdwg.mxu0
      %1420 = vmatpush.bf16.msra.mxu0 0
      %1421 = vmatpush.bf16.msra.mxu0 0
      %1422 = vmatpush.bf16.msra.mxu0 0
      %1423 = vmatpush.bf16.msra.mxu0 0
      %1424 = vmatpush.bf16.msra.mxu0 0
      %1425 = vmatpush.bf16.msra.mxu0 0
      %1426 = vmatpush.bf16.msra.mxu0 %v1295
      %1427 = vmatpush.bf16.msra.mxu0 %v1202
      %1428 = vmatmul.bf16.gmra.mxu0 %v1279
      %v1429 = vpop.f32.mrf.mxu0
      %v1430 = vadd.f32 0.0, %v1429
      %v1431 = vpop.f32.mrf.mxu0
      %v1432 = vadd.f32 0.0, %v1431
      %1433 = vmatmul.bf16.gmra.mxu0 %v1282
      %v1434 = vpop.f32.mrf.mxu0
      %v1435 = vadd.f32 0.0, %v1434
      %v1436 = vpop.f32.mrf.mxu0
      %v1437 = vadd.f32 0.0, %v1436
      %1438 = vdwg.mxu0
      %1439 = vmatpush.bf16.msra.mxu0 0
      %1440 = vmatpush.bf16.msra.mxu0 0
      %1441 = vmatpush.bf16.msra.mxu0 0
      %1442 = vmatpush.bf16.msra.mxu0 0
      %1443 = vmatpush.bf16.msra.mxu0 0
      %1444 = vmatpush.bf16.msra.mxu0 0
      %1445 = vmatpush.bf16.msra.mxu0 %v1298
      %1446 = vmatpush.bf16.msra.mxu0 %v1203
      %1447 = vmatmul.bf16.gmra.mxu0 %v1279
      %v1448 = vpop.f32.mrf.mxu0
      %v1449 = vadd.f32 0.0, %v1448
      %v1450 = vpop.f32.mrf.mxu0
      %v1451 = vadd.f32 0.0, %v1450
      %1452 = vmatmul.bf16.gmra.mxu0 %v1282
      %v1453 = vpop.f32.mrf.mxu0
      %v1454 = vadd.f32 0.0, %v1453
      %v1455 = vpop.f32.mrf.mxu0
      %v1456 = vadd.f32 0.0, %v1455
      %1457 = vdwg.mxu0
      %1458 = vmatpush.bf16.msra.mxu0 0
      %1459 = vmatpush.bf16.msra.mxu0 0
      %1460 = vmatpush.bf16.msra.mxu0 0
      %1461 = vmatpush.bf16.msra.mxu0 0
      %1462 = vmatpush.bf16.msra.mxu0 0
      %1463 = vmatpush.bf16.msra.mxu0 0
      %1464 = vmatpush.bf16.msra.mxu0 %v1301
      %1465 = vmatpush.bf16.msra.mxu0 %v1204
      %1466 = vmatmul.bf16.gmra.mxu0 %v1279
      %v1467 = vpop.f32.mrf.mxu0
      %v1468 = vadd.f32 0.0, %v1467
      %v1469 = vpop.f32.mrf.mxu0
      %v1470 = vadd.f32 0.0, %v1469
      %1471 = vmatmul.bf16.gmra.mxu0 %v1282
      %v1472 = vpop.f32.mrf.mxu0
      %v1473 = vadd.f32 0.0, %v1472
      %v1474 = vpop.f32.mrf.mxu0
      %v1475 = vadd.f32 0.0, %v1474
      %1476 = vdwg.mxu0
      %1477 = vmatpush.bf16.msra.mxu0 0
      %1478 = vmatpush.bf16.msra.mxu0 0
      %1479 = vmatpush.bf16.msra.mxu0 0
      %1480 = vmatpush.bf16.msra.mxu0 0
      %1481 = vmatpush.bf16.msra.mxu0 0
      %1482 = vmatpush.bf16.msra.mxu0 0
      %1483 = vmatpush.bf16.msra.mxu0 %v1304
      %1484 = vmatpush.bf16.msra.mxu0 %v1205
      %1485 = vmatmul.bf16.gmra.mxu0 %v1279
      %v1486 = vpop.f32.mrf.mxu0
      %v1487 = vadd.f32 0.0, %v1486
      %v1488 = vpop.f32.mrf.mxu0
      %v1489 = vadd.f32 0.0, %v1488
      %1490 = vmatmul.bf16.gmra.mxu0 %v1282
      %v1491 = vpop.f32.mrf.mxu0
      %v1492 = vadd.f32 0.0, %v1491
      %v1493 = vpop.f32.mrf.mxu0
      %v1494 = vadd.f32 0.0, %v1493
      %1495 = vdwg.mxu0
      %1496 = vmatpush.bf16.msra.mxu0 0
      %1497 = vmatpush.bf16.msra.mxu0 0
      %1498 = vmatpush.bf16.msra.mxu0 0
      %1499 = vmatpush.bf16.msra.mxu0 0
      %1500 = vmatpush.bf16.msra.mxu0 0
      %1501 = vmatpush.bf16.msra.mxu0 0
      %1502 = vmatpush.bf16.msra.mxu0 %v1307
      %1503 = vmatpush.bf16.msra.mxu0 %v1206
      %1504 = vmatmul.bf16.gmra.mxu0 %v1279
      %v1505 = vpop.f32.mrf.mxu0
      %v1506 = vadd.f32 0.0, %v1505
      %v1507 = vpop.f32.mrf.mxu0
      %v1508 = vadd.f32 0.0, %v1507
      %1509 = vmatmul.bf16.gmra.mxu0 %v1282
      %v1510 = vpop.f32.mrf.mxu0
      %v1511 = vadd.f32 0.0, %v1510
      %v1512 = vpop.f32.mrf.mxu0
      %v1513 = vadd.f32 0.0, %v1512
      %1514 = vdwg.mxu0
      %1515 = vmatpush.bf16.msra.mxu0 0
      %1516 = vmatpush.bf16.msra.mxu0 0
      %1517 = vmatpush.bf16.msra.mxu0 0
      %1518 = vmatpush.bf16.msra.mxu0 0
      %1519 = vmatpush.bf16.msra.mxu0 0
      %1520 = vmatpush.bf16.msra.mxu0 0
      %1521 = vmatpush.bf16.msra.mxu0 %v1310
      %1522 = vmatpush.bf16.msra.mxu0 %v1207
      %1523 = vmatmul.bf16.gmra.mxu0 %v1279
      %v1524 = vpop.f32.mrf.mxu0
      %v1525 = vadd.f32 0.0, %v1524
      %v1526 = vpop.f32.mrf.mxu0
      %v1527 = vadd.f32 0.0, %v1526
      %1528 = vmatmul.bf16.gmra.mxu0 %v1282
      %v1529 = vpop.f32.mrf.mxu0
      %v1530 = vadd.f32 0.0, %v1529
      %v1531 = vpop.f32.mrf.mxu0
      %v1532 = vadd.f32 0.0, %v1531
      %1533 = vdwg.mxu0
      %1534 = vmatpush.bf16.msra.mxu0 0
      %1535 = vmatpush.bf16.msra.mxu0 0
      %1536 = vmatpush.bf16.msra.mxu0 0
      %1537 = vmatpush.bf16.msra.mxu0 0
      %1538 = vmatpush.bf16.msra.mxu0 0
      %1539 = vmatpush.bf16.msra.mxu0 0
      %1540 = vmatpush.bf16.msra.mxu0 %v1313
      %1541 = vmatpush.bf16.msra.mxu0 %v1208
      %1542 = vmatmul.bf16.gmra.mxu0 %v1279
      %v1543 = vpop.f32.mrf.mxu0
      %v1544 = vadd.f32 0.0, %v1543
      %v1545 = vpop.f32.mrf.mxu0
      %v1546 = vadd.f32 0.0, %v1545
      %1547 = vmatmul.bf16.gmra.mxu0 %v1282
      %v1548 = vpop.f32.mrf.mxu0
      %v1549 = vadd.f32 0.0, %v1548
      %v1550 = vpop.f32.mrf.mxu0
      %v1551 = vadd.f32 0.0, %v1550
      %1552 = vdwg.mxu0
      %1553 = vmatpush.bf16.msra.mxu0 0
      %1554 = vmatpush.bf16.msra.mxu0 0
      %1555 = vmatpush.bf16.msra.mxu0 0
      %1556 = vmatpush.bf16.msra.mxu0 0
      %1557 = vmatpush.bf16.msra.mxu0 0
      %1558 = vmatpush.bf16.msra.mxu0 0
      %1559 = vmatpush.bf16.msra.mxu0 %v1316
      %1560 = vmatpush.bf16.msra.mxu0 %v1209
      %1561 = vmatmul.bf16.gmra.mxu0 %v1279
      %v1562 = vpop.f32.mrf.mxu0
      %v1563 = vadd.f32 0.0, %v1562
      %v1564 = vpop.f32.mrf.mxu0
      %v1565 = vadd.f32 0.0, %v1564
      %1566 = vmatmul.bf16.gmra.mxu0 %v1282
      %v1567 = vpop.f32.mrf.mxu0
      %v1568 = vadd.f32 0.0, %v1567
      %v1569 = vpop.f32.mrf.mxu0
      %v1570 = vadd.f32 0.0, %v1569
      %1571 = vdwg.mxu0
      %1572 = vmatpush.bf16.msra.mxu0 0
      %1573 = vmatpush.bf16.msra.mxu0 0
      %1574 = vmatpush.bf16.msra.mxu0 0
      %1575 = vmatpush.bf16.msra.mxu0 0
      %1576 = vmatpush.bf16.msra.mxu0 0
      %1577 = vmatpush.bf16.msra.mxu0 0
      %1578 = vmatpush.bf16.msra.mxu0 %v1319
      %1579 = vmatpush.bf16.msra.mxu0 %v1210
      %1580 = vmatmul.bf16.gmra.mxu0 %v1279
      %v1581 = vpop.f32.mrf.mxu0
      %v1582 = vadd.f32 0.0, %v1581
      %v1583 = vpop.f32.mrf.mxu0
      %v1584 = vadd.f32 0.0, %v1583
      %1585 = vmatmul.bf16.gmra.mxu0 %v1282
      %v1586 = vpop.f32.mrf.mxu0
      %v1587 = vadd.f32 0.0, %v1586
      %v1588 = vpop.f32.mrf.mxu0
      %v1589 = vadd.f32 0.0, %v1588
      %1590 = vdwg.mxu0
      %1591 = vmatpush.bf16.msra.mxu0 0
      %1592 = vmatpush.bf16.msra.mxu0 0
      %1593 = vmatpush.bf16.msra.mxu0 0
      %1594 = vmatpush.bf16.msra.mxu0 0
      %1595 = vmatpush.bf16.msra.mxu0 0
      %1596 = vmatpush.bf16.msra.mxu0 0
      %1597 = vmatpush.bf16.msra.mxu0 %v1322
      %1598 = vmatpush.bf16.msra.mxu0 %v1211
      %1599 = vmatmul.bf16.gmra.mxu0 %v1279
      %v1600 = vpop.f32.mrf.mxu0
      %v1601 = vadd.f32 0.0, %v1600
      %v1602 = vpop.f32.mrf.mxu0
      %v1603 = vadd.f32 0.0, %v1602
      %1604 = vmatmul.bf16.gmra.mxu0 %v1282
      %v1605 = vpop.f32.mrf.mxu0
      %v1606 = vadd.f32 0.0, %v1605
      %v1607 = vpop.f32.mrf.mxu0
      %v1608 = vadd.f32 0.0, %v1607
      %1609 = vdwg.mxu0
      %1610 = vmatpush.bf16.msra.mxu0 0
      %1611 = vmatpush.bf16.msra.mxu0 0
      %1612 = vmatpush.bf16.msra.mxu0 0
      %1613 = vmatpush.bf16.msra.mxu0 0
      %1614 = vmatpush.bf16.msra.mxu0 0
      %1615 = vmatpush.bf16.msra.mxu0 0
      %1616 = vmatpush.bf16.msra.mxu0 %v1325
      %1617 = vmatpush.bf16.msra.mxu0 %v1212
      %1618 = vmatmul.bf16.gmra.mxu0 %v1279
      %v1619 = vpop.f32.mrf.mxu0
      %v1620 = vadd.f32 0.0, %v1619
      %v1621 = vpop.f32.mrf.mxu0
      %v1622 = vadd.f32 0.0, %v1621
      %1623 = vmatmul.bf16.gmra.mxu0 %v1282
      %v1624 = vpop.f32.mrf.mxu0
      %v1625 = vadd.f32 0.0, %v1624
      %v1626 = vpop.f32.mrf.mxu0
      %v1627 = vadd.f32 0.0, %v1626
      %1628 = vdwg.mxu0
      %1629 = vmatpush.bf16.msra.mxu0 0
      %1630 = vmatpush.bf16.msra.mxu0 0
      %1631 = vmatpush.bf16.msra.mxu0 0
      %1632 = vmatpush.bf16.msra.mxu0 0
      %1633 = vmatpush.bf16.msra.mxu0 0
      %1634 = vmatpush.bf16.msra.mxu0 0
      %1635 = vmatpush.bf16.msra.mxu0 %v1328
      %1636 = vmatpush.bf16.msra.mxu0 %v1213
      %1637 = vmatmul.bf16.gmra.mxu0 %v1279
      %v1638 = vpop.f32.mrf.mxu0
      %v1639 = vadd.f32 0.0, %v1638
      %v1640 = vpop.f32.mrf.mxu0
      %v1641 = vadd.f32 0.0, %v1640
      %1642 = vmatmul.bf16.gmra.mxu0 %v1282
      %v1643 = vpop.f32.mrf.mxu0
      %v1644 = vadd.f32 0.0, %v1643
      %v1645 = vpop.f32.mrf.mxu0
      %v1646 = vadd.f32 0.0, %v1645
      %1647 = vdwg.mxu0
      %1648 = vmatpush.bf16.msra.mxu0 0
      %1649 = vmatpush.bf16.msra.mxu0 0
      %1650 = vmatpush.bf16.msra.mxu0 0
      %1651 = vmatpush.bf16.msra.mxu0 0
      %1652 = vmatpush.bf16.msra.mxu0 0
      %1653 = vmatpush.bf16.msra.mxu0 0
      %1654 = vmatpush.bf16.msra.mxu0 %v1331
      %1655 = vmatpush.bf16.msra.mxu0 %v1214
      %1656 = vmatmul.bf16.gmra.mxu0 %v1279
      %v1657 = vpop.f32.mrf.mxu0
      %v1658 = vadd.f32 0.0, %v1657
      %v1659 = vpop.f32.mrf.mxu0
      %v1660 = vadd.f32 0.0, %v1659
      %1661 = vmatmul.bf16.gmra.mxu0 %v1282
      %v1662 = vpop.f32.mrf.mxu0
      %v1663 = vadd.f32 0.0, %v1662
      %v1664 = vpop.f32.mrf.mxu0
      %v1665 = vadd.f32 0.0, %v1664
      %1666 = vdwg.mxu0
      %1667 = vmatpush.bf16.msra.mxu0 0
      %1668 = vmatpush.bf16.msra.mxu0 0
      %1669 = vmatpush.bf16.msra.mxu0 0
      %1670 = vmatpush.bf16.msra.mxu0 0
      %1671 = vmatpush.bf16.msra.mxu0 0
      %1672 = vmatpush.bf16.msra.mxu0 0
      %1673 = vmatpush.bf16.msra.mxu0 %v1334
      %1674 = vmatpush.bf16.msra.mxu0 %v1215
      %1675 = vmatmul.bf16.gmra.mxu0 %v1279
      %v1676 = vpop.f32.mrf.mxu0
      %v1677 = vadd.f32 0.0, %v1676
      %v1678 = vpop.f32.mrf.mxu0
      %v1679 = vadd.f32 0.0, %v1678
      %1680 = vmatmul.bf16.gmra.mxu0 %v1282
      %v1681 = vpop.f32.mrf.mxu0
      %v1682 = vadd.f32 0.0, %v1681
      %v1683 = vpop.f32.mrf.mxu0
      %v1684 = vadd.f32 0.0, %v1683
      %1685 = vdwg.mxu0
      %1686 = vmatpush.bf16.msra.mxu0 0
      %1687 = vmatpush.bf16.msra.mxu0 0
      %1688 = vmatpush.bf16.msra.mxu0 0
      %1689 = vmatpush.bf16.msra.mxu0 0
      %1690 = vmatpush.bf16.msra.mxu0 0
      %1691 = vmatpush.bf16.msra.mxu0 0
      %1692 = vmatpush.bf16.msra.mxu0 %v1337
      %1693 = vmatpush.bf16.msra.mxu0 %v1216
      %1694 = vmatmul.bf16.gmra.mxu0 %v1279
      %v1695 = vpop.f32.mrf.mxu0
      %v1696 = vadd.f32 0.0, %v1695
      %v1697 = vpop.f32.mrf.mxu0
      %v1698 = vadd.f32 0.0, %v1697
      %1699 = vmatmul.bf16.gmra.mxu0 %v1282
      %v1700 = vpop.f32.mrf.mxu0
      %v1701 = vadd.f32 0.0, %v1700
      %v1702 = vpop.f32.mrf.mxu0
      %v1703 = vadd.f32 0.0, %v1702
      %1704 = vdwg.mxu0
      %1705 = vmatpush.bf16.msra.mxu0 0
      %1706 = vmatpush.bf16.msra.mxu0 0
      %1707 = vmatpush.bf16.msra.mxu0 0
      %1708 = vmatpush.bf16.msra.mxu0 0
      %1709 = vmatpush.bf16.msra.mxu0 0
      %1710 = vmatpush.bf16.msra.mxu0 0
      %1711 = vmatpush.bf16.msra.mxu0 %v1340
      %1712 = vmatpush.bf16.msra.mxu0 %v1217
      %1713 = vmatmul.bf16.gmra.mxu0 %v1279
      %v1714 = vpop.f32.mrf.mxu0
      %v1715 = vadd.f32 0.0, %v1714
      %v1716 = vpop.f32.mrf.mxu0
      %v1717 = vadd.f32 0.0, %v1716
      %1718 = vmatmul.bf16.gmra.mxu0 %v1282
      %v1719 = vpop.f32.mrf.mxu0
      %v1720 = vadd.f32 0.0, %v1719
      %v1721 = vpop.f32.mrf.mxu0
      %v1722 = vadd.f32 0.0, %v1721
      %1723 = vdwg.mxu0
      %1724 = vmatpush.bf16.msra.mxu0 0
      %1725 = vmatpush.bf16.msra.mxu0 0
      %1726 = vmatpush.bf16.msra.mxu0 0
      %1727 = vmatpush.bf16.msra.mxu0 0
      %1728 = vmatpush.bf16.msra.mxu0 0
      %1729 = vmatpush.bf16.msra.mxu0 0
      %1730 = vmatpush.bf16.msra.mxu0 %v1343
      %1731 = vmatpush.bf16.msra.mxu0 %v1218
      %1732 = vmatmul.bf16.gmra.mxu0 %v1279
      %v1733 = vpop.f32.mrf.mxu0
      %v1734 = vadd.f32 0.0, %v1733
      %v1735 = vpop.f32.mrf.mxu0
      %v1736 = vadd.f32 0.0, %v1735
      %1737 = vmatmul.bf16.gmra.mxu0 %v1282
      %v1738 = vpop.f32.mrf.mxu0
      %v1739 = vadd.f32 0.0, %v1738
      %v1740 = vpop.f32.mrf.mxu0
      %v1741 = vadd.f32 0.0, %v1740
      %1742 = vdwg.mxu0
      %1743 = vmatpush.bf16.msra.mxu0 0
      %1744 = vmatpush.bf16.msra.mxu0 0
      %1745 = vmatpush.bf16.msra.mxu0 0
      %1746 = vmatpush.bf16.msra.mxu0 0
      %1747 = vmatpush.bf16.msra.mxu0 0
      %1748 = vmatpush.bf16.msra.mxu0 0
      %1749 = vmatpush.bf16.msra.mxu0 %v1346
      %1750 = vmatpush.bf16.msra.mxu0 %v1219
      %1751 = vmatmul.bf16.gmra.mxu0 %v1279
      %v1752 = vpop.f32.mrf.mxu0
      %v1753 = vadd.f32 0.0, %v1752
      %v1754 = vpop.f32.mrf.mxu0
      %v1755 = vadd.f32 0.0, %v1754
      %1756 = vmatmul.bf16.gmra.mxu0 %v1282
      %v1757 = vpop.f32.mrf.mxu0
      %v1758 = vadd.f32 0.0, %v1757
      %v1759 = vpop.f32.mrf.mxu0
      %v1760 = vadd.f32 0.0, %v1759
      %1761 = vdwg.mxu0
      %1762 = vmatpush.bf16.msra.mxu0 0
      %1763 = vmatpush.bf16.msra.mxu0 0
      %1764 = vmatpush.bf16.msra.mxu0 0
      %1765 = vmatpush.bf16.msra.mxu0 0
      %1766 = vmatpush.bf16.msra.mxu0 0
      %1767 = vmatpush.bf16.msra.mxu0 0
      %1768 = vmatpush.bf16.msra.mxu0 %v1349
      %1769 = vmatpush.bf16.msra.mxu0 %v1220
      %1770 = vmatmul.bf16.gmra.mxu0 %v1279
      %v1771 = vpop.f32.mrf.mxu0
      %v1772 = vadd.f32 0.0, %v1771
      %v1773 = vpop.f32.mrf.mxu0
      %v1774 = vadd.f32 0.0, %v1773
      %1775 = vmatmul.bf16.gmra.mxu0 %v1282
      %v1776 = vpop.f32.mrf.mxu0
      %v1777 = vadd.f32 0.0, %v1776
      %v1778 = vpop.f32.mrf.mxu0
      %v1779 = vadd.f32 0.0, %v1778
      %1780 = vdwg.mxu0
      %1781 = vmatpush.bf16.msra.mxu0 0
      %1782 = vmatpush.bf16.msra.mxu0 0
      %1783 = vmatpush.bf16.msra.mxu0 0
      %1784 = vmatpush.bf16.msra.mxu0 0
      %1785 = vmatpush.bf16.msra.mxu0 0
      %1786 = vmatpush.bf16.msra.mxu0 0
      %1787 = vmatpush.bf16.msra.mxu0 %v1352
      %1788 = vmatpush.bf16.msra.mxu0 %v1221
      %1789 = vmatmul.bf16.gmra.mxu0 %v1279
      %v1790 = vpop.f32.mrf.mxu0
      %v1791 = vadd.f32 0.0, %v1790
      %v1792 = vpop.f32.mrf.mxu0
      %v1793 = vadd.f32 0.0, %v1792
      %1794 = vmatmul.bf16.gmra.mxu0 %v1282
      %v1795 = vpop.f32.mrf.mxu0
      %v1796 = vadd.f32 0.0, %v1795
      %v1797 = vpop.f32.mrf.mxu0
      %v1798 = vadd.f32 0.0, %v1797
      %1799 = vdwg.mxu0
      %1800 = vmatpush.bf16.msra.mxu0 0
      %1801 = vmatpush.bf16.msra.mxu0 0
      %1802 = vmatpush.bf16.msra.mxu0 0
      %1803 = vmatpush.bf16.msra.mxu0 0
      %1804 = vmatpush.bf16.msra.mxu0 0
      %1805 = vmatpush.bf16.msra.mxu0 0
      %1806 = vmatpush.bf16.msra.mxu0 %v1355
      %1807 = vmatpush.bf16.msra.mxu0 %v1222
      %1808 = vmatmul.bf16.gmra.mxu0 %v1279
      %v1809 = vpop.f32.mrf.mxu0
      %v1810 = vadd.f32 0.0, %v1809
      %v1811 = vpop.f32.mrf.mxu0
      %v1812 = vadd.f32 0.0, %v1811
      %1813 = vmatmul.bf16.gmra.mxu0 %v1282
      %v1814 = vpop.f32.mrf.mxu0
      %v1815 = vadd.f32 0.0, %v1814
      %v1816 = vpop.f32.mrf.mxu0
      %v1817 = vadd.f32 0.0, %v1816
      %1818 = vdwg.mxu0
      %1819 = vmatpush.bf16.msra.mxu0 0
      %1820 = vmatpush.bf16.msra.mxu0 0
      %1821 = vmatpush.bf16.msra.mxu0 0
      %1822 = vmatpush.bf16.msra.mxu0 0
      %1823 = vmatpush.bf16.msra.mxu0 0
      %1824 = vmatpush.bf16.msra.mxu0 0
      %1825 = vmatpush.bf16.msra.mxu0 %v1358
      %1826 = vmatpush.bf16.msra.mxu0 %v1223
      %1827 = vmatmul.bf16.gmra.mxu0 %v1279
      %v1828 = vpop.f32.mrf.mxu0
      %v1829 = vadd.f32 0.0, %v1828
      %v1830 = vpop.f32.mrf.mxu0
      %v1831 = vadd.f32 0.0, %v1830
      %1832 = vmatmul.bf16.gmra.mxu0 %v1282
      %v1833 = vpop.f32.mrf.mxu0
      %v1834 = vadd.f32 0.0, %v1833
      %v1835 = vpop.f32.mrf.mxu0
      %v1836 = vadd.f32 0.0, %v1835
      %1837 = vdwg.mxu0
      %1838 = vmatpush.bf16.msra.mxu0 0
      %1839 = vmatpush.bf16.msra.mxu0 0
      %1840 = vmatpush.bf16.msra.mxu0 0
      %1841 = vmatpush.bf16.msra.mxu0 0
      %1842 = vmatpush.bf16.msra.mxu0 0
      %1843 = vmatpush.bf16.msra.mxu0 0
      %1844 = vmatpush.bf16.msra.mxu0 %v1361
      %1845 = vmatpush.bf16.msra.mxu0 %v1224
      %1846 = vmatmul.bf16.gmra.mxu0 %v1279
      %v1847 = vpop.f32.mrf.mxu0
      %v1848 = vadd.f32 0.0, %v1847
      %v1849 = vpop.f32.mrf.mxu0
      %v1850 = vadd.f32 0.0, %v1849
      %1851 = vmatmul.bf16.gmra.mxu0 %v1282
      %v1852 = vpop.f32.mrf.mxu0
      %v1853 = vadd.f32 0.0, %v1852
      %v1854 = vpop.f32.mrf.mxu0
      %v1855 = vadd.f32 0.0, %v1854
      %1856 = vdwg.mxu0
      %v1883 = vunpack.c.l.b16 %v1015
      %v1884 = vunpack.c.h.b16 %v1015
      %v1885 = vunpack.c.l.b16 %v1016
      %v1886 = vunpack.c.h.b16 %v1016
      %v1887 = vunpack.c.l.b16 %v1017
      %v1888 = vunpack.c.h.b16 %v1017
      %v1889 = vunpack.c.l.b16 %v1018
      %v1890 = vunpack.c.h.b16 %v1018
      %v1891 = vunpack.c.l.b16 %v1019
      %v1892 = vunpack.c.h.b16 %v1019
      %v1893 = vunpack.c.l.b16 %v1020
      %v1894 = vunpack.c.h.b16 %v1020
      %v1895 = vunpack.c.l.b16 %v1021
      %v1896 = vunpack.c.h.b16 %v1021
      %v1897 = vunpack.c.l.b16 %v1022
      %v1898 = vunpack.c.h.b16 %v1022
      %v1899 = vunpack.c.l.b16 %v1023
      %v1900 = vunpack.c.h.b16 %v1023
      %v1901 = vunpack.c.l.b16 %v1024
      %v1902 = vunpack.c.h.b16 %v1024
      %v1903 = vunpack.c.l.b16 %v1025
      %v1904 = vunpack.c.h.b16 %v1025
      %v1905 = vunpack.c.l.b16 %v1026
      %v1906 = vunpack.c.h.b16 %v1026
      %v1907 = vunpack.c.l.b16 %v1027
      %v1908 = vunpack.c.h.b16 %v1027
      %v1909 = vunpack.c.l.b16 %v1028
      %v1910 = vunpack.c.h.b16 %v1028
      %v1911 = vunpack.c.l.b16 %v1029
      %v1912 = vunpack.c.h.b16 %v1029
      %v1913 = vunpack.c.l.b16 %v1030
      %v1914 = vunpack.c.h.b16 %v1030
      %v1915 = vunpack.c.l.b16 %v1031
      %v1916 = vunpack.c.h.b16 %v1031
      %v1917 = vunpack.c.l.b16 %v1032
      %v1918 = vunpack.c.h.b16 %v1032
      %v1919 = vunpack.c.l.b16 %v1033
      %v1920 = vunpack.c.h.b16 %v1033
      %v1921 = vunpack.c.l.b16 %v1034
      %v1922 = vunpack.c.h.b16 %v1034
      %v1923 = vunpack.c.l.b16 %v1035
      %v1924 = vunpack.c.h.b16 %v1035
      %v1925 = vunpack.c.l.b16 %v1036
      %v1926 = vunpack.c.h.b16 %v1036
      %v1927 = vunpack.c.l.b16 %v1037
      %v1928 = vunpack.c.h.b16 %v1037
      %v1929 = vunpack.c.l.b16 %v1038
      %v1930 = vunpack.c.h.b16 %v1038
      %v1931 = vunpack.c.l.b16 %v1039
      %v1932 = vunpack.c.h.b16 %v1039
      %v1933 = vunpack.c.l.b16 %v1040
      %v1934 = vunpack.c.h.b16 %v1040
      %v1935 = vpack.c.b16 %v1909, %v1883
      %v1936 = vpack.c.b16 %v1910, %v1884
      %v1937 = vpack.c.b16 %v1911, %v1885
      %v1938 = vpack.c.b16 %v1912, %v1886
      %v1939 = vpack.c.b16 %v1913, %v1887
      %v1940 = vpack.c.b16 %v1914, %v1888
      %v1941 = vpack.c.b16 %v1915, %v1889
      %v1942 = vpack.c.b16 %v1916, %v1890
      %v1943 = vpack.c.b16 %v1917, %v1891
      %v1944 = vpack.c.b16 %v1918, %v1892
      %v1945 = vpack.c.b16 %v1919, %v1893
      %v1946 = vpack.c.b16 %v1920, %v1894
      %v1947 = vpack.c.b16 %v1921, %v1895
      %v1948 = vpack.c.b16 %v1922, %v1896
      %v1949 = vpack.c.b16 %v1923, %v1897
      %v1950 = vpack.c.b16 %v1924, %v1898
      %v1951 = vpack.c.b16 %v1925, %v1899
      %v1952 = vpack.c.b16 %v1926, %v1900
      %v1953 = vpack.c.b16 %v1927, %v1901
      %v1954 = vpack.c.b16 %v1928, %v1902
      %v1955 = vpack.c.b16 %v1929, %v1903
      %v1956 = vpack.c.b16 %v1930, %v1904
      %v1957 = vpack.c.b16 %v1931, %v1905
      %v1958 = vpack.c.b16 %v1932, %v1906
      %v1959 = vpack.c.b16 %v1933, %v1907
      %v1960 = vpack.c.b16 %v1934, %v1908
      %v1988 = vsel %vm615, %v1013, 0
      %v1991 = vsel %vm615, %v1014, 0
      %1993 = vmatpush.bf16.msra.mxu0 0
      %1994 = vmatpush.bf16.msra.mxu0 0
      %1995 = vmatpush.bf16.msra.mxu0 0
      %1996 = vmatpush.bf16.msra.mxu0 0
      %1997 = vmatpush.bf16.msra.mxu0 0
      %1998 = vmatpush.bf16.msra.mxu0 0
      %1999 = vmatpush.bf16.msra.mxu0 0
      %2000 = vmatpush.bf16.msra.mxu0 %v1935
      %2001 = vmatmul.bf16.gmra.mxu0 %v1988
      %v2002 = vpop.f32.mrf.mxu0
      %v2003 = vadd.f32 %v1373, %v2002
      %v2004 = vpop.f32.mrf.mxu0
      %v2005 = vadd.f32 %v1375, %v2004
      %2006 = vmatmul.bf16.gmra.mxu0 %v1991
      %v2007 = vpop.f32.mrf.mxu0
      %v2008 = vadd.f32 %v1378, %v2007
      %v2009 = vpop.f32.mrf.mxu0
      %v2010 = vadd.f32 %v1380, %v2009
      %2011 = vdwg.mxu0
      %2012 = vmatpush.bf16.msra.mxu0 0
      %2013 = vmatpush.bf16.msra.mxu0 0
      %2014 = vmatpush.bf16.msra.mxu0 0
      %2015 = vmatpush.bf16.msra.mxu0 0
      %2016 = vmatpush.bf16.msra.mxu0 0
      %2017 = vmatpush.bf16.msra.mxu0 0
      %2018 = vmatpush.bf16.msra.mxu0 0
      %2019 = vmatpush.bf16.msra.mxu0 %v1936
      %2020 = vmatmul.bf16.gmra.mxu0 %v1988
      %v2021 = vpop.f32.mrf.mxu0
      %v2022 = vadd.f32 %v1392, %v2021
      %v2023 = vpop.f32.mrf.mxu0
      %v2024 = vadd.f32 %v1394, %v2023
      %2025 = vmatmul.bf16.gmra.mxu0 %v1991
      %v2026 = vpop.f32.mrf.mxu0
      %v2027 = vadd.f32 %v1397, %v2026
      %v2028 = vpop.f32.mrf.mxu0
      %v2029 = vadd.f32 %v1399, %v2028
      %2030 = vdwg.mxu0
      %2031 = vmatpush.bf16.msra.mxu0 0
      %2032 = vmatpush.bf16.msra.mxu0 0
      %2033 = vmatpush.bf16.msra.mxu0 0
      %2034 = vmatpush.bf16.msra.mxu0 0
      %2035 = vmatpush.bf16.msra.mxu0 0
      %2036 = vmatpush.bf16.msra.mxu0 0
      %2037 = vmatpush.bf16.msra.mxu0 0
      %2038 = vmatpush.bf16.msra.mxu0 %v1937
      %2039 = vmatmul.bf16.gmra.mxu0 %v1988
      %v2040 = vpop.f32.mrf.mxu0
      %v2041 = vadd.f32 %v1411, %v2040
      %v2042 = vpop.f32.mrf.mxu0
      %v2043 = vadd.f32 %v1413, %v2042
      %2044 = vmatmul.bf16.gmra.mxu0 %v1991
      %v2045 = vpop.f32.mrf.mxu0
      %v2046 = vadd.f32 %v1416, %v2045
      %v2047 = vpop.f32.mrf.mxu0
      %v2048 = vadd.f32 %v1418, %v2047
      %2049 = vdwg.mxu0
      %2050 = vmatpush.bf16.msra.mxu0 0
      %2051 = vmatpush.bf16.msra.mxu0 0
      %2052 = vmatpush.bf16.msra.mxu0 0
      %2053 = vmatpush.bf16.msra.mxu0 0
      %2054 = vmatpush.bf16.msra.mxu0 0
      %2055 = vmatpush.bf16.msra.mxu0 0
      %2056 = vmatpush.bf16.msra.mxu0 0
      %2057 = vmatpush.bf16.msra.mxu0 %v1938
      %2058 = vmatmul.bf16.gmra.mxu0 %v1988
      %v2059 = vpop.f32.mrf.mxu0
      %v2060 = vadd.f32 %v1430, %v2059
      %v2061 = vpop.f32.mrf.mxu0
      %v2062 = vadd.f32 %v1432, %v2061
      %2063 = vmatmul.bf16.gmra.mxu0 %v1991
      %v2064 = vpop.f32.mrf.mxu0
      %v2065 = vadd.f32 %v1435, %v2064
      %v2066 = vpop.f32.mrf.mxu0
      %v2067 = vadd.f32 %v1437, %v2066
      %2068 = vdwg.mxu0
      %2069 = vmatpush.bf16.msra.mxu0 0
      %2070 = vmatpush.bf16.msra.mxu0 0
      %2071 = vmatpush.bf16.msra.mxu0 0
      %2072 = vmatpush.bf16.msra.mxu0 0
      %2073 = vmatpush.bf16.msra.mxu0 0
      %2074 = vmatpush.bf16.msra.mxu0 0
      %2075 = vmatpush.bf16.msra.mxu0 0
      %2076 = vmatpush.bf16.msra.mxu0 %v1939
      %2077 = vmatmul.bf16.gmra.mxu0 %v1988
      %v2078 = vpop.f32.mrf.mxu0
      %v2079 = vadd.f32 %v1449, %v2078
      %v2080 = vpop.f32.mrf.mxu0
      %v2081 = vadd.f32 %v1451, %v2080
      %2082 = vmatmul.bf16.gmra.mxu0 %v1991
      %v2083 = vpop.f32.mrf.mxu0
      %v2084 = vadd.f32 %v1454, %v2083
      %v2085 = vpop.f32.mrf.mxu0
      %v2086 = vadd.f32 %v1456, %v2085
      %2087 = vdwg.mxu0
      %2088 = vmatpush.bf16.msra.mxu0 0
      %2089 = vmatpush.bf16.msra.mxu0 0
      %2090 = vmatpush.bf16.msra.mxu0 0
      %2091 = vmatpush.bf16.msra.mxu0 0
      %2092 = vmatpush.bf16.msra.mxu0 0
      %2093 = vmatpush.bf16.msra.mxu0 0
      %2094 = vmatpush.bf16.msra.mxu0 0
      %2095 = vmatpush.bf16.msra.mxu0 %v1940
      %2096 = vmatmul.bf16.gmra.mxu0 %v1988
      %v2097 = vpop.f32.mrf.mxu0
      %v2098 = vadd.f32 %v1468, %v2097
      %v2099 = vpop.f32.mrf.mxu0
      %v2100 = vadd.f32 %v1470, %v2099
      %2101 = vmatmul.bf16.gmra.mxu0 %v1991
      %v2102 = vpop.f32.mrf.mxu0
      %v2103 = vadd.f32 %v1473, %v2102
      %v2104 = vpop.f32.mrf.mxu0
      %v2105 = vadd.f32 %v1475, %v2104
      %2106 = vdwg.mxu0
      %2107 = vmatpush.bf16.msra.mxu0 0
      %2108 = vmatpush.bf16.msra.mxu0 0
      %2109 = vmatpush.bf16.msra.mxu0 0
      %2110 = vmatpush.bf16.msra.mxu0 0
      %2111 = vmatpush.bf16.msra.mxu0 0
      %2112 = vmatpush.bf16.msra.mxu0 0
      %2113 = vmatpush.bf16.msra.mxu0 0
      %2114 = vmatpush.bf16.msra.mxu0 %v1941
      %2115 = vmatmul.bf16.gmra.mxu0 %v1988
      %v2116 = vpop.f32.mrf.mxu0
      %v2117 = vadd.f32 %v1487, %v2116
      %v2118 = vpop.f32.mrf.mxu0
      %v2119 = vadd.f32 %v1489, %v2118
      %2120 = vmatmul.bf16.gmra.mxu0 %v1991
      %v2121 = vpop.f32.mrf.mxu0
      %v2122 = vadd.f32 %v1492, %v2121
      %v2123 = vpop.f32.mrf.mxu0
      %v2124 = vadd.f32 %v1494, %v2123
      %2125 = vdwg.mxu0
      %2126 = vmatpush.bf16.msra.mxu0 0
      %2127 = vmatpush.bf16.msra.mxu0 0
      %2128 = vmatpush.bf16.msra.mxu0 0
      %2129 = vmatpush.bf16.msra.mxu0 0
      %2130 = vmatpush.bf16.msra.mxu0 0
      %2131 = vmatpush.bf16.msra.mxu0 0
      %2132 = vmatpush.bf16.msra.mxu0 0
      %2133 = vmatpush.bf16.msra.mxu0 %v1942
      %2134 = vmatmul.bf16.gmra.mxu0 %v1988
      %v2135 = vpop.f32.mrf.mxu0
      %v2136 = vadd.f32 %v1506, %v2135
      %v2137 = vpop.f32.mrf.mxu0
      %v2138 = vadd.f32 %v1508, %v2137
      %2139 = vmatmul.bf16.gmra.mxu0 %v1991
      %v2140 = vpop.f32.mrf.mxu0
      %v2141 = vadd.f32 %v1511, %v2140
      %v2142 = vpop.f32.mrf.mxu0
      %v2143 = vadd.f32 %v1513, %v2142
      %2144 = vdwg.mxu0
      %2145 = vmatpush.bf16.msra.mxu0 0
      %2146 = vmatpush.bf16.msra.mxu0 0
      %2147 = vmatpush.bf16.msra.mxu0 0
      %2148 = vmatpush.bf16.msra.mxu0 0
      %2149 = vmatpush.bf16.msra.mxu0 0
      %2150 = vmatpush.bf16.msra.mxu0 0
      %2151 = vmatpush.bf16.msra.mxu0 0
      %2152 = vmatpush.bf16.msra.mxu0 %v1943
      %2153 = vmatmul.bf16.gmra.mxu0 %v1988
      %v2154 = vpop.f32.mrf.mxu0
      %v2155 = vadd.f32 %v1525, %v2154
      %v2156 = vpop.f32.mrf.mxu0
      %v2157 = vadd.f32 %v1527, %v2156
      %2158 = vmatmul.bf16.gmra.mxu0 %v1991
      %v2159 = vpop.f32.mrf.mxu0
      %v2160 = vadd.f32 %v1530, %v2159
      %v2161 = vpop.f32.mrf.mxu0
      %v2162 = vadd.f32 %v1532, %v2161
      %2163 = vdwg.mxu0
      %2164 = vmatpush.bf16.msra.mxu0 0
      %2165 = vmatpush.bf16.msra.mxu0 0
      %2166 = vmatpush.bf16.msra.mxu0 0
      %2167 = vmatpush.bf16.msra.mxu0 0
      %2168 = vmatpush.bf16.msra.mxu0 0
      %2169 = vmatpush.bf16.msra.mxu0 0
      %2170 = vmatpush.bf16.msra.mxu0 0
      %2171 = vmatpush.bf16.msra.mxu0 %v1944
      %2172 = vmatmul.bf16.gmra.mxu0 %v1988
      %v2173 = vpop.f32.mrf.mxu0
      %v2174 = vadd.f32 %v1544, %v2173
      %v2175 = vpop.f32.mrf.mxu0
      %v2176 = vadd.f32 %v1546, %v2175
      %2177 = vmatmul.bf16.gmra.mxu0 %v1991
      %v2178 = vpop.f32.mrf.mxu0
      %v2179 = vadd.f32 %v1549, %v2178
      %v2180 = vpop.f32.mrf.mxu0
      %v2181 = vadd.f32 %v1551, %v2180
      %2182 = vdwg.mxu0
      %2183 = vmatpush.bf16.msra.mxu0 0
      %2184 = vmatpush.bf16.msra.mxu0 0
      %2185 = vmatpush.bf16.msra.mxu0 0
      %2186 = vmatpush.bf16.msra.mxu0 0
      %2187 = vmatpush.bf16.msra.mxu0 0
      %2188 = vmatpush.bf16.msra.mxu0 0
      %2189 = vmatpush.bf16.msra.mxu0 0
      %2190 = vmatpush.bf16.msra.mxu0 %v1945
      %2191 = vmatmul.bf16.gmra.mxu0 %v1988
      %v2192 = vpop.f32.mrf.mxu0
      %v2193 = vadd.f32 %v1563, %v2192
      %v2194 = vpop.f32.mrf.mxu0
      %v2195 = vadd.f32 %v1565, %v2194
      %2196 = vmatmul.bf16.gmra.mxu0 %v1991
      %v2197 = vpop.f32.mrf.mxu0
      %v2198 = vadd.f32 %v1568, %v2197
      %v2199 = vpop.f32.mrf.mxu0
      %v2200 = vadd.f32 %v1570, %v2199
      %2201 = vdwg.mxu0
      %2202 = vmatpush.bf16.msra.mxu0 0
      %2203 = vmatpush.bf16.msra.mxu0 0
      %2204 = vmatpush.bf16.msra.mxu0 0
      %2205 = vmatpush.bf16.msra.mxu0 0
      %2206 = vmatpush.bf16.msra.mxu0 0
      %2207 = vmatpush.bf16.msra.mxu0 0
      %2208 = vmatpush.bf16.msra.mxu0 0
      %2209 = vmatpush.bf16.msra.mxu0 %v1946
      %2210 = vmatmul.bf16.gmra.mxu0 %v1988
      %v2211 = vpop.f32.mrf.mxu0
      %v2212 = vadd.f32 %v1582, %v2211
      %v2213 = vpop.f32.mrf.mxu0
      %v2214 = vadd.f32 %v1584, %v2213
      %2215 = vmatmul.bf16.gmra.mxu0 %v1991
      %v2216 = vpop.f32.mrf.mxu0
      %v2217 = vadd.f32 %v1587, %v2216
      %v2218 = vpop.f32.mrf.mxu0
      %v2219 = vadd.f32 %v1589, %v2218
      %2220 = vdwg.mxu0
      %2221 = vmatpush.bf16.msra.mxu0 0
      %2222 = vmatpush.bf16.msra.mxu0 0
      %2223 = vmatpush.bf16.msra.mxu0 0
      %2224 = vmatpush.bf16.msra.mxu0 0
      %2225 = vmatpush.bf16.msra.mxu0 0
      %2226 = vmatpush.bf16.msra.mxu0 0
      %2227 = vmatpush.bf16.msra.mxu0 0
      %2228 = vmatpush.bf16.msra.mxu0 %v1947
      %2229 = vmatmul.bf16.gmra.mxu0 %v1988
      %v2230 = vpop.f32.mrf.mxu0
      %v2231 = vadd.f32 %v1601, %v2230
      %v2232 = vpop.f32.mrf.mxu0
      %v2233 = vadd.f32 %v1603, %v2232
      %2234 = vmatmul.bf16.gmra.mxu0 %v1991
      %v2235 = vpop.f32.mrf.mxu0
      %v2236 = vadd.f32 %v1606, %v2235
      %v2237 = vpop.f32.mrf.mxu0
      %v2238 = vadd.f32 %v1608, %v2237
      %2239 = vdwg.mxu0
      %2240 = vmatpush.bf16.msra.mxu0 0
      %2241 = vmatpush.bf16.msra.mxu0 0
      %2242 = vmatpush.bf16.msra.mxu0 0
      %2243 = vmatpush.bf16.msra.mxu0 0
      %2244 = vmatpush.bf16.msra.mxu0 0
      %2245 = vmatpush.bf16.msra.mxu0 0
      %2246 = vmatpush.bf16.msra.mxu0 0
      %2247 = vmatpush.bf16.msra.mxu0 %v1948
      %2248 = vmatmul.bf16.gmra.mxu0 %v1988
      %v2249 = vpop.f32.mrf.mxu0
      %v2250 = vadd.f32 %v1620, %v2249
      %v2251 = vpop.f32.mrf.mxu0
      %v2252 = vadd.f32 %v1622, %v2251
      %2253 = vmatmul.bf16.gmra.mxu0 %v1991
      %v2254 = vpop.f32.mrf.mxu0
      %v2255 = vadd.f32 %v1625, %v2254
      %v2256 = vpop.f32.mrf.mxu0
      %v2257 = vadd.f32 %v1627, %v2256
      %2258 = vdwg.mxu0
      %2259 = vmatpush.bf16.msra.mxu0 0
      %2260 = vmatpush.bf16.msra.mxu0 0
      %2261 = vmatpush.bf16.msra.mxu0 0
      %2262 = vmatpush.bf16.msra.mxu0 0
      %2263 = vmatpush.bf16.msra.mxu0 0
      %2264 = vmatpush.bf16.msra.mxu0 0
      %2265 = vmatpush.bf16.msra.mxu0 0
      %2266 = vmatpush.bf16.msra.mxu0 %v1949
      %2267 = vmatmul.bf16.gmra.mxu0 %v1988
      %v2268 = vpop.f32.mrf.mxu0
      %v2269 = vadd.f32 %v1639, %v2268
      %v2270 = vpop.f32.mrf.mxu0
      %v2271 = vadd.f32 %v1641, %v2270
      %2272 = vmatmul.bf16.gmra.mxu0 %v1991
      %v2273 = vpop.f32.mrf.mxu0
      %v2274 = vadd.f32 %v1644, %v2273
      %v2275 = vpop.f32.mrf.mxu0
      %v2276 = vadd.f32 %v1646, %v2275
      %2277 = vdwg.mxu0
      %2278 = vmatpush.bf16.msra.mxu0 0
      %2279 = vmatpush.bf16.msra.mxu0 0
      %2280 = vmatpush.bf16.msra.mxu0 0
      %2281 = vmatpush.bf16.msra.mxu0 0
      %2282 = vmatpush.bf16.msra.mxu0 0
      %2283 = vmatpush.bf16.msra.mxu0 0
      %2284 = vmatpush.bf16.msra.mxu0 0
      %2285 = vmatpush.bf16.msra.mxu0 %v1950
      %2286 = vmatmul.bf16.gmra.mxu0 %v1988
      %v2287 = vpop.f32.mrf.mxu0
      %v2288 = vadd.f32 %v1658, %v2287
      %v2289 = vpop.f32.mrf.mxu0
      %v2290 = vadd.f32 %v1660, %v2289
      %2291 = vmatmul.bf16.gmra.mxu0 %v1991
      %v2292 = vpop.f32.mrf.mxu0
      %v2293 = vadd.f32 %v1663, %v2292
      %v2294 = vpop.f32.mrf.mxu0
      %v2295 = vadd.f32 %v1665, %v2294
      %2296 = vdwg.mxu0
      %2297 = vmatpush.bf16.msra.mxu0 0
      %2298 = vmatpush.bf16.msra.mxu0 0
      %2299 = vmatpush.bf16.msra.mxu0 0
      %2300 = vmatpush.bf16.msra.mxu0 0
      %2301 = vmatpush.bf16.msra.mxu0 0
      %2302 = vmatpush.bf16.msra.mxu0 0
      %2303 = vmatpush.bf16.msra.mxu0 0
      %2304 = vmatpush.bf16.msra.mxu0 %v1951
      %2305 = vmatmul.bf16.gmra.mxu0 %v1988
      %v2306 = vpop.f32.mrf.mxu0
      %v2307 = vadd.f32 %v1677, %v2306
      %v2308 = vpop.f32.mrf.mxu0
      %v2309 = vadd.f32 %v1679, %v2308
      %2310 = vmatmul.bf16.gmra.mxu0 %v1991
      %v2311 = vpop.f32.mrf.mxu0
      %v2312 = vadd.f32 %v1682, %v2311
      %v2313 = vpop.f32.mrf.mxu0
      %v2314 = vadd.f32 %v1684, %v2313
      %2315 = vdwg.mxu0
      %2316 = vmatpush.bf16.msra.mxu0 0
      %2317 = vmatpush.bf16.msra.mxu0 0
      %2318 = vmatpush.bf16.msra.mxu0 0
      %2319 = vmatpush.bf16.msra.mxu0 0
      %2320 = vmatpush.bf16.msra.mxu0 0
      %2321 = vmatpush.bf16.msra.mxu0 0
      %2322 = vmatpush.bf16.msra.mxu0 0
      %2323 = vmatpush.bf16.msra.mxu0 %v1952
      %2324 = vmatmul.bf16.gmra.mxu0 %v1988
      %v2325 = vpop.f32.mrf.mxu0
      %v2326 = vadd.f32 %v1696, %v2325
      %v2327 = vpop.f32.mrf.mxu0
      %v2328 = vadd.f32 %v1698, %v2327
      %2329 = vmatmul.bf16.gmra.mxu0 %v1991
      %v2330 = vpop.f32.mrf.mxu0
      %v2331 = vadd.f32 %v1701, %v2330
      %v2332 = vpop.f32.mrf.mxu0
      %v2333 = vadd.f32 %v1703, %v2332
      %2334 = vdwg.mxu0
      %2335 = vmatpush.bf16.msra.mxu0 0
      %2336 = vmatpush.bf16.msra.mxu0 0
      %2337 = vmatpush.bf16.msra.mxu0 0
      %2338 = vmatpush.bf16.msra.mxu0 0
      %2339 = vmatpush.bf16.msra.mxu0 0
      %2340 = vmatpush.bf16.msra.mxu0 0
      %2341 = vmatpush.bf16.msra.mxu0 0
      %2342 = vmatpush.bf16.msra.mxu0 %v1953
      %2343 = vmatmul.bf16.gmra.mxu0 %v1988
      %v2344 = vpop.f32.mrf.mxu0
      %v2345 = vadd.f32 %v1715, %v2344
      %v2346 = vpop.f32.mrf.mxu0
      %v2347 = vadd.f32 %v1717, %v2346
      %2348 = vmatmul.bf16.gmra.mxu0 %v1991
      %v2349 = vpop.f32.mrf.mxu0
      %v2350 = vadd.f32 %v1720, %v2349
      %v2351 = vpop.f32.mrf.mxu0
      %v2352 = vadd.f32 %v1722, %v2351
      %2353 = vdwg.mxu0
      %2354 = vmatpush.bf16.msra.mxu0 0
      %2355 = vmatpush.bf16.msra.mxu0 0
      %2356 = vmatpush.bf16.msra.mxu0 0
      %2357 = vmatpush.bf16.msra.mxu0 0
      %2358 = vmatpush.bf16.msra.mxu0 0
      %2359 = vmatpush.bf16.msra.mxu0 0
      %2360 = vmatpush.bf16.msra.mxu0 0
      %2361 = vmatpush.bf16.msra.mxu0 %v1954
      %2362 = vmatmul.bf16.gmra.mxu0 %v1988
      %v2363 = vpop.f32.mrf.mxu0
      %v2364 = vadd.f32 %v1734, %v2363
      %v2365 = vpop.f32.mrf.mxu0
      %v2366 = vadd.f32 %v1736, %v2365
      %2367 = vmatmul.bf16.gmra.mxu0 %v1991
      %v2368 = vpop.f32.mrf.mxu0
      %v2369 = vadd.f32 %v1739, %v2368
      %v2370 = vpop.f32.mrf.mxu0
      %v2371 = vadd.f32 %v1741, %v2370
      %2372 = vdwg.mxu0
      %2373 = vmatpush.bf16.msra.mxu0 0
      %2374 = vmatpush.bf16.msra.mxu0 0
      %2375 = vmatpush.bf16.msra.mxu0 0
      %2376 = vmatpush.bf16.msra.mxu0 0
      %2377 = vmatpush.bf16.msra.mxu0 0
      %2378 = vmatpush.bf16.msra.mxu0 0
      %2379 = vmatpush.bf16.msra.mxu0 0
      %2380 = vmatpush.bf16.msra.mxu0 %v1955
      %2381 = vmatmul.bf16.gmra.mxu0 %v1988
      %v2382 = vpop.f32.mrf.mxu0
      %v2383 = vadd.f32 %v1753, %v2382
      %v2384 = vpop.f32.mrf.mxu0
      %v2385 = vadd.f32 %v1755, %v2384
      %2386 = vmatmul.bf16.gmra.mxu0 %v1991
      %v2387 = vpop.f32.mrf.mxu0
      %v2388 = vadd.f32 %v1758, %v2387
      %v2389 = vpop.f32.mrf.mxu0
      %v2390 = vadd.f32 %v1760, %v2389
      %2391 = vdwg.mxu0
      %2392 = vmatpush.bf16.msra.mxu0 0
      %2393 = vmatpush.bf16.msra.mxu0 0
      %2394 = vmatpush.bf16.msra.mxu0 0
      %2395 = vmatpush.bf16.msra.mxu0 0
      %2396 = vmatpush.bf16.msra.mxu0 0
      %2397 = vmatpush.bf16.msra.mxu0 0
      %2398 = vmatpush.bf16.msra.mxu0 0
      %2399 = vmatpush.bf16.msra.mxu0 %v1956
      %2400 = vmatmul.bf16.gmra.mxu0 %v1988
      %v2401 = vpop.f32.mrf.mxu0
      %v2402 = vadd.f32 %v1772, %v2401
      %v2403 = vpop.f32.mrf.mxu0
      %v2404 = vadd.f32 %v1774, %v2403
      %2405 = vmatmul.bf16.gmra.mxu0 %v1991
      %v2406 = vpop.f32.mrf.mxu0
      %v2407 = vadd.f32 %v1777, %v2406
      %v2408 = vpop.f32.mrf.mxu0
      %v2409 = vadd.f32 %v1779, %v2408
      %2410 = vdwg.mxu0
      %2411 = vmatpush.bf16.msra.mxu0 0
      %2412 = vmatpush.bf16.msra.mxu0 0
      %2413 = vmatpush.bf16.msra.mxu0 0
      %2414 = vmatpush.bf16.msra.mxu0 0
      %2415 = vmatpush.bf16.msra.mxu0 0
      %2416 = vmatpush.bf16.msra.mxu0 0
      %2417 = vmatpush.bf16.msra.mxu0 0
      %2418 = vmatpush.bf16.msra.mxu0 %v1957
      %2419 = vmatmul.bf16.gmra.mxu0 %v1988
      %v2420 = vpop.f32.mrf.mxu0
      %v2421 = vadd.f32 %v1791, %v2420
      %v2422 = vpop.f32.mrf.mxu0
      %v2423 = vadd.f32 %v1793, %v2422
      %2424 = vmatmul.bf16.gmra.mxu0 %v1991
      %v2425 = vpop.f32.mrf.mxu0
      %v2426 = vadd.f32 %v1796, %v2425
      %v2427 = vpop.f32.mrf.mxu0
      %v2428 = vadd.f32 %v1798, %v2427
      %2429 = vdwg.mxu0
      %2430 = vmatpush.bf16.msra.mxu0 0
      %2431 = vmatpush.bf16.msra.mxu0 0
      %2432 = vmatpush.bf16.msra.mxu0 0
      %2433 = vmatpush.bf16.msra.mxu0 0
      %2434 = vmatpush.bf16.msra.mxu0 0
      %2435 = vmatpush.bf16.msra.mxu0 0
      %2436 = vmatpush.bf16.msra.mxu0 0
      %2437 = vmatpush.bf16.msra.mxu0 %v1958
      %2438 = vmatmul.bf16.gmra.mxu0 %v1988
      %v2439 = vpop.f32.mrf.mxu0
      %v2440 = vadd.f32 %v1810, %v2439
      %v2441 = vpop.f32.mrf.mxu0
      %v2442 = vadd.f32 %v1812, %v2441
      %2443 = vmatmul.bf16.gmra.mxu0 %v1991
      %v2444 = vpop.f32.mrf.mxu0
      %v2445 = vadd.f32 %v1815, %v2444
      %v2446 = vpop.f32.mrf.mxu0
      %v2447 = vadd.f32 %v1817, %v2446
      %2448 = vdwg.mxu0
      %2449 = vmatpush.bf16.msra.mxu0 0
      %2450 = vmatpush.bf16.msra.mxu0 0
      %2451 = vmatpush.bf16.msra.mxu0 0
      %2452 = vmatpush.bf16.msra.mxu0 0
      %2453 = vmatpush.bf16.msra.mxu0 0
      %2454 = vmatpush.bf16.msra.mxu0 0
      %2455 = vmatpush.bf16.msra.mxu0 0
      %2456 = vmatpush.bf16.msra.mxu0 %v1959
      %2457 = vmatmul.bf16.gmra.mxu0 %v1988
      %v2458 = vpop.f32.mrf.mxu0
      %v2459 = vadd.f32 %v1829, %v2458
      %v2460 = vpop.f32.mrf.mxu0
      %v2461 = vadd.f32 %v1831, %v2460
      %2462 = vmatmul.bf16.gmra.mxu0 %v1991
      %v2463 = vpop.f32.mrf.mxu0
      %v2464 = vadd.f32 %v1834, %v2463
      %v2465 = vpop.f32.mrf.mxu0
      %v2466 = vadd.f32 %v1836, %v2465
      %2467 = vdwg.mxu0
      %2468 = vmatpush.bf16.msra.mxu0 0
      %2469 = vmatpush.bf16.msra.mxu0 0
      %2470 = vmatpush.bf16.msra.mxu0 0
      %2471 = vmatpush.bf16.msra.mxu0 0
      %2472 = vmatpush.bf16.msra.mxu0 0
      %2473 = vmatpush.bf16.msra.mxu0 0
      %2474 = vmatpush.bf16.msra.mxu0 0
      %2475 = vmatpush.bf16.msra.mxu0 %v1960
      %2476 = vmatmul.bf16.gmra.mxu0 %v1988
      %v2477 = vpop.f32.mrf.mxu0
      %v2478 = vadd.f32 %v1848, %v2477
      %v2479 = vpop.f32.mrf.mxu0
      %v2480 = vadd.f32 %v1850, %v2479
      %2481 = vmatmul.bf16.gmra.mxu0 %v1991
      %v2482 = vpop.f32.mrf.mxu0
      %v2483 = vadd.f32 %v1853, %v2482
      %v2484 = vpop.f32.mrf.mxu0
      %v2485 = vadd.f32 %v1855, %v2484
      %2486 = vdwg.mxu0
      %v2487 = vmul.f32 %v2003, %v2250
      %v2488 = vmul.f32 %v2022, %v2269
      %v2489 = vmul.f32 %v2041, %v2288
      %v2490 = vmul.f32 %v2060, %v2307
      %v2491 = vmul.f32 %v2079, %v2326
      %v2492 = vmul.f32 %v2098, %v2345
      %v2493 = vmul.f32 %v2117, %v2364
      %v2494 = vmul.f32 %v2136, %v2383
      %v2495 = vmul.f32 %v2155, %v2402
      %v2496 = vmul.f32 %v2174, %v2421
      %v2497 = vmul.f32 %v2193, %v2440
      %v2498 = vmul.f32 %v2212, %v2459
      %v2499 = vmul.f32 %v2231, %v2478
      %v2500 = vmul.f32 %v2005, %v2252
      %v2501 = vmul.f32 %v2024, %v2271
      %v2502 = vmul.f32 %v2043, %v2290
      %v2503 = vmul.f32 %v2062, %v2309
      %v2504 = vmul.f32 %v2081, %v2328
      %v2505 = vmul.f32 %v2100, %v2347
      %v2506 = vmul.f32 %v2119, %v2366
      %v2507 = vmul.f32 %v2138, %v2385
      %v2508 = vmul.f32 %v2157, %v2404
      %v2509 = vmul.f32 %v2176, %v2423
      %v2510 = vmul.f32 %v2195, %v2442
      %v2511 = vmul.f32 %v2214, %v2461
      %v2512 = vmul.f32 %v2233, %v2480
      %v2513 = vmul.f32 %v2008, %v2255
      %v2514 = vmul.f32 %v2027, %v2274
      %v2515 = vmul.f32 %v2046, %v2293
      %v2516 = vmul.f32 %v2065, %v2312
      %v2517 = vmul.f32 %v2084, %v2331
      %v2518 = vmul.f32 %v2103, %v2350
      %v2519 = vmul.f32 %v2122, %v2369
      %v2520 = vmul.f32 %v2141, %v2388
      %v2521 = vmul.f32 %v2160, %v2407
      %v2522 = vmul.f32 %v2179, %v2426
      %v2523 = vmul.f32 %v2198, %v2445
      %v2524 = vmul.f32 %v2217, %v2464
      %v2525 = vmul.f32 %v2236, %v2483
      %v2526 = vmul.f32 %v2010, %v2257
      %v2527 = vmul.f32 %v2029, %v2276
      %v2528 = vmul.f32 %v2048, %v2295
      %v2529 = vmul.f32 %v2067, %v2314
      %v2530 = vmul.f32 %v2086, %v2333
      %v2531 = vmul.f32 %v2105, %v2352
      %v2532 = vmul.f32 %v2124, %v2371
      %v2533 = vmul.f32 %v2143, %v2390
      %v2534 = vmul.f32 %v2162, %v2409
      %v2535 = vmul.f32 %v2181, %v2428
      %v2536 = vmul.f32 %v2200, %v2447
      %v2537 = vmul.f32 %v2219, %v2466
      %v2538 = vmul.f32 %v2238, %v2485
      %v2539 = vpack.c.bf16 %v2500, %v2487
      %v2540 = vpack.c.bf16 %v2501, %v2488
      %v2541 = vpack.c.bf16 %v2502, %v2489
      %v2542 = vpack.c.bf16 %v2503, %v2490
      %v2543 = vpack.c.bf16 %v2504, %v2491
      %v2544 = vpack.c.bf16 %v2505, %v2492
      %v2545 = vpack.c.bf16 %v2506, %v2493
      %v2546 = vpack.c.bf16 %v2507, %v2494
      %v2547 = vpack.c.bf16 %v2508, %v2495
      %v2548 = vpack.c.bf16 %v2509, %v2496
      %v2549 = vpack.c.bf16 %v2510, %v2497
      %v2550 = vpack.c.bf16 %v2511, %v2498
      %v2551 = vpack.c.bf16 %v2512, %v2499
      %v2552 = vpack.c.bf16 %v2526, %v2513
      %v2553 = vpack.c.bf16 %v2527, %v2514
      %v2554 = vpack.c.bf16 %v2528, %v2515
      %v2555 = vpack.c.bf16 %v2529, %v2516
      %v2556 = vpack.c.bf16 %v2530, %v2517
      %v2557 = vpack.c.bf16 %v2531, %v2518
      %v2558 = vpack.c.bf16 %v2532, %v2519
      %v2559 = vpack.c.bf16 %v2533, %v2520
      %v2560 = vpack.c.bf16 %v2534, %v2521
      %v2561 = vpack.c.bf16 %v2535, %v2522
      %v2562 = vpack.c.bf16 %v2536, %v2523
      %v2563 = vpack.c.bf16 %v2537, %v2524
      %v2564 = vpack.c.bf16 %v2538, %v2525
      %v2565 = vld [vmem:[%s11] sm:$0xf]
      %v2566 = vld [vmem:[%s11 + $0x4] sm:$0xf]
      %v2567 = vld [vmem:[%s11 + $0x8] sm:$0xf]
      %v2568 = vld [vmem:[%s11 + $0xc] sm:$0xf]
      %v2569 = vld [vmem:[%s11 + $0x10] sm:$0xf]
      %v2570 = vld [vmem:[%s11 + $0x14] sm:$0xf]
      %v2571 = vld [vmem:[%s11 + $0x18] sm:$0xf]
      %v2572 = vld [vmem:[%s11 + $0x1c] sm:$0xf]
      %v2573 = vld [vmem:[%s11 + $0x20] sm:$0xf]
      %v2574 = vld [vmem:[%s11 + $0x24] sm:$0xf]
      %v2575 = vld [vmem:[%s11 + $0x28] sm:$0xf]
      %v2576 = vld [vmem:[%s11 + $0x2c] sm:$0xf]
      %v2577 = vld [vmem:[%s11 + $0x30] sm:$0xf]
      %v2578 = vld [vmem:[%s11 + $0x34] sm:$0xf]
      %v2579 = vld [vmem:[%s11 + $0x38] sm:$0xf]
      %v2580 = vld [vmem:[%s11 + $0x3c] sm:$0xf]
      %v2581 = vld [vmem:[%s11 + $0x40] sm:$0xf]
      %v2582 = vld [vmem:[%s11 + $0x44] sm:$0xf]
      %v2583 = vld [vmem:[%s11 + $0x48] sm:$0xf]
      %v2584 = vld [vmem:[%s11 + $0x4c] sm:$0xf]
      %v2585 = vld [vmem:[%s11 + $0x50] sm:$0xf]
      %v2586 = vld [vmem:[%s11 + $0x54] sm:$0xf]
      %v2587 = vld [vmem:[%s11 + $0x58] sm:$0xf]
      %v2588 = vld [vmem:[%s11 + $0x5c] sm:$0xf]
      %v2589 = vld [vmem:[%s11 + $0x60] sm:$0xf]
      %v2590 = vld [vmem:[%s11 + $0x64] sm:$0xf]
      %v2591 = vld [vmem:[%s11 + $0x68] sm:$0xf]
      %v2592 = vld [vmem:[%s11 + $0x6c] sm:$0xf]
      %v2593 = vld [vmem:[%s11 + $0x70] sm:$0xf]
      %v2594 = vld [vmem:[%s11 + $0x74] sm:$0xf]
      %v2595 = vld [vmem:[%s11 + $0x78] sm:$0xf]
      %v2596 = vld [vmem:[%s11 + $0x7c] sm:$0xf]
      %v2597 = vld [vmem:[%s11 + $0x80] sm:$0xf]
      %v2598 = vld [vmem:[%s11 + $0x84] sm:$0xf]
      %v2599 = vld [vmem:[%s11 + $0x88] sm:$0xf]
      %v2600 = vld [vmem:[%s11 + $0x8c] sm:$0xf]
      %v2601 = vld [vmem:[%s11 + $0x90] sm:$0xf]
      %v2602 = vld [vmem:[%s11 + $0x94] sm:$0xf]
      %v2603 = vld [vmem:[%s11 + $0x98] sm:$0xf]
      %v2604 = vld [vmem:[%s11 + $0x9c] sm:$0xf]
      %v2605 = vld [vmem:[%s11 + $0xa0] sm:$0xf]
      %v2606 = vld [vmem:[%s11 + $0xa4] sm:$0xf]
      %v2607 = vld [vmem:[%s11 + $0xa8] sm:$0xf]
      %v2608 = vld [vmem:[%s11 + $0xac] sm:$0xf]
      %v2609 = vld [vmem:[%s11 + $0xb0] sm:$0xf]
      %v2610 = vld [vmem:[%s11 + $0xb4] sm:$0xf]
      %v2611 = vld [vmem:[%s11 + $0xb8] sm:$0xf]
      %v2612 = vld [vmem:[%s11 + $0xbc] sm:$0xf]
      %v2613 = vld [vmem:[%s11 + $0xc0] sm:$0xf]
      %v2614 = vld [vmem:[%s11 + $0xc4] sm:$0xf]
      %v2615 = vld [vmem:[%s11 + $0xc8] sm:$0xf]
      %v2616 = vld [vmem:[%s11 + $0xcc] sm:$0xf]
      %v2617 = vld [vmem:[%s11 + $0xd0] sm:$0xf]
      %v2618 = vld [vmem:[%s11 + $0xd4] sm:$0xf]
      %v2619 = vld [vmem:[%s11 + $0xd8] sm:$0xf]
      %v2620 = vld [vmem:[%s11 + $0xdc] sm:$0xf]
      %v2621 = vld [vmem:[%s11 + $0xe0] sm:$0xf]
      %v2622 = vld [vmem:[%s11 + $0xe4] sm:$0xf]
      %v2623 = vld [vmem:[%s11 + $0xe8] sm:$0xf]
      %v2624 = vld [vmem:[%s11 + $0xec] sm:$0xf]
      %v2625 = vld [vmem:[%s11 + $0xf0] sm:$0xf]
      %v2626 = vld [vmem:[%s11 + $0xf4] sm:$0xf]
      %v2627 = vld [vmem:[%s11 + $0xf8] sm:$0xf]
      %v2628 = vld [vmem:[%s11 + $0xfc] sm:$0xf]
      %v2629 = vld [vmem:[%s11 + $0x100] sm:$0xf]
      %v2630 = vld [vmem:[%s11 + $0x104] sm:$0xf]
      %v2631 = vld [vmem:[%s11 + $0x108] sm:$0xf]
      %v2632 = vld [vmem:[%s11 + $0x10c] sm:$0xf]
      %v2633 = vld [vmem:[%s11 + $0x110] sm:$0xf]
      %v2634 = vld [vmem:[%s11 + $0x114] sm:$0xf]
      %v2635 = vld [vmem:[%s11 + $0x118] sm:$0xf]
      %v2636 = vld [vmem:[%s11 + $0x11c] sm:$0xf]
      %v2637 = vld [vmem:[%s11 + $0x120] sm:$0xf]
      %v2638 = vld [vmem:[%s11 + $0x124] sm:$0xf]
      %v2639 = vld [vmem:[%s11 + $0x128] sm:$0xf]
      %v2640 = vld [vmem:[%s11 + $0x12c] sm:$0xf]
      %v2641 = vld [vmem:[%s11 + $0x130] sm:$0xf]
      %v2642 = vld [vmem:[%s11 + $0x134] sm:$0xf]
      %v2643 = vld [vmem:[%s11 + $0x138] sm:$0xf]
      %v2644 = vld [vmem:[%s11 + $0x13c] sm:$0xf]
      %v2645 = vld [vmem:[%s11 + $0x140] sm:$0xf]
      %v2646 = vld [vmem:[%s11 + $0x144] sm:$0xf]
      %v2647 = vld [vmem:[%s11 + $0x148] sm:$0xf]
      %v2648 = vld [vmem:[%s11 + $0x14c] sm:$0xf]
      %v2649 = vld [vmem:[%s11 + $0x150] sm:$0xf]
      %v2650 = vld [vmem:[%s11 + $0x154] sm:$0xf]
      %v2651 = vld [vmem:[%s11 + $0x158] sm:$0xf]
      %v2652 = vld [vmem:[%s11 + $0x15c] sm:$0xf]
      %v2653 = vld [vmem:[%s11 + $0x160] sm:$0xf]
      %v2654 = vld [vmem:[%s11 + $0x164] sm:$0xf]
      %v2655 = vld [vmem:[%s11 + $0x168] sm:$0xf]
      %v2656 = vld [vmem:[%s11 + $0x16c] sm:$0xf]
      %v2657 = vld [vmem:[%s11 + $0x170] sm:$0xf]
      %v2658 = vld [vmem:[%s11 + $0x174] sm:$0xf]
      %v2659 = vld [vmem:[%s11 + $0x178] sm:$0xf]
      %v2660 = vld [vmem:[%s11 + $0x17c] sm:$0xf]
      %v2661 = vld [vmem:[%s11 + $0x180] sm:$0xf]
      %v2662 = vld [vmem:[%s11 + $0x184] sm:$0xf]
      %v2663 = vld [vmem:[%s11 + $0x188] sm:$0xf]
      %v2664 = vld [vmem:[%s11 + $0x18c] sm:$0xf]
      %v2665 = vld [vmem:[%s11 + $0x190] sm:$0xf]
      %v2666 = vld [vmem:[%s11 + $0x194] sm:$0xf]
      %v2667 = vld [vmem:[%s11 + $0x198] sm:$0xf]
      %v2668 = vld [vmem:[%s11 + $0x19c] sm:$0xf]
      %v2669 = vld [vmem:[%s11 + $0x1a0] sm:$0xf]
      %v2670 = vld [vmem:[%s11 + $0x1a4] sm:$0xf]
      %v2671 = vld [vmem:[%s11 + $0x1a8] sm:$0xf]
      %v2672 = vld [vmem:[%s11 + $0x1ac] sm:$0xf]
      %v2673 = vld [vmem:[%s11 + $0x1b0] sm:$0xf]
      %v2674 = vld [vmem:[%s11 + $0x1b4] sm:$0xf]
      %v2675 = vld [vmem:[%s11 + $0x1b8] sm:$0xf]
      %v2676 = vld [vmem:[%s11 + $0x1bc] sm:$0xf]
      %v2677 = vld [vmem:[%s11 + $0x1c0] sm:$0xf]
      %v2678 = vld [vmem:[%s11 + $0x1c4] sm:$0xf]
      %v2679 = vld [vmem:[%s11 + $0x1c8] sm:$0xf]
      %v2680 = vld [vmem:[%s11 + $0x1cc] sm:$0xf]
      %v2681 = vld [vmem:[%s11 + $0x1d0] sm:$0xf]
      %v2682 = vld [vmem:[%s11 + $0x1d4] sm:$0xf]
      %v2683 = vld [vmem:[%s11 + $0x1d8] sm:$0xf]
      %v2684 = vld [vmem:[%s11 + $0x1dc] sm:$0xf]
      %v2685 = vld [vmem:[%s11 + $0x1e0] sm:$0xf]
      %v2686 = vld [vmem:[%s11 + $0x1e4] sm:$0xf]
      %v2687 = vld [vmem:[%s11 + $0x1e8] sm:$0xf]
      %v2688 = vld [vmem:[%s11 + $0x1ec] sm:$0xf]
      %v2689 = vld [vmem:[%s11 + $0x1f0] sm:$0xf]
      %v2690 = vld [vmem:[%s11 + $0x1f4] sm:$0xf]
      %v2691 = vld [vmem:[%s11 + $0x1f8] sm:$0xf]
      %v2692 = vld [vmem:[%s11 + $0x1fc] sm:$0xf]
      %v2693 = vld [vmem:[%s11 + $0x200] sm:$0xf]
      %v2694 = vld [vmem:[%s11 + $0x204] sm:$0xf]
      %v2695 = vld [vmem:[%s11 + $0x208] sm:$0xf]
      %v2696 = vld [vmem:[%s11 + $0x20c] sm:$0xf]
      %v2697 = vld [vmem:[%s11 + $0x210] sm:$0xf]
      %v2698 = vld [vmem:[%s11 + $0x214] sm:$0xf]
      %v2699 = vld [vmem:[%s11 + $0x218] sm:$0xf]
      %v2700 = vld [vmem:[%s11 + $0x21c] sm:$0xf]
      %v2701 = vld [vmem:[%s11 + $0x220] sm:$0xf]
      %v2702 = vld [vmem:[%s11 + $0x224] sm:$0xf]
      %v2703 = vld [vmem:[%s11 + $0x228] sm:$0xf]
      %v2704 = vld [vmem:[%s11 + $0x22c] sm:$0xf]
      %v2705 = vld [vmem:[%s11 + $0x230] sm:$0xf]
      %v2706 = vld [vmem:[%s11 + $0x234] sm:$0xf]
      %v2707 = vld [vmem:[%s11 + $0x238] sm:$0xf]
      %v2708 = vld [vmem:[%s11 + $0x23c] sm:$0xf]
      %v2709 = vld [vmem:[%s11 + $0x240] sm:$0xf]
      %v2710 = vld [vmem:[%s11 + $0x244] sm:$0xf]
      %v2711 = vld [vmem:[%s11 + $0x248] sm:$0xf]
      %v2712 = vld [vmem:[%s11 + $0x24c] sm:$0xf]
      %v2713 = vld [vmem:[%s11 + $0x250] sm:$0xf]
      %v2714 = vld [vmem:[%s11 + $0x254] sm:$0xf]
      %v2715 = vld [vmem:[%s11 + $0x258] sm:$0xf]
      %v2716 = vld [vmem:[%s11 + $0x25c] sm:$0xf]
      %v2717 = vld [vmem:[%s11 + $0x260] sm:$0xf]
      %v2718 = vld [vmem:[%s11 + $0x264] sm:$0xf]
      %v2719 = vld [vmem:[%s11 + $0x268] sm:$0xf]
      %v2720 = vld [vmem:[%s11 + $0x26c] sm:$0xf]
      %v2721 = vld [vmem:[%s11 + $0x270] sm:$0xf]
      %v2722 = vld [vmem:[%s11 + $0x274] sm:$0xf]
      %v2723 = vld [vmem:[%s11 + $0x278] sm:$0xf]
      %v2724 = vld [vmem:[%s11 + $0x27c] sm:$0xf]
      %v2725 = vld [vmem:[%s11 + $0x280] sm:$0xf]
      %v2726 = vld [vmem:[%s11 + $0x284] sm:$0xf]
      %v2727 = vld [vmem:[%s11 + $0x288] sm:$0xf]
      %v2728 = vld [vmem:[%s11 + $0x28c] sm:$0xf]
      %v2729 = vld [vmem:[%s11 + $0x290] sm:$0xf]
      %v2730 = vld [vmem:[%s11 + $0x294] sm:$0xf]
      %v2731 = vld [vmem:[%s11 + $0x298] sm:$0xf]
      %v2732 = vld [vmem:[%s11 + $0x29c] sm:$0xf]
      %v2733 = vld [vmem:[%s11 + $0x2a0] sm:$0xf]
      %v2734 = vld [vmem:[%s11 + $0x2a4] sm:$0xf]
      %v2735 = vld [vmem:[%s11 + $0x2a8] sm:$0xf]
      %v2736 = vld [vmem:[%s11 + $0x2ac] sm:$0xf]
      %v2737 = vld [vmem:[%s11 + $0x2b0] sm:$0xf]
      %v2738 = vld [vmem:[%s11 + $0x2b4] sm:$0xf]
      %v2739 = vld [vmem:[%s11 + $0x2b8] sm:$0xf]
      %v2740 = vld [vmem:[%s11 + $0x2bc] sm:$0xf]
      %v2741 = vld [vmem:[%s11 + $0x2c0] sm:$0xf]
      %v2742 = vld [vmem:[%s11 + $0x2c4] sm:$0xf]
      %v2743 = vld [vmem:[%s11 + $0x2c8] sm:$0xf]
      %v2744 = vld [vmem:[%s11 + $0x2cc] sm:$0xf]
      %v2745 = vld [vmem:[%s11 + $0x2d0] sm:$0xf]
      %v2746 = vld [vmem:[%s11 + $0x2d4] sm:$0xf]
      %v2747 = vld [vmem:[%s11 + $0x2d8] sm:$0xf]
      %v2748 = vld [vmem:[%s11 + $0x2dc] sm:$0xf]
      %v2749 = vld [vmem:[%s11 + $0x2e0] sm:$0xf]
      %v2750 = vld [vmem:[%s11 + $0x2e4] sm:$0xf]
      %v2751 = vld [vmem:[%s11 + $0x2e8] sm:$0xf]
      %v2752 = vld [vmem:[%s11 + $0x2ec] sm:$0xf]
      %v2753 = vld [vmem:[%s11 + $0x2f0] sm:$0xf]
      %v2754 = vld [vmem:[%s11 + $0x2f4] sm:$0xf]
      %v2755 = vld [vmem:[%s11 + $0x2f8] sm:$0xf]
      %v2756 = vld [vmem:[%s11 + $0x2fc] sm:$0xf]
      %v2757 = vld [vmem:[%s11 + $0x300] sm:$0xf]
      %v2758 = vld [vmem:[%s11 + $0x304] sm:$0xf]
      %v2759 = vld [vmem:[%s11 + $0x308] sm:$0xf]
      %v2760 = vld [vmem:[%s11 + $0x30c] sm:$0xf]
      %v2761 = vld [vmem:[%s11 + $0x310] sm:$0xf]
      %v2762 = vld [vmem:[%s11 + $0x314] sm:$0xf]
      %v2763 = vld [vmem:[%s11 + $0x318] sm:$0xf]
      %v2764 = vld [vmem:[%s11 + $0x31c] sm:$0xf]
      %v2765 = vld [vmem:[%s11 + $0x320] sm:$0xf]
      %v2766 = vld [vmem:[%s11 + $0x324] sm:$0xf]
      %v2767 = vld [vmem:[%s11 + $0x328] sm:$0xf]
      %v2768 = vld [vmem:[%s11 + $0x32c] sm:$0xf]
      %v2769 = vld [vmem:[%s11 + $0x330] sm:$0xf]
      %v2770 = vld [vmem:[%s11 + $0x334] sm:$0xf]
      %v2771 = vld [vmem:[%s11 + $0x338] sm:$0xf]
      %v2772 = vld [vmem:[%s11 + $0x33c] sm:$0xf]
      %v2773 = vld [vmem:[%s12] sm:$0xf]
      %v2774 = vld [vmem:[%s12 + $0x4] sm:$0xf]
      %v2777 = vunpack.c.l.b16 %v2773
      %v2778 = vunpack.c.l.b16 %v2774
      %v2779 = vpack.c.b16 %v2778, %v2777
      %2781 = vmatpush.bf16.msra.mxu0 0
      %2782 = vmatpush.bf16.msra.mxu0 0
      %2783 = vmatpush.bf16.msra.mxu0 0
      %2784 = vmatpush.bf16.msra.mxu0 0
      %2785 = vmatpush.bf16.msra.mxu0 0
      %2786 = vmatpush.bf16.msra.mxu0 0
      %2787 = vmatpush.bf16.msra.mxu0 0
      %2788 = vmatpush.bf16.msra.mxu0 %v2779
      %2789 = vmatmul.bf16.gmra.mxu0 %v1988
      %v2790 = vpop.f32.mrf.mxu0
      %v2791 = vadd.f32 0.0, %v2790
      %v2792 = vpop.f32.mrf.mxu0
      %v2793 = vadd.f32 0.0, %v2792
      %2794 = vmatmul.bf16.gmra.mxu0 %v1991
      %v2795 = vpop.f32.mrf.mxu0
      %v2796 = vadd.f32 0.0, %v2795
      %v2797 = vpop.f32.mrf.mxu0
      %v2798 = vadd.f32 0.0, %v2797
      %2799 = vdwg.mxu0
      %v3008 = vunpack.c.l.b16 %v2565
      %v3009 = vunpack.c.l.b16 %v2566
      %v3010 = vunpack.c.l.b16 %v2567
      %v3011 = vunpack.c.l.b16 %v2568
      %v3012 = vunpack.c.l.b16 %v2569
      %v3013 = vunpack.c.l.b16 %v2570
      %v3014 = vunpack.c.l.b16 %v2571
      %v3015 = vunpack.c.l.b16 %v2572
      %v3016 = vunpack.c.l.b16 %v2573
      %v3017 = vunpack.c.l.b16 %v2574
      %v3018 = vunpack.c.l.b16 %v2575
      %v3019 = vunpack.c.l.b16 %v2576
      %v3020 = vunpack.c.l.b16 %v2577
      %v3021 = vunpack.c.l.b16 %v2578
      %v3022 = vunpack.c.l.b16 %v2579
      %v3023 = vunpack.c.l.b16 %v2580
      %v3024 = vunpack.c.l.b16 %v2581
      %v3025 = vunpack.c.l.b16 %v2582
      %v3026 = vunpack.c.l.b16 %v2583
      %v3027 = vunpack.c.l.b16 %v2584
      %v3028 = vunpack.c.l.b16 %v2585
      %v3029 = vunpack.c.l.b16 %v2586
      %v3030 = vunpack.c.l.b16 %v2587
      %v3031 = vunpack.c.l.b16 %v2588
      %v3032 = vunpack.c.l.b16 %v2589
      %v3033 = vunpack.c.l.b16 %v2590
      %v3034 = vunpack.c.l.b16 %v2591
      %v3035 = vunpack.c.l.b16 %v2592
      %v3036 = vunpack.c.l.b16 %v2593
      %v3037 = vunpack.c.l.b16 %v2594
      %v3038 = vunpack.c.l.b16 %v2595
      %v3039 = vunpack.c.l.b16 %v2596
      %v3040 = vunpack.c.l.b16 %v2597
      %v3041 = vunpack.c.l.b16 %v2598
      %v3042 = vunpack.c.l.b16 %v2599
      %v3043 = vunpack.c.l.b16 %v2600
      %v3044 = vunpack.c.l.b16 %v2601
      %v3045 = vunpack.c.l.b16 %v2602
      %v3046 = vunpack.c.l.b16 %v2603
      %v3047 = vunpack.c.l.b16 %v2604
      %v3048 = vunpack.c.l.b16 %v2605
      %v3049 = vunpack.c.l.b16 %v2606
      %v3050 = vunpack.c.l.b16 %v2607
      %v3051 = vunpack.c.l.b16 %v2608
      %v3052 = vunpack.c.l.b16 %v2609
      %v3053 = vunpack.c.l.b16 %v2610
      %v3054 = vunpack.c.l.b16 %v2611
      %v3055 = vunpack.c.l.b16 %v2612
      %v3056 = vunpack.c.l.b16 %v2613
      %v3057 = vunpack.c.l.b16 %v2614
      %v3058 = vunpack.c.l.b16 %v2615
      %v3059 = vunpack.c.l.b16 %v2616
      %v3060 = vunpack.c.l.b16 %v2617
      %v3061 = vunpack.c.l.b16 %v2618
      %v3062 = vunpack.c.l.b16 %v2619
      %v3063 = vunpack.c.l.b16 %v2620
      %v3064 = vunpack.c.l.b16 %v2621
      %v3065 = vunpack.c.l.b16 %v2622
      %v3066 = vunpack.c.l.b16 %v2623
      %v3067 = vunpack.c.l.b16 %v2624
      %v3068 = vunpack.c.l.b16 %v2625
      %v3069 = vunpack.c.l.b16 %v2626
      %v3070 = vunpack.c.l.b16 %v2627
      %v3071 = vunpack.c.l.b16 %v2628
      %v3072 = vunpack.c.l.b16 %v2629
      %v3073 = vunpack.c.l.b16 %v2630
      %v3074 = vunpack.c.l.b16 %v2631
      %v3075 = vunpack.c.l.b16 %v2632
      %v3076 = vunpack.c.l.b16 %v2633
      %v3077 = vunpack.c.l.b16 %v2634
      %v3078 = vunpack.c.l.b16 %v2635
      %v3079 = vunpack.c.l.b16 %v2636
      %v3080 = vunpack.c.l.b16 %v2637
      %v3081 = vunpack.c.l.b16 %v2638
      %v3082 = vunpack.c.l.b16 %v2639
      %v3083 = vunpack.c.l.b16 %v2640
      %v3084 = vunpack.c.l.b16 %v2641
      %v3085 = vunpack.c.l.b16 %v2642
      %v3086 = vunpack.c.l.b16 %v2643
      %v3087 = vunpack.c.l.b16 %v2644
      %v3088 = vunpack.c.l.b16 %v2645
      %v3089 = vunpack.c.l.b16 %v2646
      %v3090 = vunpack.c.l.b16 %v2647
      %v3091 = vunpack.c.l.b16 %v2648
      %v3092 = vunpack.c.l.b16 %v2649
      %v3093 = vunpack.c.l.b16 %v2650
      %v3094 = vunpack.c.l.b16 %v2651
      %v3095 = vunpack.c.l.b16 %v2652
      %v3096 = vunpack.c.l.b16 %v2653
      %v3097 = vunpack.c.l.b16 %v2654
      %v3098 = vunpack.c.l.b16 %v2655
      %v3099 = vunpack.c.l.b16 %v2656
      %v3100 = vunpack.c.l.b16 %v2657
      %v3101 = vunpack.c.l.b16 %v2658
      %v3102 = vunpack.c.l.b16 %v2659
      %v3103 = vunpack.c.l.b16 %v2660
      %v3104 = vunpack.c.l.b16 %v2661
      %v3105 = vunpack.c.l.b16 %v2662
      %v3106 = vunpack.c.l.b16 %v2663
      %v3107 = vunpack.c.l.b16 %v2664
      %v3108 = vunpack.c.l.b16 %v2665
      %v3109 = vunpack.c.l.b16 %v2666
      %v3110 = vunpack.c.l.b16 %v2667
      %v3111 = vunpack.c.l.b16 %v2668
      %v3112 = vunpack.c.l.b16 %v2669
      %v3113 = vunpack.c.l.b16 %v2670
      %v3114 = vunpack.c.l.b16 %v2671
      %v3115 = vunpack.c.l.b16 %v2672
      %v3116 = vunpack.c.l.b16 %v2673
      %v3117 = vunpack.c.l.b16 %v2674
      %v3118 = vunpack.c.l.b16 %v2675
      %v3119 = vunpack.c.l.b16 %v2676
      %v3120 = vunpack.c.l.b16 %v2677
      %v3121 = vunpack.c.l.b16 %v2678
      %v3122 = vunpack.c.l.b16 %v2679
      %v3123 = vunpack.c.l.b16 %v2680
      %v3124 = vunpack.c.l.b16 %v2681
      %v3125 = vunpack.c.l.b16 %v2682
      %v3126 = vunpack.c.l.b16 %v2683
      %v3127 = vunpack.c.l.b16 %v2684
      %v3128 = vunpack.c.l.b16 %v2685
      %v3129 = vunpack.c.l.b16 %v2686
      %v3130 = vunpack.c.l.b16 %v2687
      %v3131 = vunpack.c.l.b16 %v2688
      %v3132 = vunpack.c.l.b16 %v2689
      %v3133 = vunpack.c.l.b16 %v2690
      %v3134 = vunpack.c.l.b16 %v2691
      %v3135 = vunpack.c.l.b16 %v2692
      %v3136 = vunpack.c.l.b16 %v2693
      %v3137 = vunpack.c.l.b16 %v2694
      %v3138 = vunpack.c.l.b16 %v2695
      %v3139 = vunpack.c.l.b16 %v2696
      %v3140 = vunpack.c.l.b16 %v2697
      %v3141 = vunpack.c.l.b16 %v2698
      %v3142 = vunpack.c.l.b16 %v2699
      %v3143 = vunpack.c.l.b16 %v2700
      %v3144 = vunpack.c.l.b16 %v2701
      %v3145 = vunpack.c.l.b16 %v2702
      %v3146 = vunpack.c.l.b16 %v2703
      %v3147 = vunpack.c.l.b16 %v2704
      %v3148 = vunpack.c.l.b16 %v2705
      %v3149 = vunpack.c.l.b16 %v2706
      %v3150 = vunpack.c.l.b16 %v2707
      %v3151 = vunpack.c.l.b16 %v2708
      %v3152 = vunpack.c.l.b16 %v2709
      %v3153 = vunpack.c.l.b16 %v2710
      %v3154 = vunpack.c.l.b16 %v2711
      %v3155 = vunpack.c.l.b16 %v2712
      %v3156 = vunpack.c.l.b16 %v2713
      %v3157 = vunpack.c.l.b16 %v2714
      %v3158 = vunpack.c.l.b16 %v2715
      %v3159 = vunpack.c.l.b16 %v2716
      %v3160 = vunpack.c.l.b16 %v2717
      %v3161 = vunpack.c.l.b16 %v2718
      %v3162 = vunpack.c.l.b16 %v2719
      %v3163 = vunpack.c.l.b16 %v2720
      %v3164 = vunpack.c.l.b16 %v2721
      %v3165 = vunpack.c.l.b16 %v2722
      %v3166 = vunpack.c.l.b16 %v2723
      %v3167 = vunpack.c.l.b16 %v2724
      %v3168 = vunpack.c.l.b16 %v2725
      %v3169 = vunpack.c.l.b16 %v2726
      %v3170 = vunpack.c.l.b16 %v2727
      %v3171 = vunpack.c.l.b16 %v2728
      %v3172 = vunpack.c.l.b16 %v2729
      %v3173 = vunpack.c.l.b16 %v2730
      %v3174 = vunpack.c.l.b16 %v2731
      %v3175 = vunpack.c.l.b16 %v2732
      %v3176 = vunpack.c.l.b16 %v2733
      %v3177 = vunpack.c.l.b16 %v2734
      %v3178 = vunpack.c.l.b16 %v2735
      %v3179 = vunpack.c.l.b16 %v2736
      %v3180 = vunpack.c.l.b16 %v2737
      %v3181 = vunpack.c.l.b16 %v2738
      %v3182 = vunpack.c.l.b16 %v2739
      %v3183 = vunpack.c.l.b16 %v2740
      %v3184 = vunpack.c.l.b16 %v2741
      %v3185 = vunpack.c.l.b16 %v2742
      %v3186 = vunpack.c.l.b16 %v2743
      %v3187 = vunpack.c.l.b16 %v2744
      %v3188 = vunpack.c.l.b16 %v2745
      %v3189 = vunpack.c.l.b16 %v2746
      %v3190 = vunpack.c.l.b16 %v2747
      %v3191 = vunpack.c.l.b16 %v2748
      %v3192 = vunpack.c.l.b16 %v2749
      %v3193 = vunpack.c.l.b16 %v2750
      %v3194 = vunpack.c.l.b16 %v2751
      %v3195 = vunpack.c.l.b16 %v2752
      %v3196 = vunpack.c.l.b16 %v2753
      %v3197 = vunpack.c.l.b16 %v2754
      %v3198 = vunpack.c.l.b16 %v2755
      %v3199 = vunpack.c.l.b16 %v2756
      %v3200 = vunpack.c.l.b16 %v2757
      %v3201 = vunpack.c.l.b16 %v2758
      %v3202 = vunpack.c.l.b16 %v2759
      %v3203 = vunpack.c.l.b16 %v2760
      %v3204 = vunpack.c.l.b16 %v2761
      %v3205 = vunpack.c.l.b16 %v2762
      %v3206 = vunpack.c.l.b16 %v2763
      %v3207 = vunpack.c.l.b16 %v2764
      %v3208 = vunpack.c.l.b16 %v2765
      %v3209 = vunpack.c.l.b16 %v2766
      %v3210 = vunpack.c.l.b16 %v2767
      %v3211 = vunpack.c.l.b16 %v2768
      %v3212 = vunpack.c.l.b16 %v2769
      %v3213 = vunpack.c.l.b16 %v2770
      %v3214 = vunpack.c.l.b16 %v2771
      %v3215 = vunpack.c.l.b16 %v2772
      %v3216 = vpack.c.b16 %v3009, %v3008
      %v3217 = vpack.c.b16 %v3011, %v3010
      %v3218 = vpack.c.b16 %v3013, %v3012
      %v3219 = vpack.c.b16 %v3015, %v3014
      %v3220 = vpack.c.b16 %v3017, %v3016
      %v3221 = vpack.c.b16 %v3019, %v3018
      %v3222 = vpack.c.b16 %v3021, %v3020
      %v3223 = vpack.c.b16 %v3023, %v3022
      %v3224 = vpack.c.b16 %v3025, %v3024
      %v3225 = vpack.c.b16 %v3027, %v3026
      %v3226 = vpack.c.b16 %v3029, %v3028
      %v3227 = vpack.c.b16 %v3031, %v3030
      %v3228 = vpack.c.b16 %v3033, %v3032
      %v3229 = vpack.c.b16 %v3035, %v3034
      %v3230 = vpack.c.b16 %v3037, %v3036
      %v3231 = vpack.c.b16 %v3039, %v3038
      %v3232 = vpack.c.b16 %v3041, %v3040
      %v3233 = vpack.c.b16 %v3043, %v3042
      %v3234 = vpack.c.b16 %v3045, %v3044
      %v3235 = vpack.c.b16 %v3047, %v3046
      %v3236 = vpack.c.b16 %v3049, %v3048
      %v3237 = vpack.c.b16 %v3051, %v3050
      %v3238 = vpack.c.b16 %v3053, %v3052
      %v3239 = vpack.c.b16 %v3055, %v3054
      %v3240 = vpack.c.b16 %v3057, %v3056
      %v3241 = vpack.c.b16 %v3059, %v3058
      %v3242 = vpack.c.b16 %v3061, %v3060
      %v3243 = vpack.c.b16 %v3063, %v3062
      %v3244 = vpack.c.b16 %v3065, %v3064
      %v3245 = vpack.c.b16 %v3067, %v3066
      %v3246 = vpack.c.b16 %v3069, %v3068
      %v3247 = vpack.c.b16 %v3071, %v3070
      %v3248 = vpack.c.b16 %v3073, %v3072
      %v3249 = vpack.c.b16 %v3075, %v3074
      %v3250 = vpack.c.b16 %v3077, %v3076
      %v3251 = vpack.c.b16 %v3079, %v3078
      %v3252 = vpack.c.b16 %v3081, %v3080
      %v3253 = vpack.c.b16 %v3083, %v3082
      %v3254 = vpack.c.b16 %v3085, %v3084
      %v3255 = vpack.c.b16 %v3087, %v3086
      %v3256 = vpack.c.b16 %v3089, %v3088
      %v3257 = vpack.c.b16 %v3091, %v3090
      %v3258 = vpack.c.b16 %v3093, %v3092
      %v3259 = vpack.c.b16 %v3095, %v3094
      %v3260 = vpack.c.b16 %v3097, %v3096
      %v3261 = vpack.c.b16 %v3099, %v3098
      %v3262 = vpack.c.b16 %v3101, %v3100
      %v3263 = vpack.c.b16 %v3103, %v3102
      %v3264 = vpack.c.b16 %v3105, %v3104
      %v3265 = vpack.c.b16 %v3107, %v3106
      %v3266 = vpack.c.b16 %v3109, %v3108
      %v3267 = vpack.c.b16 %v3111, %v3110
      %v3268 = vpack.c.b16 %v3113, %v3112
      %v3269 = vpack.c.b16 %v3115, %v3114
      %v3270 = vpack.c.b16 %v3117, %v3116
      %v3271 = vpack.c.b16 %v3119, %v3118
      %v3272 = vpack.c.b16 %v3121, %v3120
      %v3273 = vpack.c.b16 %v3123, %v3122
      %v3274 = vpack.c.b16 %v3125, %v3124
      %v3275 = vpack.c.b16 %v3127, %v3126
      %v3276 = vpack.c.b16 %v3129, %v3128
      %v3277 = vpack.c.b16 %v3131, %v3130
      %v3278 = vpack.c.b16 %v3133, %v3132
      %v3279 = vpack.c.b16 %v3135, %v3134
      %v3280 = vpack.c.b16 %v3137, %v3136
      %v3281 = vpack.c.b16 %v3139, %v3138
      %v3282 = vpack.c.b16 %v3141, %v3140
      %v3283 = vpack.c.b16 %v3143, %v3142
      %v3284 = vpack.c.b16 %v3145, %v3144
      %v3285 = vpack.c.b16 %v3147, %v3146
      %v3286 = vpack.c.b16 %v3149, %v3148
      %v3287 = vpack.c.b16 %v3151, %v3150
      %v3288 = vpack.c.b16 %v3153, %v3152
      %v3289 = vpack.c.b16 %v3155, %v3154
      %v3290 = vpack.c.b16 %v3157, %v3156
      %v3291 = vpack.c.b16 %v3159, %v3158
      %v3292 = vpack.c.b16 %v3161, %v3160
      %v3293 = vpack.c.b16 %v3163, %v3162
      %v3294 = vpack.c.b16 %v3165, %v3164
      %v3295 = vpack.c.b16 %v3167, %v3166
      %v3296 = vpack.c.b16 %v3169, %v3168
      %v3297 = vpack.c.b16 %v3171, %v3170
      %v3298 = vpack.c.b16 %v3173, %v3172
      %v3299 = vpack.c.b16 %v3175, %v3174
      %v3300 = vpack.c.b16 %v3177, %v3176
      %v3301 = vpack.c.b16 %v3179, %v3178
      %v3302 = vpack.c.b16 %v3181, %v3180
      %v3303 = vpack.c.b16 %v3183, %v3182
      %v3304 = vpack.c.b16 %v3185, %v3184
      %v3305 = vpack.c.b16 %v3187, %v3186
      %v3306 = vpack.c.b16 %v3189, %v3188
      %v3307 = vpack.c.b16 %v3191, %v3190
      %v3308 = vpack.c.b16 %v3193, %v3192
      %v3309 = vpack.c.b16 %v3195, %v3194
      %v3310 = vpack.c.b16 %v3197, %v3196
      %v3311 = vpack.c.b16 %v3199, %v3198
      %v3312 = vpack.c.b16 %v3201, %v3200
      %v3313 = vpack.c.b16 %v3203, %v3202
      %v3314 = vpack.c.b16 %v3205, %v3204
      %v3315 = vpack.c.b16 %v3207, %v3206
      %v3316 = vpack.c.b16 %v3209, %v3208
      %v3317 = vpack.c.b16 %v3211, %v3210
      %v3318 = vpack.c.b16 %v3213, %v3212
      %v3319 = vpack.c.b16 %v3215, %v3214
      %3424 = vmatpush.bf16.msra.mxu0 %v3223
      %3425 = vmatpush.bf16.msra.mxu0 %v3222
      %3426 = vmatpush.bf16.msra.mxu0 %v3221
      %3427 = vmatpush.bf16.msra.mxu0 %v3220
      %3428 = vmatpush.bf16.msra.mxu0 %v3219
      %3429 = vmatpush.bf16.msra.mxu0 %v3218
      %3430 = vmatpush.bf16.msra.mxu0 %v3217
      %3431 = vmatpush.bf16.msra.mxu0 %v3216
      %3432 = vmatmul.bf16.gmra.mxu0 %v2539
      %v3433 = vpop.f32.mrf.mxu0
      %v3434 = vadd.f32 %v2791, %v3433
      %v3435 = vpop.f32.mrf.mxu0
      %v3436 = vadd.f32 %v2793, %v3435
      %3437 = vmatmul.bf16.gmra.mxu0 %v2552
      %v3438 = vpop.f32.mrf.mxu0
      %v3439 = vadd.f32 %v2796, %v3438
      %v3440 = vpop.f32.mrf.mxu0
      %v3441 = vadd.f32 %v2798, %v3440
      %3442 = vdwg.mxu0
      %3443 = vmatpush.bf16.msra.mxu0 %v3231
      %3444 = vmatpush.bf16.msra.mxu0 %v3230
      %3445 = vmatpush.bf16.msra.mxu0 %v3229
      %3446 = vmatpush.bf16.msra.mxu0 %v3228
      %3447 = vmatpush.bf16.msra.mxu0 %v3227
      %3448 = vmatpush.bf16.msra.mxu0 %v3226
      %3449 = vmatpush.bf16.msra.mxu0 %v3225
      %3450 = vmatpush.bf16.msra.mxu0 %v3224
      %3451 = vmatmul.bf16.gmra.mxu0 %v2540
      %v3452 = vpop.f32.mrf.mxu0
      %v3453 = vadd.f32 %v3434, %v3452
      %v3454 = vpop.f32.mrf.mxu0
      %v3455 = vadd.f32 %v3436, %v3454
      %3456 = vmatmul.bf16.gmra.mxu0 %v2553
      %v3457 = vpop.f32.mrf.mxu0
      %v3458 = vadd.f32 %v3439, %v3457
      %v3459 = vpop.f32.mrf.mxu0
      %v3460 = vadd.f32 %v3441, %v3459
      %3461 = vdwg.mxu0
      %3462 = vmatpush.bf16.msra.mxu0 %v3239
      %3463 = vmatpush.bf16.msra.mxu0 %v3238
      %3464 = vmatpush.bf16.msra.mxu0 %v3237
      %3465 = vmatpush.bf16.msra.mxu0 %v3236
      %3466 = vmatpush.bf16.msra.mxu0 %v3235
      %3467 = vmatpush.bf16.msra.mxu0 %v3234
      %3468 = vmatpush.bf16.msra.mxu0 %v3233
      %3469 = vmatpush.bf16.msra.mxu0 %v3232
      %3470 = vmatmul.bf16.gmra.mxu0 %v2541
      %v3471 = vpop.f32.mrf.mxu0
      %v3472 = vadd.f32 %v3453, %v3471
      %v3473 = vpop.f32.mrf.mxu0
      %v3474 = vadd.f32 %v3455, %v3473
      %3475 = vmatmul.bf16.gmra.mxu0 %v2554
      %v3476 = vpop.f32.mrf.mxu0
      %v3477 = vadd.f32 %v3458, %v3476
      %v3478 = vpop.f32.mrf.mxu0
      %v3479 = vadd.f32 %v3460, %v3478
      %3480 = vdwg.mxu0
      %3481 = vmatpush.bf16.msra.mxu0 %v3247
      %3482 = vmatpush.bf16.msra.mxu0 %v3246
      %3483 = vmatpush.bf16.msra.mxu0 %v3245
      %3484 = vmatpush.bf16.msra.mxu0 %v3244
      %3485 = vmatpush.bf16.msra.mxu0 %v3243
      %3486 = vmatpush.bf16.msra.mxu0 %v3242
      %3487 = vmatpush.bf16.msra.mxu0 %v3241
      %3488 = vmatpush.bf16.msra.mxu0 %v3240
      %3489 = vmatmul.bf16.gmra.mxu0 %v2542
      %v3490 = vpop.f32.mrf.mxu0
      %v3491 = vadd.f32 %v3472, %v3490
      %v3492 = vpop.f32.mrf.mxu0
      %v3493 = vadd.f32 %v3474, %v3492
      %3494 = vmatmul.bf16.gmra.mxu0 %v2555
      %v3495 = vpop.f32.mrf.mxu0
      %v3496 = vadd.f32 %v3477, %v3495
      %v3497 = vpop.f32.mrf.mxu0
      %v3498 = vadd.f32 %v3479, %v3497
      %3499 = vdwg.mxu0
      %3500 = vmatpush.bf16.msra.mxu0 %v3255
      %3501 = vmatpush.bf16.msra.mxu0 %v3254
      %3502 = vmatpush.bf16.msra.mxu0 %v3253
      %3503 = vmatpush.bf16.msra.mxu0 %v3252
      %3504 = vmatpush.bf16.msra.mxu0 %v3251
      %3505 = vmatpush.bf16.msra.mxu0 %v3250
      %3506 = vmatpush.bf16.msra.mxu0 %v3249
      %3507 = vmatpush.bf16.msra.mxu0 %v3248
      %3508 = vmatmul.bf16.gmra.mxu0 %v2543
      %v3509 = vpop.f32.mrf.mxu0
      %v3510 = vadd.f32 %v3491, %v3509
      %v3511 = vpop.f32.mrf.mxu0
      %v3512 = vadd.f32 %v3493, %v3511
      %3513 = vmatmul.bf16.gmra.mxu0 %v2556
      %v3514 = vpop.f32.mrf.mxu0
      %v3515 = vadd.f32 %v3496, %v3514
      %v3516 = vpop.f32.mrf.mxu0
      %v3517 = vadd.f32 %v3498, %v3516
      %3518 = vdwg.mxu0
      %3519 = vmatpush.bf16.msra.mxu0 %v3263
      %3520 = vmatpush.bf16.msra.mxu0 %v3262
      %3521 = vmatpush.bf16.msra.mxu0 %v3261
      %3522 = vmatpush.bf16.msra.mxu0 %v3260
      %3523 = vmatpush.bf16.msra.mxu0 %v3259
      %3524 = vmatpush.bf16.msra.mxu0 %v3258
      %3525 = vmatpush.bf16.msra.mxu0 %v3257
      %3526 = vmatpush.bf16.msra.mxu0 %v3256
      %3527 = vmatmul.bf16.gmra.mxu0 %v2544
      %v3528 = vpop.f32.mrf.mxu0
      %v3529 = vadd.f32 %v3510, %v3528
      %v3530 = vpop.f32.mrf.mxu0
      %v3531 = vadd.f32 %v3512, %v3530
      %3532 = vmatmul.bf16.gmra.mxu0 %v2557
      %v3533 = vpop.f32.mrf.mxu0
      %v3534 = vadd.f32 %v3515, %v3533
      %v3535 = vpop.f32.mrf.mxu0
      %v3536 = vadd.f32 %v3517, %v3535
      %3537 = vdwg.mxu0
      %3538 = vmatpush.bf16.msra.mxu0 %v3271
      %3539 = vmatpush.bf16.msra.mxu0 %v3270
      %3540 = vmatpush.bf16.msra.mxu0 %v3269
      %3541 = vmatpush.bf16.msra.mxu0 %v3268
      %3542 = vmatpush.bf16.msra.mxu0 %v3267
      %3543 = vmatpush.bf16.msra.mxu0 %v3266
      %3544 = vmatpush.bf16.msra.mxu0 %v3265
      %3545 = vmatpush.bf16.msra.mxu0 %v3264
      %3546 = vmatmul.bf16.gmra.mxu0 %v2545
      %v3547 = vpop.f32.mrf.mxu0
      %v3548 = vadd.f32 %v3529, %v3547
      %v3549 = vpop.f32.mrf.mxu0
      %v3550 = vadd.f32 %v3531, %v3549
      %3551 = vmatmul.bf16.gmra.mxu0 %v2558
      %v3552 = vpop.f32.mrf.mxu0
      %v3553 = vadd.f32 %v3534, %v3552
      %v3554 = vpop.f32.mrf.mxu0
      %v3555 = vadd.f32 %v3536, %v3554
      %3556 = vdwg.mxu0
      %3557 = vmatpush.bf16.msra.mxu0 %v3279
      %3558 = vmatpush.bf16.msra.mxu0 %v3278
      %3559 = vmatpush.bf16.msra.mxu0 %v3277
      %3560 = vmatpush.bf16.msra.mxu0 %v3276
      %3561 = vmatpush.bf16.msra.mxu0 %v3275
      %3562 = vmatpush.bf16.msra.mxu0 %v3274
      %3563 = vmatpush.bf16.msra.mxu0 %v3273
      %3564 = vmatpush.bf16.msra.mxu0 %v3272
      %3565 = vmatmul.bf16.gmra.mxu0 %v2546
      %v3566 = vpop.f32.mrf.mxu0
      %v3567 = vadd.f32 %v3548, %v3566
      %v3568 = vpop.f32.mrf.mxu0
      %v3569 = vadd.f32 %v3550, %v3568
      %3570 = vmatmul.bf16.gmra.mxu0 %v2559
      %v3571 = vpop.f32.mrf.mxu0
      %v3572 = vadd.f32 %v3553, %v3571
      %v3573 = vpop.f32.mrf.mxu0
      %v3574 = vadd.f32 %v3555, %v3573
      %3575 = vdwg.mxu0
      %3576 = vmatpush.bf16.msra.mxu0 %v3287
      %3577 = vmatpush.bf16.msra.mxu0 %v3286
      %3578 = vmatpush.bf16.msra.mxu0 %v3285
      %3579 = vmatpush.bf16.msra.mxu0 %v3284
      %3580 = vmatpush.bf16.msra.mxu0 %v3283
      %3581 = vmatpush.bf16.msra.mxu0 %v3282
      %3582 = vmatpush.bf16.msra.mxu0 %v3281
      %3583 = vmatpush.bf16.msra.mxu0 %v3280
      %3584 = vmatmul.bf16.gmra.mxu0 %v2547
      %v3585 = vpop.f32.mrf.mxu0
      %v3586 = vadd.f32 %v3567, %v3585
      %v3587 = vpop.f32.mrf.mxu0
      %v3588 = vadd.f32 %v3569, %v3587
      %3589 = vmatmul.bf16.gmra.mxu0 %v2560
      %v3590 = vpop.f32.mrf.mxu0
      %v3591 = vadd.f32 %v3572, %v3590
      %v3592 = vpop.f32.mrf.mxu0
      %v3593 = vadd.f32 %v3574, %v3592
      %3594 = vdwg.mxu0
      %3595 = vmatpush.bf16.msra.mxu0 %v3295
      %3596 = vmatpush.bf16.msra.mxu0 %v3294
      %3597 = vmatpush.bf16.msra.mxu0 %v3293
      %3598 = vmatpush.bf16.msra.mxu0 %v3292
      %3599 = vmatpush.bf16.msra.mxu0 %v3291
      %3600 = vmatpush.bf16.msra.mxu0 %v3290
      %3601 = vmatpush.bf16.msra.mxu0 %v3289
      %3602 = vmatpush.bf16.msra.mxu0 %v3288
      %3603 = vmatmul.bf16.gmra.mxu0 %v2548
      %v3604 = vpop.f32.mrf.mxu0
      %v3605 = vadd.f32 %v3586, %v3604
      %v3606 = vpop.f32.mrf.mxu0
      %v3607 = vadd.f32 %v3588, %v3606
      %3608 = vmatmul.bf16.gmra.mxu0 %v2561
      %v3609 = vpop.f32.mrf.mxu0
      %v3610 = vadd.f32 %v3591, %v3609
      %v3611 = vpop.f32.mrf.mxu0
      %v3612 = vadd.f32 %v3593, %v3611
      %3613 = vdwg.mxu0
      %3614 = vmatpush.bf16.msra.mxu0 %v3303
      %3615 = vmatpush.bf16.msra.mxu0 %v3302
      %3616 = vmatpush.bf16.msra.mxu0 %v3301
      %3617 = vmatpush.bf16.msra.mxu0 %v3300
      %3618 = vmatpush.bf16.msra.mxu0 %v3299
      %3619 = vmatpush.bf16.msra.mxu0 %v3298
      %3620 = vmatpush.bf16.msra.mxu0 %v3297
      %3621 = vmatpush.bf16.msra.mxu0 %v3296
      %3622 = vmatmul.bf16.gmra.mxu0 %v2549
      %v3623 = vpop.f32.mrf.mxu0
      %v3624 = vadd.f32 %v3605, %v3623
      %v3625 = vpop.f32.mrf.mxu0
      %v3626 = vadd.f32 %v3607, %v3625
      %3627 = vmatmul.bf16.gmra.mxu0 %v2562
      %v3628 = vpop.f32.mrf.mxu0
      %v3629 = vadd.f32 %v3610, %v3628
      %v3630 = vpop.f32.mrf.mxu0
      %v3631 = vadd.f32 %v3612, %v3630
      %3632 = vdwg.mxu0
      %3633 = vmatpush.bf16.msra.mxu0 %v3311
      %3634 = vmatpush.bf16.msra.mxu0 %v3310
      %3635 = vmatpush.bf16.msra.mxu0 %v3309
      %3636 = vmatpush.bf16.msra.mxu0 %v3308
      %3637 = vmatpush.bf16.msra.mxu0 %v3307
      %3638 = vmatpush.bf16.msra.mxu0 %v3306
      %3639 = vmatpush.bf16.msra.mxu0 %v3305
      %3640 = vmatpush.bf16.msra.mxu0 %v3304
      %3641 = vmatmul.bf16.gmra.mxu0 %v2550
      %v3642 = vpop.f32.mrf.mxu0
      %v3643 = vadd.f32 %v3624, %v3642
      %v3644 = vpop.f32.mrf.mxu0
      %v3645 = vadd.f32 %v3626, %v3644
      %3646 = vmatmul.bf16.gmra.mxu0 %v2563
      %v3647 = vpop.f32.mrf.mxu0
      %v3648 = vadd.f32 %v3629, %v3647
      %v3649 = vpop.f32.mrf.mxu0
      %v3650 = vadd.f32 %v3631, %v3649
      %3651 = vdwg.mxu0
      %3652 = vmatpush.bf16.msra.mxu0 %v3319
      %3653 = vmatpush.bf16.msra.mxu0 %v3318
      %3654 = vmatpush.bf16.msra.mxu0 %v3317
      %3655 = vmatpush.bf16.msra.mxu0 %v3316
      %3656 = vmatpush.bf16.msra.mxu0 %v3315
      %3657 = vmatpush.bf16.msra.mxu0 %v3314
      %3658 = vmatpush.bf16.msra.mxu0 %v3313
      %3659 = vmatpush.bf16.msra.mxu0 %v3312
      %3660 = vmatmul.bf16.gmra.mxu0 %v2551
      %v3661 = vpop.f32.mrf.mxu0
      %v3662 = vadd.f32 %v3643, %v3661
      %v3663 = vpop.f32.mrf.mxu0
      %v3664 = vadd.f32 %v3645, %v3663
      %3665 = vmatmul.bf16.gmra.mxu0 %v2564
      %v3666 = vpop.f32.mrf.mxu0
      %v3667 = vadd.f32 %v3648, %v3666
      %v3668 = vpop.f32.mrf.mxu0
      %v3669 = vadd.f32 %v3650, %v3668
      %3670 = vdwg.mxu0
      %v3671 = vld [vmem:[%s13] sm:$0x1]
      %v3673 = vperm.slane %v3671, 0
      %v3675 = vadd.f32 %v3662, %v3673
      %v3676 = vadd.f32 %v3664, %v3673
      %v3677 = vadd.f32 %v3667, %v3673
      %v3678 = vadd.f32 %v3669, %v3673
      %v3679 = vmax.f32 %v3675, 0.0
      %v3680 = vmax.f32 %v3676, 0.0
      %v3681 = vmax.f32 %v3677, 0.0
      %v3682 = vmax.f32 %v3678, 0.0
      %v3683 = vpack.c.bf16 %v3680, %v3679
      %v3684 = vpack.c.bf16 %v3682, %v3681
      %v3685 = vld [vmem:[%s14] sm:$0xf]
      %v3686 = vld [vmem:[%s14 + $0x4] sm:$0xf]
      %v3687 = vld [vmem:[%s14 + $0x8] sm:$0xf]
      %v3688 = vld [vmem:[%s14 + $0xc] sm:$0xf]
      %v3689 = vld [vmem:[%s14 + $0x10] sm:$0xf]
      %v3690 = vld [vmem:[%s14 + $0x14] sm:$0xf]
      %v3691 = vld [vmem:[%s14 + $0x18] sm:$0xf]
      %v3692 = vld [vmem:[%s14 + $0x1c] sm:$0xf]
      %v3693 = vld [vmem:[%s15] sm:$0x1]
      %v3695 = vperm.slane %v3693, 0
      %v3705 = vunpack.c.l.b16 %v3685
      %v3706 = vunpack.c.l.b16 %v3686
      %v3707 = vunpack.c.l.b16 %v3687
      %v3708 = vunpack.c.l.b16 %v3688
      %v3709 = vunpack.c.l.b16 %v3689
      %v3710 = vunpack.c.l.b16 %v3690
      %v3711 = vunpack.c.l.b16 %v3691
      %v3712 = vunpack.c.l.b16 %v3692
      %v3713 = vpack.c.b16 %v3706, %v3705
      %v3714 = vpack.c.b16 %v3708, %v3707
      %v3715 = vpack.c.b16 %v3710, %v3709
      %v3716 = vpack.c.b16 %v3712, %v3711
      %vm3721 = vcmask 523264
      %v3723 = vsel %vm3721, %v3683, 0
      %v3726 = vsel %vm3721, %v3684, 0
      %3728 = vmatpush.bf16.msra.mxu0 0
      %3729 = vmatpush.bf16.msra.mxu0 0
      %3730 = vmatpush.bf16.msra.mxu0 0
      %3731 = vmatpush.bf16.msra.mxu0 0
      %3732 = vmatpush.bf16.msra.mxu0 %v3716
      %3733 = vmatpush.bf16.msra.mxu0 %v3715
      %3734 = vmatpush.bf16.msra.mxu0 %v3714
      %3735 = vmatpush.bf16.msra.mxu0 %v3713
      %3736 = vmatmul.bf16.gmra.mxu0 %v3723
      %v3737 = vpop.f32.mrf.mxu0
      %v3738 = vadd.f32 %v3695, %v3737
      %v3739 = vpop.f32.mrf.mxu0
      %v3740 = vadd.f32 %v3695, %v3739
      %3741 = vmatmul.bf16.gmra.mxu0 %v3726
      %v3742 = vpop.f32.mrf.mxu0
      %v3743 = vadd.f32 %v3695, %v3742
      %v3744 = vpop.f32.mrf.mxu0
      %v3745 = vadd.f32 %v3695, %v3744
      %3746 = vdwg.mxu0
      %v3747 = vmax.f32 %v3738, 0.0
      %v3748 = vmax.f32 %v3740, 0.0
      %v3749 = vmax.f32 %v3743, 0.0
      %v3750 = vmax.f32 %v3745, 0.0
      %v3751 = vpack.c.bf16 %v3748, %v3747
      %v3752 = vpack.c.bf16 %v3750, %v3749
      %v3753 = vld [vmem:[%s16] sm:$0xf]
      %v3754 = vld [vmem:[%s16 + $0x4] sm:$0xf]
      %v3755 = vld [vmem:[%s16 + $0x8] sm:$0xf]
      %v3756 = vld [vmem:[%s16 + $0xc] sm:$0xf]
      %v3757 = vld [vmem:[%s17] sm:$0x1]
      %v3759 = vperm.slane %v3757, 0
      %v3765 = vunpack.c.l.b16 %v3753
      %v3766 = vunpack.c.l.b16 %v3754
      %v3767 = vunpack.c.l.b16 %v3755
      %v3768 = vunpack.c.l.b16 %v3756
      %v3769 = vpack.c.b16 %v3766, %v3765
      %v3770 = vpack.c.b16 %v3768, %v3767
      %v3774 = vsel %vm667, %v3751, 0
      %v3777 = vsel %vm667, %v3752, 0
      %3779 = vmatpush.bf16.msra.mxu0 0
      %3780 = vmatpush.bf16.msra.mxu0 0
      %3781 = vmatpush.bf16.msra.mxu0 0
      %3782 = vmatpush.bf16.msra.mxu0 0
      %3783 = vmatpush.bf16.msra.mxu0 0
      %3784 = vmatpush.bf16.msra.mxu0 0
      %3785 = vmatpush.bf16.msra.mxu0 %v3770
      %3786 = vmatpush.bf16.msra.mxu0 %v3769
      %3787 = vmatmul.bf16.gmra.mxu0 %v3774
      %v3788 = vpop.f32.mrf.mxu0
      %v3789 = vadd.f32 %v3759, %v3788
      %v3790 = vpop.f32.mrf.mxu0
      %v3791 = vadd.f32 %v3759, %v3790
      %3792 = vmatmul.bf16.gmra.mxu0 %v3777
      %v3793 = vpop.f32.mrf.mxu0
      %v3794 = vadd.f32 %v3759, %v3793
      %v3795 = vpop.f32.mrf.mxu0
      %v3796 = vadd.f32 %v3759, %v3795
      %3797 = vdwg.mxu0
      %3798 = vxpose.xlu0.b32.start [1/16] %v3789, 128
      %3799 = vxpose.xlu0.b32.cont [2/16] %v3791, 128
      %3800 = vxpose.xlu0.b32.cont [3/16] %v3794, 128
      %3801 = vxpose.xlu0.b32.cont [4/16] %v3796, 128
      %3802 = vxpose.xlu0.b32.cont [5/16] 0.0, 128
      %3803 = vxpose.xlu0.b32.cont [6/16] 0.0, 128
      %3804 = vxpose.xlu0.b32.cont [7/16] 0.0, 128
      %3805 = vxpose.xlu0.b32.cont [8/16] 0.0, 128
      %3806 = vxpose.xlu0.b32.cont [9/16] 0.0, 128
      %3807 = vxpose.xlu0.b32.cont [10/16] 0.0, 128
      %3808 = vxpose.xlu0.b32.cont [11/16] 0.0, 128
      %3809 = vxpose.xlu0.b32.cont [12/16] 0.0, 128
      %3810 = vxpose.xlu0.b32.cont [13/16] 0.0, 128
      %3811 = vxpose.xlu0.b32.cont [14/16] 0.0, 128
      %3812 = vxpose.xlu0.b32.cont [15/16] 0.0, 128
      %3813 = vxpose.xlu0.b32.end [16/16] 0.0, 128
      %v3814 = vpop.trf.xlu0
      %v3815 = vpop.trf.xlu0
      %v3816 = vpop.trf.xlu0
      %v3817 = vpop.trf.xlu0
      %v3818 = vpop.trf.xlu0
      %v3819 = vpop.trf.xlu0
      %v3820 = vpop.trf.xlu0
      %v3821 = vpop.trf.xlu0
      %v3822 = vpop.trf.xlu0
      %v3823 = vpop.trf.xlu0
      %v3824 = vpop.trf.xlu0
      %v3825 = vpop.trf.xlu0
      %v3826 = vpop.trf.xlu0
      %v3827 = vpop.trf.xlu0
      %v3828 = vpop.trf.xlu0
      %v3829 = vpop.trf.xlu0
      %vm3830 = vcmask 253952
      %3831 = vst.msk [vmem:[%s595] sm:$0x1] %vm3830, %v3814
      %p3832 = scmp.lt.s32.totalorder %s29, 1
      %s3833 = scalar_select %p3832, %s29, 1
      %s3834 = scalar_lea.vmem %s18, %s3833
      // Predicated region
      $region93: #{dlrm_forward.1} parent=91 // pred_check
        %p3835 = pneg %p435
      $region94: #{dlrm_forward.1} parent=91 // pred_check_branch
        %3837 = sbr.rel (%p3835) target = $region96
      $region95: #{dlrm_forward.1} parent=91 // pred_region
        _
      $region96: #{dlrm_forward.1} parent=91 // pred_fallthru
        _
    $region92: #{dlrm_forward.1} parent=5 // pred_fallthru
      _
    %p3838 = scmp.le.s32.totalorder 2, %s24
    // Predicated region
    $region97: #{dlrm_forward.1} parent=5 // pred_check
      %p3839 = pneg %p3838
    $region98: #{dlrm_forward.1} parent=5 // pred_check_branch
      %3841 = sbr.rel (%p3839) target = $region100
    $region99: #{dlrm_forward.1} parent=5 // pred_region
      %s3842 = ssub.s32 %s24, 2
      // Predicated region
      $region101: #{dlrm_forward.1} parent=99 // pred_check
        %p3843 = pneg %p441
      $region102: #{dlrm_forward.1} parent=99 // pred_check_branch
        %3845 = sbr.rel (%p3843) target = $region104
      $region103: #{dlrm_forward.1} parent=99 // pred_region
        %p3846 = scmp.lt.s32.totalorder %s30, 1
        %s3847 = scalar_select %p3846, %s30, 1
        %s3848 = scalar_lea.vmem %s18, %s3847
      $region104: #{dlrm_forward.1} parent=99 // pred_fallthru
        _
    $region100: #{dlrm_forward.1} parent=5 // pred_fallthru
      _
  $region6: #{dlrm_forward.1} parent=0 // loop_footer
    %s28 = sadd.s32 1, %s24
  $region7: #{dlrm_forward.1} parent=0 // loop_footer_branch
    %23 = sbr.rel target = $region3
  $region8: #{dlrm_forward.1} parent=0 // loop_exit
    _

</llo_original>
